<compile_context>
chip_gen: v7x
topology: tpu7x:2x2x1
jax: 0.10.0
libtpu: 0.0.40
codegen_flags: <defaults>
</compile_context>

<pallas_src>
import functools

import jax
import jax.numpy as jnp
from jax.experimental import pallas as pl
from jax.experimental.pallas import tpu as pltpu


# ----------------------------- Pallas kernels ------------------------------ #

def _l1_matmul_bn_relu_kernel(x_ref, w_ref, g_ref, b_ref, o_ref, *, cout, taps):
    """Layer 1: Y(N, taps*Cout) = Z(N, Cin) @ W + fused BN(batch stats)+ReLU.

    Output columns are (kh, kw, o) spatial-major, so per-channel statistics
    are accumulated over `taps` lane-aligned column blocks and the N rows.
    """
    y = jnp.dot(x_ref[...], w_ref[...], preferred_element_type=jnp.float32)
    n = y.shape[0]
    s = jnp.zeros((1, cout), jnp.float32)
    ss = jnp.zeros((1, cout), jnp.float32)
    for t in range(taps):
        blk = y[:, t * cout:(t + 1) * cout]
        s = s + jnp.sum(blk, axis=0, keepdims=True)
        ss = ss + jnp.sum(blk * blk, axis=0, keepdims=True)
    cnt = float(taps * n)
    mean = s / cnt
    var = ss / cnt - mean * mean                 # one-pass biased variance
    inv = jax.lax.rsqrt(var + 1e-5)
    scale = g_ref[...] * inv
    shift = b_ref[...] - mean * scale
    for t in range(taps):
        blk = y[:, t * cout:(t + 1) * cout]
        o_ref[:, t * cout:(t + 1) * cout] = jnp.maximum(
            blk * scale + shift, 0.0).astype(o_ref.dtype)


def _subpix_matmul_bn_relu_kernel(x_ref, w_ref, g_ref, b_ref, o_ref, *, cp):
    """Sub-pixel deconv matmul + fused BatchNorm(batch stats)+ReLU.

    x_ref: (9*Cin, M) bf16, w_ref: (4*cp, 9*Cin) bf16, g/b: (cp, 1) f32.
    The 4 row-blocks of the output are the output-pixel phases; per-channel
    statistics reduce over all 4 phase blocks and all M columns.
    """
    y = jnp.dot(w_ref[...], x_ref[...], preferred_element_type=jnp.float32)
    m = y.shape[1]
    s = jnp.zeros((cp, 1), jnp.float32)
    ss = jnp.zeros((cp, 1), jnp.float32)
    for p in range(4):
        blk = y[p * cp:(p + 1) * cp]
        s = s + jnp.sum(blk, axis=1, keepdims=True)
        ss = ss + jnp.sum(blk * blk, axis=1, keepdims=True)
    cnt = float(4 * m)
    mean = s / cnt
    var = ss / cnt - mean * mean                 # one-pass biased variance
    inv = jax.lax.rsqrt(var + 1e-5)
    scale = g_ref[...] * inv
    shift = b_ref[...] - mean * scale
    for p in range(4):
        blk = y[p * cp:(p + 1) * cp]
        o_ref[p * cp:(p + 1) * cp, :] = jnp.maximum(
            blk * scale + shift, 0.0).astype(o_ref.dtype)


def _subpix_matmul_bias_tanh_kernel(x_ref, w_ref, b_ref, o_ref):
    """Sub-pixel deconv matmul + bias + Tanh (final layer, M-tiled)."""
    y = jnp.dot(w_ref[...], x_ref[...], preferred_element_type=jnp.float32)
    o_ref[...] = jnp.tanh(y + b_ref[...]).astype(o_ref.dtype)


# ------------------------------- Glue (JAX) -------------------------------- #

def _round_up(x, m):
    return ((x + m - 1) // m) * m


def _pick_m_tile(m, target=1024):
    """Largest multiple of 128 <= target that divides m (else full m)."""
    if m <= target:
        return m
    for t in range(target, 127, -128):
        if m % t == 0:
            return t
    return m


def _vmem_limit(*byte_counts):
    """Derive a scoped-VMEM limit from the actual block sizes (+headroom)."""
    need = int(sum(byte_counts))
    return int(min(max(4 * need, 8 * 1024 * 1024), 48 * 1024 * 1024))


# (phase, row-shift) -> kernel-tap row index, for k=4, stride=2, pad=1:
#   oh = 2r+ph uses x[r+d] * w[kh] with kh = 2(r-ih)+ph+1, d = ih-r.
_KH_OF = {(0, 0): 1, (0, -1): 3, (1, 0): 2, (1, 1): 0}


def _subpixel_inputs(h_cm):
    """9-shift tap stack for a k=4,s=2,p=1 ConvTranspose (no zero insertion).

    h_cm: (Cin, N, H, W) bf16 channel-major activation.
    Returns (9*Cin, M) with M = N*H*W; column m = (n, r, c) row-major.
    """
    cin, n, h, w = h_cm.shape
    m = n * h * w
    xp = jnp.pad(h_cm, ((0, 0), (0, 0), (1, 1), (1, 1)))
    taps = [xp[:, :, 1 + d:1 + d + h, 1 + e:1 + e + w].reshape(cin, m)
            for d in (-1, 0, 1) for e in (-1, 0, 1)]
    return jnp.concatenate(taps, axis=0)


def _subpixel_weights(w_t, cp):
    """Phase-stacked weights (4*cp, 9*Cin) for a k=4,s=2,p=1 ConvTranspose.

    w_t: (Cin, Cout, 4, 4) PyTorch ConvTranspose2d layout.  Row block
    p = ph*2+pw holds the weights for output phase (ph, pw); column block
    t = (d+1)*3 + (e+1) matches the tap order of _subpixel_inputs.  Taps a
    phase does not use get zero weights.
    """
    cin, cout, k, _ = w_t.shape
    assert k == 4
    zero = jnp.zeros((cp, cin), w_t.dtype)
    rows = []
    for ph in range(2):
        for pw in range(2):
            blks = []
            for d in (-1, 0, 1):
                for e in (-1, 0, 1):
                    kh = _KH_OF.get((ph, d))
                    kw = _KH_OF.get((pw, e))
                    if kh is None or kw is None:
                        blks.append(zero)
                    else:
                        wb = w_t[:, :, kh, kw].T                   # (Cout, Cin)
                        if cp != cout:
                            wb = jnp.pad(wb, ((0, cp - cout), (0, 0)))
                        blks.append(wb)
            rows.append(jnp.concatenate(blks, axis=1))             # (cp, 9*Cin)
    return jnp.concatenate(rows, axis=0)                           # (4cp, 9Cin)


def _pixel_shuffle(y_all, cp, cout, n, h, w):
    """Phase-stacked (4*cp, N*H*W) -> channel-major image (Cout, N, 2H, 2W)."""
    y = y_all.reshape(2, 2, cp, n, h, w)[:, :, :cout]   # [ph, pw, o, n, r, c]
    return jnp.transpose(y, (2, 3, 4, 0, 5, 1)).reshape(cout, n, 2 * h, 2 * w)


def input_layer(z, w_t, gamma, beta):
    """ConvTranspose2d(k=4, s=1, p=0) on a 1x1 input + BN + ReLU.

    z: (N, Cin).  Returns channel-major (Cout, N, 4, 4).
    """
    cin, cout, k, _ = w_t.shape
    n = z.shape[0]
    taps = k * k
    w1 = jnp.transpose(w_t, (0, 2, 3, 1)).reshape(cin, taps * cout)
    w1 = w1.astype(jnp.bfloat16)
    g = gamma.astype(jnp.float32).reshape(1, cout)
    b = beta.astype(jnp.float32).reshape(1, cout)
    kern = functools.partial(_l1_matmul_bn_relu_kernel, cout=cout, taps=taps)
    vmem = _vmem_limit(n * cin * 2, cin * taps * cout * 2,
                       n * taps * cout * 2, 2 * cout * 4)
    y = pl.pallas_call(
        kern,
        out_shape=jax.ShapeDtypeStruct((n, taps * cout), jnp.bfloat16),
        grid_spec=pltpu.PrefetchScalarGridSpec(
            num_scalar_prefetch=0,
            grid=(1,),
            in_specs=[pl.BlockSpec((n, cin), lambda i: (0, 0)),
                      pl.BlockSpec((cin, taps * cout), lambda i: (0, 0)),
                      pl.BlockSpec((1, cout), lambda i: (0, 0)),
                      pl.BlockSpec((1, cout), lambda i: (0, 0))],
            out_specs=pl.BlockSpec((n, taps * cout), lambda i: (0, 0))),
        compiler_params=pltpu.CompilerParams(
            dimension_semantics=("arbitrary",), vmem_limit_bytes=vmem),
    )(z.astype(jnp.bfloat16), w1, g, b)
    # columns are (kh, kw, o) -> channel-major image
    return jnp.transpose(y.reshape(n, k, k, cout), (3, 0, 1, 2))


def upsample_bn_relu_layer(h_cm, w_t, gamma, beta):
    """Fused sub-pixel ConvTranspose2d(4,2,1) + BN + ReLU, channel-major io."""
    cin, n, h, w = h_cm.shape
    _, cout, k, _ = w_t.shape
    assert k == 4
    m = n * h * w
    cp = _round_up(cout, 8)
    kdim = 9 * cin
    x_big = _subpixel_inputs(h_cm.astype(jnp.bfloat16))
    w_all = _subpixel_weights(w_t, cp).astype(jnp.bfloat16)
    g = jnp.pad(gamma.astype(jnp.float32), (0, cp - cout)).reshape(cp, 1)
    b = jnp.pad(beta.astype(jnp.float32), (0, cp - cout)).reshape(cp, 1)
    kern = functools.partial(_subpix_matmul_bn_relu_kernel, cp=cp)
    vmem = _vmem_limit(kdim * m * 2, 4 * cp * kdim * 2, 4 * cp * m * 2,
                       2 * cp * 4)
    # Batch statistics need the full M axis in one block; after the sub-pixel
    # refactor this block is tiny at these sizes, so grid=(1,) is fine.
    y_all = pl.pallas_call(
        kern,
        out_shape=jax.ShapeDtypeStruct((4 * cp, m), jnp.bfloat16),
        grid_spec=pltpu.PrefetchScalarGridSpec(
            num_scalar_prefetch=0,
            grid=(1,),
            in_specs=[pl.BlockSpec((kdim, m), lambda i: (0, 0)),
                      pl.BlockSpec((4 * cp, kdim), lambda i: (0, 0)),
                      pl.BlockSpec((cp, 1), lambda i: (0, 0)),
                      pl.BlockSpec((cp, 1), lambda i: (0, 0))],
            out_specs=pl.BlockSpec((4 * cp, m), lambda i: (0, 0))),
        compiler_params=pltpu.CompilerParams(
            dimension_semantics=("arbitrary",), vmem_limit_bytes=vmem),
    )(x_big, w_all, g, b)
    return _pixel_shuffle(y_all, cp, cout, n, h, w)


def upsample_bias_tanh_layer(h_cm, w_t, bias, *, m_tile_target=1024):
    """Fused sub-pixel ConvTranspose2d(4,2,1) + bias + Tanh (final layer)."""
    cin, n, h, w = h_cm.shape
    _, cout, k, _ = w_t.shape
    assert k == 4
    m = n * h * w
    cp = _round_up(cout, 8)
    kdim = 9 * cin
    x_big = _subpixel_inputs(h_cm.astype(jnp.bfloat16))
    w_all = _subpixel_weights(w_t, cp).astype(jnp.bfloat16)
    b = jnp.pad(bias.astype(jnp.float32), (0, cp - cout))
    b = jnp.tile(b, 4).reshape(4 * cp, 1)          # per (phase, channel) row

    # Elementwise epilogue -> tile M into lane-dense blocks on a parallel grid
    # (>=2 steps at default sizes so v7x can use both TensorCores).
    mt = _pick_m_tile(m, m_tile_target)
    grid = (m // mt,)
    vmem = _vmem_limit(2 * kdim * mt * 2, 4 * cp * kdim * 2,
                       2 * 4 * cp * mt * 4, 4 * cp * 4)
    y_all = pl.pallas_call(
        _subpix_matmul_bias_tanh_kernel,
        out_shape=jax.ShapeDtypeStruct((4 * cp, m), jnp.float32),
        grid_spec=pltpu.PrefetchScalarGridSpec(
            num_scalar_prefetch=0,
            grid=grid,
            in_specs=[pl.BlockSpec((kdim, mt), lambda j: (0, j)),
                      pl.BlockSpec((4 * cp, kdim), lambda j: (0, 0)),
                      pl.BlockSpec((4 * cp, 1), lambda j: (0, 0))],
            out_specs=pl.BlockSpec((4 * cp, mt), lambda j: (0, j))),
        compiler_params=pltpu.CompilerParams(
            dimension_semantics=("parallel",), vmem_limit_bytes=vmem),
    )(x_big, w_all, b)
    return _pixel_shuffle(y_all, cp, cout, n, h, w)


# --------------------------- Generator definition --------------------------- #

def generator_config(channels_noise, channels_img, features_g):
    # (cin, cout, kernel, stride, padding) per layer; last entry is the final
    # ConvTranspose2d + Tanh layer.
    return (
        (channels_noise,   features_g * 16, 4, 1, 0),
        (features_g * 16,  features_g * 8,  4, 2, 1),
        (features_g * 8,   features_g * 4,  4, 2, 1),
        (features_g * 4,   features_g * 2,  4, 2, 1),
        (features_g * 2,   channels_img,    4, 2, 1),
    )


def init_generator_params(key, cfg):
    """Deterministic synthetic init matching the nn.Module's parameter shapes."""
    params = []
    keys = jax.random.split(key, 3 * len(cfg))
    for i, (cin, cout, k, _, _) in enumerate(cfg):
        kw_, kg_, kb_ = keys[3 * i], keys[3 * i + 1], keys[3 * i + 2]
        layer = {"w": jax.random.normal(kw_, (cin, cout, k, k), jnp.float32) * 0.02}
        if i < len(cfg) - 1:   # BN layers (ConvTranspose has bias=False)
            layer["gamma"] = 1.0 + 0.02 * jax.random.normal(kg_, (cout,), jnp.float32)
            layer["beta"] = 0.02 * jax.random.normal(kb_, (cout,), jnp.float32)
        else:                  # final ConvTranspose has a bias
            layer["b"] = 0.02 * jax.random.normal(kb_, (cout,), jnp.float32)
        params.append(layer)
    return params


def generator_forward(cfg, params, x):
    # x: (N, C_noise, 1, 1) NCHW.
    assert cfg[0][3] == 1 and cfg[0][4] == 0 and x.shape[2:] == (1, 1)
    for (_, _, k, s, p) in cfg[1:]:
        assert (k, s, p) == (4, 2, 1)

    z = x.reshape(x.shape[0], x.shape[1])
    h = input_layer(z, params[0]["w"], params[0]["gamma"], params[0]["beta"])
    last = len(cfg) - 1
    for i in range(1, last):
        h = upsample_bn_relu_layer(h, params[i]["w"],
                                   params[i]["gamma"], params[i]["beta"])
    h = upsample_bias_tanh_layer(h, params[last]["w"], params[last]["b"])
    # channel-major (C, N, H, W) -> NCHW once at the end.
    return jnp.transpose(h, (1, 0, 2, 3))


# ------------------------- Pure-JAX reference check ------------------------ #
# The reference casts matmul operands to bf16 (f32 accumulation) and uses the
# same one-pass variance, matching the kernel's numeric choices, so the
# comparison validates the sub-pixel / fusion logic tightly.

def _ref_convt(x, w_t, stride, padding):
    _, _, K, _ = w_t.shape
    w_conv = jnp.transpose(w_t[:, :, ::-1, ::-1], (1, 0, 2, 3))   # OIHW
    q = K - 1 - padding
    return jax.lax.conv_general_dilated(
        x.astype(jnp.bfloat16), w_conv.astype(jnp.bfloat16),
        window_strides=(1, 1), padding=((q, q), (q, q)),
        lhs_dilation=(stride, stride),
        dimension_numbers=("NCHW", "OIHW", "NCHW"),
        preferred_element_type=jnp.float32)


def ref_forward(cfg, params, x):
    h = x
    last = len(cfg) - 1
    for i, (_, _, _, stride, padding) in enumerate(cfg):
        layer = params[i]
        y = _ref_convt(h, layer["w"], stride, padding)
        if i == last:
            h = jnp.tanh(y + layer["b"].reshape(1, -1, 1, 1))
        else:
            mean = jnp.mean(y, axis=(0, 2, 3), keepdims=True)
            var = jnp.mean(y * y, axis=(0, 2, 3), keepdims=True) - mean * mean
            z = (y - mean) * jax.lax.rsqrt(var + 1e-5)
            z = z * layer["gamma"].reshape(1, -1, 1, 1) + layer["beta"].reshape(1, -1, 1, 1)
            h = jnp.maximum(z, 0.0).astype(jnp.bfloat16).astype(jnp.float32)
    return h


# ----------------------------------- main ----------------------------------- #

if __name__ == "__main__":
    channels_noise, channels_img, features_g = 16, 3, 8
    batch = 2
    cfg = generator_config(channels_noise, channels_img, features_g)

    key = jax.random.PRNGKey(0)
    kp, kx = jax.random.split(key)
    params = init_generator_params(kp, cfg)

    # DCGAN generator input: NCHW noise of spatial size 1x1.
    x = jax.random.normal(kx, (batch, channels_noise, 1, 1), jnp.float32)

    gen_fwd = jax.jit(functools.partial(generator_forward, cfg))
    out = jax.block_until_ready(gen_fwd(params, x))
    assert out.shape == (batch, channels_img, 64, 64), out.shape

    ref_fwd = jax.jit(functools.partial(ref_forward, cfg))
    ref = jax.block_until_ready(ref_fwd(params, x))
    max_err = float(jnp.max(jnp.abs(out - ref)))
    assert max_err < 1e-2, f"mismatch vs reference: {max_err}"

    print("KERNEL_OK")
</pallas_src>

<mosaic_0001>
module attributes {stable_mosaic.version = 11 : i64} {
  func.func @_l1_matmul_bn_relu_kernel(%arg0: i32, %arg1: memref<2x16xbf16, #tpu.memory_space<vmem>>, %arg2: memref<16x2048xbf16, #tpu.memory_space<vmem>>, %arg3: memref<1x128xf32, #tpu.memory_space<vmem>>, %arg4: memref<1x128xf32, #tpu.memory_space<vmem>>, %arg5: memref<2x2048xbf16, #tpu.memory_space<vmem>>) attributes {dimension_semantics = [#tpu.dimension_semantics<arbitrary>], iteration_bounds = array<i64: 1>, scalar_prefetch = 0 : i64, scratch_operands = 0 : i64, tpu.core_type = #tpu.core_type<tc>, window_params = [{pipeline_mode = #tpu.pipeline_mode<synchronous>, transform_indices = @transform_0, window_bounds = array<i64: 2, 16>}, {pipeline_mode = #tpu.pipeline_mode<synchronous>, transform_indices = @transform_1, window_bounds = array<i64: 16, 2048>}, {pipeline_mode = #tpu.pipeline_mode<synchronous>, transform_indices = @transform_2, window_bounds = array<i64: 1, 128>}, {pipeline_mode = #tpu.pipeline_mode<synchronous>, transform_indices = @transform_3, window_bounds = array<i64: 1, 128>}, {pipeline_mode = #tpu.pipeline_mode<synchronous>, transform_indices = @transform_4, window_bounds = array<i64: 2, 2048>}]} {
    %c0 = arith.constant 0 : index
    %c0_0 = arith.constant 0 : index
    %0 = vector.load %arg1[%c0, %c0_0] : memref<2x16xbf16, #tpu.memory_space<vmem>>, vector<2x16xbf16>
    %c0_1 = arith.constant 0 : index
    %c0_2 = arith.constant 0 : index
    %1 = vector.load %arg2[%c0_1, %c0_2] : memref<16x2048xbf16, #tpu.memory_space<vmem>>, vector<16x2048xbf16>
    %cst = arith.constant dense<0.000000e+00> : vector<2x2048xf32>
    %2 = tpu.matmul %0, %1, %cst {dimension_numbers = #tpu.dot_dimension_numbers<[1], [0], [0], [1], [0, 0, 1, 1], [], []>} : vector<2x16xbf16>, vector<16x2048xbf16>, vector<2x2048xf32> -> vector<2x2048xf32>
    %cst_3 = arith.constant 0.000000e+00 : f32
    %3 = vector.broadcast %cst_3 : f32 to vector<1x128xf32>
    %cst_4 = arith.constant 0.000000e+00 : f32
    %4 = vector.broadcast %cst_4 : f32 to vector<1x128xf32>
    %5 = vector.extract_strided_slice %2 {offsets = [0, 0], sizes = [2, 128], strides = [1, 1]} : vector<2x2048xf32> to vector<2x128xf32>
    %cst_5 = arith.constant dense<0.000000e+00> : vector<128xf32>
    %6 = vector.multi_reduction <add>, %5, %cst_5 [0] : vector<2x128xf32> to vector<128xf32>
    %7 = vector.shape_cast %6 : vector<128xf32> to vector<1x128xf32>
    %8 = arith.addf %3, %7 : vector<1x128xf32>
    %9 = arith.mulf %5, %5 : vector<2x128xf32>
    %cst_6 = arith.constant dense<0.000000e+00> : vector<128xf32>
    %10 = vector.multi_reduction <add>, %9, %cst_6 [0] : vector<2x128xf32> to vector<128xf32>
    %11 = vector.shape_cast %10 : vector<128xf32> to vector<1x128xf32>
    %12 = arith.addf %4, %11 : vector<1x128xf32>
    %13 = vector.extract_strided_slice %2 {offsets = [0, 128], sizes = [2, 128], strides = [1, 1]} : vector<2x2048xf32> to vector<2x128xf32>
    %cst_7 = arith.constant dense<0.000000e+00> : vector<128xf32>
    %14 = vector.multi_reduction <add>, %13, %cst_7 [0] : vector<2x128xf32> to vector<128xf32>
    %15 = vector.shape_cast %14 : vector<128xf32> to vector<1x128xf32>
    %16 = arith.addf %8, %15 : vector<1x128xf32>
    %17 = arith.mulf %13, %13 : vector<2x128xf32>
    %cst_8 = arith.constant dense<0.000000e+00> : vector<128xf32>
    %18 = vector.multi_reduction <add>, %17, %cst_8 [0] : vector<2x128xf32> to vector<128xf32>
    %19 = vector.shape_cast %18 : vector<128xf32> to vector<1x128xf32>
    %20 = arith.addf %12, %19 : vector<1x128xf32>
    %21 = vector.extract_strided_slice %2 {offsets = [0, 256], sizes = [2, 128], strides = [1, 1]} : vector<2x2048xf32> to vector<2x128xf32>
    %cst_9 = arith.constant dense<0.000000e+00> : vector<128xf32>
    %22 = vector.multi_reduction <add>, %21, %cst_9 [0] : vector<2x128xf32> to vector<128xf32>
    %23 = vector.shape_cast %22 : vector<128xf32> to vector<1x128xf32>
    %24 = arith.addf %16, %23 : vector<1x128xf32>
    %25 = arith.mulf %21, %21 : vector<2x128xf32>
    %cst_10 = arith.constant dense<0.000000e+00> : vector<128xf32>
    %26 = vector.multi_reduction <add>, %25, %cst_10 [0] : vector<2x128xf32> to vector<128xf32>
    %27 = vector.shape_cast %26 : vector<128xf32> to vector<1x128xf32>
    %28 = arith.addf %20, %27 : vector<1x128xf32>
    %29 = vector.extract_strided_slice %2 {offsets = [0, 384], sizes = [2, 128], strides = [1, 1]} : vector<2x2048xf32> to vector<2x128xf32>
    %cst_11 = arith.constant dense<0.000000e+00> : vector<128xf32>
    %30 = vector.multi_reduction <add>, %29, %cst_11 [0] : vector<2x128xf32> to vector<128xf32>
    %31 = vector.shape_cast %30 : vector<128xf32> to vector<1x128xf32>
    %32 = arith.addf %24, %31 : vector<1x128xf32>
    %33 = arith.mulf %29, %29 : vector<2x128xf32>
    %cst_12 = arith.constant dense<0.000000e+00> : vector<128xf32>
    %34 = vector.multi_reduction <add>, %33, %cst_12 [0] : vector<2x128xf32> to vector<128xf32>
    %35 = vector.shape_cast %34 : vector<128xf32> to vector<1x128xf32>
    %36 = arith.addf %28, %35 : vector<1x128xf32>
    %37 = vector.extract_strided_slice %2 {offsets = [0, 512], sizes = [2, 128], strides = [1, 1]} : vector<2x2048xf32> to vector<2x128xf32>
    %cst_13 = arith.constant dense<0.000000e+00> : vector<128xf32>
    %38 = vector.multi_reduction <add>, %37, %cst_13 [0] : vector<2x128xf32> to vector<128xf32>
    %39 = vector.shape_cast %38 : vector<128xf32> to vector<1x128xf32>
    %40 = arith.addf %32, %39 : vector<1x128xf32>
    %41 = arith.mulf %37, %37 : vector<2x128xf32>
    %cst_14 = arith.constant dense<0.000000e+00> : vector<128xf32>
    %42 = vector.multi_reduction <add>, %41, %cst_14 [0] : vector<2x128xf32> to vector<128xf32>
    %43 = vector.shape_cast %42 : vector<128xf32> to vector<1x128xf32>
    %44 = arith.addf %36, %43 : vector<1x128xf32>
    %45 = vector.extract_strided_slice %2 {offsets = [0, 640], sizes = [2, 128], strides = [1, 1]} : vector<2x2048xf32> to vector<2x128xf32>
    %cst_15 = arith.constant dense<0.000000e+00> : vector<128xf32>
    %46 = vector.multi_reduction <add>, %45, %cst_15 [0] : vector<2x128xf32> to vector<128xf32>
    %47 = vector.shape_cast %46 : vector<128xf32> to vector<1x128xf32>
    %48 = arith.addf %40, %47 : vector<1x128xf32>
    %49 = arith.mulf %45, %45 : vector<2x128xf32>
    %cst_16 = arith.constant dense<0.000000e+00> : vector<128xf32>
    %50 = vector.multi_reduction <add>, %49, %cst_16 [0] : vector<2x128xf32> to vector<128xf32>
    %51 = vector.shape_cast %50 : vector<128xf32> to vector<1x128xf32>
    %52 = arith.addf %44, %51 : vector<1x128xf32>
    %53 = vector.extract_strided_slice %2 {offsets = [0, 768], sizes = [2, 128], strides = [1, 1]} : vector<2x2048xf32> to vector<2x128xf32>
    %cst_17 = arith.constant dense<0.000000e+00> : vector<128xf32>
    %54 = vector.multi_reduction <add>, %53, %cst_17 [0] : vector<2x128xf32> to vector<128xf32>
    %55 = vector.shape_cast %54 : vector<128xf32> to vector<1x128xf32>
    %56 = arith.addf %48, %55 : vector<1x128xf32>
    %57 = arith.mulf %53, %53 : vector<2x128xf32>
    %cst_18 = arith.constant dense<0.000000e+00> : vector<128xf32>
    %58 = vector.multi_reduction <add>, %57, %cst_18 [0] : vector<2x128xf32> to vector<128xf32>
    %59 = vector.shape_cast %58 : vector<128xf32> to vector<1x128xf32>
    %60 = arith.addf %52, %59 : vector<1x128xf32>
    %61 = vector.extract_strided_slice %2 {offsets = [0, 896], sizes = [2, 128], strides = [1, 1]} : vector<2x2048xf32> to vector<2x128xf32>
    %cst_19 = arith.constant dense<0.000000e+00> : vector<128xf32>
    %62 = vector.multi_reduction <add>, %61, %cst_19 [0] : vector<2x128xf32> to vector<128xf32>
    %63 = vector.shape_cast %62 : vector<128xf32> to vector<1x128xf32>
    %64 = arith.addf %56, %63 : vector<1x128xf32>
    %65 = arith.mulf %61, %61 : vector<2x128xf32>
    %cst_20 = arith.constant dense<0.000000e+00> : vector<128xf32>
    %66 = vector.multi_reduction <add>, %65, %cst_20 [0] : vector<2x128xf32> to vector<128xf32>
    %67 = vector.shape_cast %66 : vector<128xf32> to vector<1x128xf32>
    %68 = arith.addf %60, %67 : vector<1x128xf32>
    %69 = vector.extract_strided_slice %2 {offsets = [0, 1024], sizes = [2, 128], strides = [1, 1]} : vector<2x2048xf32> to vector<2x128xf32>
    %cst_21 = arith.constant dense<0.000000e+00> : vector<128xf32>
    %70 = vector.multi_reduction <add>, %69, %cst_21 [0] : vector<2x128xf32> to vector<128xf32>
    %71 = vector.shape_cast %70 : vector<128xf32> to vector<1x128xf32>
    %72 = arith.addf %64, %71 : vector<1x128xf32>
    %73 = arith.mulf %69, %69 : vector<2x128xf32>
    %cst_22 = arith.constant dense<0.000000e+00> : vector<128xf32>
    %74 = vector.multi_reduction <add>, %73, %cst_22 [0] : vector<2x128xf32> to vector<128xf32>
    %75 = vector.shape_cast %74 : vector<128xf32> to vector<1x128xf32>
    %76 = arith.addf %68, %75 : vector<1x128xf32>
    %77 = vector.extract_strided_slice %2 {offsets = [0, 1152], sizes = [2, 128], strides = [1, 1]} : vector<2x2048xf32> to vector<2x128xf32>
    %cst_23 = arith.constant dense<0.000000e+00> : vector<128xf32>
    %78 = vector.multi_reduction <add>, %77, %cst_23 [0] : vector<2x128xf32> to vector<128xf32>
    %79 = vector.shape_cast %78 : vector<128xf32> to vector<1x128xf32>
    %80 = arith.addf %72, %79 : vector<1x128xf32>
    %81 = arith.mulf %77, %77 : vector<2x128xf32>
    %cst_24 = arith.constant dense<0.000000e+00> : vector<128xf32>
    %82 = vector.multi_reduction <add>, %81, %cst_24 [0] : vector<2x128xf32> to vector<128xf32>
    %83 = vector.shape_cast %82 : vector<128xf32> to vector<1x128xf32>
    %84 = arith.addf %76, %83 : vector<1x128xf32>
    %85 = vector.extract_strided_slice %2 {offsets = [0, 1280], sizes = [2, 128], strides = [1, 1]} : vector<2x2048xf32> to vector<2x128xf32>
    %cst_25 = arith.constant dense<0.000000e+00> : vector<128xf32>
    %86 = vector.multi_reduction <add>, %85, %cst_25 [0] : vector<2x128xf32> to vector<128xf32>
    %87 = vector.shape_cast %86 : vector<128xf32> to vector<1x128xf32>
    %88 = arith.addf %80, %87 : vector<1x128xf32>
    %89 = arith.mulf %85, %85 : vector<2x128xf32>
    %cst_26 = arith.constant dense<0.000000e+00> : vector<128xf32>
    %90 = vector.multi_reduction <add>, %89, %cst_26 [0] : vector<2x128xf32> to vector<128xf32>
    %91 = vector.shape_cast %90 : vector<128xf32> to vector<1x128xf32>
    %92 = arith.addf %84, %91 : vector<1x128xf32>
    %93 = vector.extract_strided_slice %2 {offsets = [0, 1408], sizes = [2, 128], strides = [1, 1]} : vector<2x2048xf32> to vector<2x128xf32>
    %cst_27 = arith.constant dense<0.000000e+00> : vector<128xf32>
    %94 = vector.multi_reduction <add>, %93, %cst_27 [0] : vector<2x128xf32> to vector<128xf32>
    %95 = vector.shape_cast %94 : vector<128xf32> to vector<1x128xf32>
    %96 = arith.addf %88, %95 : vector<1x128xf32>
    %97 = arith.mulf %93, %93 : vector<2x128xf32>
    %cst_28 = arith.constant dense<0.000000e+00> : vector<128xf32>
    %98 = vector.multi_reduction <add>, %97, %cst_28 [0] : vector<2x128xf32> to vector<128xf32>
    %99 = vector.shape_cast %98 : vector<128xf32> to vector<1x128xf32>
    %100 = arith.addf %92, %99 : vector<1x128xf32>
    %101 = vector.extract_strided_slice %2 {offsets = [0, 1536], sizes = [2, 128], strides = [1, 1]} : vector<2x2048xf32> to vector<2x128xf32>
    %cst_29 = arith.constant dense<0.000000e+00> : vector<128xf32>
    %102 = vector.multi_reduction <add>, %101, %cst_29 [0] : vector<2x128xf32> to vector<128xf32>
    %103 = vector.shape_cast %102 : vector<128xf32> to vector<1x128xf32>
    %104 = arith.addf %96, %103 : vector<1x128xf32>
    %105 = arith.mulf %101, %101 : vector<2x128xf32>
    %cst_30 = arith.constant dense<0.000000e+00> : vector<128xf32>
    %106 = vector.multi_reduction <add>, %105, %cst_30 [0] : vector<2x128xf32> to vector<128xf32>
    %107 = vector.shape_cast %106 : vector<128xf32> to vector<1x128xf32>
    %108 = arith.addf %100, %107 : vector<1x128xf32>
    %109 = vector.extract_strided_slice %2 {offsets = [0, 1664], sizes = [2, 128], strides = [1, 1]} : vector<2x2048xf32> to vector<2x128xf32>
    %cst_31 = arith.constant dense<0.000000e+00> : vector<128xf32>
    %110 = vector.multi_reduction <add>, %109, %cst_31 [0] : vector<2x128xf32> to vector<128xf32>
    %111 = vector.shape_cast %110 : vector<128xf32> to vector<1x128xf32>
    %112 = arith.addf %104, %111 : vector<1x128xf32>
    %113 = arith.mulf %109, %109 : vector<2x128xf32>
    %cst_32 = arith.constant dense<0.000000e+00> : vector<128xf32>
    %114 = vector.multi_reduction <add>, %113, %cst_32 [0] : vector<2x128xf32> to vector<128xf32>
    %115 = vector.shape_cast %114 : vector<128xf32> to vector<1x128xf32>
    %116 = arith.addf %108, %115 : vector<1x128xf32>
    %117 = vector.extract_strided_slice %2 {offsets = [0, 1792], sizes = [2, 128], strides = [1, 1]} : vector<2x2048xf32> to vector<2x128xf32>
    %cst_33 = arith.constant dense<0.000000e+00> : vector<128xf32>
    %118 = vector.multi_reduction <add>, %117, %cst_33 [0] : vector<2x128xf32> to vector<128xf32>
    %119 = vector.shape_cast %118 : vector<128xf32> to vector<1x128xf32>
    %120 = arith.addf %112, %119 : vector<1x128xf32>
    %121 = arith.mulf %117, %117 : vector<2x128xf32>
    %cst_34 = arith.constant dense<0.000000e+00> : vector<128xf32>
    %122 = vector.multi_reduction <add>, %121, %cst_34 [0] : vector<2x128xf32> to vector<128xf32>
    %123 = vector.shape_cast %122 : vector<128xf32> to vector<1x128xf32>
    %124 = arith.addf %116, %123 : vector<1x128xf32>
    %125 = vector.extract_strided_slice %2 {offsets = [0, 1920], sizes = [2, 128], strides = [1, 1]} : vector<2x2048xf32> to vector<2x128xf32>
    %cst_35 = arith.constant dense<0.000000e+00> : vector<128xf32>
    %126 = vector.multi_reduction <add>, %125, %cst_35 [0] : vector<2x128xf32> to vector<128xf32>
    %127 = vector.shape_cast %126 : vector<128xf32> to vector<1x128xf32>
    %128 = arith.addf %120, %127 : vector<1x128xf32>
    %129 = arith.mulf %125, %125 : vector<2x128xf32>
    %cst_36 = arith.constant dense<0.000000e+00> : vector<128xf32>
    %130 = vector.multi_reduction <add>, %129, %cst_36 [0] : vector<2x128xf32> to vector<128xf32>
    %131 = vector.shape_cast %130 : vector<128xf32> to vector<1x128xf32>
    %132 = arith.addf %124, %131 : vector<1x128xf32>
    %cst_37 = arith.constant 3.200000e+01 : f32
    %133 = vector.broadcast %cst_37 : f32 to vector<1x128xf32>
    %134 = arith.divf %128, %133 : vector<1x128xf32>
    %cst_38 = arith.constant 3.200000e+01 : f32
    %135 = vector.broadcast %cst_38 : f32 to vector<1x128xf32>
    %136 = arith.divf %132, %135 : vector<1x128xf32>
    %137 = arith.mulf %134, %134 : vector<1x128xf32>
    %138 = arith.subf %136, %137 : vector<1x128xf32>
    %cst_39 = arith.constant 9.99999974E-6 : f32
    %139 = vector.broadcast %cst_39 : f32 to vector<1x128xf32>
    %140 = arith.addf %138, %139 : vector<1x128xf32>
    %141 = math.rsqrt %140 : vector<1x128xf32>
    %c0_40 = arith.constant 0 : index
    %c0_41 = arith.constant 0 : index
    %142 = vector.load %arg3[%c0_40, %c0_41] : memref<1x128xf32, #tpu.memory_space<vmem>>, vector<1x128xf32>
    %143 = arith.mulf %142, %141 : vector<1x128xf32>
    %c0_42 = arith.constant 0 : index
    %c0_43 = arith.constant 0 : index
    %144 = vector.load %arg4[%c0_42, %c0_43] : memref<1x128xf32, #tpu.memory_space<vmem>>, vector<1x128xf32>
    %145 = arith.mulf %134, %143 : vector<1x128xf32>
    %146 = arith.subf %144, %145 : vector<1x128xf32>
    %147 = vector.extract_strided_slice %2 {offsets = [0, 0], sizes = [2, 128], strides = [1, 1]} : vector<2x2048xf32> to vector<2x128xf32>
    %148 = vector.broadcast %143 : vector<1x128xf32> to vector<2x128xf32>
    %149 = arith.mulf %147, %148 : vector<2x128xf32>
    %150 = vector.broadcast %146 : vector<1x128xf32> to vector<2x128xf32>
    %151 = arith.addf %149, %150 : vector<2x128xf32>
    %cst_44 = arith.constant 0.000000e+00 : f32
    %152 = vector.broadcast %cst_44 : f32 to vector<2x128xf32>
    %153 = arith.maximumf %151, %152 : vector<2x128xf32>
    %154 = arith.truncf %153 : vector<2x128xf32> to vector<2x128xbf16>
    %c0_45 = arith.constant 0 : index
    %c0_46 = arith.constant 0 : index
    %155 = vector.load %arg5[%c0_45, %c0_46] : memref<2x2048xbf16, #tpu.memory_space<vmem>>, vector<2x128xbf16>
    tpu.vector_store %arg5[%c0_45, %c0_46], %154 {strides = array<i32>} : memref<2x2048xbf16, #tpu.memory_space<vmem>>, vector<2x128xbf16>,
    %156 = vector.extract_strided_slice %2 {offsets = [0, 128], sizes = [2, 128], strides = [1, 1]} : vector<2x2048xf32> to vector<2x128xf32>
    %157 = vector.broadcast %143 : vector<1x128xf32> to vector<2x128xf32>
    %158 = arith.mulf %156, %157 : vector<2x128xf32>
    %159 = vector.broadcast %146 : vector<1x128xf32> to vector<2x128xf32>
    %160 = arith.addf %158, %159 : vector<2x128xf32>
    %cst_47 = arith.constant 0.000000e+00 : f32
    %161 = vector.broadcast %cst_47 : f32 to vector<2x128xf32>
    %162 = arith.maximumf %160, %161 : vector<2x128xf32>
    %163 = arith.truncf %162 : vector<2x128xf32> to vector<2x128xbf16>
    %c0_48 = arith.constant 0 : index
    %c128 = arith.constant 128 : index
    %164 = vector.load %arg5[%c0_48, %c128] : memref<2x2048xbf16, #tpu.memory_space<vmem>>, vector<2x128xbf16>
    tpu.vector_store %arg5[%c0_48, %c128], %163 {strides = array<i32>} : memref<2x2048xbf16, #tpu.memory_space<vmem>>, vector<2x128xbf16>,
    %165 = vector.extract_strided_slice %2 {offsets = [0, 256], sizes = [2, 128], strides = [1, 1]} : vector<2x2048xf32> to vector<2x128xf32>
    %166 = vector.broadcast %143 : vector<1x128xf32> to vector<2x128xf32>
    %167 = arith.mulf %165, %166 : vector<2x128xf32>
    %168 = vector.broadcast %146 : vector<1x128xf32> to vector<2x128xf32>
    %169 = arith.addf %167, %168 : vector<2x128xf32>
    %cst_49 = arith.constant 0.000000e+00 : f32
    %170 = vector.broadcast %cst_49 : f32 to vector<2x128xf32>
    %171 = arith.maximumf %169, %170 : vector<2x128xf32>
    %172 = arith.truncf %171 : vector<2x128xf32> to vector<2x128xbf16>
    %c0_50 = arith.constant 0 : index
    %c256 = arith.constant 256 : index
    %173 = vector.load %arg5[%c0_50, %c256] : memref<2x2048xbf16, #tpu.memory_space<vmem>>, vector<2x128xbf16>
    tpu.vector_store %arg5[%c0_50, %c256], %172 {strides = array<i32>} : memref<2x2048xbf16, #tpu.memory_space<vmem>>, vector<2x128xbf16>,
    %174 = vector.extract_strided_slice %2 {offsets = [0, 384], sizes = [2, 128], strides = [1, 1]} : vector<2x2048xf32> to vector<2x128xf32>
    %175 = vector.broadcast %143 : vector<1x128xf32> to vector<2x128xf32>
    %176 = arith.mulf %174, %175 : vector<2x128xf32>
    %177 = vector.broadcast %146 : vector<1x128xf32> to vector<2x128xf32>
    %178 = arith.addf %176, %177 : vector<2x128xf32>
    %cst_51 = arith.constant 0.000000e+00 : f32
    %179 = vector.broadcast %cst_51 : f32 to vector<2x128xf32>
    %180 = arith.maximumf %178, %179 : vector<2x128xf32>
    %181 = arith.truncf %180 : vector<2x128xf32> to vector<2x128xbf16>
    %c0_52 = arith.constant 0 : index
    %c384 = arith.constant 384 : index
    %182 = vector.load %arg5[%c0_52, %c384] : memref<2x2048xbf16, #tpu.memory_space<vmem>>, vector<2x128xbf16>
    tpu.vector_store %arg5[%c0_52, %c384], %181 {strides = array<i32>} : memref<2x2048xbf16, #tpu.memory_space<vmem>>, vector<2x128xbf16>,
    %183 = vector.extract_strided_slice %2 {offsets = [0, 512], sizes = [2, 128], strides = [1, 1]} : vector<2x2048xf32> to vector<2x128xf32>
    %184 = vector.broadcast %143 : vector<1x128xf32> to vector<2x128xf32>
    %185 = arith.mulf %183, %184 : vector<2x128xf32>
    %186 = vector.broadcast %146 : vector<1x128xf32> to vector<2x128xf32>
    %187 = arith.addf %185, %186 : vector<2x128xf32>
    %cst_53 = arith.constant 0.000000e+00 : f32
    %188 = vector.broadcast %cst_53 : f32 to vector<2x128xf32>
    %189 = arith.maximumf %187, %188 : vector<2x128xf32>
    %190 = arith.truncf %189 : vector<2x128xf32> to vector<2x128xbf16>
    %c0_54 = arith.constant 0 : index
    %c512 = arith.constant 512 : index
    %191 = vector.load %arg5[%c0_54, %c512] : memref<2x2048xbf16, #tpu.memory_space<vmem>>, vector<2x128xbf16>
    tpu.vector_store %arg5[%c0_54, %c512], %190 {strides = array<i32>} : memref<2x2048xbf16, #tpu.memory_space<vmem>>, vector<2x128xbf16>,
    %192 = vector.extract_strided_slice %2 {offsets = [0, 640], sizes = [2, 128], strides = [1, 1]} : vector<2x2048xf32> to vector<2x128xf32>
    %193 = vector.broadcast %143 : vector<1x128xf32> to vector<2x128xf32>
    %194 = arith.mulf %192, %193 : vector<2x128xf32>
    %195 = vector.broadcast %146 : vector<1x128xf32> to vector<2x128xf32>
    %196 = arith.addf %194, %195 : vector<2x128xf32>
    %cst_55 = arith.constant 0.000000e+00 : f32
    %197 = vector.broadcast %cst_55 : f32 to vector<2x128xf32>
    %198 = arith.maximumf %196, %197 : vector<2x128xf32>
    %199 = arith.truncf %198 : vector<2x128xf32> to vector<2x128xbf16>
    %c0_56 = arith.constant 0 : index
    %c640 = arith.constant 640 : index
    %200 = vector.load %arg5[%c0_56, %c640] : memref<2x2048xbf16, #tpu.memory_space<vmem>>, vector<2x128xbf16>
    tpu.vector_store %arg5[%c0_56, %c640], %199 {strides = array<i32>} : memref<2x2048xbf16, #tpu.memory_space<vmem>>, vector<2x128xbf16>,
    %201 = vector.extract_strided_slice %2 {offsets = [0, 768], sizes = [2, 128], strides = [1, 1]} : vector<2x2048xf32> to vector<2x128xf32>
    %202 = vector.broadcast %143 : vector<1x128xf32> to vector<2x128xf32>
    %203 = arith.mulf %201, %202 : vector<2x128xf32>
    %204 = vector.broadcast %146 : vector<1x128xf32> to vector<2x128xf32>
    %205 = arith.addf %203, %204 : vector<2x128xf32>
    %cst_57 = arith.constant 0.000000e+00 : f32
    %206 = vector.broadcast %cst_57 : f32 to vector<2x128xf32>
    %207 = arith.maximumf %205, %206 : vector<2x128xf32>
    %208 = arith.truncf %207 : vector<2x128xf32> to vector<2x128xbf16>
    %c0_58 = arith.constant 0 : index
    %c768 = arith.constant 768 : index
    %209 = vector.load %arg5[%c0_58, %c768] : memref<2x2048xbf16, #tpu.memory_space<vmem>>, vector<2x128xbf16>
    tpu.vector_store %arg5[%c0_58, %c768], %208 {strides = array<i32>} : memref<2x2048xbf16, #tpu.memory_space<vmem>>, vector<2x128xbf16>,
    %210 = vector.extract_strided_slice %2 {offsets = [0, 896], sizes = [2, 128], strides = [1, 1]} : vector<2x2048xf32> to vector<2x128xf32>
    %211 = vector.broadcast %143 : vector<1x128xf32> to vector<2x128xf32>
    %212 = arith.mulf %210, %211 : vector<2x128xf32>
    %213 = vector.broadcast %146 : vector<1x128xf32> to vector<2x128xf32>
    %214 = arith.addf %212, %213 : vector<2x128xf32>
    %cst_59 = arith.constant 0.000000e+00 : f32
    %215 = vector.broadcast %cst_59 : f32 to vector<2x128xf32>
    %216 = arith.maximumf %214, %215 : vector<2x128xf32>
    %217 = arith.truncf %216 : vector<2x128xf32> to vector<2x128xbf16>
    %c0_60 = arith.constant 0 : index
    %c896 = arith.constant 896 : index
    %218 = vector.load %arg5[%c0_60, %c896] : memref<2x2048xbf16, #tpu.memory_space<vmem>>, vector<2x128xbf16>
    tpu.vector_store %arg5[%c0_60, %c896], %217 {strides = array<i32>} : memref<2x2048xbf16, #tpu.memory_space<vmem>>, vector<2x128xbf16>,
    %219 = vector.extract_strided_slice %2 {offsets = [0, 1024], sizes = [2, 128], strides = [1, 1]} : vector<2x2048xf32> to vector<2x128xf32>
    %220 = vector.broadcast %143 : vector<1x128xf32> to vector<2x128xf32>
    %221 = arith.mulf %219, %220 : vector<2x128xf32>
    %222 = vector.broadcast %146 : vector<1x128xf32> to vector<2x128xf32>
    %223 = arith.addf %221, %222 : vector<2x128xf32>
    %cst_61 = arith.constant 0.000000e+00 : f32
    %224 = vector.broadcast %cst_61 : f32 to vector<2x128xf32>
    %225 = arith.maximumf %223, %224 : vector<2x128xf32>
    %226 = arith.truncf %225 : vector<2x128xf32> to vector<2x128xbf16>
    %c0_62 = arith.constant 0 : index
    %c1024 = arith.constant 1024 : index
    %227 = vector.load %arg5[%c0_62, %c1024] : memref<2x2048xbf16, #tpu.memory_space<vmem>>, vector<2x128xbf16>
    tpu.vector_store %arg5[%c0_62, %c1024], %226 {strides = array<i32>} : memref<2x2048xbf16, #tpu.memory_space<vmem>>, vector<2x128xbf16>,
    %228 = vector.extract_strided_slice %2 {offsets = [0, 1152], sizes = [2, 128], strides = [1, 1]} : vector<2x2048xf32> to vector<2x128xf32>
    %229 = vector.broadcast %143 : vector<1x128xf32> to vector<2x128xf32>
    %230 = arith.mulf %228, %229 : vector<2x128xf32>
    %231 = vector.broadcast %146 : vector<1x128xf32> to vector<2x128xf32>
    %232 = arith.addf %230, %231 : vector<2x128xf32>
    %cst_63 = arith.constant 0.000000e+00 : f32
    %233 = vector.broadcast %cst_63 : f32 to vector<2x128xf32>
    %234 = arith.maximumf %232, %233 : vector<2x128xf32>
    %235 = arith.truncf %234 : vector<2x128xf32> to vector<2x128xbf16>
    %c0_64 = arith.constant 0 : index
    %c1152 = arith.constant 1152 : index
    %236 = vector.load %arg5[%c0_64, %c1152] : memref<2x2048xbf16, #tpu.memory_space<vmem>>, vector<2x128xbf16>
    tpu.vector_store %arg5[%c0_64, %c1152], %235 {strides = array<i32>} : memref<2x2048xbf16, #tpu.memory_space<vmem>>, vector<2x128xbf16>,
    %237 = vector.extract_strided_slice %2 {offsets = [0, 1280], sizes = [2, 128], strides = [1, 1]} : vector<2x2048xf32> to vector<2x128xf32>
    %238 = vector.broadcast %143 : vector<1x128xf32> to vector<2x128xf32>
    %239 = arith.mulf %237, %238 : vector<2x128xf32>
    %240 = vector.broadcast %146 : vector<1x128xf32> to vector<2x128xf32>
    %241 = arith.addf %239, %240 : vector<2x128xf32>
    %cst_65 = arith.constant 0.000000e+00 : f32
    %242 = vector.broadcast %cst_65 : f32 to vector<2x128xf32>
    %243 = arith.maximumf %241, %242 : vector<2x128xf32>
    %244 = arith.truncf %243 : vector<2x128xf32> to vector<2x128xbf16>
    %c0_66 = arith.constant 0 : index
    %c1280 = arith.constant 1280 : index
    %245 = vector.load %arg5[%c0_66, %c1280] : memref<2x2048xbf16, #tpu.memory_space<vmem>>, vector<2x128xbf16>
    tpu.vector_store %arg5[%c0_66, %c1280], %244 {strides = array<i32>} : memref<2x2048xbf16, #tpu.memory_space<vmem>>, vector<2x128xbf16>,
    %246 = vector.extract_strided_slice %2 {offsets = [0, 1408], sizes = [2, 128], strides = [1, 1]} : vector<2x2048xf32> to vector<2x128xf32>
    %247 = vector.broadcast %143 : vector<1x128xf32> to vector<2x128xf32>
    %248 = arith.mulf %246, %247 : vector<2x128xf32>
    %249 = vector.broadcast %146 : vector<1x128xf32> to vector<2x128xf32>
    %250 = arith.addf %248, %249 : vector<2x128xf32>
    %cst_67 = arith.constant 0.000000e+00 : f32
    %251 = vector.broadcast %cst_67 : f32 to vector<2x128xf32>
    %252 = arith.maximumf %250, %251 : vector<2x128xf32>
    %253 = arith.truncf %252 : vector<2x128xf32> to vector<2x128xbf16>
    %c0_68 = arith.constant 0 : index
    %c1408 = arith.constant 1408 : index
    %254 = vector.load %arg5[%c0_68, %c1408] : memref<2x2048xbf16, #tpu.memory_space<vmem>>, vector<2x128xbf16>
    tpu.vector_store %arg5[%c0_68, %c1408], %253 {strides = array<i32>} : memref<2x2048xbf16, #tpu.memory_space<vmem>>, vector<2x128xbf16>,
    %255 = vector.extract_strided_slice %2 {offsets = [0, 1536], sizes = [2, 128], strides = [1, 1]} : vector<2x2048xf32> to vector<2x128xf32>
    %256 = vector.broadcast %143 : vector<1x128xf32> to vector<2x128xf32>
    %257 = arith.mulf %255, %256 : vector<2x128xf32>
    %258 = vector.broadcast %146 : vector<1x128xf32> to vector<2x128xf32>
    %259 = arith.addf %257, %258 : vector<2x128xf32>
    %cst_69 = arith.constant 0.000000e+00 : f32
    %260 = vector.broadcast %cst_69 : f32 to vector<2x128xf32>
    %261 = arith.maximumf %259, %260 : vector<2x128xf32>
    %262 = arith.truncf %261 : vector<2x128xf32> to vector<2x128xbf16>
    %c0_70 = arith.constant 0 : index
    %c1536 = arith.constant 1536 : index
    %263 = vector.load %arg5[%c0_70, %c1536] : memref<2x2048xbf16, #tpu.memory_space<vmem>>, vector<2x128xbf16>
    tpu.vector_store %arg5[%c0_70, %c1536], %262 {strides = array<i32>} : memref<2x2048xbf16, #tpu.memory_space<vmem>>, vector<2x128xbf16>,
    %264 = vector.extract_strided_slice %2 {offsets = [0, 1664], sizes = [2, 128], strides = [1, 1]} : vector<2x2048xf32> to vector<2x128xf32>
    %265 = vector.broadcast %143 : vector<1x128xf32> to vector<2x128xf32>
    %266 = arith.mulf %264, %265 : vector<2x128xf32>
    %267 = vector.broadcast %146 : vector<1x128xf32> to vector<2x128xf32>
    %268 = arith.addf %266, %267 : vector<2x128xf32>
    %cst_71 = arith.constant 0.000000e+00 : f32
    %269 = vector.broadcast %cst_71 : f32 to vector<2x128xf32>
    %270 = arith.maximumf %268, %269 : vector<2x128xf32>
    %271 = arith.truncf %270 : vector<2x128xf32> to vector<2x128xbf16>
    %c0_72 = arith.constant 0 : index
    %c1664 = arith.constant 1664 : index
    %272 = vector.load %arg5[%c0_72, %c1664] : memref<2x2048xbf16, #tpu.memory_space<vmem>>, vector<2x128xbf16>
    tpu.vector_store %arg5[%c0_72, %c1664], %271 {strides = array<i32>} : memref<2x2048xbf16, #tpu.memory_space<vmem>>, vector<2x128xbf16>,
    %273 = vector.extract_strided_slice %2 {offsets = [0, 1792], sizes = [2, 128], strides = [1, 1]} : vector<2x2048xf32> to vector<2x128xf32>
    %274 = vector.broadcast %143 : vector<1x128xf32> to vector<2x128xf32>
    %275 = arith.mulf %273, %274 : vector<2x128xf32>
    %276 = vector.broadcast %146 : vector<1x128xf32> to vector<2x128xf32>
    %277 = arith.addf %275, %276 : vector<2x128xf32>
    %cst_73 = arith.constant 0.000000e+00 : f32
    %278 = vector.broadcast %cst_73 : f32 to vector<2x128xf32>
    %279 = arith.maximumf %277, %278 : vector<2x128xf32>
    %280 = arith.truncf %279 : vector<2x128xf32> to vector<2x128xbf16>
    %c0_74 = arith.constant 0 : index
    %c1792 = arith.constant 1792 : index
    %281 = vector.load %arg5[%c0_74, %c1792] : memref<2x2048xbf16, #tpu.memory_space<vmem>>, vector<2x128xbf16>
    tpu.vector_store %arg5[%c0_74, %c1792], %280 {strides = array<i32>} : memref<2x2048xbf16, #tpu.memory_space<vmem>>, vector<2x128xbf16>,
    %282 = vector.extract_strided_slice %2 {offsets = [0, 1920], sizes = [2, 128], strides = [1, 1]} : vector<2x2048xf32> to vector<2x128xf32>
    %283 = vector.broadcast %143 : vector<1x128xf32> to vector<2x128xf32>
    %284 = arith.mulf %282, %283 : vector<2x128xf32>
    %285 = vector.broadcast %146 : vector<1x128xf32> to vector<2x128xf32>
    %286 = arith.addf %284, %285 : vector<2x128xf32>
    %cst_75 = arith.constant 0.000000e+00 : f32
    %287 = vector.broadcast %cst_75 : f32 to vector<2x128xf32>
    %288 = arith.maximumf %286, %287 : vector<2x128xf32>
    %289 = arith.truncf %288 : vector<2x128xf32> to vector<2x128xbf16>
    %c0_76 = arith.constant 0 : index
    %c1920 = arith.constant 1920 : index
    %290 = vector.load %arg5[%c0_76, %c1920] : memref<2x2048xbf16, #tpu.memory_space<vmem>>, vector<2x128xbf16>
    tpu.vector_store %arg5[%c0_76, %c1920], %289 {strides = array<i32>} : memref<2x2048xbf16, #tpu.memory_space<vmem>>, vector<2x128xbf16>,
    return
  }
  func.func @transform_0(%arg0: i32) -> (i32, i32) {
    %c0_i32 = arith.constant 0 : i32
    %c0_i32_0 = arith.constant 0 : i32
    %c0_i32_1 = arith.constant 0 : i32
    return %c0_i32, %c0_i32_0 : i32, i32
  }
  func.func @transform_1(%arg0: i32) -> (i32, i32) {
    %c0_i32 = arith.constant 0 : i32
    %c0_i32_0 = arith.constant 0 : i32
    %c0_i32_1 = arith.constant 0 : i32
    return %c0_i32, %c0_i32_0 : i32, i32
  }
  func.func @transform_2(%arg0: i32) -> (i32, i32) {
    %c0_i32 = arith.constant 0 : i32
    %c0_i32_0 = arith.constant 0 : i32
    %c0_i32_1 = arith.constant 0 : i32
    return %c0_i32, %c0_i32_0 : i32, i32
  }
  func.func @transform_3(%arg0: i32) -> (i32, i32) {
    %c0_i32 = arith.constant 0 : i32
    %c0_i32_0 = arith.constant 0 : i32
    %c0_i32_1 = arith.constant 0 : i32
    return %c0_i32, %c0_i32_0 : i32, i32
  }
  func.func @transform_4(%arg0: i32) -> (i32, i32) {
    %c0_i32 = arith.constant 0 : i32
    %c0_i32_0 = arith.constant 0 : i32
    %c0_i32_1 = arith.constant 0 : i32
    return %c0_i32, %c0_i32_0 : i32, i32
  }
}

module attributes {stable_mosaic.version = 11 : i64} {
  func.func @_subpix_matmul_bn_relu_kernel(%arg0: i32, %arg1: memref<1152x32xbf16, #tpu.memory_space<vmem>>, %arg2: memref<256x1152xbf16, #tpu.memory_space<vmem>>, %arg3: memref<64x1xf32, #tpu.memory_space<vmem>>, %arg4: memref<64x1xf32, #tpu.memory_space<vmem>>, %arg5: memref<256x32xbf16, #tpu.memory_space<vmem>>) attributes {dimension_semantics = [#tpu.dimension_semantics<arbitrary>], iteration_bounds = array<i64: 1>, scalar_prefetch = 0 : i64, scratch_operands = 0 : i64, tpu.core_type = #tpu.core_type<tc>, window_params = [{pipeline_mode = #tpu.pipeline_mode<synchronous>, transform_indices = @transform_0, window_bounds = array<i64: 1152, 32>}, {pipeline_mode = #tpu.pipeline_mode<synchronous>, transform_indices = @transform_1, window_bounds = array<i64: 256, 1152>}, {pipeline_mode = #tpu.pipeline_mode<synchronous>, transform_indices = @transform_2, window_bounds = array<i64: 64, 1>}, {pipeline_mode = #tpu.pipeline_mode<synchronous>, transform_indices = @transform_3, window_bounds = array<i64: 64, 1>}, {pipeline_mode = #tpu.pipeline_mode<synchronous>, transform_indices = @transform_4, window_bounds = array<i64: 256, 32>}]} {
    %c0 = arith.constant 0 : index
    %c0_0 = arith.constant 0 : index
    %0 = vector.load %arg2[%c0, %c0_0] : memref<256x1152xbf16, #tpu.memory_space<vmem>>, vector<256x1152xbf16>
    %c0_1 = arith.constant 0 : index
    %c0_2 = arith.constant 0 : index
    %1 = vector.load %arg1[%c0_1, %c0_2] : memref<1152x32xbf16, #tpu.memory_space<vmem>>, vector<1152x32xbf16>
    %cst = arith.constant dense<0.000000e+00> : vector<256x32xf32>
    %2 = tpu.matmul %0, %1, %cst {dimension_numbers = #tpu.dot_dimension_numbers<[1], [0], [0], [1], [0, 0, 1, 1], [], []>} : vector<256x1152xbf16>, vector<1152x32xbf16>, vector<256x32xf32> -> vector<256x32xf32>
    %cst_3 = arith.constant 0.000000e+00 : f32
    %3 = vector.broadcast %cst_3 : f32 to vector<64x1xf32>
    %cst_4 = arith.constant 0.000000e+00 : f32
    %4 = vector.broadcast %cst_4 : f32 to vector<64x1xf32>
    %5 = vector.extract_strided_slice %2 {offsets = [0, 0], sizes = [64, 32], strides = [1, 1]} : vector<256x32xf32> to vector<64x32xf32>
    %cst_5 = arith.constant dense<0.000000e+00> : vector<64xf32>
    %6 = vector.multi_reduction <add>, %5, %cst_5 [1] : vector<64x32xf32> to vector<64xf32>
    %7 = vector.shape_cast %6 : vector<64xf32> to vector<64x1xf32>
    %8 = arith.addf %3, %7 : vector<64x1xf32>
    %9 = arith.mulf %5, %5 : vector<64x32xf32>
    %cst_6 = arith.constant dense<0.000000e+00> : vector<64xf32>
    %10 = vector.multi_reduction <add>, %9, %cst_6 [1] : vector<64x32xf32> to vector<64xf32>
    %11 = vector.shape_cast %10 : vector<64xf32> to vector<64x1xf32>
    %12 = arith.addf %4, %11 : vector<64x1xf32>
    %13 = vector.extract_strided_slice %2 {offsets = [64, 0], sizes = [64, 32], strides = [1, 1]} : vector<256x32xf32> to vector<64x32xf32>
    %cst_7 = arith.constant dense<0.000000e+00> : vector<64xf32>
    %14 = vector.multi_reduction <add>, %13, %cst_7 [1] : vector<64x32xf32> to vector<64xf32>
    %15 = vector.shape_cast %14 : vector<64xf32> to vector<64x1xf32>
    %16 = arith.addf %8, %15 : vector<64x1xf32>
    %17 = arith.mulf %13, %13 : vector<64x32xf32>
    %cst_8 = arith.constant dense<0.000000e+00> : vector<64xf32>
    %18 = vector.multi_reduction <add>, %17, %cst_8 [1] : vector<64x32xf32> to vector<64xf32>
    %19 = vector.shape_cast %18 : vector<64xf32> to vector<64x1xf32>
    %20 = arith.addf %12, %19 : vector<64x1xf32>
    %21 = vector.extract_strided_slice %2 {offsets = [128, 0], sizes = [64, 32], strides = [1, 1]} : vector<256x32xf32> to vector<64x32xf32>
    %cst_9 = arith.constant dense<0.000000e+00> : vector<64xf32>
    %22 = vector.multi_reduction <add>, %21, %cst_9 [1] : vector<64x32xf32> to vector<64xf32>
    %23 = vector.shape_cast %22 : vector<64xf32> to vector<64x1xf32>
    %24 = arith.addf %16, %23 : vector<64x1xf32>
    %25 = arith.mulf %21, %21 : vector<64x32xf32>
    %cst_10 = arith.constant dense<0.000000e+00> : vector<64xf32>
    %26 = vector.multi_reduction <add>, %25, %cst_10 [1] : vector<64x32xf32> to vector<64xf32>
    %27 = vector.shape_cast %26 : vector<64xf32> to vector<64x1xf32>
    %28 = arith.addf %20, %27 : vector<64x1xf32>
    %29 = vector.extract_strided_slice %2 {offsets = [192, 0], sizes = [64, 32], strides = [1, 1]} : vector<256x32xf32> to vector<64x32xf32>
    %cst_11 = arith.constant dense<0.000000e+00> : vector<64xf32>
    %30 = vector.multi_reduction <add>, %29, %cst_11 [1] : vector<64x32xf32> to vector<64xf32>
    %31 = vector.shape_cast %30 : vector<64xf32> to vector<64x1xf32>
    %32 = arith.addf %24, %31 : vector<64x1xf32>
    %33 = arith.mulf %29, %29 : vector<64x32xf32>
    %cst_12 = arith.constant dense<0.000000e+00> : vector<64xf32>
    %34 = vector.multi_reduction <add>, %33, %cst_12 [1] : vector<64x32xf32> to vector<64xf32>
    %35 = vector.shape_cast %34 : vector<64xf32> to vector<64x1xf32>
    %36 = arith.addf %28, %35 : vector<64x1xf32>
    %cst_13 = arith.constant 1.280000e+02 : f32
    %37 = vector.broadcast %cst_13 : f32 to vector<64x1xf32>
    %38 = arith.divf %32, %37 : vector<64x1xf32>
    %cst_14 = arith.constant 1.280000e+02 : f32
    %39 = vector.broadcast %cst_14 : f32 to vector<64x1xf32>
    %40 = arith.divf %36, %39 : vector<64x1xf32>
    %41 = arith.mulf %38, %38 : vector<64x1xf32>
    %42 = arith.subf %40, %41 : vector<64x1xf32>
    %cst_15 = arith.constant 9.99999974E-6 : f32
    %43 = vector.broadcast %cst_15 : f32 to vector<64x1xf32>
    %44 = arith.addf %42, %43 : vector<64x1xf32>
    %45 = math.rsqrt %44 : vector<64x1xf32>
    %c0_16 = arith.constant 0 : index
    %c0_17 = arith.constant 0 : index
    %46 = vector.load %arg3[%c0_16, %c0_17] : memref<64x1xf32, #tpu.memory_space<vmem>>, vector<64x1xf32>
    %47 = arith.mulf %46, %45 : vector<64x1xf32>
    %c0_18 = arith.constant 0 : index
    %c0_19 = arith.constant 0 : index
    %48 = vector.load %arg4[%c0_18, %c0_19] : memref<64x1xf32, #tpu.memory_space<vmem>>, vector<64x1xf32>
    %49 = arith.mulf %38, %47 : vector<64x1xf32>
    %50 = arith.subf %48, %49 : vector<64x1xf32>
    %51 = vector.extract_strided_slice %2 {offsets = [0, 0], sizes = [64, 32], strides = [1, 1]} : vector<256x32xf32> to vector<64x32xf32>
    %52 = vector.broadcast %47 : vector<64x1xf32> to vector<64x32xf32>
    %53 = arith.mulf %51, %52 : vector<64x32xf32>
    %54 = vector.broadcast %50 : vector<64x1xf32> to vector<64x32xf32>
    %55 = arith.addf %53, %54 : vector<64x32xf32>
    %cst_20 = arith.constant 0.000000e+00 : f32
    %56 = vector.broadcast %cst_20 : f32 to vector<64x32xf32>
    %57 = arith.maximumf %55, %56 : vector<64x32xf32>
    %58 = arith.truncf %57 : vector<64x32xf32> to vector<64x32xbf16>
    %c0_21 = arith.constant 0 : index
    %c0_22 = arith.constant 0 : index
    %59 = vector.load %arg5[%c0_21, %c0_22] : memref<256x32xbf16, #tpu.memory_space<vmem>>, vector<64x32xbf16>
    tpu.vector_store %arg5[%c0_21, %c0_22], %58 {strides = array<i32>} : memref<256x32xbf16, #tpu.memory_space<vmem>>, vector<64x32xbf16>,
    %60 = vector.extract_strided_slice %2 {offsets = [64, 0], sizes = [64, 32], strides = [1, 1]} : vector<256x32xf32> to vector<64x32xf32>
    %61 = vector.broadcast %47 : vector<64x1xf32> to vector<64x32xf32>
    %62 = arith.mulf %60, %61 : vector<64x32xf32>
    %63 = vector.broadcast %50 : vector<64x1xf32> to vector<64x32xf32>
    %64 = arith.addf %62, %63 : vector<64x32xf32>
    %cst_23 = arith.constant 0.000000e+00 : f32
    %65 = vector.broadcast %cst_23 : f32 to vector<64x32xf32>
    %66 = arith.maximumf %64, %65 : vector<64x32xf32>
    %67 = arith.truncf %66 : vector<64x32xf32> to vector<64x32xbf16>
    %c64 = arith.constant 64 : index
    %c0_24 = arith.constant 0 : index
    %68 = vector.load %arg5[%c64, %c0_24] : memref<256x32xbf16, #tpu.memory_space<vmem>>, vector<64x32xbf16>
    tpu.vector_store %arg5[%c64, %c0_24], %67 {strides = array<i32>} : memref<256x32xbf16, #tpu.memory_space<vmem>>, vector<64x32xbf16>,
    %69 = vector.extract_strided_slice %2 {offsets = [128, 0], sizes = [64, 32], strides = [1, 1]} : vector<256x32xf32> to vector<64x32xf32>
    %70 = vector.broadcast %47 : vector<64x1xf32> to vector<64x32xf32>
    %71 = arith.mulf %69, %70 : vector<64x32xf32>
    %72 = vector.broadcast %50 : vector<64x1xf32> to vector<64x32xf32>
    %73 = arith.addf %71, %72 : vector<64x32xf32>
    %cst_25 = arith.constant 0.000000e+00 : f32
    %74 = vector.broadcast %cst_25 : f32 to vector<64x32xf32>
    %75 = arith.maximumf %73, %74 : vector<64x32xf32>
    %76 = arith.truncf %75 : vector<64x32xf32> to vector<64x32xbf16>
    %c128 = arith.constant 128 : index
    %c0_26 = arith.constant 0 : index
    %77 = vector.load %arg5[%c128, %c0_26] : memref<256x32xbf16, #tpu.memory_space<vmem>>, vector<64x32xbf16>
    tpu.vector_store %arg5[%c128, %c0_26], %76 {strides = array<i32>} : memref<256x32xbf16, #tpu.memory_space<vmem>>, vector<64x32xbf16>,
    %78 = vector.extract_strided_slice %2 {offsets = [192, 0], sizes = [64, 32], strides = [1, 1]} : vector<256x32xf32> to vector<64x32xf32>
    %79 = vector.broadcast %47 : vector<64x1xf32> to vector<64x32xf32>
    %80 = arith.mulf %78, %79 : vector<64x32xf32>
    %81 = vector.broadcast %50 : vector<64x1xf32> to vector<64x32xf32>
    %82 = arith.addf %80, %81 : vector<64x32xf32>
    %cst_27 = arith.constant 0.000000e+00 : f32
    %83 = vector.broadcast %cst_27 : f32 to vector<64x32xf32>
    %84 = arith.maximumf %82, %83 : vector<64x32xf32>
    %85 = arith.truncf %84 : vector<64x32xf32> to vector<64x32xbf16>
    %c192 = arith.constant 192 : index
    %c0_28 = arith.constant 0 : index
    %86 = vector.load %arg5[%c192, %c0_28] : memref<256x32xbf16, #tpu.memory_space<vmem>>, vector<64x32xbf16>
    tpu.vector_store %arg5[%c192, %c0_28], %85 {strides = array<i32>} : memref<256x32xbf16, #tpu.memory_space<vmem>>, vector<64x32xbf16>,
    return
  }
  func.func @transform_0(%arg0: i32) -> (i32, i32) {
    %c0_i32 = arith.constant 0 : i32
    %c0_i32_0 = arith.constant 0 : i32
    %c0_i32_1 = arith.constant 0 : i32
    return %c0_i32, %c0_i32_0 : i32, i32
  }
  func.func @transform_1(%arg0: i32) -> (i32, i32) {
    %c0_i32 = arith.constant 0 : i32
    %c0_i32_0 = arith.constant 0 : i32
    %c0_i32_1 = arith.constant 0 : i32
    return %c0_i32, %c0_i32_0 : i32, i32
  }
  func.func @transform_2(%arg0: i32) -> (i32, i32) {
    %c0_i32 = arith.constant 0 : i32
    %c0_i32_0 = arith.constant 0 : i32
    %c0_i32_1 = arith.constant 0 : i32
    return %c0_i32, %c0_i32_0 : i32, i32
  }
  func.func @transform_3(%arg0: i32) -> (i32, i32) {
    %c0_i32 = arith.constant 0 : i32
    %c0_i32_0 = arith.constant 0 : i32
    %c0_i32_1 = arith.constant 0 : i32
    return %c0_i32, %c0_i32_0 : i32, i32
  }
  func.func @transform_4(%arg0: i32) -> (i32, i32) {
    %c0_i32 = arith.constant 0 : i32
    %c0_i32_0 = arith.constant 0 : i32
    %c0_i32_1 = arith.constant 0 : i32
    return %c0_i32, %c0_i32_0 : i32, i32
  }
}

module attributes {stable_mosaic.version = 11 : i64} {
  func.func @_subpix_matmul_bn_relu_kernel(%arg0: i32, %arg1: memref<576x128xbf16, #tpu.memory_space<vmem>>, %arg2: memref<128x576xbf16, #tpu.memory_space<vmem>>, %arg3: memref<32x1xf32, #tpu.memory_space<vmem>>, %arg4: memref<32x1xf32, #tpu.memory_space<vmem>>, %arg5: memref<128x128xbf16, #tpu.memory_space<vmem>>) attributes {dimension_semantics = [#tpu.dimension_semantics<arbitrary>], iteration_bounds = array<i64: 1>, scalar_prefetch = 0 : i64, scratch_operands = 0 : i64, tpu.core_type = #tpu.core_type<tc>, window_params = [{pipeline_mode = #tpu.pipeline_mode<synchronous>, transform_indices = @transform_0, window_bounds = array<i64: 576, 128>}, {pipeline_mode = #tpu.pipeline_mode<synchronous>, transform_indices = @transform_1, window_bounds = array<i64: 128, 576>}, {pipeline_mode = #tpu.pipeline_mode<synchronous>, transform_indices = @transform_2, window_bounds = array<i64: 32, 1>}, {pipeline_mode = #tpu.pipeline_mode<synchronous>, transform_indices = @transform_3, window_bounds = array<i64: 32, 1>}, {pipeline_mode = #tpu.pipeline_mode<synchronous>, transform_indices = @transform_4, window_bounds = array<i64: 128, 128>}]} {
    %c0 = arith.constant 0 : index
    %c0_0 = arith.constant 0 : index
    %0 = vector.load %arg2[%c0, %c0_0] : memref<128x576xbf16, #tpu.memory_space<vmem>>, vector<128x576xbf16>
    %c0_1 = arith.constant 0 : index
    %c0_2 = arith.constant 0 : index
    %1 = vector.load %arg1[%c0_1, %c0_2] : memref<576x128xbf16, #tpu.memory_space<vmem>>, vector<576x128xbf16>
    %cst = arith.constant dense<0.000000e+00> : vector<128x128xf32>
    %2 = tpu.matmul %0, %1, %cst {dimension_numbers = #tpu.dot_dimension_numbers<[1], [0], [0], [1], [0, 0, 1, 1], [], []>} : vector<128x576xbf16>, vector<576x128xbf16>, vector<128x128xf32> -> vector<128x128xf32>
    %cst_3 = arith.constant 0.000000e+00 : f32
    %3 = vector.broadcast %cst_3 : f32 to vector<32x1xf32>
    %cst_4 = arith.constant 0.000000e+00 : f32
    %4 = vector.broadcast %cst_4 : f32 to vector<32x1xf32>
    %5 = vector.extract_strided_slice %2 {offsets = [0, 0], sizes = [32, 128], strides = [1, 1]} : vector<128x128xf32> to vector<32x128xf32>
    %cst_5 = arith.constant dense<0.000000e+00> : vector<32xf32>
    %6 = vector.multi_reduction <add>, %5, %cst_5 [1] : vector<32x128xf32> to vector<32xf32>
    %7 = vector.shape_cast %6 : vector<32xf32> to vector<32x1xf32>
    %8 = arith.addf %3, %7 : vector<32x1xf32>
    %9 = arith.mulf %5, %5 : vector<32x128xf32>
    %cst_6 = arith.constant dense<0.000000e+00> : vector<32xf32>
    %10 = vector.multi_reduction <add>, %9, %cst_6 [1] : vector<32x128xf32> to vector<32xf32>
    %11 = vector.shape_cast %10 : vector<32xf32> to vector<32x1xf32>
    %12 = arith.addf %4, %11 : vector<32x1xf32>
    %13 = vector.extract_strided_slice %2 {offsets = [32, 0], sizes = [32, 128], strides = [1, 1]} : vector<128x128xf32> to vector<32x128xf32>
    %cst_7 = arith.constant dense<0.000000e+00> : vector<32xf32>
    %14 = vector.multi_reduction <add>, %13, %cst_7 [1] : vector<32x128xf32> to vector<32xf32>
    %15 = vector.shape_cast %14 : vector<32xf32> to vector<32x1xf32>
    %16 = arith.addf %8, %15 : vector<32x1xf32>
    %17 = arith.mulf %13, %13 : vector<32x128xf32>
    %cst_8 = arith.constant dense<0.000000e+00> : vector<32xf32>
    %18 = vector.multi_reduction <add>, %17, %cst_8 [1] : vector<32x128xf32> to vector<32xf32>
    %19 = vector.shape_cast %18 : vector<32xf32> to vector<32x1xf32>
    %20 = arith.addf %12, %19 : vector<32x1xf32>
    %21 = vector.extract_strided_slice %2 {offsets = [64, 0], sizes = [32, 128], strides = [1, 1]} : vector<128x128xf32> to vector<32x128xf32>
    %cst_9 = arith.constant dense<0.000000e+00> : vector<32xf32>
    %22 = vector.multi_reduction <add>, %21, %cst_9 [1] : vector<32x128xf32> to vector<32xf32>
    %23 = vector.shape_cast %22 : vector<32xf32> to vector<32x1xf32>
    %24 = arith.addf %16, %23 : vector<32x1xf32>
    %25 = arith.mulf %21, %21 : vector<32x128xf32>
    %cst_10 = arith.constant dense<0.000000e+00> : vector<32xf32>
    %26 = vector.multi_reduction <add>, %25, %cst_10 [1] : vector<32x128xf32> to vector<32xf32>
    %27 = vector.shape_cast %26 : vector<32xf32> to vector<32x1xf32>
    %28 = arith.addf %20, %27 : vector<32x1xf32>
    %29 = vector.extract_strided_slice %2 {offsets = [96, 0], sizes = [32, 128], strides = [1, 1]} : vector<128x128xf32> to vector<32x128xf32>
    %cst_11 = arith.constant dense<0.000000e+00> : vector<32xf32>
    %30 = vector.multi_reduction <add>, %29, %cst_11 [1] : vector<32x128xf32> to vector<32xf32>
    %31 = vector.shape_cast %30 : vector<32xf32> to vector<32x1xf32>
    %32 = arith.addf %24, %31 : vector<32x1xf32>
    %33 = arith.mulf %29, %29 : vector<32x128xf32>
    %cst_12 = arith.constant dense<0.000000e+00> : vector<32xf32>
    %34 = vector.multi_reduction <add>, %33, %cst_12 [1] : vector<32x128xf32> to vector<32xf32>
    %35 = vector.shape_cast %34 : vector<32xf32> to vector<32x1xf32>
    %36 = arith.addf %28, %35 : vector<32x1xf32>
    %cst_13 = arith.constant 5.120000e+02 : f32
    %37 = vector.broadcast %cst_13 : f32 to vector<32x1xf32>
    %38 = arith.divf %32, %37 : vector<32x1xf32>
    %cst_14 = arith.constant 5.120000e+02 : f32
    %39 = vector.broadcast %cst_14 : f32 to vector<32x1xf32>
    %40 = arith.divf %36, %39 : vector<32x1xf32>
    %41 = arith.mulf %38, %38 : vector<32x1xf32>
    %42 = arith.subf %40, %41 : vector<32x1xf32>
    %cst_15 = arith.constant 9.99999974E-6 : f32
    %43 = vector.broadcast %cst_15 : f32 to vector<32x1xf32>
    %44 = arith.addf %42, %43 : vector<32x1xf32>
    %45 = math.rsqrt %44 : vector<32x1xf32>
    %c0_16 = arith.constant 0 : index
    %c0_17 = arith.constant 0 : index
    %46 = vector.load %arg3[%c0_16, %c0_17] : memref<32x1xf32, #tpu.memory_space<vmem>>, vector<32x1xf32>
    %47 = arith.mulf %46, %45 : vector<32x1xf32>
    %c0_18 = arith.constant 0 : index
    %c0_19 = arith.constant 0 : index
    %48 = vector.load %arg4[%c0_18, %c0_19] : memref<32x1xf32, #tpu.memory_space<vmem>>, vector<32x1xf32>
    %49 = arith.mulf %38, %47 : vector<32x1xf32>
    %50 = arith.subf %48, %49 : vector<32x1xf32>
    %51 = vector.extract_strided_slice %2 {offsets = [0, 0], sizes = [32, 128], strides = [1, 1]} : vector<128x128xf32> to vector<32x128xf32>
    %52 = vector.broadcast %47 : vector<32x1xf32> to vector<32x128xf32>
    %53 = arith.mulf %51, %52 : vector<32x128xf32>
    %54 = vector.broadcast %50 : vector<32x1xf32> to vector<32x128xf32>
    %55 = arith.addf %53, %54 : vector<32x128xf32>
    %cst_20 = arith.constant 0.000000e+00 : f32
    %56 = vector.broadcast %cst_20 : f32 to vector<32x128xf32>
    %57 = arith.maximumf %55, %56 : vector<32x128xf32>
    %58 = arith.truncf %57 : vector<32x128xf32> to vector<32x128xbf16>
    %c0_21 = arith.constant 0 : index
    %c0_22 = arith.constant 0 : index
    %59 = vector.load %arg5[%c0_21, %c0_22] : memref<128x128xbf16, #tpu.memory_space<vmem>>, vector<32x128xbf16>
    tpu.vector_store %arg5[%c0_21, %c0_22], %58 {strides = array<i32>} : memref<128x128xbf16, #tpu.memory_space<vmem>>, vector<32x128xbf16>,
    %60 = vector.extract_strided_slice %2 {offsets = [32, 0], sizes = [32, 128], strides = [1, 1]} : vector<128x128xf32> to vector<32x128xf32>
    %61 = vector.broadcast %47 : vector<32x1xf32> to vector<32x128xf32>
    %62 = arith.mulf %60, %61 : vector<32x128xf32>
    %63 = vector.broadcast %50 : vector<32x1xf32> to vector<32x128xf32>
    %64 = arith.addf %62, %63 : vector<32x128xf32>
    %cst_23 = arith.constant 0.000000e+00 : f32
    %65 = vector.broadcast %cst_23 : f32 to vector<32x128xf32>
    %66 = arith.maximumf %64, %65 : vector<32x128xf32>
    %67 = arith.truncf %66 : vector<32x128xf32> to vector<32x128xbf16>
    %c32 = arith.constant 32 : index
    %c0_24 = arith.constant 0 : index
    %68 = vector.load %arg5[%c32, %c0_24] : memref<128x128xbf16, #tpu.memory_space<vmem>>, vector<32x128xbf16>
    tpu.vector_store %arg5[%c32, %c0_24], %67 {strides = array<i32>} : memref<128x128xbf16, #tpu.memory_space<vmem>>, vector<32x128xbf16>,
    %69 = vector.extract_strided_slice %2 {offsets = [64, 0], sizes = [32, 128], strides = [1, 1]} : vector<128x128xf32> to vector<32x128xf32>
    %70 = vector.broadcast %47 : vector<32x1xf32> to vector<32x128xf32>
    %71 = arith.mulf %69, %70 : vector<32x128xf32>
    %72 = vector.broadcast %50 : vector<32x1xf32> to vector<32x128xf32>
    %73 = arith.addf %71, %72 : vector<32x128xf32>
    %cst_25 = arith.constant 0.000000e+00 : f32
    %74 = vector.broadcast %cst_25 : f32 to vector<32x128xf32>
    %75 = arith.maximumf %73, %74 : vector<32x128xf32>
    %76 = arith.truncf %75 : vector<32x128xf32> to vector<32x128xbf16>
    %c64 = arith.constant 64 : index
    %c0_26 = arith.constant 0 : index
    %77 = vector.load %arg5[%c64, %c0_26] : memref<128x128xbf16, #tpu.memory_space<vmem>>, vector<32x128xbf16>
    tpu.vector_store %arg5[%c64, %c0_26], %76 {strides = array<i32>} : memref<128x128xbf16, #tpu.memory_space<vmem>>, vector<32x128xbf16>,
    %78 = vector.extract_strided_slice %2 {offsets = [96, 0], sizes = [32, 128], strides = [1, 1]} : vector<128x128xf32> to vector<32x128xf32>
    %79 = vector.broadcast %47 : vector<32x1xf32> to vector<32x128xf32>
    %80 = arith.mulf %78, %79 : vector<32x128xf32>
    %81 = vector.broadcast %50 : vector<32x1xf32> to vector<32x128xf32>
    %82 = arith.addf %80, %81 : vector<32x128xf32>
    %cst_27 = arith.constant 0.000000e+00 : f32
    %83 = vector.broadcast %cst_27 : f32 to vector<32x128xf32>
    %84 = arith.maximumf %82, %83 : vector<32x128xf32>
    %85 = arith.truncf %84 : vector<32x128xf32> to vector<32x128xbf16>
    %c96 = arith.constant 96 : index
    %c0_28 = arith.constant 0 : index
    %86 = vector.load %arg5[%c96, %c0_28] : memref<128x128xbf16, #tpu.memory_space<vmem>>, vector<32x128xbf16>
    tpu.vector_store %arg5[%c96, %c0_28], %85 {strides = array<i32>} : memref<128x128xbf16, #tpu.memory_space<vmem>>, vector<32x128xbf16>,
    return
  }
  func.func @transform_0(%arg0: i32) -> (i32, i32) {
    %c0_i32 = arith.constant 0 : i32
    %c0_i32_0 = arith.constant 0 : i32
    %c0_i32_1 = arith.constant 0 : i32
    return %c0_i32, %c0_i32_0 : i32, i32
  }
  func.func @transform_1(%arg0: i32) -> (i32, i32) {
    %c0_i32 = arith.constant 0 : i32
    %c0_i32_0 = arith.constant 0 : i32
    %c0_i32_1 = arith.constant 0 : i32
    return %c0_i32, %c0_i32_0 : i32, i32
  }
  func.func @transform_2(%arg0: i32) -> (i32, i32) {
    %c0_i32 = arith.constant 0 : i32
    %c0_i32_0 = arith.constant 0 : i32
    %c0_i32_1 = arith.constant 0 : i32
    return %c0_i32, %c0_i32_0 : i32, i32
  }
  func.func @transform_3(%arg0: i32) -> (i32, i32) {
    %c0_i32 = arith.constant 0 : i32
    %c0_i32_0 = arith.constant 0 : i32
    %c0_i32_1 = arith.constant 0 : i32
    return %c0_i32, %c0_i32_0 : i32, i32
  }
  func.func @transform_4(%arg0: i32) -> (i32, i32) {
    %c0_i32 = arith.constant 0 : i32
    %c0_i32_0 = arith.constant 0 : i32
    %c0_i32_1 = arith.constant 0 : i32
    return %c0_i32, %c0_i32_0 : i32, i32
  }
}

module attributes {stable_mosaic.version = 11 : i64} {
  func.func @_subpix_matmul_bn_relu_kernel(%arg0: i32, %arg1: memref<288x512xbf16, #tpu.memory_space<vmem>>, %arg2: memref<64x288xbf16, #tpu.memory_space<vmem>>, %arg3: memref<16x1xf32, #tpu.memory_space<vmem>>, %arg4: memref<16x1xf32, #tpu.memory_space<vmem>>, %arg5: memref<64x512xbf16, #tpu.memory_space<vmem>>) attributes {dimension_semantics = [#tpu.dimension_semantics<arbitrary>], iteration_bounds = array<i64: 1>, scalar_prefetch = 0 : i64, scratch_operands = 0 : i64, tpu.core_type = #tpu.core_type<tc>, window_params = [{pipeline_mode = #tpu.pipeline_mode<synchronous>, transform_indices = @transform_0, window_bounds = array<i64: 288, 512>}, {pipeline_mode = #tpu.pipeline_mode<synchronous>, transform_indices = @transform_1, window_bounds = array<i64: 64, 288>}, {pipeline_mode = #tpu.pipeline_mode<synchronous>, transform_indices = @transform_2, window_bounds = array<i64: 16, 1>}, {pipeline_mode = #tpu.pipeline_mode<synchronous>, transform_indices = @transform_3, window_bounds = array<i64: 16, 1>}, {pipeline_mode = #tpu.pipeline_mode<synchronous>, transform_indices = @transform_4, window_bounds = array<i64: 64, 512>}]} {
    %c0 = arith.constant 0 : index
    %c0_0 = arith.constant 0 : index
    %0 = vector.load %arg2[%c0, %c0_0] : memref<64x288xbf16, #tpu.memory_space<vmem>>, vector<64x288xbf16>
    %c0_1 = arith.constant 0 : index
    %c0_2 = arith.constant 0 : index
    %1 = vector.load %arg1[%c0_1, %c0_2] : memref<288x512xbf16, #tpu.memory_space<vmem>>, vector<288x512xbf16>
    %cst = arith.constant dense<0.000000e+00> : vector<64x512xf32>
    %2 = tpu.matmul %0, %1, %cst {dimension_numbers = #tpu.dot_dimension_numbers<[1], [0], [0], [1], [0, 0, 1, 1], [], []>} : vector<64x288xbf16>, vector<288x512xbf16>, vector<64x512xf32> -> vector<64x512xf32>
    %cst_3 = arith.constant 0.000000e+00 : f32
    %3 = vector.broadcast %cst_3 : f32 to vector<16x1xf32>
    %cst_4 = arith.constant 0.000000e+00 : f32
    %4 = vector.broadcast %cst_4 : f32 to vector<16x1xf32>
    %5 = vector.extract_strided_slice %2 {offsets = [0, 0], sizes = [16, 512], strides = [1, 1]} : vector<64x512xf32> to vector<16x512xf32>
    %cst_5 = arith.constant dense<0.000000e+00> : vector<16xf32>
    %6 = vector.multi_reduction <add>, %5, %cst_5 [1] : vector<16x512xf32> to vector<16xf32>
    %7 = vector.shape_cast %6 : vector<16xf32> to vector<16x1xf32>
    %8 = arith.addf %3, %7 : vector<16x1xf32>
    %9 = arith.mulf %5, %5 : vector<16x512xf32>
    %cst_6 = arith.constant dense<0.000000e+00> : vector<16xf32>
    %10 = vector.multi_reduction <add>, %9, %cst_6 [1] : vector<16x512xf32> to vector<16xf32>
    %11 = vector.shape_cast %10 : vector<16xf32> to vector<16x1xf32>
    %12 = arith.addf %4, %11 : vector<16x1xf32>
    %13 = vector.extract_strided_slice %2 {offsets = [16, 0], sizes = [16, 512], strides = [1, 1]} : vector<64x512xf32> to vector<16x512xf32>
    %cst_7 = arith.constant dense<0.000000e+00> : vector<16xf32>
    %14 = vector.multi_reduction <add>, %13, %cst_7 [1] : vector<16x512xf32> to vector<16xf32>
    %15 = vector.shape_cast %14 : vector<16xf32> to vector<16x1xf32>
    %16 = arith.addf %8, %15 : vector<16x1xf32>
    %17 = arith.mulf %13, %13 : vector<16x512xf32>
    %cst_8 = arith.constant dense<0.000000e+00> : vector<16xf32>
    %18 = vector.multi_reduction <add>, %17, %cst_8 [1] : vector<16x512xf32> to vector<16xf32>
    %19 = vector.shape_cast %18 : vector<16xf32> to vector<16x1xf32>
    %20 = arith.addf %12, %19 : vector<16x1xf32>
    %21 = vector.extract_strided_slice %2 {offsets = [32, 0], sizes = [16, 512], strides = [1, 1]} : vector<64x512xf32> to vector<16x512xf32>
    %cst_9 = arith.constant dense<0.000000e+00> : vector<16xf32>
    %22 = vector.multi_reduction <add>, %21, %cst_9 [1] : vector<16x512xf32> to vector<16xf32>
    %23 = vector.shape_cast %22 : vector<16xf32> to vector<16x1xf32>
    %24 = arith.addf %16, %23 : vector<16x1xf32>
    %25 = arith.mulf %21, %21 : vector<16x512xf32>
    %cst_10 = arith.constant dense<0.000000e+00> : vector<16xf32>
    %26 = vector.multi_reduction <add>, %25, %cst_10 [1] : vector<16x512xf32> to vector<16xf32>
    %27 = vector.shape_cast %26 : vector<16xf32> to vector<16x1xf32>
    %28 = arith.addf %20, %27 : vector<16x1xf32>
    %29 = vector.extract_strided_slice %2 {offsets = [48, 0], sizes = [16, 512], strides = [1, 1]} : vector<64x512xf32> to vector<16x512xf32>
    %cst_11 = arith.constant dense<0.000000e+00> : vector<16xf32>
    %30 = vector.multi_reduction <add>, %29, %cst_11 [1] : vector<16x512xf32> to vector<16xf32>
    %31 = vector.shape_cast %30 : vector<16xf32> to vector<16x1xf32>
    %32 = arith.addf %24, %31 : vector<16x1xf32>
    %33 = arith.mulf %29, %29 : vector<16x512xf32>
    %cst_12 = arith.constant dense<0.000000e+00> : vector<16xf32>
    %34 = vector.multi_reduction <add>, %33, %cst_12 [1] : vector<16x512xf32> to vector<16xf32>
    %35 = vector.shape_cast %34 : vector<16xf32> to vector<16x1xf32>
    %36 = arith.addf %28, %35 : vector<16x1xf32>
    %cst_13 = arith.constant 2.048000e+03 : f32
    %37 = vector.broadcast %cst_13 : f32 to vector<16x1xf32>
    %38 = arith.divf %32, %37 : vector<16x1xf32>
    %cst_14 = arith.constant 2.048000e+03 : f32
    %39 = vector.broadcast %cst_14 : f32 to vector<16x1xf32>
    %40 = arith.divf %36, %39 : vector<16x1xf32>
    %41 = arith.mulf %38, %38 : vector<16x1xf32>
    %42 = arith.subf %40, %41 : vector<16x1xf32>
    %cst_15 = arith.constant 9.99999974E-6 : f32
    %43 = vector.broadcast %cst_15 : f32 to vector<16x1xf32>
    %44 = arith.addf %42, %43 : vector<16x1xf32>
    %45 = math.rsqrt %44 : vector<16x1xf32>
    %c0_16 = arith.constant 0 : index
    %c0_17 = arith.constant 0 : index
    %46 = vector.load %arg3[%c0_16, %c0_17] : memref<16x1xf32, #tpu.memory_space<vmem>>, vector<16x1xf32>
    %47 = arith.mulf %46, %45 : vector<16x1xf32>
    %c0_18 = arith.constant 0 : index
    %c0_19 = arith.constant 0 : index
    %48 = vector.load %arg4[%c0_18, %c0_19] : memref<16x1xf32, #tpu.memory_space<vmem>>, vector<16x1xf32>
    %49 = arith.mulf %38, %47 : vector<16x1xf32>
    %50 = arith.subf %48, %49 : vector<16x1xf32>
    %51 = vector.extract_strided_slice %2 {offsets = [0, 0], sizes = [16, 512], strides = [1, 1]} : vector<64x512xf32> to vector<16x512xf32>
    %52 = vector.broadcast %47 : vector<16x1xf32> to vector<16x512xf32>
    %53 = arith.mulf %51, %52 : vector<16x512xf32>
    %54 = vector.broadcast %50 : vector<16x1xf32> to vector<16x512xf32>
    %55 = arith.addf %53, %54 : vector<16x512xf32>
    %cst_20 = arith.constant 0.000000e+00 : f32
    %56 = vector.broadcast %cst_20 : f32 to vector<16x512xf32>
    %57 = arith.maximumf %55, %56 : vector<16x512xf32>
    %58 = arith.truncf %57 : vector<16x512xf32> to vector<16x512xbf16>
    %c0_21 = arith.constant 0 : index
    %c0_22 = arith.constant 0 : index
    %59 = vector.load %arg5[%c0_21, %c0_22] : memref<64x512xbf16, #tpu.memory_space<vmem>>, vector<16x512xbf16>
    tpu.vector_store %arg5[%c0_21, %c0_22], %58 {strides = array<i32>} : memref<64x512xbf16, #tpu.memory_space<vmem>>, vector<16x512xbf16>,
    %60 = vector.extract_strided_slice %2 {offsets = [16, 0], sizes = [16, 512], strides = [1, 1]} : vector<64x512xf32> to vector<16x512xf32>
    %61 = vector.broadcast %47 : vector<16x1xf32> to vector<16x512xf32>
    %62 = arith.mulf %60, %61 : vector<16x512xf32>
    %63 = vector.broadcast %50 : vector<16x1xf32> to vector<16x512xf32>
    %64 = arith.addf %62, %63 : vector<16x512xf32>
    %cst_23 = arith.constant 0.000000e+00 : f32
    %65 = vector.broadcast %cst_23 : f32 to vector<16x512xf32>
    %66 = arith.maximumf %64, %65 : vector<16x512xf32>
    %67 = arith.truncf %66 : vector<16x512xf32> to vector<16x512xbf16>
    %c16 = arith.constant 16 : index
    %c0_24 = arith.constant 0 : index
    %68 = vector.load %arg5[%c16, %c0_24] : memref<64x512xbf16, #tpu.memory_space<vmem>>, vector<16x512xbf16>
    tpu.vector_store %arg5[%c16, %c0_24], %67 {strides = array<i32>} : memref<64x512xbf16, #tpu.memory_space<vmem>>, vector<16x512xbf16>,
    %69 = vector.extract_strided_slice %2 {offsets = [32, 0], sizes = [16, 512], strides = [1, 1]} : vector<64x512xf32> to vector<16x512xf32>
    %70 = vector.broadcast %47 : vector<16x1xf32> to vector<16x512xf32>
    %71 = arith.mulf %69, %70 : vector<16x512xf32>
    %72 = vector.broadcast %50 : vector<16x1xf32> to vector<16x512xf32>
    %73 = arith.addf %71, %72 : vector<16x512xf32>
    %cst_25 = arith.constant 0.000000e+00 : f32
    %74 = vector.broadcast %cst_25 : f32 to vector<16x512xf32>
    %75 = arith.maximumf %73, %74 : vector<16x512xf32>
    %76 = arith.truncf %75 : vector<16x512xf32> to vector<16x512xbf16>
    %c32 = arith.constant 32 : index
    %c0_26 = arith.constant 0 : index
    %77 = vector.load %arg5[%c32, %c0_26] : memref<64x512xbf16, #tpu.memory_space<vmem>>, vector<16x512xbf16>
    tpu.vector_store %arg5[%c32, %c0_26], %76 {strides = array<i32>} : memref<64x512xbf16, #tpu.memory_space<vmem>>, vector<16x512xbf16>,
    %78 = vector.extract_strided_slice %2 {offsets = [48, 0], sizes = [16, 512], strides = [1, 1]} : vector<64x512xf32> to vector<16x512xf32>
    %79 = vector.broadcast %47 : vector<16x1xf32> to vector<16x512xf32>
    %80 = arith.mulf %78, %79 : vector<16x512xf32>
    %81 = vector.broadcast %50 : vector<16x1xf32> to vector<16x512xf32>
    %82 = arith.addf %80, %81 : vector<16x512xf32>
    %cst_27 = arith.constant 0.000000e+00 : f32
    %83 = vector.broadcast %cst_27 : f32 to vector<16x512xf32>
    %84 = arith.maximumf %82, %83 : vector<16x512xf32>
    %85 = arith.truncf %84 : vector<16x512xf32> to vector<16x512xbf16>
    %c48 = arith.constant 48 : index
    %c0_28 = arith.constant 0 : index
    %86 = vector.load %arg5[%c48, %c0_28] : memref<64x512xbf16, #tpu.memory_space<vmem>>, vector<16x512xbf16>
    tpu.vector_store %arg5[%c48, %c0_28], %85 {strides = array<i32>} : memref<64x512xbf16, #tpu.memory_space<vmem>>, vector<16x512xbf16>,
    return
  }
  func.func @transform_0(%arg0: i32) -> (i32, i32) {
    %c0_i32 = arith.constant 0 : i32
    %c0_i32_0 = arith.constant 0 : i32
    %c0_i32_1 = arith.constant 0 : i32
    return %c0_i32, %c0_i32_0 : i32, i32
  }
  func.func @transform_1(%arg0: i32) -> (i32, i32) {
    %c0_i32 = arith.constant 0 : i32
    %c0_i32_0 = arith.constant 0 : i32
    %c0_i32_1 = arith.constant 0 : i32
    return %c0_i32, %c0_i32_0 : i32, i32
  }
  func.func @transform_2(%arg0: i32) -> (i32, i32) {
    %c0_i32 = arith.constant 0 : i32
    %c0_i32_0 = arith.constant 0 : i32
    %c0_i32_1 = arith.constant 0 : i32
    return %c0_i32, %c0_i32_0 : i32, i32
  }
  func.func @transform_3(%arg0: i32) -> (i32, i32) {
    %c0_i32 = arith.constant 0 : i32
    %c0_i32_0 = arith.constant 0 : i32
    %c0_i32_1 = arith.constant 0 : i32
    return %c0_i32, %c0_i32_0 : i32, i32
  }
  func.func @transform_4(%arg0: i32) -> (i32, i32) {
    %c0_i32 = arith.constant 0 : i32
    %c0_i32_0 = arith.constant 0 : i32
    %c0_i32_1 = arith.constant 0 : i32
    return %c0_i32, %c0_i32_0 : i32, i32
  }
}

module attributes {stable_mosaic.version = 11 : i64} {
  func.func @_subpix_matmul_bias_tanh_kernel(%arg0: i32, %arg1: memref<144x1024xbf16, #tpu.memory_space<vmem>>, %arg2: memref<32x144xbf16, #tpu.memory_space<vmem>>, %arg3: memref<32x1xf32, #tpu.memory_space<vmem>>, %arg4: memref<32x1024xf32, #tpu.memory_space<vmem>>) attributes {dimension_semantics = [#tpu.dimension_semantics<parallel>], iteration_bounds = array<i64: 2>, scalar_prefetch = 0 : i64, scratch_operands = 0 : i64, tpu.core_type = #tpu.core_type<tc>, window_params = [{transform_indices = @transform_0, window_bounds = array<i64: 144, 1024>}, {pipeline_mode = #tpu.pipeline_mode<synchronous>, transform_indices = @transform_1, window_bounds = array<i64: 32, 144>}, {pipeline_mode = #tpu.pipeline_mode<synchronous>, transform_indices = @transform_2, window_bounds = array<i64: 32, 1>}, {transform_indices = @transform_3, window_bounds = array<i64: 32, 1024>}]} {
    %c0 = arith.constant 0 : index
    %c0_0 = arith.constant 0 : index
    %0 = vector.load %arg2[%c0, %c0_0] : memref<32x144xbf16, #tpu.memory_space<vmem>>, vector<32x144xbf16>
    %c0_1 = arith.constant 0 : index
    %c0_2 = arith.constant 0 : index
    %1 = vector.load %arg1[%c0_1, %c0_2] : memref<144x1024xbf16, #tpu.memory_space<vmem>>, vector<144x1024xbf16>
    %cst = arith.constant dense<0.000000e+00> : vector<32x1024xf32>
    %2 = tpu.matmul %0, %1, %cst {dimension_numbers = #tpu.dot_dimension_numbers<[1], [0], [0], [1], [0, 0, 1, 1], [], []>} : vector<32x144xbf16>, vector<144x1024xbf16>, vector<32x1024xf32> -> vector<32x1024xf32>
    %c0_3 = arith.constant 0 : index
    %c0_4 = arith.constant 0 : index
    %3 = vector.load %arg3[%c0_3, %c0_4] : memref<32x1xf32, #tpu.memory_space<vmem>>, vector<32x1xf32>
    %4 = vector.broadcast %3 : vector<32x1xf32> to vector<32x1024xf32>
    %5 = arith.addf %2, %4 : vector<32x1024xf32>
    %6 = math.tanh %5 : vector<32x1024xf32>
    %c0_5 = arith.constant 0 : index
    %c0_6 = arith.constant 0 : index
    %7 = vector.load %arg4[%c0_5, %c0_6] : memref<32x1024xf32, #tpu.memory_space<vmem>>, vector<32x1024xf32>
    tpu.vector_store %arg4[%c0_5, %c0_6], %6 {strides = array<i32>} : memref<32x1024xf32, #tpu.memory_space<vmem>>, vector<32x1024xf32>,
    return
  }
  func.func @transform_0(%arg0: i32) -> (i32, i32) {
    %c0_i32 = arith.constant 0 : i32
    %c0_i32_0 = arith.constant 0 : i32
    return %c0_i32, %arg0 : i32, i32
  }
  func.func @transform_1(%arg0: i32) -> (i32, i32) {
    %c0_i32 = arith.constant 0 : i32
    %c0_i32_0 = arith.constant 0 : i32
    %c0_i32_1 = arith.constant 0 : i32
    return %c0_i32, %c0_i32_0 : i32, i32
  }
  func.func @transform_2(%arg0: i32) -> (i32, i32) {
    %c0_i32 = arith.constant 0 : i32
    %c0_i32_0 = arith.constant 0 : i32
    %c0_i32_1 = arith.constant 0 : i32
    return %c0_i32, %c0_i32_0 : i32, i32
  }
  func.func @transform_3(%arg0: i32) -> (i32, i32) {
    %c0_i32 = arith.constant 0 : i32
    %c0_i32_0 = arith.constant 0 : i32
    return %c0_i32, %arg0 : i32, i32
  }
}

</mosaic_0001>

<llo_original>
// kernel: tile.8
$region0: #{tile.8}
  #allocation0 [shape = 's32[1]{0}', space=sflag, size = 0x4, scoped, tag = 'scoped memory for tile.8']
  %s0 = inlined_call_operand.vmem [shape: f32[8], index: 0, kind: input, shape index: {}]
  %s1 = inlined_call_operand.vmem [shape: f32[4,8], index: 1, kind: output, shape index: {}]
  // Predicated region
  $region2: #{tile.8} parent=0 // pred_check
    _
  $region3: #{tile.8} parent=0 // pred_check_branch
    %3 = sbr.rel (0) target = $region5
  $region4: #{tile.8} parent=0 // pred_region
    _
  $region5: #{tile.8} parent=0 // pred_fallthru
    _
  %v4 = vld [vmem:[%s0] ss:$0 sm:$0xff]
  %5 = vst [vmem:[%s1] sm:$0xf] %v4

// kernel: tile.0
$region0: #{tile.0}
  %s0 = inlined_call_operand.vmem [shape: f32[4,8], index: 0, kind: input, shape index: {}]
  %s1 = inlined_call_operand.vmem [shape: f32[32,1], index: 1, kind: output, shape index: {}]
  $region1: #{tile.0} parent=0
    #allocation0 [shape = 'u8[4096]{0}', space=vmem, size = 0x1000, scoped, tag = 'scoped mem for input reshape']
    %s3 = sshllo.u32 0, 4
    %v4 = vld [vmem:[%s0] sm:%s3]
    %5 = vst [vmem:[#allocation0] sm:%s3] %v4
    %v6 = vld [vmem:[#allocation0] sm:$0xf]
    %vm7 = vcmask 7168
    %8 = vst.msk [vmem:[%s1] ss:$8 sm:$0xf] %vm7, %v6
    %v9 = vld [vmem:[#allocation0] sm:$0xf]
    %10 = vrot.lane.b32.xlu0 %v9, 127
    %v11 = vpop.permute.xlu0 %10
    %vm12 = vcmask 7168
    %s13 = scalar_lea.vmem %s1, 1
    %14 = vst.msk [vmem:[%s13] ss:$8 sm:$0xf] %vm12, %v11
    %v15 = vld [vmem:[#allocation0] sm:$0xf]
    %16 = vrot.lane.b32.xlu0 %v15, 126
    %v17 = vpop.permute.xlu0 %16
    %vm18 = vcmask 7168
    %s19 = scalar_lea.vmem %s1, 2
    %20 = vst.msk [vmem:[%s19] ss:$8 sm:$0xf] %vm18, %v17
    %v21 = vld [vmem:[#allocation0] sm:$0xf]
    %22 = vrot.lane.b32.xlu0 %v21, 125
    %v23 = vpop.permute.xlu0 %22
    %vm24 = vcmask 7168
    %s25 = scalar_lea.vmem %s1, 3
    %26 = vst.msk [vmem:[%s25] ss:$8 sm:$0xf] %vm24, %v23
    %v27 = vld [vmem:[#allocation0] sm:$0xf]
    %28 = vrot.lane.b32.xlu0 %v27, 124
    %v29 = vpop.permute.xlu0 %28
    %vm30 = vcmask 7168
    %s31 = scalar_lea.vmem %s1, 4
    %32 = vst.msk [vmem:[%s31] ss:$8 sm:$0xf] %vm30, %v29
    %v33 = vld [vmem:[#allocation0] sm:$0xf]
    %34 = vrot.lane.b32.xlu0 %v33, 123
    %v35 = vpop.permute.xlu0 %34
    %vm36 = vcmask 7168
    %s37 = scalar_lea.vmem %s1, 5
    %38 = vst.msk [vmem:[%s37] ss:$8 sm:$0xf] %vm36, %v35
    %v39 = vld [vmem:[#allocation0] sm:$0xf]
    %40 = vrot.lane.b32.xlu0 %v39, 122
    %v41 = vpop.permute.xlu0 %40
    %vm42 = vcmask 7168
    %s43 = scalar_lea.vmem %s1, 6
    %44 = vst.msk [vmem:[%s43] ss:$8 sm:$0xf] %vm42, %v41
    %v45 = vld [vmem:[#allocation0] sm:$0xf]
    %46 = vrot.lane.b32.xlu0 %v45, 121
    %v47 = vpop.permute.xlu0 %46
    %vm48 = vcmask 7168
    %s49 = scalar_lea.vmem %s1, 7
    %50 = vst.msk [vmem:[%s49] ss:$8 sm:$0xf] %vm48, %v47

// kernel: generator_forward.5
$region0: #{generator_forward.5}
  #allocation0 [shape = 'u32[]', space=smem, size = 0x4, offset = 0x4, fixed_abs, tag = 'smem constant byte address 0x4 - core index']
  #allocation1 [shape = 'u32[144,128]{1,0:T(1,128)}', space=vmem, size = 0x12000, scoped, tag = 'internal scratch']
  %s0 = inlined_call_operand.vmem [shape: bf16[2,16], index: 0, kind: input, shape index: {}]
  %s1 = inlined_call_operand.vmem [shape: bf16[16,2048], index: 1, kind: input, shape index: {}]
  %s2 = inlined_call_operand.hbm [shape: f32[1,128], index: 2, kind: input, shape index: {}]
  %s3 = inlined_call_operand.hbm [shape: f32[1,128], index: 3, kind: input, shape index: {}]
  %s4 = inlined_call_operand.vmem [shape: bf16[2,2048], index: 4, kind: output, shape index: {}]
  %s5 = sld [smem:[#allocation0]]
  $region34: #{generator_forward.5} parent=0
    _
  %s7 = ssub.s32 1, %s5
  %s8 = scalar_select 0, %s7, %s5
  $region1: #{generator_forward.5} parent=0
    #allocation2 [shape = 'u8[512]{0}', space=vmem, size = 0x400, scoped, tag = 'input window, operand 2, single buffered']
    #allocation3 [shape = 's32[1]{0}', space=sflag, size = 0x4, scoped, tag = 'scoped memory for generator_forward.5']
    #allocation4 [shape = 'u8[512]{0}', space=vmem, size = 0x400, scoped, tag = 'input window, operand 3, single buffered']
    #allocation5 [shape = 's32[1]{0}', space=sflag, size = 0x4, scoped, tag = 'scoped memory for generator_forward.5']
    %9 = vsyncpa [#allocation3], 0
    %10 = vsyncpa [#allocation5], 0
    // Predicated region
    $region2: #{generator_forward.5} parent=1 // pred_check
      _
    $region3: #{generator_forward.5} parent=1 // pred_check_branch
      %12 = sbr.rel (0) target = $region5
    $region4: #{generator_forward.5} parent=1 // pred_region
      _
    $region5: #{generator_forward.5} parent=1 // pred_fallthru
      _
    // Predicated region
    $region6: #{generator_forward.5} parent=1 // pred_check
      _
    $region7: #{generator_forward.5} parent=1 // pred_check_branch
      %14 = sbr.rel (0) target = $region9
    $region8: #{generator_forward.5} parent=1 // pred_region
      _
    $region9: #{generator_forward.5} parent=1 // pred_fallthru
      _
    // Predicated region
    $region10: #{generator_forward.5} parent=1 // pred_check
      _
    $region11: #{generator_forward.5} parent=1 // pred_check_branch
      %16 = sbr.rel (0) target = $region13
    $region12: #{generator_forward.5} parent=1 // pred_region
      %s18 = ssub.s32 16, 16
      %19 = vsyncadd [#allocation3], %s18
      %s21 = sshll.u32 [#allocation2], 4
      %s22 = int_to_ptr.vmem [resolvable:$true] %s21
      %24 = dma.hbm_to_vmem [thread:$0]  %s2, 16, %s22, [#allocation3]
    $region13: #{generator_forward.5} parent=1 // pred_fallthru
      _
    // Predicated region
    $region14: #{generator_forward.5} parent=1 // pred_check
      _
    $region15: #{generator_forward.5} parent=1 // pred_check_branch
      %26 = sbr.rel (0) target = $region17
    $region16: #{generator_forward.5} parent=1 // pred_region
      %s28 = ssub.s32 16, 16
      %29 = vsyncadd [#allocation5], %s28
      %s31 = sshll.u32 [#allocation4], 4
      %s32 = int_to_ptr.vmem [resolvable:$true] %s31
      %34 = dma.hbm_to_vmem [thread:$0]  %s3, 16, %s32, [#allocation5]
    $region17: #{generator_forward.5} parent=1 // pred_fallthru
      _
    // Predicated region
    $region18: #{generator_forward.5} parent=1 // pred_check
      _
    $region19: #{generator_forward.5} parent=1 // pred_check_branch
      %36 = sbr.rel (0) target = $region21
    $region20: #{generator_forward.5} parent=1 // pred_region
      %37 = dma.done [#allocation3], 16
    $region21: #{generator_forward.5} parent=1 // pred_fallthru
      _
    // Predicated region
    $region22: #{generator_forward.5} parent=1 // pred_check
      _
    $region23: #{generator_forward.5} parent=1 // pred_check_branch
      %39 = sbr.rel (0) target = $region25
    $region24: #{generator_forward.5} parent=1 // pred_region
      %40 = dma.done [#allocation5], 16
    $region25: #{generator_forward.5} parent=1 // pred_fallthru
      _
    %v42 = vld [vmem:[%s0] sm:$0x1]
    %v43 = vld [vmem:[%s1] sm:$0xff]
    %v44 = vld [vmem:[%s1 + $0x8] sm:$0xff]
    %v45 = vld [vmem:[%s1 + $0x10] sm:$0xff]
    %v46 = vld [vmem:[%s1 + $0x18] sm:$0xff]
    %v47 = vld [vmem:[%s1 + $0x20] sm:$0xff]
    %v48 = vld [vmem:[%s1 + $0x28] sm:$0xff]
    %v49 = vld [vmem:[%s1 + $0x30] sm:$0xff]
    %v50 = vld [vmem:[%s1 + $0x38] sm:$0xff]
    %v51 = vld [vmem:[%s1 + $0x40] sm:$0xff]
    %v52 = vld [vmem:[%s1 + $0x48] sm:$0xff]
    %v53 = vld [vmem:[%s1 + $0x50] sm:$0xff]
    %v54 = vld [vmem:[%s1 + $0x58] sm:$0xff]
    %v55 = vld [vmem:[%s1 + $0x60] sm:$0xff]
    %v56 = vld [vmem:[%s1 + $0x68] sm:$0xff]
    %v57 = vld [vmem:[%s1 + $0x70] sm:$0xff]
    %v58 = vld [vmem:[%s1 + $0x78] sm:$0xff]
    %v75 = vunpack.c.l.b16 %v43
    %v76 = vunpack.c.h.b16 %v43
    %v77 = vunpack.c.l.b16 %v44
    %v78 = vunpack.c.h.b16 %v44
    %v79 = vunpack.c.l.b16 %v45
    %v80 = vunpack.c.h.b16 %v45
    %v81 = vunpack.c.l.b16 %v46
    %v82 = vunpack.c.h.b16 %v46
    %v83 = vunpack.c.l.b16 %v47
    %v84 = vunpack.c.h.b16 %v47
    %v85 = vunpack.c.l.b16 %v48
    %v86 = vunpack.c.h.b16 %v48
    %v87 = vunpack.c.l.b16 %v49
    %v88 = vunpack.c.h.b16 %v49
    %v89 = vunpack.c.l.b16 %v50
    %v90 = vunpack.c.h.b16 %v50
    %v91 = vunpack.c.l.b16 %v51
    %v92 = vunpack.c.h.b16 %v51
    %v93 = vunpack.c.l.b16 %v52
    %v94 = vunpack.c.h.b16 %v52
    %v95 = vunpack.c.l.b16 %v53
    %v96 = vunpack.c.h.b16 %v53
    %v97 = vunpack.c.l.b16 %v54
    %v98 = vunpack.c.h.b16 %v54
    %v99 = vunpack.c.l.b16 %v55
    %v100 = vunpack.c.h.b16 %v55
    %v101 = vunpack.c.l.b16 %v56
    %v102 = vunpack.c.h.b16 %v56
    %v103 = vunpack.c.l.b16 %v57
    %v104 = vunpack.c.h.b16 %v57
    %v105 = vunpack.c.l.b16 %v58
    %v106 = vunpack.c.h.b16 %v58
    %v107 = vpack.c.b16 %v91, %v75
    %v108 = vpack.c.b16 %v92, %v76
    %v109 = vpack.c.b16 %v93, %v77
    %v110 = vpack.c.b16 %v94, %v78
    %v111 = vpack.c.b16 %v95, %v79
    %v112 = vpack.c.b16 %v96, %v80
    %v113 = vpack.c.b16 %v97, %v81
    %v114 = vpack.c.b16 %v98, %v82
    %v115 = vpack.c.b16 %v99, %v83
    %v116 = vpack.c.b16 %v100, %v84
    %v117 = vpack.c.b16 %v101, %v85
    %v118 = vpack.c.b16 %v102, %v86
    %v119 = vpack.c.b16 %v103, %v87
    %v120 = vpack.c.b16 %v104, %v88
    %v121 = vpack.c.b16 %v105, %v89
    %v122 = vpack.c.b16 %v106, %v90
    %vm139 = vcmask 130048
    %v141 = vsel %vm139, %v42, 0
    %143 = vmatprep.subr.bf16.mxu0 %v108
    %144 = vmatpush1.bf16.msra.mxu0 %v107
    %145 = vmatprep.subr.bf16.mxu0 0
    %146 = vmatpush1.bf16.msra.mxu0 0
    %147 = vmatprep.subr.bf16.mxu0 0
    %148 = vmatpush1.bf16.msra.mxu0 0
    %149 = vmatprep.subr.bf16.mxu0 0
    %150 = vmatpush1.bf16.msra.mxu0 0
    %151 = vmatprep.subr.bf16.mxu0 0
    %152 = vmatpush1.bf16.msra.mxu0 0
    %153 = vmatprep.subr.bf16.mxu0 0
    %154 = vmatpush1.bf16.msra.mxu0 0
    %155 = vmatprep.subr.bf16.mxu0 0
    %156 = vmatpush1.bf16.msra.mxu0 0
    %157 = vmatprep.subr.bf16.mxu0 0
    %158 = vmatpush1.bf16.msra.mxu0 0
    %159 = vmatprep.subr.bf16.mxu0 0
    %160 = vmatpush1.bf16.msra.mxu0 0
    %161 = vmatprep.subr.bf16.mxu0 0
    %162 = vmatpush1.bf16.msra.mxu0 0
    %163 = vmatprep.subr.bf16.mxu0 0
    %164 = vmatpush1.bf16.msra.mxu0 0
    %165 = vmatprep.subr.bf16.mxu0 0
    %166 = vmatpush1.bf16.msra.mxu0 0
    %167 = vmatprep.subr.bf16.mxu0 0
    %168 = vmatpush1.bf16.msra.mxu0 0
    %169 = vmatprep.subr.bf16.mxu0 0
    %170 = vmatpush1.bf16.msra.mxu0 0
    %171 = vmatprep.subr.bf16.mxu0 0
    %172 = vmatpush1.bf16.msra.mxu0 0
    %173 = vmatprep.subr.bf16.mxu0 0
    %174 = vmatpush1.bf16.msra.mxu0 0
    %175 = vmatprep.mubr.bf16.mxu0 0
    %176 = vmatmul.mubr.bf16.gmra.mrb[0].mxu0 %v141
    %v177 = vpop.f32.mrb[0].mxu0
    %v178 = vadd.f32 0.0, %v177
    %v179 = vpop.f32.mrb[0].mxu0
    %v180 = vadd.f32 0.0, %v179
    %v181 = vpop.f32.mrb[0].mxu0
    %v182 = vpop.f32.mrb[0].mxu0
    %183 = vdwg.mxu0
    %184 = vmatprep.subr.bf16.mxu0 %v110
    %185 = vmatpush1.bf16.msra.mxu0 %v109
    %186 = vmatprep.subr.bf16.mxu0 0
    %187 = vmatpush1.bf16.msra.mxu0 0
    %188 = vmatprep.subr.bf16.mxu0 0
    %189 = vmatpush1.bf16.msra.mxu0 0
    %190 = vmatprep.subr.bf16.mxu0 0
    %191 = vmatpush1.bf16.msra.mxu0 0
    %192 = vmatprep.subr.bf16.mxu0 0
    %193 = vmatpush1.bf16.msra.mxu0 0
    %194 = vmatprep.subr.bf16.mxu0 0
    %195 = vmatpush1.bf16.msra.mxu0 0
    %196 = vmatprep.subr.bf16.mxu0 0
    %197 = vmatpush1.bf16.msra.mxu0 0
    %198 = vmatprep.subr.bf16.mxu0 0
    %199 = vmatpush1.bf16.msra.mxu0 0
    %200 = vmatprep.subr.bf16.mxu0 0
    %201 = vmatpush1.bf16.msra.mxu0 0
    %202 = vmatprep.subr.bf16.mxu0 0
    %203 = vmatpush1.bf16.msra.mxu0 0
    %204 = vmatprep.subr.bf16.mxu0 0
    %205 = vmatpush1.bf16.msra.mxu0 0
    %206 = vmatprep.subr.bf16.mxu0 0
    %207 = vmatpush1.bf16.msra.mxu0 0
    %208 = vmatprep.subr.bf16.mxu0 0
    %209 = vmatpush1.bf16.msra.mxu0 0
    %210 = vmatprep.subr.bf16.mxu0 0
    %211 = vmatpush1.bf16.msra.mxu0 0
    %212 = vmatprep.subr.bf16.mxu0 0
    %213 = vmatpush1.bf16.msra.mxu0 0
    %214 = vmatprep.subr.bf16.mxu0 0
    %215 = vmatpush1.bf16.msra.mxu0 0
    %216 = vmatprep.mubr.bf16.mxu0 0
    %217 = vmatmul.mubr.bf16.gmra.mrb[0].mxu0 %v141
    %v218 = vpop.f32.mrb[0].mxu0
    %v219 = vadd.f32 0.0, %v218
    %v220 = vpop.f32.mrb[0].mxu0
    %v221 = vadd.f32 0.0, %v220
    %v222 = vpop.f32.mrb[0].mxu0
    %v223 = vpop.f32.mrb[0].mxu0
    %224 = vdwg.mxu0
    %225 = vmatprep.subr.bf16.mxu0 %v112
    %226 = vmatpush1.bf16.msra.mxu0 %v111
    %227 = vmatprep.subr.bf16.mxu0 0
    %228 = vmatpush1.bf16.msra.mxu0 0
    %229 = vmatprep.subr.bf16.mxu0 0
    %230 = vmatpush1.bf16.msra.mxu0 0
    %231 = vmatprep.subr.bf16.mxu0 0
    %232 = vmatpush1.bf16.msra.mxu0 0
    %233 = vmatprep.subr.bf16.mxu0 0
    %234 = vmatpush1.bf16.msra.mxu0 0
    %235 = vmatprep.subr.bf16.mxu0 0
    %236 = vmatpush1.bf16.msra.mxu0 0
    %237 = vmatprep.subr.bf16.mxu0 0
    %238 = vmatpush1.bf16.msra.mxu0 0
    %239 = vmatprep.subr.bf16.mxu0 0
    %240 = vmatpush1.bf16.msra.mxu0 0
    %241 = vmatprep.subr.bf16.mxu0 0
    %242 = vmatpush1.bf16.msra.mxu0 0
    %243 = vmatprep.subr.bf16.mxu0 0
    %244 = vmatpush1.bf16.msra.mxu0 0
    %245 = vmatprep.subr.bf16.mxu0 0
    %246 = vmatpush1.bf16.msra.mxu0 0
    %247 = vmatprep.subr.bf16.mxu0 0
    %248 = vmatpush1.bf16.msra.mxu0 0
    %249 = vmatprep.subr.bf16.mxu0 0
    %250 = vmatpush1.bf16.msra.mxu0 0
    %251 = vmatprep.subr.bf16.mxu0 0
    %252 = vmatpush1.bf16.msra.mxu0 0
    %253 = vmatprep.subr.bf16.mxu0 0
    %254 = vmatpush1.bf16.msra.mxu0 0
    %255 = vmatprep.subr.bf16.mxu0 0
    %256 = vmatpush1.bf16.msra.mxu0 0
    %257 = vmatprep.mubr.bf16.mxu0 0
    %258 = vmatmul.mubr.bf16.gmra.mrb[0].mxu0 %v141
    %v259 = vpop.f32.mrb[0].mxu0
    %v260 = vadd.f32 0.0, %v259
    %v261 = vpop.f32.mrb[0].mxu0
    %v262 = vadd.f32 0.0, %v261
    %v263 = vpop.f32.mrb[0].mxu0
    %v264 = vpop.f32.mrb[0].mxu0
    %265 = vdwg.mxu0
    %266 = vmatprep.subr.bf16.mxu0 %v114
    %267 = vmatpush1.bf16.msra.mxu0 %v113
    %268 = vmatprep.subr.bf16.mxu0 0
    %269 = vmatpush1.bf16.msra.mxu0 0
    %270 = vmatprep.subr.bf16.mxu0 0
    %271 = vmatpush1.bf16.msra.mxu0 0
    %272 = vmatprep.subr.bf16.mxu0 0
    %273 = vmatpush1.bf16.msra.mxu0 0
    %274 = vmatprep.subr.bf16.mxu0 0
    %275 = vmatpush1.bf16.msra.mxu0 0
    %276 = vmatprep.subr.bf16.mxu0 0
    %277 = vmatpush1.bf16.msra.mxu0 0
    %278 = vmatprep.subr.bf16.mxu0 0
    %279 = vmatpush1.bf16.msra.mxu0 0
    %280 = vmatprep.subr.bf16.mxu0 0
    %281 = vmatpush1.bf16.msra.mxu0 0
    %282 = vmatprep.subr.bf16.mxu0 0
    %283 = vmatpush1.bf16.msra.mxu0 0
    %284 = vmatprep.subr.bf16.mxu0 0
    %285 = vmatpush1.bf16.msra.mxu0 0
    %286 = vmatprep.subr.bf16.mxu0 0
    %287 = vmatpush1.bf16.msra.mxu0 0
    %288 = vmatprep.subr.bf16.mxu0 0
    %289 = vmatpush1.bf16.msra.mxu0 0
    %290 = vmatprep.subr.bf16.mxu0 0
    %291 = vmatpush1.bf16.msra.mxu0 0
    %292 = vmatprep.subr.bf16.mxu0 0
    %293 = vmatpush1.bf16.msra.mxu0 0
    %294 = vmatprep.subr.bf16.mxu0 0
    %295 = vmatpush1.bf16.msra.mxu0 0
    %296 = vmatprep.subr.bf16.mxu0 0
    %297 = vmatpush1.bf16.msra.mxu0 0
    %298 = vmatprep.mubr.bf16.mxu0 0
    %299 = vmatmul.mubr.bf16.gmra.mrb[0].mxu0 %v141
    %v300 = vpop.f32.mrb[0].mxu0
    %v301 = vadd.f32 0.0, %v300
    %v302 = vpop.f32.mrb[0].mxu0
    %v303 = vadd.f32 0.0, %v302
    %v304 = vpop.f32.mrb[0].mxu0
    %v305 = vpop.f32.mrb[0].mxu0
    %306 = vdwg.mxu0
    %307 = vmatprep.subr.bf16.mxu0 %v116
    %308 = vmatpush1.bf16.msra.mxu0 %v115
    %309 = vmatprep.subr.bf16.mxu0 0
    %310 = vmatpush1.bf16.msra.mxu0 0
    %311 = vmatprep.subr.bf16.mxu0 0
    %312 = vmatpush1.bf16.msra.mxu0 0
    %313 = vmatprep.subr.bf16.mxu0 0
    %314 = vmatpush1.bf16.msra.mxu0 0
    %315 = vmatprep.subr.bf16.mxu0 0
    %316 = vmatpush1.bf16.msra.mxu0 0
    %317 = vmatprep.subr.bf16.mxu0 0
    %318 = vmatpush1.bf16.msra.mxu0 0
    %319 = vmatprep.subr.bf16.mxu0 0
    %320 = vmatpush1.bf16.msra.mxu0 0
    %321 = vmatprep.subr.bf16.mxu0 0
    %322 = vmatpush1.bf16.msra.mxu0 0
    %323 = vmatprep.subr.bf16.mxu0 0
    %324 = vmatpush1.bf16.msra.mxu0 0
    %325 = vmatprep.subr.bf16.mxu0 0
    %326 = vmatpush1.bf16.msra.mxu0 0
    %327 = vmatprep.subr.bf16.mxu0 0
    %328 = vmatpush1.bf16.msra.mxu0 0
    %329 = vmatprep.subr.bf16.mxu0 0
    %330 = vmatpush1.bf16.msra.mxu0 0
    %331 = vmatprep.subr.bf16.mxu0 0
    %332 = vmatpush1.bf16.msra.mxu0 0
    %333 = vmatprep.subr.bf16.mxu0 0
    %334 = vmatpush1.bf16.msra.mxu0 0
    %335 = vmatprep.subr.bf16.mxu0 0
    %336 = vmatpush1.bf16.msra.mxu0 0
    %337 = vmatprep.subr.bf16.mxu0 0
    %338 = vmatpush1.bf16.msra.mxu0 0
    %339 = vmatprep.mubr.bf16.mxu0 0
    %340 = vmatmul.mubr.bf16.gmra.mrb[0].mxu0 %v141
    %v341 = vpop.f32.mrb[0].mxu0
    %v342 = vadd.f32 0.0, %v341
    %v343 = vpop.f32.mrb[0].mxu0
    %v344 = vadd.f32 0.0, %v343
    %v345 = vpop.f32.mrb[0].mxu0
    %v346 = vpop.f32.mrb[0].mxu0
    %347 = vdwg.mxu0
    %348 = vmatprep.subr.bf16.mxu0 %v118
    %349 = vmatpush1.bf16.msra.mxu0 %v117
    %350 = vmatprep.subr.bf16.mxu0 0
    %351 = vmatpush1.bf16.msra.mxu0 0
    %352 = vmatprep.subr.bf16.mxu0 0
    %353 = vmatpush1.bf16.msra.mxu0 0
    %354 = vmatprep.subr.bf16.mxu0 0
    %355 = vmatpush1.bf16.msra.mxu0 0
    %356 = vmatprep.subr.bf16.mxu0 0
    %357 = vmatpush1.bf16.msra.mxu0 0
    %358 = vmatprep.subr.bf16.mxu0 0
    %359 = vmatpush1.bf16.msra.mxu0 0
    %360 = vmatprep.subr.bf16.mxu0 0
    %361 = vmatpush1.bf16.msra.mxu0 0
    %362 = vmatprep.subr.bf16.mxu0 0
    %363 = vmatpush1.bf16.msra.mxu0 0
    %364 = vmatprep.subr.bf16.mxu0 0
    %365 = vmatpush1.bf16.msra.mxu0 0
    %366 = vmatprep.subr.bf16.mxu0 0
    %367 = vmatpush1.bf16.msra.mxu0 0
    %368 = vmatprep.subr.bf16.mxu0 0
    %369 = vmatpush1.bf16.msra.mxu0 0
    %370 = vmatprep.subr.bf16.mxu0 0
    %371 = vmatpush1.bf16.msra.mxu0 0
    %372 = vmatprep.subr.bf16.mxu0 0
    %373 = vmatpush1.bf16.msra.mxu0 0
    %374 = vmatprep.subr.bf16.mxu0 0
    %375 = vmatpush1.bf16.msra.mxu0 0
    %376 = vmatprep.subr.bf16.mxu0 0
    %377 = vmatpush1.bf16.msra.mxu0 0
    %378 = vmatprep.subr.bf16.mxu0 0
    %379 = vmatpush1.bf16.msra.mxu0 0
    %380 = vmatprep.mubr.bf16.mxu0 0
    %381 = vmatmul.mubr.bf16.gmra.mrb[0].mxu0 %v141
    %v382 = vpop.f32.mrb[0].mxu0
    %v383 = vadd.f32 0.0, %v382
    %v384 = vpop.f32.mrb[0].mxu0
    %v385 = vadd.f32 0.0, %v384
    %v386 = vpop.f32.mrb[0].mxu0
    %v387 = vpop.f32.mrb[0].mxu0
    %388 = vdwg.mxu0
    %389 = vmatprep.subr.bf16.mxu0 %v120
    %390 = vmatpush1.bf16.msra.mxu0 %v119
    %391 = vmatprep.subr.bf16.mxu0 0
    %392 = vmatpush1.bf16.msra.mxu0 0
    %393 = vmatprep.subr.bf16.mxu0 0
    %394 = vmatpush1.bf16.msra.mxu0 0
    %395 = vmatprep.subr.bf16.mxu0 0
    %396 = vmatpush1.bf16.msra.mxu0 0
    %397 = vmatprep.subr.bf16.mxu0 0
    %398 = vmatpush1.bf16.msra.mxu0 0
    %399 = vmatprep.subr.bf16.mxu0 0
    %400 = vmatpush1.bf16.msra.mxu0 0
    %401 = vmatprep.subr.bf16.mxu0 0
    %402 = vmatpush1.bf16.msra.mxu0 0
    %403 = vmatprep.subr.bf16.mxu0 0
    %404 = vmatpush1.bf16.msra.mxu0 0
    %405 = vmatprep.subr.bf16.mxu0 0
    %406 = vmatpush1.bf16.msra.mxu0 0
    %407 = vmatprep.subr.bf16.mxu0 0
    %408 = vmatpush1.bf16.msra.mxu0 0
    %409 = vmatprep.subr.bf16.mxu0 0
    %410 = vmatpush1.bf16.msra.mxu0 0
    %411 = vmatprep.subr.bf16.mxu0 0
    %412 = vmatpush1.bf16.msra.mxu0 0
    %413 = vmatprep.subr.bf16.mxu0 0
    %414 = vmatpush1.bf16.msra.mxu0 0
    %415 = vmatprep.subr.bf16.mxu0 0
    %416 = vmatpush1.bf16.msra.mxu0 0
    %417 = vmatprep.subr.bf16.mxu0 0
    %418 = vmatpush1.bf16.msra.mxu0 0
    %419 = vmatprep.subr.bf16.mxu0 0
    %420 = vmatpush1.bf16.msra.mxu0 0
    %421 = vmatprep.mubr.bf16.mxu0 0
    %422 = vmatmul.mubr.bf16.gmra.mrb[0].mxu0 %v141
    %v423 = vpop.f32.mrb[0].mxu0
    %v424 = vadd.f32 0.0, %v423
    %v425 = vpop.f32.mrb[0].mxu0
    %v426 = vadd.f32 0.0, %v425
    %v427 = vpop.f32.mrb[0].mxu0
    %v428 = vpop.f32.mrb[0].mxu0
    %429 = vdwg.mxu0
    %430 = vmatprep.subr.bf16.mxu0 %v122
    %431 = vmatpush1.bf16.msra.mxu0 %v121
    %432 = vmatprep.subr.bf16.mxu0 0
    %433 = vmatpush1.bf16.msra.mxu0 0
    %434 = vmatprep.subr.bf16.mxu0 0
    %435 = vmatpush1.bf16.msra.mxu0 0
    %436 = vmatprep.subr.bf16.mxu0 0
    %437 = vmatpush1.bf16.msra.mxu0 0
    %438 = vmatprep.subr.bf16.mxu0 0
    %439 = vmatpush1.bf16.msra.mxu0 0
    %440 = vmatprep.subr.bf16.mxu0 0
    %441 = vmatpush1.bf16.msra.mxu0 0
    %442 = vmatprep.subr.bf16.mxu0 0
    %443 = vmatpush1.bf16.msra.mxu0 0
    %444 = vmatprep.subr.bf16.mxu0 0
    %445 = vmatpush1.bf16.msra.mxu0 0
    %446 = vmatprep.subr.bf16.mxu0 0
    %447 = vmatpush1.bf16.msra.mxu0 0
    %448 = vmatprep.subr.bf16.mxu0 0
    %449 = vmatpush1.bf16.msra.mxu0 0
    %450 = vmatprep.subr.bf16.mxu0 0
    %451 = vmatpush1.bf16.msra.mxu0 0
    %452 = vmatprep.subr.bf16.mxu0 0
    %453 = vmatpush1.bf16.msra.mxu0 0
    %454 = vmatprep.subr.bf16.mxu0 0
    %455 = vmatpush1.bf16.msra.mxu0 0
    %456 = vmatprep.subr.bf16.mxu0 0
    %457 = vmatpush1.bf16.msra.mxu0 0
    %458 = vmatprep.subr.bf16.mxu0 0
    %459 = vmatpush1.bf16.msra.mxu0 0
    %460 = vmatprep.subr.bf16.mxu0 0
    %461 = vmatpush1.bf16.msra.mxu0 0
    %462 = vmatprep.mubr.bf16.mxu0 0
    %463 = vmatmul.mubr.bf16.gmra.mrb[0].mxu0 %v141
    %v464 = vpop.f32.mrb[0].mxu0
    %v465 = vadd.f32 0.0, %v464
    %v466 = vpop.f32.mrb[0].mxu0
    %v467 = vadd.f32 0.0, %v466
    %v468 = vpop.f32.mrb[0].mxu0
    %v469 = vpop.f32.mrb[0].mxu0
    %470 = vdwg.mxu0
    %vm471 = vcmask 1041408
    %v472 = vsel %vm471, %v178, 0.0
    %v473 = vrot.slane %v472, 4
    %v474 = vadd.f32 %v472, %v473
    %v475 = vrot.slane %v474, 2
    %v476 = vadd.f32 %v474, %v475
    %v477 = vrot.slane %v476, 1
    %v478 = vadd.f32 %v476, %v477
    %v479 = vadd.f32 %v478, 0.0
    %v480 = vmul.f32 %v178, %v178
    %v481 = vsel %vm471, %v480, 0.0
    %v482 = vrot.slane %v481, 4
    %v483 = vadd.f32 %v481, %v482
    %v484 = vrot.slane %v483, 2
    %v485 = vadd.f32 %v483, %v484
    %v486 = vrot.slane %v485, 1
    %v487 = vadd.f32 %v485, %v486
    %v488 = vadd.f32 %v487, 0.0
    %v489 = vsel %vm471, %v180, 0.0
    %v490 = vrot.slane %v489, 4
    %v491 = vadd.f32 %v489, %v490
    %v492 = vrot.slane %v491, 2
    %v493 = vadd.f32 %v491, %v492
    %v494 = vrot.slane %v493, 1
    %v495 = vadd.f32 %v493, %v494
    %v496 = vadd.f32 %v479, %v495
    %v497 = vmul.f32 %v180, %v180
    %v498 = vsel %vm471, %v497, 0.0
    %v499 = vrot.slane %v498, 4
    %v500 = vadd.f32 %v498, %v499
    %v501 = vrot.slane %v500, 2
    %v502 = vadd.f32 %v500, %v501
    %v503 = vrot.slane %v502, 1
    %v504 = vadd.f32 %v502, %v503
    %v505 = vadd.f32 %v488, %v504
    %v506 = vsel %vm471, %v219, 0.0
    %v507 = vrot.slane %v506, 4
    %v508 = vadd.f32 %v506, %v507
    %v509 = vrot.slane %v508, 2
    %v510 = vadd.f32 %v508, %v509
    %v511 = vrot.slane %v510, 1
    %v512 = vadd.f32 %v510, %v511
    %v513 = vadd.f32 %v496, %v512
    %v514 = vmul.f32 %v219, %v219
    %v515 = vsel %vm471, %v514, 0.0
    %v516 = vrot.slane %v515, 4
    %v517 = vadd.f32 %v515, %v516
    %v518 = vrot.slane %v517, 2
    %v519 = vadd.f32 %v517, %v518
    %v520 = vrot.slane %v519, 1
    %v521 = vadd.f32 %v519, %v520
    %v522 = vadd.f32 %v505, %v521
    %v523 = vsel %vm471, %v221, 0.0
    %v524 = vrot.slane %v523, 4
    %v525 = vadd.f32 %v523, %v524
    %v526 = vrot.slane %v525, 2
    %v527 = vadd.f32 %v525, %v526
    %v528 = vrot.slane %v527, 1
    %v529 = vadd.f32 %v527, %v528
    %v530 = vadd.f32 %v513, %v529
    %v531 = vmul.f32 %v221, %v221
    %v532 = vsel %vm471, %v531, 0.0
    %v533 = vrot.slane %v532, 4
    %v534 = vadd.f32 %v532, %v533
    %v535 = vrot.slane %v534, 2
    %v536 = vadd.f32 %v534, %v535
    %v537 = vrot.slane %v536, 1
    %v538 = vadd.f32 %v536, %v537
    %v539 = vadd.f32 %v522, %v538
    %v540 = vsel %vm471, %v260, 0.0
    %v541 = vrot.slane %v540, 4
    %v542 = vadd.f32 %v540, %v541
    %v543 = vrot.slane %v542, 2
    %v544 = vadd.f32 %v542, %v543
    %v545 = vrot.slane %v544, 1
    %v546 = vadd.f32 %v544, %v545
    %v547 = vadd.f32 %v530, %v546
    %v548 = vmul.f32 %v260, %v260
    %v549 = vsel %vm471, %v548, 0.0
    %v550 = vrot.slane %v549, 4
    %v551 = vadd.f32 %v549, %v550
    %v552 = vrot.slane %v551, 2
    %v553 = vadd.f32 %v551, %v552
    %v554 = vrot.slane %v553, 1
    %v555 = vadd.f32 %v553, %v554
    %v556 = vadd.f32 %v539, %v555
    %v557 = vsel %vm471, %v262, 0.0
    %v558 = vrot.slane %v557, 4
    %v559 = vadd.f32 %v557, %v558
    %v560 = vrot.slane %v559, 2
    %v561 = vadd.f32 %v559, %v560
    %v562 = vrot.slane %v561, 1
    %v563 = vadd.f32 %v561, %v562
    %v564 = vadd.f32 %v547, %v563
    %v565 = vmul.f32 %v262, %v262
    %v566 = vsel %vm471, %v565, 0.0
    %v567 = vrot.slane %v566, 4
    %v568 = vadd.f32 %v566, %v567
    %v569 = vrot.slane %v568, 2
    %v570 = vadd.f32 %v568, %v569
    %v571 = vrot.slane %v570, 1
    %v572 = vadd.f32 %v570, %v571
    %v573 = vadd.f32 %v556, %v572
    %v574 = vsel %vm471, %v301, 0.0
    %v575 = vrot.slane %v574, 4
    %v576 = vadd.f32 %v574, %v575
    %v577 = vrot.slane %v576, 2
    %v578 = vadd.f32 %v576, %v577
    %v579 = vrot.slane %v578, 1
    %v580 = vadd.f32 %v578, %v579
    %v581 = vadd.f32 %v564, %v580
    %v582 = vmul.f32 %v301, %v301
    %v583 = vsel %vm471, %v582, 0.0
    %v584 = vrot.slane %v583, 4
    %v585 = vadd.f32 %v583, %v584
    %v586 = vrot.slane %v585, 2
    %v587 = vadd.f32 %v585, %v586
    %v588 = vrot.slane %v587, 1
    %v589 = vadd.f32 %v587, %v588
    %v590 = vadd.f32 %v573, %v589
    %v591 = vsel %vm471, %v303, 0.0
    %v592 = vrot.slane %v591, 4
    %v593 = vadd.f32 %v591, %v592
    %v594 = vrot.slane %v593, 2
    %v595 = vadd.f32 %v593, %v594
    %v596 = vrot.slane %v595, 1
    %v597 = vadd.f32 %v595, %v596
    %v598 = vadd.f32 %v581, %v597
    %v599 = vmul.f32 %v303, %v303
    %v600 = vsel %vm471, %v599, 0.0
    %v601 = vrot.slane %v600, 4
    %v602 = vadd.f32 %v600, %v601
    %v603 = vrot.slane %v602, 2
    %v604 = vadd.f32 %v602, %v603
    %v605 = vrot.slane %v604, 1
    %v606 = vadd.f32 %v604, %v605
    %v607 = vadd.f32 %v590, %v606
    %v608 = vsel %vm471, %v342, 0.0
    %v609 = vrot.slane %v608, 4
    %v610 = vadd.f32 %v608, %v609
    %v611 = vrot.slane %v610, 2
    %v612 = vadd.f32 %v610, %v611
    %v613 = vrot.slane %v612, 1
    %v614 = vadd.f32 %v612, %v613
    %v615 = vadd.f32 %v598, %v614
    %v616 = vmul.f32 %v342, %v342
    %v617 = vsel %vm471, %v616, 0.0
    %v618 = vrot.slane %v617, 4
    %v619 = vadd.f32 %v617, %v618
    %v620 = vrot.slane %v619, 2
    %v621 = vadd.f32 %v619, %v620
    %v622 = vrot.slane %v621, 1
    %v623 = vadd.f32 %v621, %v622
    %v624 = vadd.f32 %v607, %v623
    %v625 = vsel %vm471, %v344, 0.0
    %v626 = vrot.slane %v625, 4
    %v627 = vadd.f32 %v625, %v626
    %v628 = vrot.slane %v627, 2
    %v629 = vadd.f32 %v627, %v628
    %v630 = vrot.slane %v629, 1
    %v631 = vadd.f32 %v629, %v630
    %v632 = vadd.f32 %v615, %v631
    %v633 = vmul.f32 %v344, %v344
    %v634 = vsel %vm471, %v633, 0.0
    %v635 = vrot.slane %v634, 4
    %v636 = vadd.f32 %v634, %v635
    %v637 = vrot.slane %v636, 2
    %v638 = vadd.f32 %v636, %v637
    %v639 = vrot.slane %v638, 1
    %v640 = vadd.f32 %v638, %v639
    %v641 = vadd.f32 %v624, %v640
    %v642 = vsel %vm471, %v383, 0.0
    %v643 = vrot.slane %v642, 4
    %v644 = vadd.f32 %v642, %v643
    %v645 = vrot.slane %v644, 2
    %v646 = vadd.f32 %v644, %v645
    %v647 = vrot.slane %v646, 1
    %v648 = vadd.f32 %v646, %v647
    %v649 = vadd.f32 %v632, %v648
    %v650 = vmul.f32 %v383, %v383
    %v651 = vsel %vm471, %v650, 0.0
    %v652 = vrot.slane %v651, 4
    %v653 = vadd.f32 %v651, %v652
    %v654 = vrot.slane %v653, 2
    %v655 = vadd.f32 %v653, %v654
    %v656 = vrot.slane %v655, 1
    %v657 = vadd.f32 %v655, %v656
    %v658 = vadd.f32 %v641, %v657
    %v659 = vsel %vm471, %v385, 0.0
    %v660 = vrot.slane %v659, 4
    %v661 = vadd.f32 %v659, %v660
    %v662 = vrot.slane %v661, 2
    %v663 = vadd.f32 %v661, %v662
    %v664 = vrot.slane %v663, 1
    %v665 = vadd.f32 %v663, %v664
    %v666 = vadd.f32 %v649, %v665
    %v667 = vmul.f32 %v385, %v385
    %v668 = vsel %vm471, %v667, 0.0
    %v669 = vrot.slane %v668, 4
    %v670 = vadd.f32 %v668, %v669
    %v671 = vrot.slane %v670, 2
    %v672 = vadd.f32 %v670, %v671
    %v673 = vrot.slane %v672, 1
    %v674 = vadd.f32 %v672, %v673
    %v675 = vadd.f32 %v658, %v674
    %v676 = vsel %vm471, %v424, 0.0
    %v677 = vrot.slane %v676, 4
    %v678 = vadd.f32 %v676, %v677
    %v679 = vrot.slane %v678, 2
    %v680 = vadd.f32 %v678, %v679
    %v681 = vrot.slane %v680, 1
    %v682 = vadd.f32 %v680, %v681
    %v683 = vadd.f32 %v666, %v682
    %v684 = vmul.f32 %v424, %v424
    %v685 = vsel %vm471, %v684, 0.0
    %v686 = vrot.slane %v685, 4
    %v687 = vadd.f32 %v685, %v686
    %v688 = vrot.slane %v687, 2
    %v689 = vadd.f32 %v687, %v688
    %v690 = vrot.slane %v689, 1
    %v691 = vadd.f32 %v689, %v690
    %v692 = vadd.f32 %v675, %v691
    %v693 = vsel %vm471, %v426, 0.0
    %v694 = vrot.slane %v693, 4
    %v695 = vadd.f32 %v693, %v694
    %v696 = vrot.slane %v695, 2
    %v697 = vadd.f32 %v695, %v696
    %v698 = vrot.slane %v697, 1
    %v699 = vadd.f32 %v697, %v698
    %v700 = vadd.f32 %v683, %v699
    %v701 = vmul.f32 %v426, %v426
    %v702 = vsel %vm471, %v701, 0.0
    %v703 = vrot.slane %v702, 4
    %v704 = vadd.f32 %v702, %v703
    %v705 = vrot.slane %v704, 2
    %v706 = vadd.f32 %v704, %v705
    %v707 = vrot.slane %v706, 1
    %v708 = vadd.f32 %v706, %v707
    %v709 = vadd.f32 %v692, %v708
    %v710 = vsel %vm471, %v465, 0.0
    %v711 = vrot.slane %v710, 4
    %v712 = vadd.f32 %v710, %v711
    %v713 = vrot.slane %v712, 2
    %v714 = vadd.f32 %v712, %v713
    %v715 = vrot.slane %v714, 1
    %v716 = vadd.f32 %v714, %v715
    %v717 = vadd.f32 %v700, %v716
    %v718 = vmul.f32 %v465, %v465
    %v719 = vsel %vm471, %v718, 0.0
    %v720 = vrot.slane %v719, 4
    %v721 = vadd.f32 %v719, %v720
    %v722 = vrot.slane %v721, 2
    %v723 = vadd.f32 %v721, %v722
    %v724 = vrot.slane %v723, 1
    %v725 = vadd.f32 %v723, %v724
    %v726 = vadd.f32 %v709, %v725
    %v727 = vsel %vm471, %v467, 0.0
    %v728 = vrot.slane %v727, 4
    %v729 = vadd.f32 %v727, %v728
    %v730 = vrot.slane %v729, 2
    %v731 = vadd.f32 %v729, %v730
    %v732 = vrot.slane %v731, 1
    %v733 = vadd.f32 %v731, %v732
    %v734 = vadd.f32 %v717, %v733
    %v735 = vmul.f32 %v467, %v467
    %v736 = vsel %vm471, %v735, 0.0
    %v737 = vrot.slane %v736, 4
    %v738 = vadd.f32 %v736, %v737
    %v739 = vrot.slane %v738, 2
    %v740 = vadd.f32 %v738, %v739
    %v741 = vrot.slane %v740, 1
    %v742 = vadd.f32 %v740, %v741
    %v743 = vadd.f32 %v726, %v742
    %v744 = vrcp.pop 32.0
    %v745 = vmul.f32 %v734, %v744
    %v746 = vmul.f32 %v743, %v744
    %v747 = vmul.f32 %v745, %v745
    %v748 = vsub.f32 %v746, %v747
    %v749 = vadd.f32 %v748, 1e-05
    %v750 = vrsqrt.pop %v749
    %v751 = vld [vmem:[#allocation2] sm:$0x1]
    %v752 = vmul.f32 %v751, %v750
    %v753 = vld [vmem:[#allocation4] sm:$0x1]
    %v754 = vmul.f32 %v745, %v752
    %v755 = vsub.f32 %v753, %v754
    %v757 = vlaneseq
    %v758 = vshrl.u32 %v757, 7
    %v759 = vsub.s32 0, %v758
    %v760 = vrot.slane %v752, %v759
    %v762 = vmul.f32 %v178, %v760
    %v764 = vlaneseq
    %v765 = vshrl.u32 %v764, 7
    %v766 = vsub.s32 0, %v765
    %v767 = vrot.slane %v755, %v766
    %v769 = vadd.f32 %v762, %v767
    %v770 = vmax.f32 %v769, 0.0
    %v771 = vpack.c.bf16 %v770, %v770
    %772 = vst [vmem:[%s4] sm:$0x1] %v771
    %v773 = vmul.f32 %v180, %v760
    %v774 = vadd.f32 %v773, %v767
    %v775 = vmax.f32 %v774, 0.0
    %v776 = vpack.c.bf16 %v775, %v775
    %777 = vst [vmem:[%s4 + $0x1] sm:$0x1] %v776
    %v778 = vmul.f32 %v219, %v760
    %v779 = vadd.f32 %v778, %v767
    %v780 = vmax.f32 %v779, 0.0
    %v781 = vpack.c.bf16 %v780, %v780
    %782 = vst [vmem:[%s4 + $0x2] sm:$0x1] %v781
    %v783 = vmul.f32 %v221, %v760
    %v784 = vadd.f32 %v783, %v767
    %v785 = vmax.f32 %v784, 0.0
    %v786 = vpack.c.bf16 %v785, %v785
    %787 = vst [vmem:[%s4 + $0x3] sm:$0x1] %v786
    %v788 = vmul.f32 %v260, %v760
    %v789 = vadd.f32 %v788, %v767
    %v790 = vmax.f32 %v789, 0.0
    %v791 = vpack.c.bf16 %v790, %v790
    %792 = vst [vmem:[%s4 + $0x4] sm:$0x1] %v791
    %v793 = vmul.f32 %v262, %v760
    %v794 = vadd.f32 %v793, %v767
    %v795 = vmax.f32 %v794, 0.0
    %v796 = vpack.c.bf16 %v795, %v795
    %797 = vst [vmem:[%s4 + $0x5] sm:$0x1] %v796
    %v798 = vmul.f32 %v301, %v760
    %v799 = vadd.f32 %v798, %v767
    %v800 = vmax.f32 %v799, 0.0
    %v801 = vpack.c.bf16 %v800, %v800
    %802 = vst [vmem:[%s4 + $0x6] sm:$0x1] %v801
    %v803 = vmul.f32 %v303, %v760
    %v804 = vadd.f32 %v803, %v767
    %v805 = vmax.f32 %v804, 0.0
    %v806 = vpack.c.bf16 %v805, %v805
    %807 = vst [vmem:[%s4 + $0x7] sm:$0x1] %v806
    %v808 = vmul.f32 %v342, %v760
    %v809 = vadd.f32 %v808, %v767
    %v810 = vmax.f32 %v809, 0.0
    %v811 = vpack.c.bf16 %v810, %v810
    %812 = vst [vmem:[%s4 + $0x8] sm:$0x1] %v811
    %v813 = vmul.f32 %v344, %v760
    %v814 = vadd.f32 %v813, %v767
    %v815 = vmax.f32 %v814, 0.0
    %v816 = vpack.c.bf16 %v815, %v815
    %817 = vst [vmem:[%s4 + $0x9] sm:$0x1] %v816
    %v818 = vmul.f32 %v383, %v760
    %v819 = vadd.f32 %v818, %v767
    %v820 = vmax.f32 %v819, 0.0
    %v821 = vpack.c.bf16 %v820, %v820
    %822 = vst [vmem:[%s4 + $0xa] sm:$0x1] %v821
    %v823 = vmul.f32 %v385, %v760
    %v824 = vadd.f32 %v823, %v767
    %v825 = vmax.f32 %v824, 0.0
    %v826 = vpack.c.bf16 %v825, %v825
    %827 = vst [vmem:[%s4 + $0xb] sm:$0x1] %v826
    %v828 = vmul.f32 %v424, %v760
    %v829 = vadd.f32 %v828, %v767
    %v830 = vmax.f32 %v829, 0.0
    %v831 = vpack.c.bf16 %v830, %v830
    %832 = vst [vmem:[%s4 + $0xc] sm:$0x1] %v831
    %v833 = vmul.f32 %v426, %v760
    %v834 = vadd.f32 %v833, %v767
    %v835 = vmax.f32 %v834, 0.0
    %v836 = vpack.c.bf16 %v835, %v835
    %837 = vst [vmem:[%s4 + $0xd] sm:$0x1] %v836
    %v838 = vmul.f32 %v465, %v760
    %v839 = vadd.f32 %v838, %v767
    %v840 = vmax.f32 %v839, 0.0
    %v841 = vpack.c.bf16 %v840, %v840
    %842 = vst [vmem:[%s4 + $0xe] sm:$0x1] %v841
    %v843 = vmul.f32 %v467, %v760
    %v844 = vadd.f32 %v843, %v767
    %v845 = vmax.f32 %v844, 0.0
    %v846 = vpack.c.bf16 %v845, %v845
    %847 = vst [vmem:[%s4 + $0xf] sm:$0x1] %v846
    // Predicated region
    $region26: #{generator_forward.5} parent=1 // pred_check
      _
    $region27: #{generator_forward.5} parent=1 // pred_check_branch
      %849 = sbr.rel (0) target = $region29
    $region28: #{generator_forward.5} parent=1 // pred_region
      _
    $region29: #{generator_forward.5} parent=1 // pred_fallthru
      _
    // Predicated region
    $region30: #{generator_forward.5} parent=1 // pred_check
      _
    $region31: #{generator_forward.5} parent=1 // pred_check_branch
      %851 = sbr.rel (0) target = $region33
    $region32: #{generator_forward.5} parent=1 // pred_region
      _
    $region33: #{generator_forward.5} parent=1 // pred_fallthru
      _
    %852 = vsyncpa [#allocation3], 1
    %853 = vsyncpa [#allocation5], 1

// kernel: generator_forward.7
$region0: #{generator_forward.7}
  #allocation0 [shape = 'u32[]', space=smem, size = 0x4, offset = 0x4, fixed_abs, tag = 'smem constant byte address 0x4 - core index']
  #allocation1 [shape = 'u32[144,128]{1,0:T(1,128)}', space=vmem, size = 0x12000, scoped, tag = 'internal scratch']
  %s0 = inlined_call_operand.vmem [shape: bf16[576,128], index: 0, kind: input, shape index: {}]
  %s1 = inlined_call_operand.vmem [shape: bf16[128,576], index: 1, kind: input, shape index: {}]
  %s2 = inlined_call_operand.vmem [shape: f32[32,1], index: 2, kind: input, shape index: {}]
  %s3 = inlined_call_operand.vmem [shape: f32[32,1], index: 3, kind: input, shape index: {}]
  %s4 = inlined_call_operand.vmem [shape: bf16[128,128], index: 4, kind: output, shape index: {}]
  %s5 = sld [smem:[#allocation0]]
  $region26: #{generator_forward.7} parent=0
    _
  %s7 = ssub.s32 1, %s5
  %s8 = scalar_select 0, %s7, %s5
  // Predicated region
  $region2: #{generator_forward.7} parent=0 // pred_check
    _
  $region3: #{generator_forward.7} parent=0 // pred_check_branch
    %10 = sbr.rel (0) target = $region5
  $region4: #{generator_forward.7} parent=0 // pred_region
    _
  $region5: #{generator_forward.7} parent=0 // pred_fallthru
    _
  // Predicated region
  $region6: #{generator_forward.7} parent=0 // pred_check
    _
  $region7: #{generator_forward.7} parent=0 // pred_check_branch
    %12 = sbr.rel (0) target = $region9
  $region8: #{generator_forward.7} parent=0 // pred_region
    _
  $region9: #{generator_forward.7} parent=0 // pred_fallthru
    _
  // Predicated region
  $region10: #{generator_forward.7} parent=0 // pred_check
    _
  $region11: #{generator_forward.7} parent=0 // pred_check_branch
    %14 = sbr.rel (0) target = $region13
  $region12: #{generator_forward.7} parent=0 // pred_region
    _
  $region13: #{generator_forward.7} parent=0 // pred_fallthru
    _
  // Predicated region
  $region14: #{generator_forward.7} parent=0 // pred_check
    _
  $region15: #{generator_forward.7} parent=0 // pred_check_branch
    %16 = sbr.rel (0) target = $region17
  $region16: #{generator_forward.7} parent=0 // pred_region
    _
  $region17: #{generator_forward.7} parent=0 // pred_fallthru
    _
  %v18 = vld [vmem:[%s1] sm:$0xff]
  %v19 = vld [vmem:[%s1 + $0x8] sm:$0xff]
  %v20 = vld [vmem:[%s1 + $0x10] sm:$0xf]
  %v21 = vld [vmem:[%s1 + $0x14] sm:$0xff]
  %v22 = vld [vmem:[%s1 + $0x1c] sm:$0xff]
  %v23 = vld [vmem:[%s1 + $0x24] sm:$0xf]
  %v24 = vld [vmem:[%s1 + $0x28] sm:$0xff]
  %v25 = vld [vmem:[%s1 + $0x30] sm:$0xff]
  %v26 = vld [vmem:[%s1 + $0x38] sm:$0xf]
  %v27 = vld [vmem:[%s1 + $0x3c] sm:$0xff]
  %v28 = vld [vmem:[%s1 + $0x44] sm:$0xff]
  %v29 = vld [vmem:[%s1 + $0x4c] sm:$0xf]
  %v30 = vld [vmem:[%s1 + $0x50] sm:$0xff]
  %v31 = vld [vmem:[%s1 + $0x58] sm:$0xff]
  %v32 = vld [vmem:[%s1 + $0x60] sm:$0xf]
  %v33 = vld [vmem:[%s1 + $0x64] sm:$0xff]
  %v34 = vld [vmem:[%s1 + $0x6c] sm:$0xff]
  %v35 = vld [vmem:[%s1 + $0x74] sm:$0xf]
  %v36 = vld [vmem:[%s1 + $0x78] sm:$0xff]
  %v37 = vld [vmem:[%s1 + $0x80] sm:$0xff]
  %v38 = vld [vmem:[%s1 + $0x88] sm:$0xf]
  %v39 = vld [vmem:[%s1 + $0x8c] sm:$0xff]
  %v40 = vld [vmem:[%s1 + $0x94] sm:$0xff]
  %v41 = vld [vmem:[%s1 + $0x9c] sm:$0xf]
  %v42 = vld [vmem:[%s1 + $0xa0] sm:$0xff]
  %v43 = vld [vmem:[%s1 + $0xa8] sm:$0xff]
  %v44 = vld [vmem:[%s1 + $0xb0] sm:$0xf]
  %v45 = vld [vmem:[%s1 + $0xb4] sm:$0xff]
  %v46 = vld [vmem:[%s1 + $0xbc] sm:$0xff]
  %v47 = vld [vmem:[%s1 + $0xc4] sm:$0xf]
  %v48 = vld [vmem:[%s1 + $0xc8] sm:$0xff]
  %v49 = vld [vmem:[%s1 + $0xd0] sm:$0xff]
  %v50 = vld [vmem:[%s1 + $0xd8] sm:$0xf]
  %v51 = vld [vmem:[%s1 + $0xdc] sm:$0xff]
  %v52 = vld [vmem:[%s1 + $0xe4] sm:$0xff]
  %v53 = vld [vmem:[%s1 + $0xec] sm:$0xf]
  %v54 = vld [vmem:[%s1 + $0xf0] sm:$0xff]
  %v55 = vld [vmem:[%s1 + $0xf8] sm:$0xff]
  %v56 = vld [vmem:[%s1 + $0x100] sm:$0xf]
  %v57 = vld [vmem:[%s1 + $0x104] sm:$0xff]
  %v58 = vld [vmem:[%s1 + $0x10c] sm:$0xff]
  %v59 = vld [vmem:[%s1 + $0x114] sm:$0xf]
  %v60 = vld [vmem:[%s1 + $0x118] sm:$0xff]
  %v61 = vld [vmem:[%s1 + $0x120] sm:$0xff]
  %v62 = vld [vmem:[%s1 + $0x128] sm:$0xf]
  %v63 = vld [vmem:[%s1 + $0x12c] sm:$0xff]
  %v64 = vld [vmem:[%s1 + $0x134] sm:$0xff]
  %v65 = vld [vmem:[%s1 + $0x13c] sm:$0xf]
  %v66 = vld [vmem:[%s0] sm:$0xf]
  %v67 = vld [vmem:[%s0 + $0x4] sm:$0xf]
  %v68 = vld [vmem:[%s0 + $0x8] sm:$0xf]
  %v69 = vld [vmem:[%s0 + $0xc] sm:$0xf]
  %v70 = vld [vmem:[%s0 + $0x10] sm:$0xf]
  %v71 = vld [vmem:[%s0 + $0x14] sm:$0xf]
  %v72 = vld [vmem:[%s0 + $0x18] sm:$0xf]
  %v73 = vld [vmem:[%s0 + $0x1c] sm:$0xf]
  %v74 = vld [vmem:[%s0 + $0x20] sm:$0xf]
  %v75 = vld [vmem:[%s0 + $0x24] sm:$0xf]
  %v76 = vld [vmem:[%s0 + $0x28] sm:$0xf]
  %v77 = vld [vmem:[%s0 + $0x2c] sm:$0xf]
  %v78 = vld [vmem:[%s0 + $0x30] sm:$0xf]
  %v79 = vld [vmem:[%s0 + $0x34] sm:$0xf]
  %v80 = vld [vmem:[%s0 + $0x38] sm:$0xf]
  %v81 = vld [vmem:[%s0 + $0x3c] sm:$0xf]
  %v82 = vld [vmem:[%s0 + $0x40] sm:$0xf]
  %v83 = vld [vmem:[%s0 + $0x44] sm:$0xf]
  %v84 = vld [vmem:[%s0 + $0x48] sm:$0xf]
  %v85 = vld [vmem:[%s0 + $0x4c] sm:$0xf]
  %v86 = vld [vmem:[%s0 + $0x50] sm:$0xf]
  %v87 = vld [vmem:[%s0 + $0x54] sm:$0xf]
  %v88 = vld [vmem:[%s0 + $0x58] sm:$0xf]
  %v89 = vld [vmem:[%s0 + $0x5c] sm:$0xf]
  %v90 = vld [vmem:[%s0 + $0x60] sm:$0xf]
  %v91 = vld [vmem:[%s0 + $0x64] sm:$0xf]
  %v92 = vld [vmem:[%s0 + $0x68] sm:$0xf]
  %v93 = vld [vmem:[%s0 + $0x6c] sm:$0xf]
  %v94 = vld [vmem:[%s0 + $0x70] sm:$0xf]
  %v95 = vld [vmem:[%s0 + $0x74] sm:$0xf]
  %v96 = vld [vmem:[%s0 + $0x78] sm:$0xf]
  %v97 = vld [vmem:[%s0 + $0x7c] sm:$0xf]
  %v98 = vld [vmem:[%s0 + $0x80] sm:$0xf]
  %v99 = vld [vmem:[%s0 + $0x84] sm:$0xf]
  %v100 = vld [vmem:[%s0 + $0x88] sm:$0xf]
  %v101 = vld [vmem:[%s0 + $0x8c] sm:$0xf]
  %v102 = vld [vmem:[%s0 + $0x90] sm:$0xf]
  %v103 = vld [vmem:[%s0 + $0x94] sm:$0xf]
  %v104 = vld [vmem:[%s0 + $0x98] sm:$0xf]
  %v105 = vld [vmem:[%s0 + $0x9c] sm:$0xf]
  %v106 = vld [vmem:[%s0 + $0xa0] sm:$0xf]
  %v107 = vld [vmem:[%s0 + $0xa4] sm:$0xf]
  %v108 = vld [vmem:[%s0 + $0xa8] sm:$0xf]
  %v109 = vld [vmem:[%s0 + $0xac] sm:$0xf]
  %v110 = vld [vmem:[%s0 + $0xb0] sm:$0xf]
  %v111 = vld [vmem:[%s0 + $0xb4] sm:$0xf]
  %v112 = vld [vmem:[%s0 + $0xb8] sm:$0xf]
  %v113 = vld [vmem:[%s0 + $0xbc] sm:$0xf]
  %v114 = vld [vmem:[%s0 + $0xc0] sm:$0xf]
  %v115 = vld [vmem:[%s0 + $0xc4] sm:$0xf]
  %v116 = vld [vmem:[%s0 + $0xc8] sm:$0xf]
  %v117 = vld [vmem:[%s0 + $0xcc] sm:$0xf]
  %v118 = vld [vmem:[%s0 + $0xd0] sm:$0xf]
  %v119 = vld [vmem:[%s0 + $0xd4] sm:$0xf]
  %v120 = vld [vmem:[%s0 + $0xd8] sm:$0xf]
  %v121 = vld [vmem:[%s0 + $0xdc] sm:$0xf]
  %v122 = vld [vmem:[%s0 + $0xe0] sm:$0xf]
  %v123 = vld [vmem:[%s0 + $0xe4] sm:$0xf]
  %v124 = vld [vmem:[%s0 + $0xe8] sm:$0xf]
  %v125 = vld [vmem:[%s0 + $0xec] sm:$0xf]
  %v126 = vld [vmem:[%s0 + $0xf0] sm:$0xf]
  %v127 = vld [vmem:[%s0 + $0xf4] sm:$0xf]
  %v128 = vld [vmem:[%s0 + $0xf8] sm:$0xf]
  %v129 = vld [vmem:[%s0 + $0xfc] sm:$0xf]
  %v130 = vld [vmem:[%s0 + $0x100] sm:$0xf]
  %v131 = vld [vmem:[%s0 + $0x104] sm:$0xf]
  %v132 = vld [vmem:[%s0 + $0x108] sm:$0xf]
  %v133 = vld [vmem:[%s0 + $0x10c] sm:$0xf]
  %v134 = vld [vmem:[%s0 + $0x110] sm:$0xf]
  %v135 = vld [vmem:[%s0 + $0x114] sm:$0xf]
  %v136 = vld [vmem:[%s0 + $0x118] sm:$0xf]
  %v137 = vld [vmem:[%s0 + $0x11c] sm:$0xf]
  %v186 = vunpack.c.l.b16 %v18
  %v187 = vunpack.c.h.b16 %v18
  %v188 = vunpack.c.l.b16 %v19
  %v189 = vunpack.c.h.b16 %v19
  %v190 = vunpack.c.l.b16 %v20
  %v191 = vunpack.c.l.b16 %v21
  %v192 = vunpack.c.h.b16 %v21
  %v193 = vunpack.c.l.b16 %v22
  %v194 = vunpack.c.h.b16 %v22
  %v195 = vunpack.c.l.b16 %v23
  %v196 = vunpack.c.l.b16 %v24
  %v197 = vunpack.c.h.b16 %v24
  %v198 = vunpack.c.l.b16 %v25
  %v199 = vunpack.c.h.b16 %v25
  %v200 = vunpack.c.l.b16 %v26
  %v201 = vunpack.c.l.b16 %v27
  %v202 = vunpack.c.h.b16 %v27
  %v203 = vunpack.c.l.b16 %v28
  %v204 = vunpack.c.h.b16 %v28
  %v205 = vunpack.c.l.b16 %v29
  %v206 = vunpack.c.l.b16 %v30
  %v207 = vunpack.c.h.b16 %v30
  %v208 = vunpack.c.l.b16 %v31
  %v209 = vunpack.c.h.b16 %v31
  %v210 = vunpack.c.l.b16 %v32
  %v211 = vunpack.c.l.b16 %v33
  %v212 = vunpack.c.h.b16 %v33
  %v213 = vunpack.c.l.b16 %v34
  %v214 = vunpack.c.h.b16 %v34
  %v215 = vunpack.c.l.b16 %v35
  %v216 = vunpack.c.l.b16 %v36
  %v217 = vunpack.c.h.b16 %v36
  %v218 = vunpack.c.l.b16 %v37
  %v219 = vunpack.c.h.b16 %v37
  %v220 = vunpack.c.l.b16 %v38
  %v221 = vunpack.c.l.b16 %v39
  %v222 = vunpack.c.h.b16 %v39
  %v223 = vunpack.c.l.b16 %v40
  %v224 = vunpack.c.h.b16 %v40
  %v225 = vunpack.c.l.b16 %v41
  %v226 = vunpack.c.l.b16 %v42
  %v227 = vunpack.c.h.b16 %v42
  %v228 = vunpack.c.l.b16 %v43
  %v229 = vunpack.c.h.b16 %v43
  %v230 = vunpack.c.l.b16 %v44
  %v231 = vunpack.c.l.b16 %v45
  %v232 = vunpack.c.h.b16 %v45
  %v233 = vunpack.c.l.b16 %v46
  %v234 = vunpack.c.h.b16 %v46
  %v235 = vunpack.c.l.b16 %v47
  %v236 = vunpack.c.l.b16 %v48
  %v237 = vunpack.c.h.b16 %v48
  %v238 = vunpack.c.l.b16 %v49
  %v239 = vunpack.c.h.b16 %v49
  %v240 = vunpack.c.l.b16 %v50
  %v241 = vunpack.c.l.b16 %v51
  %v242 = vunpack.c.h.b16 %v51
  %v243 = vunpack.c.l.b16 %v52
  %v244 = vunpack.c.h.b16 %v52
  %v245 = vunpack.c.l.b16 %v53
  %v246 = vunpack.c.l.b16 %v54
  %v247 = vunpack.c.h.b16 %v54
  %v248 = vunpack.c.l.b16 %v55
  %v249 = vunpack.c.h.b16 %v55
  %v250 = vunpack.c.l.b16 %v56
  %v251 = vunpack.c.l.b16 %v57
  %v252 = vunpack.c.h.b16 %v57
  %v253 = vunpack.c.l.b16 %v58
  %v254 = vunpack.c.h.b16 %v58
  %v255 = vunpack.c.l.b16 %v59
  %v256 = vunpack.c.l.b16 %v60
  %v257 = vunpack.c.h.b16 %v60
  %v258 = vunpack.c.l.b16 %v61
  %v259 = vunpack.c.h.b16 %v61
  %v260 = vunpack.c.l.b16 %v62
  %v261 = vunpack.c.l.b16 %v63
  %v262 = vunpack.c.h.b16 %v63
  %v263 = vunpack.c.l.b16 %v64
  %v264 = vunpack.c.h.b16 %v64
  %v265 = vunpack.c.l.b16 %v65
  %v266 = vpack.c.b16 %v191, %v186
  %v267 = vpack.c.b16 %v192, %v187
  %v268 = vpack.c.b16 %v193, %v188
  %v269 = vpack.c.b16 %v194, %v189
  %v270 = vpack.c.b16 %v195, %v190
  %v271 = vpack.c.b16 %v201, %v196
  %v272 = vpack.c.b16 %v202, %v197
  %v273 = vpack.c.b16 %v203, %v198
  %v274 = vpack.c.b16 %v204, %v199
  %v275 = vpack.c.b16 %v205, %v200
  %v276 = vpack.c.b16 %v211, %v206
  %v277 = vpack.c.b16 %v212, %v207
  %v278 = vpack.c.b16 %v213, %v208
  %v279 = vpack.c.b16 %v214, %v209
  %v280 = vpack.c.b16 %v215, %v210
  %v281 = vpack.c.b16 %v221, %v216
  %v282 = vpack.c.b16 %v222, %v217
  %v283 = vpack.c.b16 %v223, %v218
  %v284 = vpack.c.b16 %v224, %v219
  %v285 = vpack.c.b16 %v225, %v220
  %v286 = vpack.c.b16 %v231, %v226
  %v287 = vpack.c.b16 %v232, %v227
  %v288 = vpack.c.b16 %v233, %v228
  %v289 = vpack.c.b16 %v234, %v229
  %v290 = vpack.c.b16 %v235, %v230
  %v291 = vpack.c.b16 %v241, %v236
  %v292 = vpack.c.b16 %v242, %v237
  %v293 = vpack.c.b16 %v243, %v238
  %v294 = vpack.c.b16 %v244, %v239
  %v295 = vpack.c.b16 %v245, %v240
  %v296 = vpack.c.b16 %v251, %v246
  %v297 = vpack.c.b16 %v252, %v247
  %v298 = vpack.c.b16 %v253, %v248
  %v299 = vpack.c.b16 %v254, %v249
  %v300 = vpack.c.b16 %v255, %v250
  %v301 = vpack.c.b16 %v261, %v256
  %v302 = vpack.c.b16 %v262, %v257
  %v303 = vpack.c.b16 %v263, %v258
  %v304 = vpack.c.b16 %v264, %v259
  %v305 = vpack.c.b16 %v265, %v260
  %v410 = vunpack.c.l.b16 %v66
  %v411 = vunpack.c.l.b16 %v67
  %v412 = vunpack.c.l.b16 %v68
  %v413 = vunpack.c.l.b16 %v69
  %v414 = vunpack.c.l.b16 %v70
  %v415 = vunpack.c.l.b16 %v71
  %v416 = vunpack.c.l.b16 %v72
  %v417 = vunpack.c.l.b16 %v73
  %v418 = vunpack.c.l.b16 %v74
  %v419 = vunpack.c.l.b16 %v75
  %v420 = vunpack.c.l.b16 %v76
  %v421 = vunpack.c.l.b16 %v77
  %v422 = vunpack.c.l.b16 %v78
  %v423 = vunpack.c.l.b16 %v79
  %v424 = vunpack.c.l.b16 %v80
  %v425 = vunpack.c.l.b16 %v81
  %v426 = vunpack.c.l.b16 %v82
  %v427 = vunpack.c.l.b16 %v83
  %v428 = vunpack.c.l.b16 %v84
  %v429 = vunpack.c.l.b16 %v85
  %v430 = vunpack.c.l.b16 %v86
  %v431 = vunpack.c.l.b16 %v87
  %v432 = vunpack.c.l.b16 %v88
  %v433 = vunpack.c.l.b16 %v89
  %v434 = vunpack.c.l.b16 %v90
  %v435 = vunpack.c.l.b16 %v91
  %v436 = vunpack.c.l.b16 %v92
  %v437 = vunpack.c.l.b16 %v93
  %v438 = vunpack.c.l.b16 %v94
  %v439 = vunpack.c.l.b16 %v95
  %v440 = vunpack.c.l.b16 %v96
  %v441 = vunpack.c.l.b16 %v97
  %v442 = vunpack.c.l.b16 %v98
  %v443 = vunpack.c.l.b16 %v99
  %v444 = vunpack.c.l.b16 %v100
  %v445 = vunpack.c.l.b16 %v101
  %v446 = vunpack.c.l.b16 %v102
  %v447 = vunpack.c.l.b16 %v103
  %v448 = vunpack.c.l.b16 %v104
  %v449 = vunpack.c.l.b16 %v105
  %v450 = vunpack.c.l.b16 %v106
  %v451 = vunpack.c.l.b16 %v107
  %v452 = vunpack.c.l.b16 %v108
  %v453 = vunpack.c.l.b16 %v109
  %v454 = vunpack.c.l.b16 %v110
  %v455 = vunpack.c.l.b16 %v111
  %v456 = vunpack.c.l.b16 %v112
  %v457 = vunpack.c.l.b16 %v113
  %v458 = vunpack.c.l.b16 %v114
  %v459 = vunpack.c.l.b16 %v115
  %v460 = vunpack.c.l.b16 %v116
  %v461 = vunpack.c.l.b16 %v117
  %v462 = vunpack.c.l.b16 %v118
  %v463 = vunpack.c.l.b16 %v119
  %v464 = vunpack.c.l.b16 %v120
  %v465 = vunpack.c.l.b16 %v121
  %v466 = vunpack.c.l.b16 %v122
  %v467 = vunpack.c.l.b16 %v123
  %v468 = vunpack.c.l.b16 %v124
  %v469 = vunpack.c.l.b16 %v125
  %v470 = vunpack.c.l.b16 %v126
  %v471 = vunpack.c.l.b16 %v127
  %v472 = vunpack.c.l.b16 %v128
  %v473 = vunpack.c.l.b16 %v129
  %v474 = vunpack.c.l.b16 %v130
  %v475 = vunpack.c.l.b16 %v131
  %v476 = vunpack.c.l.b16 %v132
  %v477 = vunpack.c.l.b16 %v133
  %v478 = vunpack.c.l.b16 %v134
  %v479 = vunpack.c.l.b16 %v135
  %v480 = vunpack.c.l.b16 %v136
  %v481 = vunpack.c.l.b16 %v137
  %v482 = vpack.c.b16 %v411, %v410
  %v483 = vpack.c.b16 %v413, %v412
  %v484 = vpack.c.b16 %v415, %v414
  %v485 = vpack.c.b16 %v417, %v416
  %v486 = vpack.c.b16 %v419, %v418
  %v487 = vpack.c.b16 %v421, %v420
  %v488 = vpack.c.b16 %v423, %v422
  %v489 = vpack.c.b16 %v425, %v424
  %v490 = vpack.c.b16 %v427, %v426
  %v491 = vpack.c.b16 %v429, %v428
  %v492 = vpack.c.b16 %v431, %v430
  %v493 = vpack.c.b16 %v433, %v432
  %v494 = vpack.c.b16 %v435, %v434
  %v495 = vpack.c.b16 %v437, %v436
  %v496 = vpack.c.b16 %v439, %v438
  %v497 = vpack.c.b16 %v441, %v440
  %v498 = vpack.c.b16 %v443, %v442
  %v499 = vpack.c.b16 %v445, %v444
  %v500 = vpack.c.b16 %v447, %v446
  %v501 = vpack.c.b16 %v449, %v448
  %v502 = vpack.c.b16 %v451, %v450
  %v503 = vpack.c.b16 %v453, %v452
  %v504 = vpack.c.b16 %v455, %v454
  %v505 = vpack.c.b16 %v457, %v456
  %v506 = vpack.c.b16 %v459, %v458
  %v507 = vpack.c.b16 %v461, %v460
  %v508 = vpack.c.b16 %v463, %v462
  %v509 = vpack.c.b16 %v465, %v464
  %v510 = vpack.c.b16 %v467, %v466
  %v511 = vpack.c.b16 %v469, %v468
  %v512 = vpack.c.b16 %v471, %v470
  %v513 = vpack.c.b16 %v473, %v472
  %v514 = vpack.c.b16 %v475, %v474
  %v515 = vpack.c.b16 %v477, %v476
  %v516 = vpack.c.b16 %v479, %v478
  %v517 = vpack.c.b16 %v481, %v480
  %vm554 = vcmask 523264
  %v556 = vsel %vm554, %v270, 0
  %v559 = vsel %vm554, %v275, 0
  %v562 = vsel %vm554, %v280, 0
  %v565 = vsel %vm554, %v285, 0
  %v568 = vsel %vm554, %v290, 0
  %v571 = vsel %vm554, %v295, 0
  %v574 = vsel %vm554, %v300, 0
  %v577 = vsel %vm554, %v305, 0
  %579 = vmatprep.subr.bf16.mxu0 0
  %580 = vmatpush1.bf16.msra.mxu0 %v482
  %581 = vmatprep.subr.bf16.mxu0 0
  %582 = vmatpush1.bf16.msra.mxu0 %v483
  %583 = vmatprep.subr.bf16.mxu0 0
  %584 = vmatpush1.bf16.msra.mxu0 %v484
  %585 = vmatprep.subr.bf16.mxu0 0
  %586 = vmatpush1.bf16.msra.mxu0 %v485
  %587 = vmatprep.subr.bf16.mxu0 0
  %588 = vmatpush1.bf16.msra.mxu0 %v486
  %589 = vmatprep.subr.bf16.mxu0 0
  %590 = vmatpush1.bf16.msra.mxu0 %v487
  %591 = vmatprep.subr.bf16.mxu0 0
  %592 = vmatpush1.bf16.msra.mxu0 %v488
  %593 = vmatprep.subr.bf16.mxu0 0
  %594 = vmatpush1.bf16.msra.mxu0 %v489
  %595 = vmatprep.subr.bf16.mxu0 0
  %596 = vmatpush1.bf16.msra.mxu0 %v490
  %597 = vmatprep.subr.bf16.mxu0 0
  %598 = vmatpush1.bf16.msra.mxu0 %v491
  %599 = vmatprep.subr.bf16.mxu0 0
  %600 = vmatpush1.bf16.msra.mxu0 %v492
  %601 = vmatprep.subr.bf16.mxu0 0
  %602 = vmatpush1.bf16.msra.mxu0 %v493
  %603 = vmatprep.subr.bf16.mxu0 0
  %604 = vmatpush1.bf16.msra.mxu0 %v494
  %605 = vmatprep.subr.bf16.mxu0 0
  %606 = vmatpush1.bf16.msra.mxu0 %v495
  %607 = vmatprep.subr.bf16.mxu0 0
  %608 = vmatpush1.bf16.msra.mxu0 %v496
  %609 = vmatprep.subr.bf16.mxu0 0
  %610 = vmatpush1.bf16.msra.mxu0 %v497
  %611 = vmatprep.mubr.bf16.mxu0 %v267
  %612 = vmatmul.mubr.bf16.gmra.mrb[0].mxu0 %v266
  %v613 = vpop.f32.mrb[0].mxu0
  %v614 = vadd.f32 0.0, %v613
  %v615 = vpop.f32.mrb[0].mxu0
  %v616 = vpop.f32.mrb[0].mxu0
  %v617 = vadd.f32 0.0, %v616
  %v618 = vpop.f32.mrb[0].mxu0
  %619 = vmatprep.mubr.bf16.mxu0 %v272
  %620 = vmatmul.mubr.bf16.gmra.mrb[0].mxu0 %v271
  %v621 = vpop.f32.mrb[0].mxu0
  %v622 = vadd.f32 0.0, %v621
  %v623 = vpop.f32.mrb[0].mxu0
  %v624 = vpop.f32.mrb[0].mxu0
  %v625 = vadd.f32 0.0, %v624
  %v626 = vpop.f32.mrb[0].mxu0
  %627 = vmatprep.mubr.bf16.mxu0 %v277
  %628 = vmatmul.mubr.bf16.gmra.mrb[0].mxu0 %v276
  %v629 = vpop.f32.mrb[0].mxu0
  %v630 = vadd.f32 0.0, %v629
  %v631 = vpop.f32.mrb[0].mxu0
  %v632 = vpop.f32.mrb[0].mxu0
  %v633 = vadd.f32 0.0, %v632
  %v634 = vpop.f32.mrb[0].mxu0
  %635 = vmatprep.mubr.bf16.mxu0 %v282
  %636 = vmatmul.mubr.bf16.gmra.mrb[0].mxu0 %v281
  %v637 = vpop.f32.mrb[0].mxu0
  %v638 = vadd.f32 0.0, %v637
  %v639 = vpop.f32.mrb[0].mxu0
  %v640 = vpop.f32.mrb[0].mxu0
  %v641 = vadd.f32 0.0, %v640
  %v642 = vpop.f32.mrb[0].mxu0
  %643 = vmatprep.mubr.bf16.mxu0 %v287
  %644 = vmatmul.mubr.bf16.gmra.mrb[0].mxu0 %v286
  %v645 = vpop.f32.mrb[0].mxu0
  %v646 = vadd.f32 0.0, %v645
  %v647 = vpop.f32.mrb[0].mxu0
  %v648 = vpop.f32.mrb[0].mxu0
  %v649 = vadd.f32 0.0, %v648
  %v650 = vpop.f32.mrb[0].mxu0
  %651 = vmatprep.mubr.bf16.mxu0 %v292
  %652 = vmatmul.mubr.bf16.gmra.mrb[0].mxu0 %v291
  %v653 = vpop.f32.mrb[0].mxu0
  %v654 = vadd.f32 0.0, %v653
  %v655 = vpop.f32.mrb[0].mxu0
  %v656 = vpop.f32.mrb[0].mxu0
  %v657 = vadd.f32 0.0, %v656
  %v658 = vpop.f32.mrb[0].mxu0
  %659 = vmatprep.mubr.bf16.mxu0 %v297
  %660 = vmatmul.mubr.bf16.gmra.mrb[0].mxu0 %v296
  %v661 = vpop.f32.mrb[0].mxu0
  %v662 = vadd.f32 0.0, %v661
  %v663 = vpop.f32.mrb[0].mxu0
  %v664 = vpop.f32.mrb[0].mxu0
  %v665 = vadd.f32 0.0, %v664
  %v666 = vpop.f32.mrb[0].mxu0
  %667 = vmatprep.mubr.bf16.mxu0 %v302
  %668 = vmatmul.mubr.bf16.gmra.mrb[0].mxu0 %v301
  %v669 = vpop.f32.mrb[0].mxu0
  %v670 = vadd.f32 0.0, %v669
  %v671 = vpop.f32.mrb[0].mxu0
  %v672 = vpop.f32.mrb[0].mxu0
  %v673 = vadd.f32 0.0, %v672
  %v674 = vpop.f32.mrb[0].mxu0
  %675 = vdwg.mxu0
  %676 = vmatprep.subr.bf16.mxu0 0
  %677 = vmatpush1.bf16.msra.mxu0 %v498
  %678 = vmatprep.subr.bf16.mxu0 0
  %679 = vmatpush1.bf16.msra.mxu0 %v499
  %680 = vmatprep.subr.bf16.mxu0 0
  %681 = vmatpush1.bf16.msra.mxu0 %v500
  %682 = vmatprep.subr.bf16.mxu0 0
  %683 = vmatpush1.bf16.msra.mxu0 %v501
  %684 = vmatprep.subr.bf16.mxu0 0
  %685 = vmatpush1.bf16.msra.mxu0 %v502
  %686 = vmatprep.subr.bf16.mxu0 0
  %687 = vmatpush1.bf16.msra.mxu0 %v503
  %688 = vmatprep.subr.bf16.mxu0 0
  %689 = vmatpush1.bf16.msra.mxu0 %v504
  %690 = vmatprep.subr.bf16.mxu0 0
  %691 = vmatpush1.bf16.msra.mxu0 %v505
  %692 = vmatprep.subr.bf16.mxu0 0
  %693 = vmatpush1.bf16.msra.mxu0 %v506
  %694 = vmatprep.subr.bf16.mxu0 0
  %695 = vmatpush1.bf16.msra.mxu0 %v507
  %696 = vmatprep.subr.bf16.mxu0 0
  %697 = vmatpush1.bf16.msra.mxu0 %v508
  %698 = vmatprep.subr.bf16.mxu0 0
  %699 = vmatpush1.bf16.msra.mxu0 %v509
  %700 = vmatprep.subr.bf16.mxu0 0
  %701 = vmatpush1.bf16.msra.mxu0 %v510
  %702 = vmatprep.subr.bf16.mxu0 0
  %703 = vmatpush1.bf16.msra.mxu0 %v511
  %704 = vmatprep.subr.bf16.mxu0 0
  %705 = vmatpush1.bf16.msra.mxu0 %v512
  %706 = vmatprep.subr.bf16.mxu0 0
  %707 = vmatpush1.bf16.msra.mxu0 %v513
  %708 = vmatprep.mubr.bf16.mxu0 %v269
  %709 = vmatmul.mubr.bf16.gmra.mrb[0].mxu0 %v268
  %v710 = vpop.f32.mrb[0].mxu0
  %v711 = vadd.f32 %v614, %v710
  %v712 = vpop.f32.mrb[0].mxu0
  %v713 = vpop.f32.mrb[0].mxu0
  %v714 = vadd.f32 %v617, %v713
  %v715 = vpop.f32.mrb[0].mxu0
  %716 = vmatprep.mubr.bf16.mxu0 %v274
  %717 = vmatmul.mubr.bf16.gmra.mrb[0].mxu0 %v273
  %v718 = vpop.f32.mrb[0].mxu0
  %v719 = vadd.f32 %v622, %v718
  %v720 = vpop.f32.mrb[0].mxu0
  %v721 = vpop.f32.mrb[0].mxu0
  %v722 = vadd.f32 %v625, %v721
  %v723 = vpop.f32.mrb[0].mxu0
  %724 = vmatprep.mubr.bf16.mxu0 %v279
  %725 = vmatmul.mubr.bf16.gmra.mrb[0].mxu0 %v278
  %v726 = vpop.f32.mrb[0].mxu0
  %v727 = vadd.f32 %v630, %v726
  %v728 = vpop.f32.mrb[0].mxu0
  %v729 = vpop.f32.mrb[0].mxu0
  %v730 = vadd.f32 %v633, %v729
  %v731 = vpop.f32.mrb[0].mxu0
  %732 = vmatprep.mubr.bf16.mxu0 %v284
  %733 = vmatmul.mubr.bf16.gmra.mrb[0].mxu0 %v283
  %v734 = vpop.f32.mrb[0].mxu0
  %v735 = vadd.f32 %v638, %v734
  %v736 = vpop.f32.mrb[0].mxu0
  %v737 = vpop.f32.mrb[0].mxu0
  %v738 = vadd.f32 %v641, %v737
  %v739 = vpop.f32.mrb[0].mxu0
  %740 = vmatprep.mubr.bf16.mxu0 %v289
  %741 = vmatmul.mubr.bf16.gmra.mrb[0].mxu0 %v288
  %v742 = vpop.f32.mrb[0].mxu0
  %v743 = vadd.f32 %v646, %v742
  %v744 = vpop.f32.mrb[0].mxu0
  %v745 = vpop.f32.mrb[0].mxu0
  %v746 = vadd.f32 %v649, %v745
  %v747 = vpop.f32.mrb[0].mxu0
  %748 = vmatprep.mubr.bf16.mxu0 %v294
  %749 = vmatmul.mubr.bf16.gmra.mrb[0].mxu0 %v293
  %v750 = vpop.f32.mrb[0].mxu0
  %v751 = vadd.f32 %v654, %v750
  %v752 = vpop.f32.mrb[0].mxu0
  %v753 = vpop.f32.mrb[0].mxu0
  %v754 = vadd.f32 %v657, %v753
  %v755 = vpop.f32.mrb[0].mxu0
  %756 = vmatprep.mubr.bf16.mxu0 %v299
  %757 = vmatmul.mubr.bf16.gmra.mrb[0].mxu0 %v298
  %v758 = vpop.f32.mrb[0].mxu0
  %v759 = vadd.f32 %v662, %v758
  %v760 = vpop.f32.mrb[0].mxu0
  %v761 = vpop.f32.mrb[0].mxu0
  %v762 = vadd.f32 %v665, %v761
  %v763 = vpop.f32.mrb[0].mxu0
  %764 = vmatprep.mubr.bf16.mxu0 %v304
  %765 = vmatmul.mubr.bf16.gmra.mrb[0].mxu0 %v303
  %v766 = vpop.f32.mrb[0].mxu0
  %v767 = vadd.f32 %v670, %v766
  %v768 = vpop.f32.mrb[0].mxu0
  %v769 = vpop.f32.mrb[0].mxu0
  %v770 = vadd.f32 %v673, %v769
  %v771 = vpop.f32.mrb[0].mxu0
  %772 = vdwg.mxu0
  %773 = vmatprep.subr.bf16.mxu0 0
  %774 = vmatpush1.bf16.msra.mxu0 %v514
  %775 = vmatprep.subr.bf16.mxu0 0
  %776 = vmatpush1.bf16.msra.mxu0 %v515
  %777 = vmatprep.subr.bf16.mxu0 0
  %778 = vmatpush1.bf16.msra.mxu0 %v516
  %779 = vmatprep.subr.bf16.mxu0 0
  %780 = vmatpush1.bf16.msra.mxu0 %v517
  %781 = vmatprep.subr.bf16.mxu0 0
  %782 = vmatpush1.bf16.msra.mxu0 0
  %783 = vmatprep.subr.bf16.mxu0 0
  %784 = vmatpush1.bf16.msra.mxu0 0
  %785 = vmatprep.subr.bf16.mxu0 0
  %786 = vmatpush1.bf16.msra.mxu0 0
  %787 = vmatprep.subr.bf16.mxu0 0
  %788 = vmatpush1.bf16.msra.mxu0 0
  %789 = vmatprep.subr.bf16.mxu0 0
  %790 = vmatpush1.bf16.msra.mxu0 0
  %791 = vmatprep.subr.bf16.mxu0 0
  %792 = vmatpush1.bf16.msra.mxu0 0
  %793 = vmatprep.subr.bf16.mxu0 0
  %794 = vmatpush1.bf16.msra.mxu0 0
  %795 = vmatprep.subr.bf16.mxu0 0
  %796 = vmatpush1.bf16.msra.mxu0 0
  %797 = vmatprep.subr.bf16.mxu0 0
  %798 = vmatpush1.bf16.msra.mxu0 0
  %799 = vmatprep.subr.bf16.mxu0 0
  %800 = vmatpush1.bf16.msra.mxu0 0
  %801 = vmatprep.subr.bf16.mxu0 0
  %802 = vmatpush1.bf16.msra.mxu0 0
  %803 = vmatprep.subr.bf16.mxu0 0
  %804 = vmatpush1.bf16.msra.mxu0 0
  %805 = vmatprep.mubr.bf16.mxu0 0
  %806 = vmatmul.mubr.bf16.gmra.mrb[0].mxu0 %v556
  %v807 = vpop.f32.mrb[0].mxu0
  %v808 = vadd.f32 %v711, %v807
  %v809 = vpop.f32.mrb[0].mxu0
  %v810 = vpop.f32.mrb[0].mxu0
  %v811 = vadd.f32 %v714, %v810
  %v812 = vpop.f32.mrb[0].mxu0
  %813 = vmatprep.mubr.bf16.mxu0 0
  %814 = vmatmul.mubr.bf16.gmra.mrb[0].mxu0 %v559
  %v815 = vpop.f32.mrb[0].mxu0
  %v816 = vadd.f32 %v719, %v815
  %v817 = vpop.f32.mrb[0].mxu0
  %v818 = vpop.f32.mrb[0].mxu0
  %v819 = vadd.f32 %v722, %v818
  %v820 = vpop.f32.mrb[0].mxu0
  %821 = vmatprep.mubr.bf16.mxu0 0
  %822 = vmatmul.mubr.bf16.gmra.mrb[0].mxu0 %v562
  %v823 = vpop.f32.mrb[0].mxu0
  %v824 = vadd.f32 %v727, %v823
  %v825 = vpop.f32.mrb[0].mxu0
  %v826 = vpop.f32.mrb[0].mxu0
  %v827 = vadd.f32 %v730, %v826
  %v828 = vpop.f32.mrb[0].mxu0
  %829 = vmatprep.mubr.bf16.mxu0 0
  %830 = vmatmul.mubr.bf16.gmra.mrb[0].mxu0 %v565
  %v831 = vpop.f32.mrb[0].mxu0
  %v832 = vadd.f32 %v735, %v831
  %v833 = vpop.f32.mrb[0].mxu0
  %v834 = vpop.f32.mrb[0].mxu0
  %v835 = vadd.f32 %v738, %v834
  %v836 = vpop.f32.mrb[0].mxu0
  %837 = vmatprep.mubr.bf16.mxu0 0
  %838 = vmatmul.mubr.bf16.gmra.mrb[0].mxu0 %v568
  %v839 = vpop.f32.mrb[0].mxu0
  %v840 = vadd.f32 %v743, %v839
  %v841 = vpop.f32.mrb[0].mxu0
  %v842 = vpop.f32.mrb[0].mxu0
  %v843 = vadd.f32 %v746, %v842
  %v844 = vpop.f32.mrb[0].mxu0
  %845 = vmatprep.mubr.bf16.mxu0 0
  %846 = vmatmul.mubr.bf16.gmra.mrb[0].mxu0 %v571
  %v847 = vpop.f32.mrb[0].mxu0
  %v848 = vadd.f32 %v751, %v847
  %v849 = vpop.f32.mrb[0].mxu0
  %v850 = vpop.f32.mrb[0].mxu0
  %v851 = vadd.f32 %v754, %v850
  %v852 = vpop.f32.mrb[0].mxu0
  %853 = vmatprep.mubr.bf16.mxu0 0
  %854 = vmatmul.mubr.bf16.gmra.mrb[0].mxu0 %v574
  %v855 = vpop.f32.mrb[0].mxu0
  %v856 = vadd.f32 %v759, %v855
  %v857 = vpop.f32.mrb[0].mxu0
  %v858 = vpop.f32.mrb[0].mxu0
  %v859 = vadd.f32 %v762, %v858
  %v860 = vpop.f32.mrb[0].mxu0
  %861 = vmatprep.mubr.bf16.mxu0 0
  %862 = vmatmul.mubr.bf16.gmra.mrb[0].mxu0 %v577
  %v863 = vpop.f32.mrb[0].mxu0
  %v864 = vadd.f32 %v767, %v863
  %v865 = vpop.f32.mrb[0].mxu0
  %v866 = vpop.f32.mrb[0].mxu0
  %v867 = vadd.f32 %v770, %v866
  %v868 = vpop.f32.mrb[0].mxu0
  %869 = vdwg.mxu0
  %870 = vadd.xlane.f32.xlu0 %v808
  %v871 = vpop.xlane.xlu0 %870
  %872 = vadd.xlane.f32.xlu0 %v811
  %v873 = vpop.xlane.xlu0 %872
  %874 = vadd.xlane.f32.xlu0 %v816
  %v875 = vpop.xlane.xlu0 %874
  %876 = vadd.xlane.f32.xlu0 %v819
  %v877 = vpop.xlane.xlu0 %876
  %v878 = vadd.f32 %v871, 0.0
  %v879 = vadd.f32 %v873, 0.0
  %v880 = vadd.f32 %v875, 0.0
  %v881 = vadd.f32 %v877, 0.0
  %v882 = vmul.f32 %v808, %v808
  %v883 = vmul.f32 %v811, %v811
  %v884 = vmul.f32 %v816, %v816
  %v885 = vmul.f32 %v819, %v819
  %886 = vadd.xlane.f32.xlu0 %v882
  %v887 = vpop.xlane.xlu0 %886
  %888 = vadd.xlane.f32.xlu0 %v883
  %v889 = vpop.xlane.xlu0 %888
  %890 = vadd.xlane.f32.xlu0 %v884
  %v891 = vpop.xlane.xlu0 %890
  %892 = vadd.xlane.f32.xlu0 %v885
  %v893 = vpop.xlane.xlu0 %892
  %v894 = vadd.f32 %v887, 0.0
  %v895 = vadd.f32 %v889, 0.0
  %v896 = vadd.f32 %v891, 0.0
  %v897 = vadd.f32 %v893, 0.0
  %898 = vadd.xlane.f32.xlu0 %v824
  %v899 = vpop.xlane.xlu0 %898
  %900 = vadd.xlane.f32.xlu0 %v827
  %v901 = vpop.xlane.xlu0 %900
  %902 = vadd.xlane.f32.xlu0 %v832
  %v903 = vpop.xlane.xlu0 %902
  %904 = vadd.xlane.f32.xlu0 %v835
  %v905 = vpop.xlane.xlu0 %904
  %v906 = vadd.f32 %v878, %v899
  %v907 = vadd.f32 %v879, %v901
  %v908 = vadd.f32 %v880, %v903
  %v909 = vadd.f32 %v881, %v905
  %v910 = vmul.f32 %v824, %v824
  %v911 = vmul.f32 %v827, %v827
  %v912 = vmul.f32 %v832, %v832
  %v913 = vmul.f32 %v835, %v835
  %914 = vadd.xlane.f32.xlu0 %v910
  %v915 = vpop.xlane.xlu0 %914
  %916 = vadd.xlane.f32.xlu0 %v911
  %v917 = vpop.xlane.xlu0 %916
  %918 = vadd.xlane.f32.xlu0 %v912
  %v919 = vpop.xlane.xlu0 %918
  %920 = vadd.xlane.f32.xlu0 %v913
  %v921 = vpop.xlane.xlu0 %920
  %v922 = vadd.f32 %v894, %v915
  %v923 = vadd.f32 %v895, %v917
  %v924 = vadd.f32 %v896, %v919
  %v925 = vadd.f32 %v897, %v921
  %926 = vadd.xlane.f32.xlu0 %v840
  %v927 = vpop.xlane.xlu0 %926
  %928 = vadd.xlane.f32.xlu0 %v843
  %v929 = vpop.xlane.xlu0 %928
  %930 = vadd.xlane.f32.xlu0 %v848
  %v931 = vpop.xlane.xlu0 %930
  %932 = vadd.xlane.f32.xlu0 %v851
  %v933 = vpop.xlane.xlu0 %932
  %v934 = vadd.f32 %v906, %v927
  %v935 = vadd.f32 %v907, %v929
  %v936 = vadd.f32 %v908, %v931
  %v937 = vadd.f32 %v909, %v933
  %v938 = vmul.f32 %v840, %v840
  %v939 = vmul.f32 %v843, %v843
  %v940 = vmul.f32 %v848, %v848
  %v941 = vmul.f32 %v851, %v851
  %942 = vadd.xlane.f32.xlu0 %v938
  %v943 = vpop.xlane.xlu0 %942
  %944 = vadd.xlane.f32.xlu0 %v939
  %v945 = vpop.xlane.xlu0 %944
  %946 = vadd.xlane.f32.xlu0 %v940
  %v947 = vpop.xlane.xlu0 %946
  %948 = vadd.xlane.f32.xlu0 %v941
  %v949 = vpop.xlane.xlu0 %948
  %v950 = vadd.f32 %v922, %v943
  %v951 = vadd.f32 %v923, %v945
  %v952 = vadd.f32 %v924, %v947
  %v953 = vadd.f32 %v925, %v949
  %954 = vadd.xlane.f32.xlu0 %v856
  %v955 = vpop.xlane.xlu0 %954
  %956 = vadd.xlane.f32.xlu0 %v859
  %v957 = vpop.xlane.xlu0 %956
  %958 = vadd.xlane.f32.xlu0 %v864
  %v959 = vpop.xlane.xlu0 %958
  %960 = vadd.xlane.f32.xlu0 %v867
  %v961 = vpop.xlane.xlu0 %960
  %v962 = vadd.f32 %v934, %v955
  %v963 = vadd.f32 %v935, %v957
  %v964 = vadd.f32 %v936, %v959
  %v965 = vadd.f32 %v937, %v961
  %v966 = vmul.f32 %v856, %v856
  %v967 = vmul.f32 %v859, %v859
  %v968 = vmul.f32 %v864, %v864
  %v969 = vmul.f32 %v867, %v867
  %970 = vadd.xlane.f32.xlu0 %v966
  %v971 = vpop.xlane.xlu0 %970
  %972 = vadd.xlane.f32.xlu0 %v967
  %v973 = vpop.xlane.xlu0 %972
  %974 = vadd.xlane.f32.xlu0 %v968
  %v975 = vpop.xlane.xlu0 %974
  %976 = vadd.xlane.f32.xlu0 %v969
  %v977 = vpop.xlane.xlu0 %976
  %v978 = vadd.f32 %v950, %v971
  %v979 = vadd.f32 %v951, %v973
  %v980 = vadd.f32 %v952, %v975
  %v981 = vadd.f32 %v953, %v977
  %v982 = vrcp.pop 512.0
  %v983 = vmul.f32 %v962, %v982
  %v984 = vmul.f32 %v963, %v982
  %v985 = vmul.f32 %v964, %v982
  %v986 = vmul.f32 %v965, %v982
  %v987 = vmul.f32 %v978, %v982
  %v988 = vmul.f32 %v979, %v982
  %v989 = vmul.f32 %v980, %v982
  %v990 = vmul.f32 %v981, %v982
  %v991 = vmul.f32 %v983, %v983
  %v992 = vmul.f32 %v984, %v984
  %v993 = vmul.f32 %v985, %v985
  %v994 = vmul.f32 %v986, %v986
  %v995 = vsub.f32 %v987, %v991
  %v996 = vsub.f32 %v988, %v992
  %v997 = vsub.f32 %v989, %v993
  %v998 = vsub.f32 %v990, %v994
  %v999 = vadd.f32 %v995, 1e-05
  %v1000 = vadd.f32 %v996, 1e-05
  %v1001 = vadd.f32 %v997, 1e-05
  %v1002 = vadd.f32 %v998, 1e-05
  %v1003 = vrsqrt.pop %v999
  %v1004 = vrsqrt.pop %v1000
  %v1005 = vrsqrt.pop %v1001
  %v1006 = vrsqrt.pop %v1002
  %v1007 = vld [vmem:[%s2] sm:$0xff]
  %v1008 = vld [vmem:[%s2 + $0x8] sm:$0xff]
  %v1009 = vld [vmem:[%s2 + $0x10] sm:$0xff]
  %v1010 = vld [vmem:[%s2 + $0x18] sm:$0xff]
  %v1011 = vmul.f32 %v1007, %v1003
  %v1012 = vmul.f32 %v1008, %v1004
  %v1013 = vmul.f32 %v1009, %v1005
  %v1014 = vmul.f32 %v1010, %v1006
  %v1015 = vld [vmem:[%s3] sm:$0xff]
  %v1016 = vld [vmem:[%s3 + $0x8] sm:$0xff]
  %v1017 = vld [vmem:[%s3 + $0x10] sm:$0xff]
  %v1018 = vld [vmem:[%s3 + $0x18] sm:$0xff]
  %v1019 = vmul.f32 %v983, %v1011
  %v1020 = vmul.f32 %v984, %v1012
  %v1021 = vmul.f32 %v985, %v1013
  %v1022 = vmul.f32 %v986, %v1014
  %v1023 = vsub.f32 %v1015, %v1019
  %v1024 = vsub.f32 %v1016, %v1020
  %v1025 = vsub.f32 %v1017, %v1021
  %v1026 = vsub.f32 %v1018, %v1022
  %1028 = vset.pattern.permute.xlu0 0
  %1029 = vperm.xlu0 %1028, %v1011
  %v1030 = vpop.permute.xlu0 %1029
  %1033 = vset.pattern.permute.xlu0 0
  %1034 = vperm.xlu0 %1033, %v1012
  %v1035 = vpop.permute.xlu0 %1034
  %1038 = vset.pattern.permute.xlu0 0
  %1039 = vperm.xlu0 %1038, %v1013
  %v1040 = vpop.permute.xlu0 %1039
  %1043 = vset.pattern.permute.xlu0 0
  %1044 = vperm.xlu0 %1043, %v1014
  %v1045 = vpop.permute.xlu0 %1044
  %v1047 = vmul.f32 %v808, %v1030
  %v1048 = vmul.f32 %v811, %v1035
  %v1049 = vmul.f32 %v816, %v1040
  %v1050 = vmul.f32 %v819, %v1045
  %1052 = vset.pattern.permute.xlu0 0
  %1053 = vperm.xlu0 %1052, %v1023
  %v1054 = vpop.permute.xlu0 %1053
  %1057 = vset.pattern.permute.xlu0 0
  %1058 = vperm.xlu0 %1057, %v1024
  %v1059 = vpop.permute.xlu0 %1058
  %1062 = vset.pattern.permute.xlu0 0
  %1063 = vperm.xlu0 %1062, %v1025
  %v1064 = vpop.permute.xlu0 %1063
  %1067 = vset.pattern.permute.xlu0 0
  %1068 = vperm.xlu0 %1067, %v1026
  %v1069 = vpop.permute.xlu0 %1068
  %v1071 = vadd.f32 %v1047, %v1054
  %v1072 = vadd.f32 %v1048, %v1059
  %v1073 = vadd.f32 %v1049, %v1064
  %v1074 = vadd.f32 %v1050, %v1069
  %v1075 = vmax.f32 %v1071, 0.0
  %v1076 = vmax.f32 %v1072, 0.0
  %v1077 = vmax.f32 %v1073, 0.0
  %v1078 = vmax.f32 %v1074, 0.0
  %v1079 = vpack.c.bf16 %v1076, %v1075
  %v1080 = vpack.c.bf16 %v1078, %v1077
  %v1083 = vunpack.c.l.b16 %v1079
  %v1084 = vunpack.c.h.b16 %v1079
  %v1085 = vunpack.c.l.b16 %v1080
  %v1086 = vunpack.c.h.b16 %v1080
  %v1087 = vpack.c.b16 %v1083, %v1083
  %v1088 = vpack.c.b16 %v1084, %v1084
  %v1089 = vpack.c.b16 %v1085, %v1085
  %v1090 = vpack.c.b16 %v1086, %v1086
  %1095 = vst [vmem:[%s4] sm:$0xf] %v1087
  %1096 = vst [vmem:[%s4 + $0x4] sm:$0xf] %v1088
  %1097 = vst [vmem:[%s4 + $0x8] sm:$0xf] %v1089
  %1098 = vst [vmem:[%s4 + $0xc] sm:$0xf] %v1090
  %v1099 = vmul.f32 %v824, %v1030
  %v1100 = vmul.f32 %v827, %v1035
  %v1101 = vmul.f32 %v832, %v1040
  %v1102 = vmul.f32 %v835, %v1045
  %v1103 = vadd.f32 %v1099, %v1054
  %v1104 = vadd.f32 %v1100, %v1059
  %v1105 = vadd.f32 %v1101, %v1064
  %v1106 = vadd.f32 %v1102, %v1069
  %v1107 = vmax.f32 %v1103, 0.0
  %v1108 = vmax.f32 %v1104, 0.0
  %v1109 = vmax.f32 %v1105, 0.0
  %v1110 = vmax.f32 %v1106, 0.0
  %v1111 = vpack.c.bf16 %v1108, %v1107
  %v1112 = vpack.c.bf16 %v1110, %v1109
  %v1115 = vunpack.c.l.b16 %v1111
  %v1116 = vunpack.c.h.b16 %v1111
  %v1117 = vunpack.c.l.b16 %v1112
  %v1118 = vunpack.c.h.b16 %v1112
  %v1119 = vpack.c.b16 %v1115, %v1115
  %v1120 = vpack.c.b16 %v1116, %v1116
  %v1121 = vpack.c.b16 %v1117, %v1117
  %v1122 = vpack.c.b16 %v1118, %v1118
  %1127 = vst [vmem:[%s4 + $0x10] sm:$0xf] %v1119
  %1128 = vst [vmem:[%s4 + $0x14] sm:$0xf] %v1120
  %1129 = vst [vmem:[%s4 + $0x18] sm:$0xf] %v1121
  %1130 = vst [vmem:[%s4 + $0x1c] sm:$0xf] %v1122
  %v1131 = vmul.f32 %v840, %v1030
  %v1132 = vmul.f32 %v843, %v1035
  %v1133 = vmul.f32 %v848, %v1040
  %v1134 = vmul.f32 %v851, %v1045
  %v1135 = vadd.f32 %v1131, %v1054
  %v1136 = vadd.f32 %v1132, %v1059
  %v1137 = vadd.f32 %v1133, %v1064
  %v1138 = vadd.f32 %v1134, %v1069
  %v1139 = vmax.f32 %v1135, 0.0
  %v1140 = vmax.f32 %v1136, 0.0
  %v1141 = vmax.f32 %v1137, 0.0
  %v1142 = vmax.f32 %v1138, 0.0
  %v1143 = vpack.c.bf16 %v1140, %v1139
  %v1144 = vpack.c.bf16 %v1142, %v1141
  %v1147 = vunpack.c.l.b16 %v1143
  %v1148 = vunpack.c.h.b16 %v1143
  %v1149 = vunpack.c.l.b16 %v1144
  %v1150 = vunpack.c.h.b16 %v1144
  %v1151 = vpack.c.b16 %v1147, %v1147
  %v1152 = vpack.c.b16 %v1148, %v1148
  %v1153 = vpack.c.b16 %v1149, %v1149
  %v1154 = vpack.c.b16 %v1150, %v1150
  %1159 = vst [vmem:[%s4 + $0x20] sm:$0xf] %v1151
  %1160 = vst [vmem:[%s4 + $0x24] sm:$0xf] %v1152
  %1161 = vst [vmem:[%s4 + $0x28] sm:$0xf] %v1153
  %1162 = vst [vmem:[%s4 + $0x2c] sm:$0xf] %v1154
  %v1163 = vmul.f32 %v856, %v1030
  %v1164 = vmul.f32 %v859, %v1035
  %v1165 = vmul.f32 %v864, %v1040
  %v1166 = vmul.f32 %v867, %v1045
  %v1167 = vadd.f32 %v1163, %v1054
  %v1168 = vadd.f32 %v1164, %v1059
  %v1169 = vadd.f32 %v1165, %v1064
  %v1170 = vadd.f32 %v1166, %v1069
  %v1171 = vmax.f32 %v1167, 0.0
  %v1172 = vmax.f32 %v1168, 0.0
  %v1173 = vmax.f32 %v1169, 0.0
  %v1174 = vmax.f32 %v1170, 0.0
  %v1175 = vpack.c.bf16 %v1172, %v1171
  %v1176 = vpack.c.bf16 %v1174, %v1173
  %v1179 = vunpack.c.l.b16 %v1175
  %v1180 = vunpack.c.h.b16 %v1175
  %v1181 = vunpack.c.l.b16 %v1176
  %v1182 = vunpack.c.h.b16 %v1176
  %v1183 = vpack.c.b16 %v1179, %v1179
  %v1184 = vpack.c.b16 %v1180, %v1180
  %v1185 = vpack.c.b16 %v1181, %v1181
  %v1186 = vpack.c.b16 %v1182, %v1182
  %1191 = vst [vmem:[%s4 + $0x30] sm:$0xf] %v1183
  %1192 = vst [vmem:[%s4 + $0x34] sm:$0xf] %v1184
  %1193 = vst [vmem:[%s4 + $0x38] sm:$0xf] %v1185
  %1194 = vst [vmem:[%s4 + $0x3c] sm:$0xf] %v1186
  // Predicated region
  $region18: #{generator_forward.7} parent=0 // pred_check
    _
  $region19: #{generator_forward.7} parent=0 // pred_check_branch
    %1196 = sbr.rel (0) target = $region21
  $region20: #{generator_forward.7} parent=0 // pred_region
    _
  $region21: #{generator_forward.7} parent=0 // pred_fallthru
    _
  // Predicated region
  $region22: #{generator_forward.7} parent=0 // pred_check
    _
  $region23: #{generator_forward.7} parent=0 // pred_check_branch
    %1198 = sbr.rel (0) target = $region25
  $region24: #{generator_forward.7} parent=0 // pred_region
    _
  $region25: #{generator_forward.7} parent=0 // pred_fallthru
    _

// kernel: generator_forward.6
$region0: #{generator_forward.6}
  #allocation0 [shape = 'u32[]', space=smem, size = 0x4, offset = 0x4, fixed_abs, tag = 'smem constant byte address 0x4 - core index']
  #allocation1 [shape = 'u32[144,128]{1,0:T(1,128)}', space=vmem, size = 0x12000, scoped, tag = 'internal scratch']
  %s0 = inlined_call_operand.vmem [shape: bf16[1152,32], index: 0, kind: input, shape index: {}]
  %s1 = inlined_call_operand.vmem [shape: bf16[256,1152], index: 1, kind: input, shape index: {}]
  %s2 = inlined_call_operand.vmem [shape: f32[64,1], index: 2, kind: input, shape index: {}]
  %s3 = inlined_call_operand.vmem [shape: f32[64,1], index: 3, kind: input, shape index: {}]
  %s4 = inlined_call_operand.vmem [shape: bf16[256,32], index: 4, kind: output, shape index: {}]
  %s5 = sld [smem:[#allocation0]]
  $region26: #{generator_forward.6} parent=0
    _
  %s7 = ssub.s32 1, %s5
  %s8 = scalar_select 0, %s7, %s5
  // Predicated region
  $region2: #{generator_forward.6} parent=0 // pred_check
    _
  $region3: #{generator_forward.6} parent=0 // pred_check_branch
    %10 = sbr.rel (0) target = $region5
  $region4: #{generator_forward.6} parent=0 // pred_region
    _
  $region5: #{generator_forward.6} parent=0 // pred_fallthru
    _
  // Predicated region
  $region6: #{generator_forward.6} parent=0 // pred_check
    _
  $region7: #{generator_forward.6} parent=0 // pred_check_branch
    %12 = sbr.rel (0) target = $region9
  $region8: #{generator_forward.6} parent=0 // pred_region
    _
  $region9: #{generator_forward.6} parent=0 // pred_fallthru
    _
  // Predicated region
  $region10: #{generator_forward.6} parent=0 // pred_check
    _
  $region11: #{generator_forward.6} parent=0 // pred_check_branch
    %14 = sbr.rel (0) target = $region13
  $region12: #{generator_forward.6} parent=0 // pred_region
    _
  $region13: #{generator_forward.6} parent=0 // pred_fallthru
    _
  // Predicated region
  $region14: #{generator_forward.6} parent=0 // pred_check
    _
  $region15: #{generator_forward.6} parent=0 // pred_check_branch
    %16 = sbr.rel (0) target = $region17
  $region16: #{generator_forward.6} parent=0 // pred_region
    _
  $region17: #{generator_forward.6} parent=0 // pred_fallthru
    _
  %v18 = vld [vmem:[%s1] sm:$0xff]
  %v19 = vld [vmem:[%s1 + $0x8] sm:$0xff]
  %v20 = vld [vmem:[%s1 + $0x10] sm:$0xff]
  %v21 = vld [vmem:[%s1 + $0x18] sm:$0xff]
  %v22 = vld [vmem:[%s1 + $0x20] sm:$0xf]
  %v23 = vld [vmem:[%s1 + $0x24] sm:$0xff]
  %v24 = vld [vmem:[%s1 + $0x2c] sm:$0xff]
  %v25 = vld [vmem:[%s1 + $0x34] sm:$0xff]
  %v26 = vld [vmem:[%s1 + $0x3c] sm:$0xff]
  %v27 = vld [vmem:[%s1 + $0x44] sm:$0xf]
  %v28 = vld [vmem:[%s1 + $0x48] sm:$0xff]
  %v29 = vld [vmem:[%s1 + $0x50] sm:$0xff]
  %v30 = vld [vmem:[%s1 + $0x58] sm:$0xff]
  %v31 = vld [vmem:[%s1 + $0x60] sm:$0xff]
  %v32 = vld [vmem:[%s1 + $0x68] sm:$0xf]
  %v33 = vld [vmem:[%s1 + $0x6c] sm:$0xff]
  %v34 = vld [vmem:[%s1 + $0x74] sm:$0xff]
  %v35 = vld [vmem:[%s1 + $0x7c] sm:$0xff]
  %v36 = vld [vmem:[%s1 + $0x84] sm:$0xff]
  %v37 = vld [vmem:[%s1 + $0x8c] sm:$0xf]
  %v38 = vld [vmem:[%s1 + $0x90] sm:$0xff]
  %v39 = vld [vmem:[%s1 + $0x98] sm:$0xff]
  %v40 = vld [vmem:[%s1 + $0xa0] sm:$0xff]
  %v41 = vld [vmem:[%s1 + $0xa8] sm:$0xff]
  %v42 = vld [vmem:[%s1 + $0xb0] sm:$0xf]
  %v43 = vld [vmem:[%s1 + $0xb4] sm:$0xff]
  %v44 = vld [vmem:[%s1 + $0xbc] sm:$0xff]
  %v45 = vld [vmem:[%s1 + $0xc4] sm:$0xff]
  %v46 = vld [vmem:[%s1 + $0xcc] sm:$0xff]
  %v47 = vld [vmem:[%s1 + $0xd4] sm:$0xf]
  %v48 = vld [vmem:[%s1 + $0xd8] sm:$0xff]
  %v49 = vld [vmem:[%s1 + $0xe0] sm:$0xff]
  %v50 = vld [vmem:[%s1 + $0xe8] sm:$0xff]
  %v51 = vld [vmem:[%s1 + $0xf0] sm:$0xff]
  %v52 = vld [vmem:[%s1 + $0xf8] sm:$0xf]
  %v53 = vld [vmem:[%s1 + $0xfc] sm:$0xff]
  %v54 = vld [vmem:[%s1 + $0x104] sm:$0xff]
  %v55 = vld [vmem:[%s1 + $0x10c] sm:$0xff]
  %v56 = vld [vmem:[%s1 + $0x114] sm:$0xff]
  %v57 = vld [vmem:[%s1 + $0x11c] sm:$0xf]
  %v58 = vld [vmem:[%s1 + $0x120] sm:$0xff]
  %v59 = vld [vmem:[%s1 + $0x128] sm:$0xff]
  %v60 = vld [vmem:[%s1 + $0x130] sm:$0xff]
  %v61 = vld [vmem:[%s1 + $0x138] sm:$0xff]
  %v62 = vld [vmem:[%s1 + $0x140] sm:$0xf]
  %v63 = vld [vmem:[%s1 + $0x144] sm:$0xff]
  %v64 = vld [vmem:[%s1 + $0x14c] sm:$0xff]
  %v65 = vld [vmem:[%s1 + $0x154] sm:$0xff]
  %v66 = vld [vmem:[%s1 + $0x15c] sm:$0xff]
  %v67 = vld [vmem:[%s1 + $0x164] sm:$0xf]
  %v68 = vld [vmem:[%s1 + $0x168] sm:$0xff]
  %v69 = vld [vmem:[%s1 + $0x170] sm:$0xff]
  %v70 = vld [vmem:[%s1 + $0x178] sm:$0xff]
  %v71 = vld [vmem:[%s1 + $0x180] sm:$0xff]
  %v72 = vld [vmem:[%s1 + $0x188] sm:$0xf]
  %v73 = vld [vmem:[%s1 + $0x18c] sm:$0xff]
  %v74 = vld [vmem:[%s1 + $0x194] sm:$0xff]
  %v75 = vld [vmem:[%s1 + $0x19c] sm:$0xff]
  %v76 = vld [vmem:[%s1 + $0x1a4] sm:$0xff]
  %v77 = vld [vmem:[%s1 + $0x1ac] sm:$0xf]
  %v78 = vld [vmem:[%s1 + $0x1b0] sm:$0xff]
  %v79 = vld [vmem:[%s1 + $0x1b8] sm:$0xff]
  %v80 = vld [vmem:[%s1 + $0x1c0] sm:$0xff]
  %v81 = vld [vmem:[%s1 + $0x1c8] sm:$0xff]
  %v82 = vld [vmem:[%s1 + $0x1d0] sm:$0xf]
  %v83 = vld [vmem:[%s1 + $0x1d4] sm:$0xff]
  %v84 = vld [vmem:[%s1 + $0x1dc] sm:$0xff]
  %v85 = vld [vmem:[%s1 + $0x1e4] sm:$0xff]
  %v86 = vld [vmem:[%s1 + $0x1ec] sm:$0xff]
  %v87 = vld [vmem:[%s1 + $0x1f4] sm:$0xf]
  %v88 = vld [vmem:[%s1 + $0x1f8] sm:$0xff]
  %v89 = vld [vmem:[%s1 + $0x200] sm:$0xff]
  %v90 = vld [vmem:[%s1 + $0x208] sm:$0xff]
  %v91 = vld [vmem:[%s1 + $0x210] sm:$0xff]
  %v92 = vld [vmem:[%s1 + $0x218] sm:$0xf]
  %v93 = vld [vmem:[%s1 + $0x21c] sm:$0xff]
  %v94 = vld [vmem:[%s1 + $0x224] sm:$0xff]
  %v95 = vld [vmem:[%s1 + $0x22c] sm:$0xff]
  %v96 = vld [vmem:[%s1 + $0x234] sm:$0xff]
  %v97 = vld [vmem:[%s1 + $0x23c] sm:$0xf]
  %v98 = vld [vmem:[%s1 + $0x240] sm:$0xff]
  %v99 = vld [vmem:[%s1 + $0x248] sm:$0xff]
  %v100 = vld [vmem:[%s1 + $0x250] sm:$0xff]
  %v101 = vld [vmem:[%s1 + $0x258] sm:$0xff]
  %v102 = vld [vmem:[%s1 + $0x260] sm:$0xf]
  %v103 = vld [vmem:[%s1 + $0x264] sm:$0xff]
  %v104 = vld [vmem:[%s1 + $0x26c] sm:$0xff]
  %v105 = vld [vmem:[%s1 + $0x274] sm:$0xff]
  %v106 = vld [vmem:[%s1 + $0x27c] sm:$0xff]
  %v107 = vld [vmem:[%s1 + $0x284] sm:$0xf]
  %v108 = vld [vmem:[%s1 + $0x288] sm:$0xff]
  %v109 = vld [vmem:[%s1 + $0x290] sm:$0xff]
  %v110 = vld [vmem:[%s1 + $0x298] sm:$0xff]
  %v111 = vld [vmem:[%s1 + $0x2a0] sm:$0xff]
  %v112 = vld [vmem:[%s1 + $0x2a8] sm:$0xf]
  %v113 = vld [vmem:[%s1 + $0x2ac] sm:$0xff]
  %v114 = vld [vmem:[%s1 + $0x2b4] sm:$0xff]
  %v115 = vld [vmem:[%s1 + $0x2bc] sm:$0xff]
  %v116 = vld [vmem:[%s1 + $0x2c4] sm:$0xff]
  %v117 = vld [vmem:[%s1 + $0x2cc] sm:$0xf]
  %v118 = vld [vmem:[%s1 + $0x2d0] sm:$0xff]
  %v119 = vld [vmem:[%s1 + $0x2d8] sm:$0xff]
  %v120 = vld [vmem:[%s1 + $0x2e0] sm:$0xff]
  %v121 = vld [vmem:[%s1 + $0x2e8] sm:$0xff]
  %v122 = vld [vmem:[%s1 + $0x2f0] sm:$0xf]
  %v123 = vld [vmem:[%s1 + $0x2f4] sm:$0xff]
  %v124 = vld [vmem:[%s1 + $0x2fc] sm:$0xff]
  %v125 = vld [vmem:[%s1 + $0x304] sm:$0xff]
  %v126 = vld [vmem:[%s1 + $0x30c] sm:$0xff]
  %v127 = vld [vmem:[%s1 + $0x314] sm:$0xf]
  %v128 = vld [vmem:[%s1 + $0x318] sm:$0xff]
  %v129 = vld [vmem:[%s1 + $0x320] sm:$0xff]
  %v130 = vld [vmem:[%s1 + $0x328] sm:$0xff]
  %v131 = vld [vmem:[%s1 + $0x330] sm:$0xff]
  %v132 = vld [vmem:[%s1 + $0x338] sm:$0xf]
  %v133 = vld [vmem:[%s1 + $0x33c] sm:$0xff]
  %v134 = vld [vmem:[%s1 + $0x344] sm:$0xff]
  %v135 = vld [vmem:[%s1 + $0x34c] sm:$0xff]
  %v136 = vld [vmem:[%s1 + $0x354] sm:$0xff]
  %v137 = vld [vmem:[%s1 + $0x35c] sm:$0xf]
  %v138 = vld [vmem:[%s1 + $0x360] sm:$0xff]
  %v139 = vld [vmem:[%s1 + $0x368] sm:$0xff]
  %v140 = vld [vmem:[%s1 + $0x370] sm:$0xff]
  %v141 = vld [vmem:[%s1 + $0x378] sm:$0xff]
  %v142 = vld [vmem:[%s1 + $0x380] sm:$0xf]
  %v143 = vld [vmem:[%s1 + $0x384] sm:$0xff]
  %v144 = vld [vmem:[%s1 + $0x38c] sm:$0xff]
  %v145 = vld [vmem:[%s1 + $0x394] sm:$0xff]
  %v146 = vld [vmem:[%s1 + $0x39c] sm:$0xff]
  %v147 = vld [vmem:[%s1 + $0x3a4] sm:$0xf]
  %v148 = vld [vmem:[%s1 + $0x3a8] sm:$0xff]
  %v149 = vld [vmem:[%s1 + $0x3b0] sm:$0xff]
  %v150 = vld [vmem:[%s1 + $0x3b8] sm:$0xff]
  %v151 = vld [vmem:[%s1 + $0x3c0] sm:$0xff]
  %v152 = vld [vmem:[%s1 + $0x3c8] sm:$0xf]
  %v153 = vld [vmem:[%s1 + $0x3cc] sm:$0xff]
  %v154 = vld [vmem:[%s1 + $0x3d4] sm:$0xff]
  %v155 = vld [vmem:[%s1 + $0x3dc] sm:$0xff]
  %v156 = vld [vmem:[%s1 + $0x3e4] sm:$0xff]
  %v157 = vld [vmem:[%s1 + $0x3ec] sm:$0xf]
  %v158 = vld [vmem:[%s1 + $0x3f0] sm:$0xff]
  %v159 = vld [vmem:[%s1 + $0x3f8] sm:$0xff]
  %v160 = vld [vmem:[%s1 + $0x400] sm:$0xff]
  %v161 = vld [vmem:[%s1 + $0x408] sm:$0xff]
  %v162 = vld [vmem:[%s1 + $0x410] sm:$0xf]
  %v163 = vld [vmem:[%s1 + $0x414] sm:$0xff]
  %v164 = vld [vmem:[%s1 + $0x41c] sm:$0xff]
  %v165 = vld [vmem:[%s1 + $0x424] sm:$0xff]
  %v166 = vld [vmem:[%s1 + $0x42c] sm:$0xff]
  %v167 = vld [vmem:[%s1 + $0x434] sm:$0xf]
  %v168 = vld [vmem:[%s1 + $0x438] sm:$0xff]
  %v169 = vld [vmem:[%s1 + $0x440] sm:$0xff]
  %v170 = vld [vmem:[%s1 + $0x448] sm:$0xff]
  %v171 = vld [vmem:[%s1 + $0x450] sm:$0xff]
  %v172 = vld [vmem:[%s1 + $0x458] sm:$0xf]
  %v173 = vld [vmem:[%s1 + $0x45c] sm:$0xff]
  %v174 = vld [vmem:[%s1 + $0x464] sm:$0xff]
  %v175 = vld [vmem:[%s1 + $0x46c] sm:$0xff]
  %v176 = vld [vmem:[%s1 + $0x474] sm:$0xff]
  %v177 = vld [vmem:[%s1 + $0x47c] sm:$0xf]
  %v178 = vld [vmem:[%s0] sm:$0xf]
  %v179 = vld [vmem:[%s0 + $0x4] sm:$0xf]
  %v180 = vld [vmem:[%s0 + $0x8] sm:$0xf]
  %v181 = vld [vmem:[%s0 + $0xc] sm:$0xf]
  %v182 = vld [vmem:[%s0 + $0x10] sm:$0xf]
  %v183 = vld [vmem:[%s0 + $0x14] sm:$0xf]
  %v184 = vld [vmem:[%s0 + $0x18] sm:$0xf]
  %v185 = vld [vmem:[%s0 + $0x1c] sm:$0xf]
  %v186 = vld [vmem:[%s0 + $0x20] sm:$0xf]
  %v187 = vld [vmem:[%s0 + $0x24] sm:$0xf]
  %v188 = vld [vmem:[%s0 + $0x28] sm:$0xf]
  %v189 = vld [vmem:[%s0 + $0x2c] sm:$0xf]
  %v190 = vld [vmem:[%s0 + $0x30] sm:$0xf]
  %v191 = vld [vmem:[%s0 + $0x34] sm:$0xf]
  %v192 = vld [vmem:[%s0 + $0x38] sm:$0xf]
  %v193 = vld [vmem:[%s0 + $0x3c] sm:$0xf]
  %v194 = vld [vmem:[%s0 + $0x40] sm:$0xf]
  %v195 = vld [vmem:[%s0 + $0x44] sm:$0xf]
  %v196 = vld [vmem:[%s0 + $0x48] sm:$0xf]
  %v197 = vld [vmem:[%s0 + $0x4c] sm:$0xf]
  %v198 = vld [vmem:[%s0 + $0x50] sm:$0xf]
  %v199 = vld [vmem:[%s0 + $0x54] sm:$0xf]
  %v200 = vld [vmem:[%s0 + $0x58] sm:$0xf]
  %v201 = vld [vmem:[%s0 + $0x5c] sm:$0xf]
  %v202 = vld [vmem:[%s0 + $0x60] sm:$0xf]
  %v203 = vld [vmem:[%s0 + $0x64] sm:$0xf]
  %v204 = vld [vmem:[%s0 + $0x68] sm:$0xf]
  %v205 = vld [vmem:[%s0 + $0x6c] sm:$0xf]
  %v206 = vld [vmem:[%s0 + $0x70] sm:$0xf]
  %v207 = vld [vmem:[%s0 + $0x74] sm:$0xf]
  %v208 = vld [vmem:[%s0 + $0x78] sm:$0xf]
  %v209 = vld [vmem:[%s0 + $0x7c] sm:$0xf]
  %v210 = vld [vmem:[%s0 + $0x80] sm:$0xf]
  %v211 = vld [vmem:[%s0 + $0x84] sm:$0xf]
  %v212 = vld [vmem:[%s0 + $0x88] sm:$0xf]
  %v213 = vld [vmem:[%s0 + $0x8c] sm:$0xf]
  %v214 = vld [vmem:[%s0 + $0x90] sm:$0xf]
  %v215 = vld [vmem:[%s0 + $0x94] sm:$0xf]
  %v216 = vld [vmem:[%s0 + $0x98] sm:$0xf]
  %v217 = vld [vmem:[%s0 + $0x9c] sm:$0xf]
  %v218 = vld [vmem:[%s0 + $0xa0] sm:$0xf]
  %v219 = vld [vmem:[%s0 + $0xa4] sm:$0xf]
  %v220 = vld [vmem:[%s0 + $0xa8] sm:$0xf]
  %v221 = vld [vmem:[%s0 + $0xac] sm:$0xf]
  %v222 = vld [vmem:[%s0 + $0xb0] sm:$0xf]
  %v223 = vld [vmem:[%s0 + $0xb4] sm:$0xf]
  %v224 = vld [vmem:[%s0 + $0xb8] sm:$0xf]
  %v225 = vld [vmem:[%s0 + $0xbc] sm:$0xf]
  %v226 = vld [vmem:[%s0 + $0xc0] sm:$0xf]
  %v227 = vld [vmem:[%s0 + $0xc4] sm:$0xf]
  %v228 = vld [vmem:[%s0 + $0xc8] sm:$0xf]
  %v229 = vld [vmem:[%s0 + $0xcc] sm:$0xf]
  %v230 = vld [vmem:[%s0 + $0xd0] sm:$0xf]
  %v231 = vld [vmem:[%s0 + $0xd4] sm:$0xf]
  %v232 = vld [vmem:[%s0 + $0xd8] sm:$0xf]
  %v233 = vld [vmem:[%s0 + $0xdc] sm:$0xf]
  %v234 = vld [vmem:[%s0 + $0xe0] sm:$0xf]
  %v235 = vld [vmem:[%s0 + $0xe4] sm:$0xf]
  %v236 = vld [vmem:[%s0 + $0xe8] sm:$0xf]
  %v237 = vld [vmem:[%s0 + $0xec] sm:$0xf]
  %v238 = vld [vmem:[%s0 + $0xf0] sm:$0xf]
  %v239 = vld [vmem:[%s0 + $0xf4] sm:$0xf]
  %v240 = vld [vmem:[%s0 + $0xf8] sm:$0xf]
  %v241 = vld [vmem:[%s0 + $0xfc] sm:$0xf]
  %v242 = vld [vmem:[%s0 + $0x100] sm:$0xf]
  %v243 = vld [vmem:[%s0 + $0x104] sm:$0xf]
  %v244 = vld [vmem:[%s0 + $0x108] sm:$0xf]
  %v245 = vld [vmem:[%s0 + $0x10c] sm:$0xf]
  %v246 = vld [vmem:[%s0 + $0x110] sm:$0xf]
  %v247 = vld [vmem:[%s0 + $0x114] sm:$0xf]
  %v248 = vld [vmem:[%s0 + $0x118] sm:$0xf]
  %v249 = vld [vmem:[%s0 + $0x11c] sm:$0xf]
  %v250 = vld [vmem:[%s0 + $0x120] sm:$0xf]
  %v251 = vld [vmem:[%s0 + $0x124] sm:$0xf]
  %v252 = vld [vmem:[%s0 + $0x128] sm:$0xf]
  %v253 = vld [vmem:[%s0 + $0x12c] sm:$0xf]
  %v254 = vld [vmem:[%s0 + $0x130] sm:$0xf]
  %v255 = vld [vmem:[%s0 + $0x134] sm:$0xf]
  %v256 = vld [vmem:[%s0 + $0x138] sm:$0xf]
  %v257 = vld [vmem:[%s0 + $0x13c] sm:$0xf]
  %v258 = vld [vmem:[%s0 + $0x140] sm:$0xf]
  %v259 = vld [vmem:[%s0 + $0x144] sm:$0xf]
  %v260 = vld [vmem:[%s0 + $0x148] sm:$0xf]
  %v261 = vld [vmem:[%s0 + $0x14c] sm:$0xf]
  %v262 = vld [vmem:[%s0 + $0x150] sm:$0xf]
  %v263 = vld [vmem:[%s0 + $0x154] sm:$0xf]
  %v264 = vld [vmem:[%s0 + $0x158] sm:$0xf]
  %v265 = vld [vmem:[%s0 + $0x15c] sm:$0xf]
  %v266 = vld [vmem:[%s0 + $0x160] sm:$0xf]
  %v267 = vld [vmem:[%s0 + $0x164] sm:$0xf]
  %v268 = vld [vmem:[%s0 + $0x168] sm:$0xf]
  %v269 = vld [vmem:[%s0 + $0x16c] sm:$0xf]
  %v270 = vld [vmem:[%s0 + $0x170] sm:$0xf]
  %v271 = vld [vmem:[%s0 + $0x174] sm:$0xf]
  %v272 = vld [vmem:[%s0 + $0x178] sm:$0xf]
  %v273 = vld [vmem:[%s0 + $0x17c] sm:$0xf]
  %v274 = vld [vmem:[%s0 + $0x180] sm:$0xf]
  %v275 = vld [vmem:[%s0 + $0x184] sm:$0xf]
  %v276 = vld [vmem:[%s0 + $0x188] sm:$0xf]
  %v277 = vld [vmem:[%s0 + $0x18c] sm:$0xf]
  %v278 = vld [vmem:[%s0 + $0x190] sm:$0xf]
  %v279 = vld [vmem:[%s0 + $0x194] sm:$0xf]
  %v280 = vld [vmem:[%s0 + $0x198] sm:$0xf]
  %v281 = vld [vmem:[%s0 + $0x19c] sm:$0xf]
  %v282 = vld [vmem:[%s0 + $0x1a0] sm:$0xf]
  %v283 = vld [vmem:[%s0 + $0x1a4] sm:$0xf]
  %v284 = vld [vmem:[%s0 + $0x1a8] sm:$0xf]
  %v285 = vld [vmem:[%s0 + $0x1ac] sm:$0xf]
  %v286 = vld [vmem:[%s0 + $0x1b0] sm:$0xf]
  %v287 = vld [vmem:[%s0 + $0x1b4] sm:$0xf]
  %v288 = vld [vmem:[%s0 + $0x1b8] sm:$0xf]
  %v289 = vld [vmem:[%s0 + $0x1bc] sm:$0xf]
  %v290 = vld [vmem:[%s0 + $0x1c0] sm:$0xf]
  %v291 = vld [vmem:[%s0 + $0x1c4] sm:$0xf]
  %v292 = vld [vmem:[%s0 + $0x1c8] sm:$0xf]
  %v293 = vld [vmem:[%s0 + $0x1cc] sm:$0xf]
  %v294 = vld [vmem:[%s0 + $0x1d0] sm:$0xf]
  %v295 = vld [vmem:[%s0 + $0x1d4] sm:$0xf]
  %v296 = vld [vmem:[%s0 + $0x1d8] sm:$0xf]
  %v297 = vld [vmem:[%s0 + $0x1dc] sm:$0xf]
  %v298 = vld [vmem:[%s0 + $0x1e0] sm:$0xf]
  %v299 = vld [vmem:[%s0 + $0x1e4] sm:$0xf]
  %v300 = vld [vmem:[%s0 + $0x1e8] sm:$0xf]
  %v301 = vld [vmem:[%s0 + $0x1ec] sm:$0xf]
  %v302 = vld [vmem:[%s0 + $0x1f0] sm:$0xf]
  %v303 = vld [vmem:[%s0 + $0x1f4] sm:$0xf]
  %v304 = vld [vmem:[%s0 + $0x1f8] sm:$0xf]
  %v305 = vld [vmem:[%s0 + $0x1fc] sm:$0xf]
  %v306 = vld [vmem:[%s0 + $0x200] sm:$0xf]
  %v307 = vld [vmem:[%s0 + $0x204] sm:$0xf]
  %v308 = vld [vmem:[%s0 + $0x208] sm:$0xf]
  %v309 = vld [vmem:[%s0 + $0x20c] sm:$0xf]
  %v310 = vld [vmem:[%s0 + $0x210] sm:$0xf]
  %v311 = vld [vmem:[%s0 + $0x214] sm:$0xf]
  %v312 = vld [vmem:[%s0 + $0x218] sm:$0xf]
  %v313 = vld [vmem:[%s0 + $0x21c] sm:$0xf]
  %v314 = vld [vmem:[%s0 + $0x220] sm:$0xf]
  %v315 = vld [vmem:[%s0 + $0x224] sm:$0xf]
  %v316 = vld [vmem:[%s0 + $0x228] sm:$0xf]
  %v317 = vld [vmem:[%s0 + $0x22c] sm:$0xf]
  %v318 = vld [vmem:[%s0 + $0x230] sm:$0xf]
  %v319 = vld [vmem:[%s0 + $0x234] sm:$0xf]
  %v320 = vld [vmem:[%s0 + $0x238] sm:$0xf]
  %v321 = vld [vmem:[%s0 + $0x23c] sm:$0xf]
  %v482 = vunpack.c.l.b16 %v18
  %v483 = vunpack.c.h.b16 %v18
  %v484 = vunpack.c.l.b16 %v19
  %v485 = vunpack.c.h.b16 %v19
  %v486 = vunpack.c.l.b16 %v20
  %v487 = vunpack.c.h.b16 %v20
  %v488 = vunpack.c.l.b16 %v21
  %v489 = vunpack.c.h.b16 %v21
  %v490 = vunpack.c.l.b16 %v22
  %v491 = vunpack.c.l.b16 %v23
  %v492 = vunpack.c.h.b16 %v23
  %v493 = vunpack.c.l.b16 %v24
  %v494 = vunpack.c.h.b16 %v24
  %v495 = vunpack.c.l.b16 %v25
  %v496 = vunpack.c.h.b16 %v25
  %v497 = vunpack.c.l.b16 %v26
  %v498 = vunpack.c.h.b16 %v26
  %v499 = vunpack.c.l.b16 %v27
  %v500 = vunpack.c.l.b16 %v28
  %v501 = vunpack.c.h.b16 %v28
  %v502 = vunpack.c.l.b16 %v29
  %v503 = vunpack.c.h.b16 %v29
  %v504 = vunpack.c.l.b16 %v30
  %v505 = vunpack.c.h.b16 %v30
  %v506 = vunpack.c.l.b16 %v31
  %v507 = vunpack.c.h.b16 %v31
  %v508 = vunpack.c.l.b16 %v32
  %v509 = vunpack.c.l.b16 %v33
  %v510 = vunpack.c.h.b16 %v33
  %v511 = vunpack.c.l.b16 %v34
  %v512 = vunpack.c.h.b16 %v34
  %v513 = vunpack.c.l.b16 %v35
  %v514 = vunpack.c.h.b16 %v35
  %v515 = vunpack.c.l.b16 %v36
  %v516 = vunpack.c.h.b16 %v36
  %v517 = vunpack.c.l.b16 %v37
  %v518 = vunpack.c.l.b16 %v38
  %v519 = vunpack.c.h.b16 %v38
  %v520 = vunpack.c.l.b16 %v39
  %v521 = vunpack.c.h.b16 %v39
  %v522 = vunpack.c.l.b16 %v40
  %v523 = vunpack.c.h.b16 %v40
  %v524 = vunpack.c.l.b16 %v41
  %v525 = vunpack.c.h.b16 %v41
  %v526 = vunpack.c.l.b16 %v42
  %v527 = vunpack.c.l.b16 %v43
  %v528 = vunpack.c.h.b16 %v43
  %v529 = vunpack.c.l.b16 %v44
  %v530 = vunpack.c.h.b16 %v44
  %v531 = vunpack.c.l.b16 %v45
  %v532 = vunpack.c.h.b16 %v45
  %v533 = vunpack.c.l.b16 %v46
  %v534 = vunpack.c.h.b16 %v46
  %v535 = vunpack.c.l.b16 %v47
  %v536 = vunpack.c.l.b16 %v48
  %v537 = vunpack.c.h.b16 %v48
  %v538 = vunpack.c.l.b16 %v49
  %v539 = vunpack.c.h.b16 %v49
  %v540 = vunpack.c.l.b16 %v50
  %v541 = vunpack.c.h.b16 %v50
  %v542 = vunpack.c.l.b16 %v51
  %v543 = vunpack.c.h.b16 %v51
  %v544 = vunpack.c.l.b16 %v52
  %v545 = vunpack.c.l.b16 %v53
  %v546 = vunpack.c.h.b16 %v53
  %v547 = vunpack.c.l.b16 %v54
  %v548 = vunpack.c.h.b16 %v54
  %v549 = vunpack.c.l.b16 %v55
  %v550 = vunpack.c.h.b16 %v55
  %v551 = vunpack.c.l.b16 %v56
  %v552 = vunpack.c.h.b16 %v56
  %v553 = vunpack.c.l.b16 %v57
  %v554 = vunpack.c.l.b16 %v58
  %v555 = vunpack.c.h.b16 %v58
  %v556 = vunpack.c.l.b16 %v59
  %v557 = vunpack.c.h.b16 %v59
  %v558 = vunpack.c.l.b16 %v60
  %v559 = vunpack.c.h.b16 %v60
  %v560 = vunpack.c.l.b16 %v61
  %v561 = vunpack.c.h.b16 %v61
  %v562 = vunpack.c.l.b16 %v62
  %v563 = vunpack.c.l.b16 %v63
  %v564 = vunpack.c.h.b16 %v63
  %v565 = vunpack.c.l.b16 %v64
  %v566 = vunpack.c.h.b16 %v64
  %v567 = vunpack.c.l.b16 %v65
  %v568 = vunpack.c.h.b16 %v65
  %v569 = vunpack.c.l.b16 %v66
  %v570 = vunpack.c.h.b16 %v66
  %v571 = vunpack.c.l.b16 %v67
  %v572 = vunpack.c.l.b16 %v68
  %v573 = vunpack.c.h.b16 %v68
  %v574 = vunpack.c.l.b16 %v69
  %v575 = vunpack.c.h.b16 %v69
  %v576 = vunpack.c.l.b16 %v70
  %v577 = vunpack.c.h.b16 %v70
  %v578 = vunpack.c.l.b16 %v71
  %v579 = vunpack.c.h.b16 %v71
  %v580 = vunpack.c.l.b16 %v72
  %v581 = vunpack.c.l.b16 %v73
  %v582 = vunpack.c.h.b16 %v73
  %v583 = vunpack.c.l.b16 %v74
  %v584 = vunpack.c.h.b16 %v74
  %v585 = vunpack.c.l.b16 %v75
  %v586 = vunpack.c.h.b16 %v75
  %v587 = vunpack.c.l.b16 %v76
  %v588 = vunpack.c.h.b16 %v76
  %v589 = vunpack.c.l.b16 %v77
  %v590 = vunpack.c.l.b16 %v78
  %v591 = vunpack.c.h.b16 %v78
  %v592 = vunpack.c.l.b16 %v79
  %v593 = vunpack.c.h.b16 %v79
  %v594 = vunpack.c.l.b16 %v80
  %v595 = vunpack.c.h.b16 %v80
  %v596 = vunpack.c.l.b16 %v81
  %v597 = vunpack.c.h.b16 %v81
  %v598 = vunpack.c.l.b16 %v82
  %v599 = vunpack.c.l.b16 %v83
  %v600 = vunpack.c.h.b16 %v83
  %v601 = vunpack.c.l.b16 %v84
  %v602 = vunpack.c.h.b16 %v84
  %v603 = vunpack.c.l.b16 %v85
  %v604 = vunpack.c.h.b16 %v85
  %v605 = vunpack.c.l.b16 %v86
  %v606 = vunpack.c.h.b16 %v86
  %v607 = vunpack.c.l.b16 %v87
  %v608 = vunpack.c.l.b16 %v88
  %v609 = vunpack.c.h.b16 %v88
  %v610 = vunpack.c.l.b16 %v89
  %v611 = vunpack.c.h.b16 %v89
  %v612 = vunpack.c.l.b16 %v90
  %v613 = vunpack.c.h.b16 %v90
  %v614 = vunpack.c.l.b16 %v91
  %v615 = vunpack.c.h.b16 %v91
  %v616 = vunpack.c.l.b16 %v92
  %v617 = vunpack.c.l.b16 %v93
  %v618 = vunpack.c.h.b16 %v93
  %v619 = vunpack.c.l.b16 %v94
  %v620 = vunpack.c.h.b16 %v94
  %v621 = vunpack.c.l.b16 %v95
  %v622 = vunpack.c.h.b16 %v95
  %v623 = vunpack.c.l.b16 %v96
  %v624 = vunpack.c.h.b16 %v96
  %v625 = vunpack.c.l.b16 %v97
  %v626 = vunpack.c.l.b16 %v98
  %v627 = vunpack.c.h.b16 %v98
  %v628 = vunpack.c.l.b16 %v99
  %v629 = vunpack.c.h.b16 %v99
  %v630 = vunpack.c.l.b16 %v100
  %v631 = vunpack.c.h.b16 %v100
  %v632 = vunpack.c.l.b16 %v101
  %v633 = vunpack.c.h.b16 %v101
  %v634 = vunpack.c.l.b16 %v102
  %v635 = vunpack.c.l.b16 %v103
  %v636 = vunpack.c.h.b16 %v103
  %v637 = vunpack.c.l.b16 %v104
  %v638 = vunpack.c.h.b16 %v104
  %v639 = vunpack.c.l.b16 %v105
  %v640 = vunpack.c.h.b16 %v105
  %v641 = vunpack.c.l.b16 %v106
  %v642 = vunpack.c.h.b16 %v106
  %v643 = vunpack.c.l.b16 %v107
  %v644 = vunpack.c.l.b16 %v108
  %v645 = vunpack.c.h.b16 %v108
  %v646 = vunpack.c.l.b16 %v109
  %v647 = vunpack.c.h.b16 %v109
  %v648 = vunpack.c.l.b16 %v110
  %v649 = vunpack.c.h.b16 %v110
  %v650 = vunpack.c.l.b16 %v111
  %v651 = vunpack.c.h.b16 %v111
  %v652 = vunpack.c.l.b16 %v112
  %v653 = vunpack.c.l.b16 %v113
  %v654 = vunpack.c.h.b16 %v113
  %v655 = vunpack.c.l.b16 %v114
  %v656 = vunpack.c.h.b16 %v114
  %v657 = vunpack.c.l.b16 %v115
  %v658 = vunpack.c.h.b16 %v115
  %v659 = vunpack.c.l.b16 %v116
  %v660 = vunpack.c.h.b16 %v116
  %v661 = vunpack.c.l.b16 %v117
  %v662 = vunpack.c.l.b16 %v118
  %v663 = vunpack.c.h.b16 %v118
  %v664 = vunpack.c.l.b16 %v119
  %v665 = vunpack.c.h.b16 %v119
  %v666 = vunpack.c.l.b16 %v120
  %v667 = vunpack.c.h.b16 %v120
  %v668 = vunpack.c.l.b16 %v121
  %v669 = vunpack.c.h.b16 %v121
  %v670 = vunpack.c.l.b16 %v122
  %v671 = vunpack.c.l.b16 %v123
  %v672 = vunpack.c.h.b16 %v123
  %v673 = vunpack.c.l.b16 %v124
  %v674 = vunpack.c.h.b16 %v124
  %v675 = vunpack.c.l.b16 %v125
  %v676 = vunpack.c.h.b16 %v125
  %v677 = vunpack.c.l.b16 %v126
  %v678 = vunpack.c.h.b16 %v126
  %v679 = vunpack.c.l.b16 %v127
  %v680 = vunpack.c.l.b16 %v128
  %v681 = vunpack.c.h.b16 %v128
  %v682 = vunpack.c.l.b16 %v129
  %v683 = vunpack.c.h.b16 %v129
  %v684 = vunpack.c.l.b16 %v130
  %v685 = vunpack.c.h.b16 %v130
  %v686 = vunpack.c.l.b16 %v131
  %v687 = vunpack.c.h.b16 %v131
  %v688 = vunpack.c.l.b16 %v132
  %v689 = vunpack.c.l.b16 %v133
  %v690 = vunpack.c.h.b16 %v133
  %v691 = vunpack.c.l.b16 %v134
  %v692 = vunpack.c.h.b16 %v134
  %v693 = vunpack.c.l.b16 %v135
  %v694 = vunpack.c.h.b16 %v135
  %v695 = vunpack.c.l.b16 %v136
  %v696 = vunpack.c.h.b16 %v136
  %v697 = vunpack.c.l.b16 %v137
  %v698 = vunpack.c.l.b16 %v138
  %v699 = vunpack.c.h.b16 %v138
  %v700 = vunpack.c.l.b16 %v139
  %v701 = vunpack.c.h.b16 %v139
  %v702 = vunpack.c.l.b16 %v140
  %v703 = vunpack.c.h.b16 %v140
  %v704 = vunpack.c.l.b16 %v141
  %v705 = vunpack.c.h.b16 %v141
  %v706 = vunpack.c.l.b16 %v142
  %v707 = vunpack.c.l.b16 %v143
  %v708 = vunpack.c.h.b16 %v143
  %v709 = vunpack.c.l.b16 %v144
  %v710 = vunpack.c.h.b16 %v144
  %v711 = vunpack.c.l.b16 %v145
  %v712 = vunpack.c.h.b16 %v145
  %v713 = vunpack.c.l.b16 %v146
  %v714 = vunpack.c.h.b16 %v146
  %v715 = vunpack.c.l.b16 %v147
  %v716 = vunpack.c.l.b16 %v148
  %v717 = vunpack.c.h.b16 %v148
  %v718 = vunpack.c.l.b16 %v149
  %v719 = vunpack.c.h.b16 %v149
  %v720 = vunpack.c.l.b16 %v150
  %v721 = vunpack.c.h.b16 %v150
  %v722 = vunpack.c.l.b16 %v151
  %v723 = vunpack.c.h.b16 %v151
  %v724 = vunpack.c.l.b16 %v152
  %v725 = vunpack.c.l.b16 %v153
  %v726 = vunpack.c.h.b16 %v153
  %v727 = vunpack.c.l.b16 %v154
  %v728 = vunpack.c.h.b16 %v154
  %v729 = vunpack.c.l.b16 %v155
  %v730 = vunpack.c.h.b16 %v155
  %v731 = vunpack.c.l.b16 %v156
  %v732 = vunpack.c.h.b16 %v156
  %v733 = vunpack.c.l.b16 %v157
  %v734 = vunpack.c.l.b16 %v158
  %v735 = vunpack.c.h.b16 %v158
  %v736 = vunpack.c.l.b16 %v159
  %v737 = vunpack.c.h.b16 %v159
  %v738 = vunpack.c.l.b16 %v160
  %v739 = vunpack.c.h.b16 %v160
  %v740 = vunpack.c.l.b16 %v161
  %v741 = vunpack.c.h.b16 %v161
  %v742 = vunpack.c.l.b16 %v162
  %v743 = vunpack.c.l.b16 %v163
  %v744 = vunpack.c.h.b16 %v163
  %v745 = vunpack.c.l.b16 %v164
  %v746 = vunpack.c.h.b16 %v164
  %v747 = vunpack.c.l.b16 %v165
  %v748 = vunpack.c.h.b16 %v165
  %v749 = vunpack.c.l.b16 %v166
  %v750 = vunpack.c.h.b16 %v166
  %v751 = vunpack.c.l.b16 %v167
  %v752 = vunpack.c.l.b16 %v168
  %v753 = vunpack.c.h.b16 %v168
  %v754 = vunpack.c.l.b16 %v169
  %v755 = vunpack.c.h.b16 %v169
  %v756 = vunpack.c.l.b16 %v170
  %v757 = vunpack.c.h.b16 %v170
  %v758 = vunpack.c.l.b16 %v171
  %v759 = vunpack.c.h.b16 %v171
  %v760 = vunpack.c.l.b16 %v172
  %v761 = vunpack.c.l.b16 %v173
  %v762 = vunpack.c.h.b16 %v173
  %v763 = vunpack.c.l.b16 %v174
  %v764 = vunpack.c.h.b16 %v174
  %v765 = vunpack.c.l.b16 %v175
  %v766 = vunpack.c.h.b16 %v175
  %v767 = vunpack.c.l.b16 %v176
  %v768 = vunpack.c.h.b16 %v176
  %v769 = vunpack.c.l.b16 %v177
  %v770 = vpack.c.b16 %v491, %v482
  %v771 = vpack.c.b16 %v492, %v483
  %v772 = vpack.c.b16 %v493, %v484
  %v773 = vpack.c.b16 %v494, %v485
  %v774 = vpack.c.b16 %v495, %v486
  %v775 = vpack.c.b16 %v496, %v487
  %v776 = vpack.c.b16 %v497, %v488
  %v777 = vpack.c.b16 %v498, %v489
  %v778 = vpack.c.b16 %v499, %v490
  %v779 = vpack.c.b16 %v509, %v500
  %v780 = vpack.c.b16 %v510, %v501
  %v781 = vpack.c.b16 %v511, %v502
  %v782 = vpack.c.b16 %v512, %v503
  %v783 = vpack.c.b16 %v513, %v504
  %v784 = vpack.c.b16 %v514, %v505
  %v785 = vpack.c.b16 %v515, %v506
  %v786 = vpack.c.b16 %v516, %v507
  %v787 = vpack.c.b16 %v517, %v508
  %v788 = vpack.c.b16 %v527, %v518
  %v789 = vpack.c.b16 %v528, %v519
  %v790 = vpack.c.b16 %v529, %v520
  %v791 = vpack.c.b16 %v530, %v521
  %v792 = vpack.c.b16 %v531, %v522
  %v793 = vpack.c.b16 %v532, %v523
  %v794 = vpack.c.b16 %v533, %v524
  %v795 = vpack.c.b16 %v534, %v525
  %v796 = vpack.c.b16 %v535, %v526
  %v797 = vpack.c.b16 %v545, %v536
  %v798 = vpack.c.b16 %v546, %v537
  %v799 = vpack.c.b16 %v547, %v538
  %v800 = vpack.c.b16 %v548, %v539
  %v801 = vpack.c.b16 %v549, %v540
  %v802 = vpack.c.b16 %v550, %v541
  %v803 = vpack.c.b16 %v551, %v542
  %v804 = vpack.c.b16 %v552, %v543
  %v805 = vpack.c.b16 %v553, %v544
  %v806 = vpack.c.b16 %v563, %v554
  %v807 = vpack.c.b16 %v564, %v555
  %v808 = vpack.c.b16 %v565, %v556
  %v809 = vpack.c.b16 %v566, %v557
  %v810 = vpack.c.b16 %v567, %v558
  %v811 = vpack.c.b16 %v568, %v559
  %v812 = vpack.c.b16 %v569, %v560
  %v813 = vpack.c.b16 %v570, %v561
  %v814 = vpack.c.b16 %v571, %v562
  %v815 = vpack.c.b16 %v581, %v572
  %v816 = vpack.c.b16 %v582, %v573
  %v817 = vpack.c.b16 %v583, %v574
  %v818 = vpack.c.b16 %v584, %v575
  %v819 = vpack.c.b16 %v585, %v576
  %v820 = vpack.c.b16 %v586, %v577
  %v821 = vpack.c.b16 %v587, %v578
  %v822 = vpack.c.b16 %v588, %v579
  %v823 = vpack.c.b16 %v589, %v580
  %v824 = vpack.c.b16 %v599, %v590
  %v825 = vpack.c.b16 %v600, %v591
  %v826 = vpack.c.b16 %v601, %v592
  %v827 = vpack.c.b16 %v602, %v593
  %v828 = vpack.c.b16 %v603, %v594
  %v829 = vpack.c.b16 %v604, %v595
  %v830 = vpack.c.b16 %v605, %v596
  %v831 = vpack.c.b16 %v606, %v597
  %v832 = vpack.c.b16 %v607, %v598
  %v833 = vpack.c.b16 %v617, %v608
  %v834 = vpack.c.b16 %v618, %v609
  %v835 = vpack.c.b16 %v619, %v610
  %v836 = vpack.c.b16 %v620, %v611
  %v837 = vpack.c.b16 %v621, %v612
  %v838 = vpack.c.b16 %v622, %v613
  %v839 = vpack.c.b16 %v623, %v614
  %v840 = vpack.c.b16 %v624, %v615
  %v841 = vpack.c.b16 %v625, %v616
  %v842 = vpack.c.b16 %v635, %v626
  %v843 = vpack.c.b16 %v636, %v627
  %v844 = vpack.c.b16 %v637, %v628
  %v845 = vpack.c.b16 %v638, %v629
  %v846 = vpack.c.b16 %v639, %v630
  %v847 = vpack.c.b16 %v640, %v631
  %v848 = vpack.c.b16 %v641, %v632
  %v849 = vpack.c.b16 %v642, %v633
  %v850 = vpack.c.b16 %v643, %v634
  %v851 = vpack.c.b16 %v653, %v644
  %v852 = vpack.c.b16 %v654, %v645
  %v853 = vpack.c.b16 %v655, %v646
  %v854 = vpack.c.b16 %v656, %v647
  %v855 = vpack.c.b16 %v657, %v648
  %v856 = vpack.c.b16 %v658, %v649
  %v857 = vpack.c.b16 %v659, %v650
  %v858 = vpack.c.b16 %v660, %v651
  %v859 = vpack.c.b16 %v661, %v652
  %v860 = vpack.c.b16 %v671, %v662
  %v861 = vpack.c.b16 %v672, %v663
  %v862 = vpack.c.b16 %v673, %v664
  %v863 = vpack.c.b16 %v674, %v665
  %v864 = vpack.c.b16 %v675, %v666
  %v865 = vpack.c.b16 %v676, %v667
  %v866 = vpack.c.b16 %v677, %v668
  %v867 = vpack.c.b16 %v678, %v669
  %v868 = vpack.c.b16 %v679, %v670
  %v869 = vpack.c.b16 %v689, %v680
  %v870 = vpack.c.b16 %v690, %v681
  %v871 = vpack.c.b16 %v691, %v682
  %v872 = vpack.c.b16 %v692, %v683
  %v873 = vpack.c.b16 %v693, %v684
  %v874 = vpack.c.b16 %v694, %v685
  %v875 = vpack.c.b16 %v695, %v686
  %v876 = vpack.c.b16 %v696, %v687
  %v877 = vpack.c.b16 %v697, %v688
  %v878 = vpack.c.b16 %v707, %v698
  %v879 = vpack.c.b16 %v708, %v699
  %v880 = vpack.c.b16 %v709, %v700
  %v881 = vpack.c.b16 %v710, %v701
  %v882 = vpack.c.b16 %v711, %v702
  %v883 = vpack.c.b16 %v712, %v703
  %v884 = vpack.c.b16 %v713, %v704
  %v885 = vpack.c.b16 %v714, %v705
  %v886 = vpack.c.b16 %v715, %v706
  %v887 = vpack.c.b16 %v725, %v716
  %v888 = vpack.c.b16 %v726, %v717
  %v889 = vpack.c.b16 %v727, %v718
  %v890 = vpack.c.b16 %v728, %v719
  %v891 = vpack.c.b16 %v729, %v720
  %v892 = vpack.c.b16 %v730, %v721
  %v893 = vpack.c.b16 %v731, %v722
  %v894 = vpack.c.b16 %v732, %v723
  %v895 = vpack.c.b16 %v733, %v724
  %v896 = vpack.c.b16 %v743, %v734
  %v897 = vpack.c.b16 %v744, %v735
  %v898 = vpack.c.b16 %v745, %v736
  %v899 = vpack.c.b16 %v746, %v737
  %v900 = vpack.c.b16 %v747, %v738
  %v901 = vpack.c.b16 %v748, %v739
  %v902 = vpack.c.b16 %v749, %v740
  %v903 = vpack.c.b16 %v750, %v741
  %v904 = vpack.c.b16 %v751, %v742
  %v905 = vpack.c.b16 %v761, %v752
  %v906 = vpack.c.b16 %v762, %v753
  %v907 = vpack.c.b16 %v763, %v754
  %v908 = vpack.c.b16 %v764, %v755
  %v909 = vpack.c.b16 %v765, %v756
  %v910 = vpack.c.b16 %v766, %v757
  %v911 = vpack.c.b16 %v767, %v758
  %v912 = vpack.c.b16 %v768, %v759
  %v913 = vpack.c.b16 %v769, %v760
  %v1202 = vunpack.c.l.b16 %v178
  %v1203 = vunpack.c.l.b16 %v179
  %v1204 = vunpack.c.l.b16 %v180
  %v1205 = vunpack.c.l.b16 %v181
  %v1206 = vunpack.c.l.b16 %v182
  %v1207 = vunpack.c.l.b16 %v183
  %v1208 = vunpack.c.l.b16 %v184
  %v1209 = vunpack.c.l.b16 %v185
  %v1210 = vunpack.c.l.b16 %v186
  %v1211 = vunpack.c.l.b16 %v187
  %v1212 = vunpack.c.l.b16 %v188
  %v1213 = vunpack.c.l.b16 %v189
  %v1214 = vunpack.c.l.b16 %v190
  %v1215 = vunpack.c.l.b16 %v191
  %v1216 = vunpack.c.l.b16 %v192
  %v1217 = vunpack.c.l.b16 %v193
  %v1218 = vunpack.c.l.b16 %v194
  %v1219 = vunpack.c.l.b16 %v195
  %v1220 = vunpack.c.l.b16 %v196
  %v1221 = vunpack.c.l.b16 %v197
  %v1222 = vunpack.c.l.b16 %v198
  %v1223 = vunpack.c.l.b16 %v199
  %v1224 = vunpack.c.l.b16 %v200
  %v1225 = vunpack.c.l.b16 %v201
  %v1226 = vunpack.c.l.b16 %v202
  %v1227 = vunpack.c.l.b16 %v203
  %v1228 = vunpack.c.l.b16 %v204
  %v1229 = vunpack.c.l.b16 %v205
  %v1230 = vunpack.c.l.b16 %v206
  %v1231 = vunpack.c.l.b16 %v207
  %v1232 = vunpack.c.l.b16 %v208
  %v1233 = vunpack.c.l.b16 %v209
  %v1234 = vunpack.c.l.b16 %v210
  %v1235 = vunpack.c.l.b16 %v211
  %v1236 = vunpack.c.l.b16 %v212
  %v1237 = vunpack.c.l.b16 %v213
  %v1238 = vunpack.c.l.b16 %v214
  %v1239 = vunpack.c.l.b16 %v215
  %v1240 = vunpack.c.l.b16 %v216
  %v1241 = vunpack.c.l.b16 %v217
  %v1242 = vunpack.c.l.b16 %v218
  %v1243 = vunpack.c.l.b16 %v219
  %v1244 = vunpack.c.l.b16 %v220
  %v1245 = vunpack.c.l.b16 %v221
  %v1246 = vunpack.c.l.b16 %v222
  %v1247 = vunpack.c.l.b16 %v223
  %v1248 = vunpack.c.l.b16 %v224
  %v1249 = vunpack.c.l.b16 %v225
  %v1250 = vunpack.c.l.b16 %v226
  %v1251 = vunpack.c.l.b16 %v227
  %v1252 = vunpack.c.l.b16 %v228
  %v1253 = vunpack.c.l.b16 %v229
  %v1254 = vunpack.c.l.b16 %v230
  %v1255 = vunpack.c.l.b16 %v231
  %v1256 = vunpack.c.l.b16 %v232
  %v1257 = vunpack.c.l.b16 %v233
  %v1258 = vunpack.c.l.b16 %v234
  %v1259 = vunpack.c.l.b16 %v235
  %v1260 = vunpack.c.l.b16 %v236
  %v1261 = vunpack.c.l.b16 %v237
  %v1262 = vunpack.c.l.b16 %v238
  %v1263 = vunpack.c.l.b16 %v239
  %v1264 = vunpack.c.l.b16 %v240
  %v1265 = vunpack.c.l.b16 %v241
  %v1266 = vunpack.c.l.b16 %v242
  %v1267 = vunpack.c.l.b16 %v243
  %v1268 = vunpack.c.l.b16 %v244
  %v1269 = vunpack.c.l.b16 %v245
  %v1270 = vunpack.c.l.b16 %v246
  %v1271 = vunpack.c.l.b16 %v247
  %v1272 = vunpack.c.l.b16 %v248
  %v1273 = vunpack.c.l.b16 %v249
  %v1274 = vunpack.c.l.b16 %v250
  %v1275 = vunpack.c.l.b16 %v251
  %v1276 = vunpack.c.l.b16 %v252
  %v1277 = vunpack.c.l.b16 %v253
  %v1278 = vunpack.c.l.b16 %v254
  %v1279 = vunpack.c.l.b16 %v255
  %v1280 = vunpack.c.l.b16 %v256
  %v1281 = vunpack.c.l.b16 %v257
  %v1282 = vunpack.c.l.b16 %v258
  %v1283 = vunpack.c.l.b16 %v259
  %v1284 = vunpack.c.l.b16 %v260
  %v1285 = vunpack.c.l.b16 %v261
  %v1286 = vunpack.c.l.b16 %v262
  %v1287 = vunpack.c.l.b16 %v263
  %v1288 = vunpack.c.l.b16 %v264
  %v1289 = vunpack.c.l.b16 %v265
  %v1290 = vunpack.c.l.b16 %v266
  %v1291 = vunpack.c.l.b16 %v267
  %v1292 = vunpack.c.l.b16 %v268
  %v1293 = vunpack.c.l.b16 %v269
  %v1294 = vunpack.c.l.b16 %v270
  %v1295 = vunpack.c.l.b16 %v271
  %v1296 = vunpack.c.l.b16 %v272
  %v1297 = vunpack.c.l.b16 %v273
  %v1298 = vunpack.c.l.b16 %v274
  %v1299 = vunpack.c.l.b16 %v275
  %v1300 = vunpack.c.l.b16 %v276
  %v1301 = vunpack.c.l.b16 %v277
  %v1302 = vunpack.c.l.b16 %v278
  %v1303 = vunpack.c.l.b16 %v279
  %v1304 = vunpack.c.l.b16 %v280
  %v1305 = vunpack.c.l.b16 %v281
  %v1306 = vunpack.c.l.b16 %v282
  %v1307 = vunpack.c.l.b16 %v283
  %v1308 = vunpack.c.l.b16 %v284
  %v1309 = vunpack.c.l.b16 %v285
  %v1310 = vunpack.c.l.b16 %v286
  %v1311 = vunpack.c.l.b16 %v287
  %v1312 = vunpack.c.l.b16 %v288
  %v1313 = vunpack.c.l.b16 %v289
  %v1314 = vunpack.c.l.b16 %v290
  %v1315 = vunpack.c.l.b16 %v291
  %v1316 = vunpack.c.l.b16 %v292
  %v1317 = vunpack.c.l.b16 %v293
  %v1318 = vunpack.c.l.b16 %v294
  %v1319 = vunpack.c.l.b16 %v295
  %v1320 = vunpack.c.l.b16 %v296
  %v1321 = vunpack.c.l.b16 %v297
  %v1322 = vunpack.c.l.b16 %v298
  %v1323 = vunpack.c.l.b16 %v299
  %v1324 = vunpack.c.l.b16 %v300
  %v1325 = vunpack.c.l.b16 %v301
  %v1326 = vunpack.c.l.b16 %v302
  %v1327 = vunpack.c.l.b16 %v303
  %v1328 = vunpack.c.l.b16 %v304
  %v1329 = vunpack.c.l.b16 %v305
  %v1330 = vunpack.c.l.b16 %v306
  %v1331 = vunpack.c.l.b16 %v307
  %v1332 = vunpack.c.l.b16 %v308
  %v1333 = vunpack.c.l.b16 %v309
  %v1334 = vunpack.c.l.b16 %v310
  %v1335 = vunpack.c.l.b16 %v311
  %v1336 = vunpack.c.l.b16 %v312
  %v1337 = vunpack.c.l.b16 %v313
  %v1338 = vunpack.c.l.b16 %v314
  %v1339 = vunpack.c.l.b16 %v315
  %v1340 = vunpack.c.l.b16 %v316
  %v1341 = vunpack.c.l.b16 %v317
  %v1342 = vunpack.c.l.b16 %v318
  %v1343 = vunpack.c.l.b16 %v319
  %v1344 = vunpack.c.l.b16 %v320
  %v1345 = vunpack.c.l.b16 %v321
  %v1346 = vpack.c.b16 %v1203, %v1202
  %v1347 = vpack.c.b16 %v1205, %v1204
  %v1348 = vpack.c.b16 %v1207, %v1206
  %v1349 = vpack.c.b16 %v1209, %v1208
  %v1350 = vpack.c.b16 %v1211, %v1210
  %v1351 = vpack.c.b16 %v1213, %v1212
  %v1352 = vpack.c.b16 %v1215, %v1214
  %v1353 = vpack.c.b16 %v1217, %v1216
  %v1354 = vpack.c.b16 %v1219, %v1218
  %v1355 = vpack.c.b16 %v1221, %v1220
  %v1356 = vpack.c.b16 %v1223, %v1222
  %v1357 = vpack.c.b16 %v1225, %v1224
  %v1358 = vpack.c.b16 %v1227, %v1226
  %v1359 = vpack.c.b16 %v1229, %v1228
  %v1360 = vpack.c.b16 %v1231, %v1230
  %v1361 = vpack.c.b16 %v1233, %v1232
  %v1362 = vpack.c.b16 %v1235, %v1234
  %v1363 = vpack.c.b16 %v1237, %v1236
  %v1364 = vpack.c.b16 %v1239, %v1238
  %v1365 = vpack.c.b16 %v1241, %v1240
  %v1366 = vpack.c.b16 %v1243, %v1242
  %v1367 = vpack.c.b16 %v1245, %v1244
  %v1368 = vpack.c.b16 %v1247, %v1246
  %v1369 = vpack.c.b16 %v1249, %v1248
  %v1370 = vpack.c.b16 %v1251, %v1250
  %v1371 = vpack.c.b16 %v1253, %v1252
  %v1372 = vpack.c.b16 %v1255, %v1254
  %v1373 = vpack.c.b16 %v1257, %v1256
  %v1374 = vpack.c.b16 %v1259, %v1258
  %v1375 = vpack.c.b16 %v1261, %v1260
  %v1376 = vpack.c.b16 %v1263, %v1262
  %v1377 = vpack.c.b16 %v1265, %v1264
  %v1378 = vpack.c.b16 %v1267, %v1266
  %v1379 = vpack.c.b16 %v1269, %v1268
  %v1380 = vpack.c.b16 %v1271, %v1270
  %v1381 = vpack.c.b16 %v1273, %v1272
  %v1382 = vpack.c.b16 %v1275, %v1274
  %v1383 = vpack.c.b16 %v1277, %v1276
  %v1384 = vpack.c.b16 %v1279, %v1278
  %v1385 = vpack.c.b16 %v1281, %v1280
  %v1386 = vpack.c.b16 %v1283, %v1282
  %v1387 = vpack.c.b16 %v1285, %v1284
  %v1388 = vpack.c.b16 %v1287, %v1286
  %v1389 = vpack.c.b16 %v1289, %v1288
  %v1390 = vpack.c.b16 %v1291, %v1290
  %v1391 = vpack.c.b16 %v1293, %v1292
  %v1392 = vpack.c.b16 %v1295, %v1294
  %v1393 = vpack.c.b16 %v1297, %v1296
  %v1394 = vpack.c.b16 %v1299, %v1298
  %v1395 = vpack.c.b16 %v1301, %v1300
  %v1396 = vpack.c.b16 %v1303, %v1302
  %v1397 = vpack.c.b16 %v1305, %v1304
  %v1398 = vpack.c.b16 %v1307, %v1306
  %v1399 = vpack.c.b16 %v1309, %v1308
  %v1400 = vpack.c.b16 %v1311, %v1310
  %v1401 = vpack.c.b16 %v1313, %v1312
  %v1402 = vpack.c.b16 %v1315, %v1314
  %v1403 = vpack.c.b16 %v1317, %v1316
  %v1404 = vpack.c.b16 %v1319, %v1318
  %v1405 = vpack.c.b16 %v1321, %v1320
  %v1406 = vpack.c.b16 %v1323, %v1322
  %v1407 = vpack.c.b16 %v1325, %v1324
  %v1408 = vpack.c.b16 %v1327, %v1326
  %v1409 = vpack.c.b16 %v1329, %v1328
  %v1410 = vpack.c.b16 %v1331, %v1330
  %v1411 = vpack.c.b16 %v1333, %v1332
  %v1412 = vpack.c.b16 %v1335, %v1334
  %v1413 = vpack.c.b16 %v1337, %v1336
  %v1414 = vpack.c.b16 %v1339, %v1338
  %v1415 = vpack.c.b16 %v1341, %v1340
  %v1416 = vpack.c.b16 %v1343, %v1342
  %v1417 = vpack.c.b16 %v1345, %v1344
  %1490 = vmatprep.subr.bf16.mxu0 0
  %1491 = vmatpush1.bf16.msra.mxu0 %v1346
  %1492 = vmatprep.subr.bf16.mxu0 0
  %1493 = vmatpush1.bf16.msra.mxu0 %v1347
  %1494 = vmatprep.subr.bf16.mxu0 0
  %1495 = vmatpush1.bf16.msra.mxu0 %v1348
  %1496 = vmatprep.subr.bf16.mxu0 0
  %1497 = vmatpush1.bf16.msra.mxu0 %v1349
  %1498 = vmatprep.subr.bf16.mxu0 0
  %1499 = vmatpush1.bf16.msra.mxu0 %v1350
  %1500 = vmatprep.subr.bf16.mxu0 0
  %1501 = vmatpush1.bf16.msra.mxu0 %v1351
  %1502 = vmatprep.subr.bf16.mxu0 0
  %1503 = vmatpush1.bf16.msra.mxu0 %v1352
  %1504 = vmatprep.subr.bf16.mxu0 0
  %1505 = vmatpush1.bf16.msra.mxu0 %v1353
  %1506 = vmatprep.subr.bf16.mxu0 0
  %1507 = vmatpush1.bf16.msra.mxu0 %v1354
  %1508 = vmatprep.subr.bf16.mxu0 0
  %1509 = vmatpush1.bf16.msra.mxu0 %v1355
  %1510 = vmatprep.subr.bf16.mxu0 0
  %1511 = vmatpush1.bf16.msra.mxu0 %v1356
  %1512 = vmatprep.subr.bf16.mxu0 0
  %1513 = vmatpush1.bf16.msra.mxu0 %v1357
  %1514 = vmatprep.subr.bf16.mxu0 0
  %1515 = vmatpush1.bf16.msra.mxu0 %v1358
  %1516 = vmatprep.subr.bf16.mxu0 0
  %1517 = vmatpush1.bf16.msra.mxu0 %v1359
  %1518 = vmatprep.subr.bf16.mxu0 0
  %1519 = vmatpush1.bf16.msra.mxu0 %v1360
  %1520 = vmatprep.subr.bf16.mxu0 0
  %1521 = vmatpush1.bf16.msra.mxu0 %v1361
  %1522 = vmatprep.mubr.bf16.mxu0 %v771
  %1523 = vmatmul.mubr.bf16.gmra.mrb[0].mxu0 %v770
  %v1524 = vpop.f32.mrb[0].mxu0
  %v1525 = vadd.f32 0.0, %v1524
  %v1526 = vpop.f32.mrb[0].mxu0
  %v1527 = vpop.f32.mrb[0].mxu0
  %v1528 = vadd.f32 0.0, %v1527
  %v1529 = vpop.f32.mrb[0].mxu0
  %1530 = vmatprep.mubr.bf16.mxu0 %v780
  %1531 = vmatmul.mubr.bf16.gmra.mrb[0].mxu0 %v779
  %v1532 = vpop.f32.mrb[0].mxu0
  %v1533 = vadd.f32 0.0, %v1532
  %v1534 = vpop.f32.mrb[0].mxu0
  %v1535 = vpop.f32.mrb[0].mxu0
  %v1536 = vadd.f32 0.0, %v1535
  %v1537 = vpop.f32.mrb[0].mxu0
  %1538 = vmatprep.mubr.bf16.mxu0 %v789
  %1539 = vmatmul.mubr.bf16.gmra.mrb[0].mxu0 %v788
  %v1540 = vpop.f32.mrb[0].mxu0
  %v1541 = vadd.f32 0.0, %v1540
  %v1542 = vpop.f32.mrb[0].mxu0
  %v1543 = vpop.f32.mrb[0].mxu0
  %v1544 = vadd.f32 0.0, %v1543
  %v1545 = vpop.f32.mrb[0].mxu0
  %1546 = vmatprep.mubr.bf16.mxu0 %v798
  %1547 = vmatmul.mubr.bf16.gmra.mrb[0].mxu0 %v797
  %v1548 = vpop.f32.mrb[0].mxu0
  %v1549 = vadd.f32 0.0, %v1548
  %v1550 = vpop.f32.mrb[0].mxu0
  %v1551 = vpop.f32.mrb[0].mxu0
  %v1552 = vadd.f32 0.0, %v1551
  %v1553 = vpop.f32.mrb[0].mxu0
  %1554 = vmatprep.mubr.bf16.mxu0 %v807
  %1555 = vmatmul.mubr.bf16.gmra.mrb[0].mxu0 %v806
  %v1556 = vpop.f32.mrb[0].mxu0
  %v1557 = vadd.f32 0.0, %v1556
  %v1558 = vpop.f32.mrb[0].mxu0
  %v1559 = vpop.f32.mrb[0].mxu0
  %v1560 = vadd.f32 0.0, %v1559
  %v1561 = vpop.f32.mrb[0].mxu0
  %1562 = vmatprep.mubr.bf16.mxu0 %v816
  %1563 = vmatmul.mubr.bf16.gmra.mrb[0].mxu0 %v815
  %v1564 = vpop.f32.mrb[0].mxu0
  %v1565 = vadd.f32 0.0, %v1564
  %v1566 = vpop.f32.mrb[0].mxu0
  %v1567 = vpop.f32.mrb[0].mxu0
  %v1568 = vadd.f32 0.0, %v1567
  %v1569 = vpop.f32.mrb[0].mxu0
  %1570 = vmatprep.mubr.bf16.mxu0 %v825
  %1571 = vmatmul.mubr.bf16.gmra.mrb[0].mxu0 %v824
  %v1572 = vpop.f32.mrb[0].mxu0
  %v1573 = vadd.f32 0.0, %v1572
  %v1574 = vpop.f32.mrb[0].mxu0
  %v1575 = vpop.f32.mrb[0].mxu0
  %v1576 = vadd.f32 0.0, %v1575
  %v1577 = vpop.f32.mrb[0].mxu0
  %1578 = vmatprep.mubr.bf16.mxu0 %v834
  %1579 = vmatmul.mubr.bf16.gmra.mrb[0].mxu0 %v833
  %v1580 = vpop.f32.mrb[0].mxu0
  %v1581 = vadd.f32 0.0, %v1580
  %v1582 = vpop.f32.mrb[0].mxu0
  %v1583 = vpop.f32.mrb[0].mxu0
  %v1584 = vadd.f32 0.0, %v1583
  %v1585 = vpop.f32.mrb[0].mxu0
  %1586 = vmatprep.mubr.bf16.mxu0 %v843
  %1587 = vmatmul.mubr.bf16.gmra.mrb[0].mxu0 %v842
  %v1588 = vpop.f32.mrb[0].mxu0
  %v1589 = vadd.f32 0.0, %v1588
  %v1590 = vpop.f32.mrb[0].mxu0
  %v1591 = vpop.f32.mrb[0].mxu0
  %v1592 = vadd.f32 0.0, %v1591
  %v1593 = vpop.f32.mrb[0].mxu0
  %1594 = vmatprep.mubr.bf16.mxu0 %v852
  %1595 = vmatmul.mubr.bf16.gmra.mrb[0].mxu0 %v851
  %v1596 = vpop.f32.mrb[0].mxu0
  %v1597 = vadd.f32 0.0, %v1596
  %v1598 = vpop.f32.mrb[0].mxu0
  %v1599 = vpop.f32.mrb[0].mxu0
  %v1600 = vadd.f32 0.0, %v1599
  %v1601 = vpop.f32.mrb[0].mxu0
  %1602 = vmatprep.mubr.bf16.mxu0 %v861
  %1603 = vmatmul.mubr.bf16.gmra.mrb[0].mxu0 %v860
  %v1604 = vpop.f32.mrb[0].mxu0
  %v1605 = vadd.f32 0.0, %v1604
  %v1606 = vpop.f32.mrb[0].mxu0
  %v1607 = vpop.f32.mrb[0].mxu0
  %v1608 = vadd.f32 0.0, %v1607
  %v1609 = vpop.f32.mrb[0].mxu0
  %1610 = vmatprep.mubr.bf16.mxu0 %v870
  %1611 = vmatmul.mubr.bf16.gmra.mrb[0].mxu0 %v869
  %v1612 = vpop.f32.mrb[0].mxu0
  %v1613 = vadd.f32 0.0, %v1612
  %v1614 = vpop.f32.mrb[0].mxu0
  %v1615 = vpop.f32.mrb[0].mxu0
  %v1616 = vadd.f32 0.0, %v1615
  %v1617 = vpop.f32.mrb[0].mxu0
  %1618 = vmatprep.mubr.bf16.mxu0 %v879
  %1619 = vmatmul.mubr.bf16.gmra.mrb[0].mxu0 %v878
  %v1620 = vpop.f32.mrb[0].mxu0
  %v1621 = vadd.f32 0.0, %v1620
  %v1622 = vpop.f32.mrb[0].mxu0
  %v1623 = vpop.f32.mrb[0].mxu0
  %v1624 = vadd.f32 0.0, %v1623
  %v1625 = vpop.f32.mrb[0].mxu0
  %1626 = vmatprep.mubr.bf16.mxu0 %v888
  %1627 = vmatmul.mubr.bf16.gmra.mrb[0].mxu0 %v887
  %v1628 = vpop.f32.mrb[0].mxu0
  %v1629 = vadd.f32 0.0, %v1628
  %v1630 = vpop.f32.mrb[0].mxu0
  %v1631 = vpop.f32.mrb[0].mxu0
  %v1632 = vadd.f32 0.0, %v1631
  %v1633 = vpop.f32.mrb[0].mxu0
  %1634 = vmatprep.mubr.bf16.mxu0 %v897
  %1635 = vmatmul.mubr.bf16.gmra.mrb[0].mxu0 %v896
  %v1636 = vpop.f32.mrb[0].mxu0
  %v1637 = vadd.f32 0.0, %v1636
  %v1638 = vpop.f32.mrb[0].mxu0
  %v1639 = vpop.f32.mrb[0].mxu0
  %v1640 = vadd.f32 0.0, %v1639
  %v1641 = vpop.f32.mrb[0].mxu0
  %1642 = vmatprep.mubr.bf16.mxu0 %v906
  %1643 = vmatmul.mubr.bf16.gmra.mrb[0].mxu0 %v905
  %v1644 = vpop.f32.mrb[0].mxu0
  %v1645 = vadd.f32 0.0, %v1644
  %v1646 = vpop.f32.mrb[0].mxu0
  %v1647 = vpop.f32.mrb[0].mxu0
  %v1648 = vadd.f32 0.0, %v1647
  %v1649 = vpop.f32.mrb[0].mxu0
  %1650 = vdwg.mxu0
  %1651 = vmatprep.subr.bf16.mxu0 0
  %1652 = vmatpush1.bf16.msra.mxu0 %v1362
  %1653 = vmatprep.subr.bf16.mxu0 0
  %1654 = vmatpush1.bf16.msra.mxu0 %v1363
  %1655 = vmatprep.subr.bf16.mxu0 0
  %1656 = vmatpush1.bf16.msra.mxu0 %v1364
  %1657 = vmatprep.subr.bf16.mxu0 0
  %1658 = vmatpush1.bf16.msra.mxu0 %v1365
  %1659 = vmatprep.subr.bf16.mxu0 0
  %1660 = vmatpush1.bf16.msra.mxu0 %v1366
  %1661 = vmatprep.subr.bf16.mxu0 0
  %1662 = vmatpush1.bf16.msra.mxu0 %v1367
  %1663 = vmatprep.subr.bf16.mxu0 0
  %1664 = vmatpush1.bf16.msra.mxu0 %v1368
  %1665 = vmatprep.subr.bf16.mxu0 0
  %1666 = vmatpush1.bf16.msra.mxu0 %v1369
  %1667 = vmatprep.subr.bf16.mxu0 0
  %1668 = vmatpush1.bf16.msra.mxu0 %v1370
  %1669 = vmatprep.subr.bf16.mxu0 0
  %1670 = vmatpush1.bf16.msra.mxu0 %v1371
  %1671 = vmatprep.subr.bf16.mxu0 0
  %1672 = vmatpush1.bf16.msra.mxu0 %v1372
  %1673 = vmatprep.subr.bf16.mxu0 0
  %1674 = vmatpush1.bf16.msra.mxu0 %v1373
  %1675 = vmatprep.subr.bf16.mxu0 0
  %1676 = vmatpush1.bf16.msra.mxu0 %v1374
  %1677 = vmatprep.subr.bf16.mxu0 0
  %1678 = vmatpush1.bf16.msra.mxu0 %v1375
  %1679 = vmatprep.subr.bf16.mxu0 0
  %1680 = vmatpush1.bf16.msra.mxu0 %v1376
  %1681 = vmatprep.subr.bf16.mxu0 0
  %1682 = vmatpush1.bf16.msra.mxu0 %v1377
  %1683 = vmatprep.mubr.bf16.mxu0 %v773
  %1684 = vmatmul.mubr.bf16.gmra.mrb[0].mxu0 %v772
  %v1685 = vpop.f32.mrb[0].mxu0
  %v1686 = vadd.f32 %v1525, %v1685
  %v1687 = vpop.f32.mrb[0].mxu0
  %v1688 = vpop.f32.mrb[0].mxu0
  %v1689 = vadd.f32 %v1528, %v1688
  %v1690 = vpop.f32.mrb[0].mxu0
  %1691 = vmatprep.mubr.bf16.mxu0 %v782
  %1692 = vmatmul.mubr.bf16.gmra.mrb[0].mxu0 %v781
  %v1693 = vpop.f32.mrb[0].mxu0
  %v1694 = vadd.f32 %v1533, %v1693
  %v1695 = vpop.f32.mrb[0].mxu0
  %v1696 = vpop.f32.mrb[0].mxu0
  %v1697 = vadd.f32 %v1536, %v1696
  %v1698 = vpop.f32.mrb[0].mxu0
  %1699 = vmatprep.mubr.bf16.mxu0 %v791
  %1700 = vmatmul.mubr.bf16.gmra.mrb[0].mxu0 %v790
  %v1701 = vpop.f32.mrb[0].mxu0
  %v1702 = vadd.f32 %v1541, %v1701
  %v1703 = vpop.f32.mrb[0].mxu0
  %v1704 = vpop.f32.mrb[0].mxu0
  %v1705 = vadd.f32 %v1544, %v1704
  %v1706 = vpop.f32.mrb[0].mxu0
  %1707 = vmatprep.mubr.bf16.mxu0 %v800
  %1708 = vmatmul.mubr.bf16.gmra.mrb[0].mxu0 %v799
  %v1709 = vpop.f32.mrb[0].mxu0
  %v1710 = vadd.f32 %v1549, %v1709
  %v1711 = vpop.f32.mrb[0].mxu0
  %v1712 = vpop.f32.mrb[0].mxu0
  %v1713 = vadd.f32 %v1552, %v1712
  %v1714 = vpop.f32.mrb[0].mxu0
  %1715 = vmatprep.mubr.bf16.mxu0 %v809
  %1716 = vmatmul.mubr.bf16.gmra.mrb[0].mxu0 %v808
  %v1717 = vpop.f32.mrb[0].mxu0
  %v1718 = vadd.f32 %v1557, %v1717
  %v1719 = vpop.f32.mrb[0].mxu0
  %v1720 = vpop.f32.mrb[0].mxu0
  %v1721 = vadd.f32 %v1560, %v1720
  %v1722 = vpop.f32.mrb[0].mxu0
  %1723 = vmatprep.mubr.bf16.mxu0 %v818
  %1724 = vmatmul.mubr.bf16.gmra.mrb[0].mxu0 %v817
  %v1725 = vpop.f32.mrb[0].mxu0
  %v1726 = vadd.f32 %v1565, %v1725
  %v1727 = vpop.f32.mrb[0].mxu0
  %v1728 = vpop.f32.mrb[0].mxu0
  %v1729 = vadd.f32 %v1568, %v1728
  %v1730 = vpop.f32.mrb[0].mxu0
  %1731 = vmatprep.mubr.bf16.mxu0 %v827
  %1732 = vmatmul.mubr.bf16.gmra.mrb[0].mxu0 %v826
  %v1733 = vpop.f32.mrb[0].mxu0
  %v1734 = vadd.f32 %v1573, %v1733
  %v1735 = vpop.f32.mrb[0].mxu0
  %v1736 = vpop.f32.mrb[0].mxu0
  %v1737 = vadd.f32 %v1576, %v1736
  %v1738 = vpop.f32.mrb[0].mxu0
  %1739 = vmatprep.mubr.bf16.mxu0 %v836
  %1740 = vmatmul.mubr.bf16.gmra.mrb[0].mxu0 %v835
  %v1741 = vpop.f32.mrb[0].mxu0
  %v1742 = vadd.f32 %v1581, %v1741
  %v1743 = vpop.f32.mrb[0].mxu0
  %v1744 = vpop.f32.mrb[0].mxu0
  %v1745 = vadd.f32 %v1584, %v1744
  %v1746 = vpop.f32.mrb[0].mxu0
  %1747 = vmatprep.mubr.bf16.mxu0 %v845
  %1748 = vmatmul.mubr.bf16.gmra.mrb[0].mxu0 %v844
  %v1749 = vpop.f32.mrb[0].mxu0
  %v1750 = vadd.f32 %v1589, %v1749
  %v1751 = vpop.f32.mrb[0].mxu0
  %v1752 = vpop.f32.mrb[0].mxu0
  %v1753 = vadd.f32 %v1592, %v1752
  %v1754 = vpop.f32.mrb[0].mxu0
  %1755 = vmatprep.mubr.bf16.mxu0 %v854
  %1756 = vmatmul.mubr.bf16.gmra.mrb[0].mxu0 %v853
  %v1757 = vpop.f32.mrb[0].mxu0
  %v1758 = vadd.f32 %v1597, %v1757
  %v1759 = vpop.f32.mrb[0].mxu0
  %v1760 = vpop.f32.mrb[0].mxu0
  %v1761 = vadd.f32 %v1600, %v1760
  %v1762 = vpop.f32.mrb[0].mxu0
  %1763 = vmatprep.mubr.bf16.mxu0 %v863
  %1764 = vmatmul.mubr.bf16.gmra.mrb[0].mxu0 %v862
  %v1765 = vpop.f32.mrb[0].mxu0
  %v1766 = vadd.f32 %v1605, %v1765
  %v1767 = vpop.f32.mrb[0].mxu0
  %v1768 = vpop.f32.mrb[0].mxu0
  %v1769 = vadd.f32 %v1608, %v1768
  %v1770 = vpop.f32.mrb[0].mxu0
  %1771 = vmatprep.mubr.bf16.mxu0 %v872
  %1772 = vmatmul.mubr.bf16.gmra.mrb[0].mxu0 %v871
  %v1773 = vpop.f32.mrb[0].mxu0
  %v1774 = vadd.f32 %v1613, %v1773
  %v1775 = vpop.f32.mrb[0].mxu0
  %v1776 = vpop.f32.mrb[0].mxu0
  %v1777 = vadd.f32 %v1616, %v1776
  %v1778 = vpop.f32.mrb[0].mxu0
  %1779 = vmatprep.mubr.bf16.mxu0 %v881
  %1780 = vmatmul.mubr.bf16.gmra.mrb[0].mxu0 %v880
  %v1781 = vpop.f32.mrb[0].mxu0
  %v1782 = vadd.f32 %v1621, %v1781
  %v1783 = vpop.f32.mrb[0].mxu0
  %v1784 = vpop.f32.mrb[0].mxu0
  %v1785 = vadd.f32 %v1624, %v1784
  %v1786 = vpop.f32.mrb[0].mxu0
  %1787 = vmatprep.mubr.bf16.mxu0 %v890
  %1788 = vmatmul.mubr.bf16.gmra.mrb[0].mxu0 %v889
  %v1789 = vpop.f32.mrb[0].mxu0
  %v1790 = vadd.f32 %v1629, %v1789
  %v1791 = vpop.f32.mrb[0].mxu0
  %v1792 = vpop.f32.mrb[0].mxu0
  %v1793 = vadd.f32 %v1632, %v1792
  %v1794 = vpop.f32.mrb[0].mxu0
  %1795 = vmatprep.mubr.bf16.mxu0 %v899
  %1796 = vmatmul.mubr.bf16.gmra.mrb[0].mxu0 %v898
  %v1797 = vpop.f32.mrb[0].mxu0
  %v1798 = vadd.f32 %v1637, %v1797
  %v1799 = vpop.f32.mrb[0].mxu0
  %v1800 = vpop.f32.mrb[0].mxu0
  %v1801 = vadd.f32 %v1640, %v1800
  %v1802 = vpop.f32.mrb[0].mxu0
  %1803 = vmatprep.mubr.bf16.mxu0 %v908
  %1804 = vmatmul.mubr.bf16.gmra.mrb[0].mxu0 %v907
  %v1805 = vpop.f32.mrb[0].mxu0
  %v1806 = vadd.f32 %v1645, %v1805
  %v1807 = vpop.f32.mrb[0].mxu0
  %v1808 = vpop.f32.mrb[0].mxu0
  %v1809 = vadd.f32 %v1648, %v1808
  %v1810 = vpop.f32.mrb[0].mxu0
  %1811 = vdwg.mxu0
  %1812 = vmatprep.subr.bf16.mxu0 0
  %1813 = vmatpush1.bf16.msra.mxu0 %v1378
  %1814 = vmatprep.subr.bf16.mxu0 0
  %1815 = vmatpush1.bf16.msra.mxu0 %v1379
  %1816 = vmatprep.subr.bf16.mxu0 0
  %1817 = vmatpush1.bf16.msra.mxu0 %v1380
  %1818 = vmatprep.subr.bf16.mxu0 0
  %1819 = vmatpush1.bf16.msra.mxu0 %v1381
  %1820 = vmatprep.subr.bf16.mxu0 0
  %1821 = vmatpush1.bf16.msra.mxu0 %v1382
  %1822 = vmatprep.subr.bf16.mxu0 0
  %1823 = vmatpush1.bf16.msra.mxu0 %v1383
  %1824 = vmatprep.subr.bf16.mxu0 0
  %1825 = vmatpush1.bf16.msra.mxu0 %v1384
  %1826 = vmatprep.subr.bf16.mxu0 0
  %1827 = vmatpush1.bf16.msra.mxu0 %v1385
  %1828 = vmatprep.subr.bf16.mxu0 0
  %1829 = vmatpush1.bf16.msra.mxu0 %v1386
  %1830 = vmatprep.subr.bf16.mxu0 0
  %1831 = vmatpush1.bf16.msra.mxu0 %v1387
  %1832 = vmatprep.subr.bf16.mxu0 0
  %1833 = vmatpush1.bf16.msra.mxu0 %v1388
  %1834 = vmatprep.subr.bf16.mxu0 0
  %1835 = vmatpush1.bf16.msra.mxu0 %v1389
  %1836 = vmatprep.subr.bf16.mxu0 0
  %1837 = vmatpush1.bf16.msra.mxu0 %v1390
  %1838 = vmatprep.subr.bf16.mxu0 0
  %1839 = vmatpush1.bf16.msra.mxu0 %v1391
  %1840 = vmatprep.subr.bf16.mxu0 0
  %1841 = vmatpush1.bf16.msra.mxu0 %v1392
  %1842 = vmatprep.subr.bf16.mxu0 0
  %1843 = vmatpush1.bf16.msra.mxu0 %v1393
  %1844 = vmatprep.mubr.bf16.mxu0 %v775
  %1845 = vmatmul.mubr.bf16.gmra.mrb[0].mxu0 %v774
  %v1846 = vpop.f32.mrb[0].mxu0
  %v1847 = vadd.f32 %v1686, %v1846
  %v1848 = vpop.f32.mrb[0].mxu0
  %v1849 = vpop.f32.mrb[0].mxu0
  %v1850 = vadd.f32 %v1689, %v1849
  %v1851 = vpop.f32.mrb[0].mxu0
  %1852 = vmatprep.mubr.bf16.mxu0 %v784
  %1853 = vmatmul.mubr.bf16.gmra.mrb[0].mxu0 %v783
  %v1854 = vpop.f32.mrb[0].mxu0
  %v1855 = vadd.f32 %v1694, %v1854
  %v1856 = vpop.f32.mrb[0].mxu0
  %v1857 = vpop.f32.mrb[0].mxu0
  %v1858 = vadd.f32 %v1697, %v1857
  %v1859 = vpop.f32.mrb[0].mxu0
  %1860 = vmatprep.mubr.bf16.mxu0 %v793
  %1861 = vmatmul.mubr.bf16.gmra.mrb[0].mxu0 %v792
  %v1862 = vpop.f32.mrb[0].mxu0
  %v1863 = vadd.f32 %v1702, %v1862
  %v1864 = vpop.f32.mrb[0].mxu0
  %v1865 = vpop.f32.mrb[0].mxu0
  %v1866 = vadd.f32 %v1705, %v1865
  %v1867 = vpop.f32.mrb[0].mxu0
  %1868 = vmatprep.mubr.bf16.mxu0 %v802
  %1869 = vmatmul.mubr.bf16.gmra.mrb[0].mxu0 %v801
  %v1870 = vpop.f32.mrb[0].mxu0
  %v1871 = vadd.f32 %v1710, %v1870
  %v1872 = vpop.f32.mrb[0].mxu0
  %v1873 = vpop.f32.mrb[0].mxu0
  %v1874 = vadd.f32 %v1713, %v1873
  %v1875 = vpop.f32.mrb[0].mxu0
  %1876 = vmatprep.mubr.bf16.mxu0 %v811
  %1877 = vmatmul.mubr.bf16.gmra.mrb[0].mxu0 %v810
  %v1878 = vpop.f32.mrb[0].mxu0
  %v1879 = vadd.f32 %v1718, %v1878
  %v1880 = vpop.f32.mrb[0].mxu0
  %v1881 = vpop.f32.mrb[0].mxu0
  %v1882 = vadd.f32 %v1721, %v1881
  %v1883 = vpop.f32.mrb[0].mxu0
  %1884 = vmatprep.mubr.bf16.mxu0 %v820
  %1885 = vmatmul.mubr.bf16.gmra.mrb[0].mxu0 %v819
  %v1886 = vpop.f32.mrb[0].mxu0
  %v1887 = vadd.f32 %v1726, %v1886
  %v1888 = vpop.f32.mrb[0].mxu0
  %v1889 = vpop.f32.mrb[0].mxu0
  %v1890 = vadd.f32 %v1729, %v1889
  %v1891 = vpop.f32.mrb[0].mxu0
  %1892 = vmatprep.mubr.bf16.mxu0 %v829
  %1893 = vmatmul.mubr.bf16.gmra.mrb[0].mxu0 %v828
  %v1894 = vpop.f32.mrb[0].mxu0
  %v1895 = vadd.f32 %v1734, %v1894
  %v1896 = vpop.f32.mrb[0].mxu0
  %v1897 = vpop.f32.mrb[0].mxu0
  %v1898 = vadd.f32 %v1737, %v1897
  %v1899 = vpop.f32.mrb[0].mxu0
  %1900 = vmatprep.mubr.bf16.mxu0 %v838
  %1901 = vmatmul.mubr.bf16.gmra.mrb[0].mxu0 %v837
  %v1902 = vpop.f32.mrb[0].mxu0
  %v1903 = vadd.f32 %v1742, %v1902
  %v1904 = vpop.f32.mrb[0].mxu0
  %v1905 = vpop.f32.mrb[0].mxu0
  %v1906 = vadd.f32 %v1745, %v1905
  %v1907 = vpop.f32.mrb[0].mxu0
  %1908 = vmatprep.mubr.bf16.mxu0 %v847
  %1909 = vmatmul.mubr.bf16.gmra.mrb[0].mxu0 %v846
  %v1910 = vpop.f32.mrb[0].mxu0
  %v1911 = vadd.f32 %v1750, %v1910
  %v1912 = vpop.f32.mrb[0].mxu0
  %v1913 = vpop.f32.mrb[0].mxu0
  %v1914 = vadd.f32 %v1753, %v1913
  %v1915 = vpop.f32.mrb[0].mxu0
  %1916 = vmatprep.mubr.bf16.mxu0 %v856
  %1917 = vmatmul.mubr.bf16.gmra.mrb[0].mxu0 %v855
  %v1918 = vpop.f32.mrb[0].mxu0
  %v1919 = vadd.f32 %v1758, %v1918
  %v1920 = vpop.f32.mrb[0].mxu0
  %v1921 = vpop.f32.mrb[0].mxu0
  %v1922 = vadd.f32 %v1761, %v1921
  %v1923 = vpop.f32.mrb[0].mxu0
  %1924 = vmatprep.mubr.bf16.mxu0 %v865
  %1925 = vmatmul.mubr.bf16.gmra.mrb[0].mxu0 %v864
  %v1926 = vpop.f32.mrb[0].mxu0
  %v1927 = vadd.f32 %v1766, %v1926
  %v1928 = vpop.f32.mrb[0].mxu0
  %v1929 = vpop.f32.mrb[0].mxu0
  %v1930 = vadd.f32 %v1769, %v1929
  %v1931 = vpop.f32.mrb[0].mxu0
  %1932 = vmatprep.mubr.bf16.mxu0 %v874
  %1933 = vmatmul.mubr.bf16.gmra.mrb[0].mxu0 %v873
  %v1934 = vpop.f32.mrb[0].mxu0
  %v1935 = vadd.f32 %v1774, %v1934
  %v1936 = vpop.f32.mrb[0].mxu0
  %v1937 = vpop.f32.mrb[0].mxu0
  %v1938 = vadd.f32 %v1777, %v1937
  %v1939 = vpop.f32.mrb[0].mxu0
  %1940 = vmatprep.mubr.bf16.mxu0 %v883
  %1941 = vmatmul.mubr.bf16.gmra.mrb[0].mxu0 %v882
  %v1942 = vpop.f32.mrb[0].mxu0
  %v1943 = vadd.f32 %v1782, %v1942
  %v1944 = vpop.f32.mrb[0].mxu0
  %v1945 = vpop.f32.mrb[0].mxu0
  %v1946 = vadd.f32 %v1785, %v1945
  %v1947 = vpop.f32.mrb[0].mxu0
  %1948 = vmatprep.mubr.bf16.mxu0 %v892
  %1949 = vmatmul.mubr.bf16.gmra.mrb[0].mxu0 %v891
  %v1950 = vpop.f32.mrb[0].mxu0
  %v1951 = vadd.f32 %v1790, %v1950
  %v1952 = vpop.f32.mrb[0].mxu0
  %v1953 = vpop.f32.mrb[0].mxu0
  %v1954 = vadd.f32 %v1793, %v1953
  %v1955 = vpop.f32.mrb[0].mxu0
  %1956 = vmatprep.mubr.bf16.mxu0 %v901
  %1957 = vmatmul.mubr.bf16.gmra.mrb[0].mxu0 %v900
  %v1958 = vpop.f32.mrb[0].mxu0
  %v1959 = vadd.f32 %v1798, %v1958
  %v1960 = vpop.f32.mrb[0].mxu0
  %v1961 = vpop.f32.mrb[0].mxu0
  %v1962 = vadd.f32 %v1801, %v1961
  %v1963 = vpop.f32.mrb[0].mxu0
  %1964 = vmatprep.mubr.bf16.mxu0 %v910
  %1965 = vmatmul.mubr.bf16.gmra.mrb[0].mxu0 %v909
  %v1966 = vpop.f32.mrb[0].mxu0
  %v1967 = vadd.f32 %v1806, %v1966
  %v1968 = vpop.f32.mrb[0].mxu0
  %v1969 = vpop.f32.mrb[0].mxu0
  %v1970 = vadd.f32 %v1809, %v1969
  %v1971 = vpop.f32.mrb[0].mxu0
  %1972 = vdwg.mxu0
  %1973 = vmatprep.subr.bf16.mxu0 0
  %1974 = vmatpush1.bf16.msra.mxu0 %v1394
  %1975 = vmatprep.subr.bf16.mxu0 0
  %1976 = vmatpush1.bf16.msra.mxu0 %v1395
  %1977 = vmatprep.subr.bf16.mxu0 0
  %1978 = vmatpush1.bf16.msra.mxu0 %v1396
  %1979 = vmatprep.subr.bf16.mxu0 0
  %1980 = vmatpush1.bf16.msra.mxu0 %v1397
  %1981 = vmatprep.subr.bf16.mxu0 0
  %1982 = vmatpush1.bf16.msra.mxu0 %v1398
  %1983 = vmatprep.subr.bf16.mxu0 0
  %1984 = vmatpush1.bf16.msra.mxu0 %v1399
  %1985 = vmatprep.subr.bf16.mxu0 0
  %1986 = vmatpush1.bf16.msra.mxu0 %v1400
  %1987 = vmatprep.subr.bf16.mxu0 0
  %1988 = vmatpush1.bf16.msra.mxu0 %v1401
  %1989 = vmatprep.subr.bf16.mxu0 0
  %1990 = vmatpush1.bf16.msra.mxu0 %v1402
  %1991 = vmatprep.subr.bf16.mxu0 0
  %1992 = vmatpush1.bf16.msra.mxu0 %v1403
  %1993 = vmatprep.subr.bf16.mxu0 0
  %1994 = vmatpush1.bf16.msra.mxu0 %v1404
  %1995 = vmatprep.subr.bf16.mxu0 0
  %1996 = vmatpush1.bf16.msra.mxu0 %v1405
  %1997 = vmatprep.subr.bf16.mxu0 0
  %1998 = vmatpush1.bf16.msra.mxu0 %v1406
  %1999 = vmatprep.subr.bf16.mxu0 0
  %2000 = vmatpush1.bf16.msra.mxu0 %v1407
  %2001 = vmatprep.subr.bf16.mxu0 0
  %2002 = vmatpush1.bf16.msra.mxu0 %v1408
  %2003 = vmatprep.subr.bf16.mxu0 0
  %2004 = vmatpush1.bf16.msra.mxu0 %v1409
  %2005 = vmatprep.mubr.bf16.mxu0 %v777
  %2006 = vmatmul.mubr.bf16.gmra.mrb[0].mxu0 %v776
  %v2007 = vpop.f32.mrb[0].mxu0
  %v2008 = vadd.f32 %v1847, %v2007
  %v2009 = vpop.f32.mrb[0].mxu0
  %v2010 = vpop.f32.mrb[0].mxu0
  %v2011 = vadd.f32 %v1850, %v2010
  %v2012 = vpop.f32.mrb[0].mxu0
  %2013 = vmatprep.mubr.bf16.mxu0 %v786
  %2014 = vmatmul.mubr.bf16.gmra.mrb[0].mxu0 %v785
  %v2015 = vpop.f32.mrb[0].mxu0
  %v2016 = vadd.f32 %v1855, %v2015
  %v2017 = vpop.f32.mrb[0].mxu0
  %v2018 = vpop.f32.mrb[0].mxu0
  %v2019 = vadd.f32 %v1858, %v2018
  %v2020 = vpop.f32.mrb[0].mxu0
  %2021 = vmatprep.mubr.bf16.mxu0 %v795
  %2022 = vmatmul.mubr.bf16.gmra.mrb[0].mxu0 %v794
  %v2023 = vpop.f32.mrb[0].mxu0
  %v2024 = vadd.f32 %v1863, %v2023
  %v2025 = vpop.f32.mrb[0].mxu0
  %v2026 = vpop.f32.mrb[0].mxu0
  %v2027 = vadd.f32 %v1866, %v2026
  %v2028 = vpop.f32.mrb[0].mxu0
  %2029 = vmatprep.mubr.bf16.mxu0 %v804
  %2030 = vmatmul.mubr.bf16.gmra.mrb[0].mxu0 %v803
  %v2031 = vpop.f32.mrb[0].mxu0
  %v2032 = vadd.f32 %v1871, %v2031
  %v2033 = vpop.f32.mrb[0].mxu0
  %v2034 = vpop.f32.mrb[0].mxu0
  %v2035 = vadd.f32 %v1874, %v2034
  %v2036 = vpop.f32.mrb[0].mxu0
  %2037 = vmatprep.mubr.bf16.mxu0 %v813
  %2038 = vmatmul.mubr.bf16.gmra.mrb[0].mxu0 %v812
  %v2039 = vpop.f32.mrb[0].mxu0
  %v2040 = vadd.f32 %v1879, %v2039
  %v2041 = vpop.f32.mrb[0].mxu0
  %v2042 = vpop.f32.mrb[0].mxu0
  %v2043 = vadd.f32 %v1882, %v2042
  %v2044 = vpop.f32.mrb[0].mxu0
  %2045 = vmatprep.mubr.bf16.mxu0 %v822
  %2046 = vmatmul.mubr.bf16.gmra.mrb[0].mxu0 %v821
  %v2047 = vpop.f32.mrb[0].mxu0
  %v2048 = vadd.f32 %v1887, %v2047
  %v2049 = vpop.f32.mrb[0].mxu0
  %v2050 = vpop.f32.mrb[0].mxu0
  %v2051 = vadd.f32 %v1890, %v2050
  %v2052 = vpop.f32.mrb[0].mxu0
  %2053 = vmatprep.mubr.bf16.mxu0 %v831
  %2054 = vmatmul.mubr.bf16.gmra.mrb[0].mxu0 %v830
  %v2055 = vpop.f32.mrb[0].mxu0
  %v2056 = vadd.f32 %v1895, %v2055
  %v2057 = vpop.f32.mrb[0].mxu0
  %v2058 = vpop.f32.mrb[0].mxu0
  %v2059 = vadd.f32 %v1898, %v2058
  %v2060 = vpop.f32.mrb[0].mxu0
  %2061 = vmatprep.mubr.bf16.mxu0 %v840
  %2062 = vmatmul.mubr.bf16.gmra.mrb[0].mxu0 %v839
  %v2063 = vpop.f32.mrb[0].mxu0
  %v2064 = vadd.f32 %v1903, %v2063
  %v2065 = vpop.f32.mrb[0].mxu0
  %v2066 = vpop.f32.mrb[0].mxu0
  %v2067 = vadd.f32 %v1906, %v2066
  %v2068 = vpop.f32.mrb[0].mxu0
  %2069 = vmatprep.mubr.bf16.mxu0 %v849
  %2070 = vmatmul.mubr.bf16.gmra.mrb[0].mxu0 %v848
  %v2071 = vpop.f32.mrb[0].mxu0
  %v2072 = vadd.f32 %v1911, %v2071
  %v2073 = vpop.f32.mrb[0].mxu0
  %v2074 = vpop.f32.mrb[0].mxu0
  %v2075 = vadd.f32 %v1914, %v2074
  %v2076 = vpop.f32.mrb[0].mxu0
  %2077 = vmatprep.mubr.bf16.mxu0 %v858
  %2078 = vmatmul.mubr.bf16.gmra.mrb[0].mxu0 %v857
  %v2079 = vpop.f32.mrb[0].mxu0
  %v2080 = vadd.f32 %v1919, %v2079
  %v2081 = vpop.f32.mrb[0].mxu0
  %v2082 = vpop.f32.mrb[0].mxu0
  %v2083 = vadd.f32 %v1922, %v2082
  %v2084 = vpop.f32.mrb[0].mxu0
  %2085 = vmatprep.mubr.bf16.mxu0 %v867
  %2086 = vmatmul.mubr.bf16.gmra.mrb[0].mxu0 %v866
  %v2087 = vpop.f32.mrb[0].mxu0
  %v2088 = vadd.f32 %v1927, %v2087
  %v2089 = vpop.f32.mrb[0].mxu0
  %v2090 = vpop.f32.mrb[0].mxu0
  %v2091 = vadd.f32 %v1930, %v2090
  %v2092 = vpop.f32.mrb[0].mxu0
  %2093 = vmatprep.mubr.bf16.mxu0 %v876
  %2094 = vmatmul.mubr.bf16.gmra.mrb[0].mxu0 %v875
  %v2095 = vpop.f32.mrb[0].mxu0
  %v2096 = vadd.f32 %v1935, %v2095
  %v2097 = vpop.f32.mrb[0].mxu0
  %v2098 = vpop.f32.mrb[0].mxu0
  %v2099 = vadd.f32 %v1938, %v2098
  %v2100 = vpop.f32.mrb[0].mxu0
  %2101 = vmatprep.mubr.bf16.mxu0 %v885
  %2102 = vmatmul.mubr.bf16.gmra.mrb[0].mxu0 %v884
  %v2103 = vpop.f32.mrb[0].mxu0
  %v2104 = vadd.f32 %v1943, %v2103
  %v2105 = vpop.f32.mrb[0].mxu0
  %v2106 = vpop.f32.mrb[0].mxu0
  %v2107 = vadd.f32 %v1946, %v2106
  %v2108 = vpop.f32.mrb[0].mxu0
  %2109 = vmatprep.mubr.bf16.mxu0 %v894
  %2110 = vmatmul.mubr.bf16.gmra.mrb[0].mxu0 %v893
  %v2111 = vpop.f32.mrb[0].mxu0
  %v2112 = vadd.f32 %v1951, %v2111
  %v2113 = vpop.f32.mrb[0].mxu0
  %v2114 = vpop.f32.mrb[0].mxu0
  %v2115 = vadd.f32 %v1954, %v2114
  %v2116 = vpop.f32.mrb[0].mxu0
  %2117 = vmatprep.mubr.bf16.mxu0 %v903
  %2118 = vmatmul.mubr.bf16.gmra.mrb[0].mxu0 %v902
  %v2119 = vpop.f32.mrb[0].mxu0
  %v2120 = vadd.f32 %v1959, %v2119
  %v2121 = vpop.f32.mrb[0].mxu0
  %v2122 = vpop.f32.mrb[0].mxu0
  %v2123 = vadd.f32 %v1962, %v2122
  %v2124 = vpop.f32.mrb[0].mxu0
  %2125 = vmatprep.mubr.bf16.mxu0 %v912
  %2126 = vmatmul.mubr.bf16.gmra.mrb[0].mxu0 %v911
  %v2127 = vpop.f32.mrb[0].mxu0
  %v2128 = vadd.f32 %v1967, %v2127
  %v2129 = vpop.f32.mrb[0].mxu0
  %v2130 = vpop.f32.mrb[0].mxu0
  %v2131 = vadd.f32 %v1970, %v2130
  %v2132 = vpop.f32.mrb[0].mxu0
  %2133 = vdwg.mxu0
  %2134 = vmatprep.subr.bf16.mxu0 0
  %2135 = vmatpush1.bf16.msra.mxu0 %v1410
  %2136 = vmatprep.subr.bf16.mxu0 0
  %2137 = vmatpush1.bf16.msra.mxu0 %v1411
  %2138 = vmatprep.subr.bf16.mxu0 0
  %2139 = vmatpush1.bf16.msra.mxu0 %v1412
  %2140 = vmatprep.subr.bf16.mxu0 0
  %2141 = vmatpush1.bf16.msra.mxu0 %v1413
  %2142 = vmatprep.subr.bf16.mxu0 0
  %2143 = vmatpush1.bf16.msra.mxu0 %v1414
  %2144 = vmatprep.subr.bf16.mxu0 0
  %2145 = vmatpush1.bf16.msra.mxu0 %v1415
  %2146 = vmatprep.subr.bf16.mxu0 0
  %2147 = vmatpush1.bf16.msra.mxu0 %v1416
  %2148 = vmatprep.subr.bf16.mxu0 0
  %2149 = vmatpush1.bf16.msra.mxu0 %v1417
  %2150 = vmatprep.subr.bf16.mxu0 0
  %2151 = vmatpush1.bf16.msra.mxu0 0
  %2152 = vmatprep.subr.bf16.mxu0 0
  %2153 = vmatpush1.bf16.msra.mxu0 0
  %2154 = vmatprep.subr.bf16.mxu0 0
  %2155 = vmatpush1.bf16.msra.mxu0 0
  %2156 = vmatprep.subr.bf16.mxu0 0
  %2157 = vmatpush1.bf16.msra.mxu0 0
  %2158 = vmatprep.subr.bf16.mxu0 0
  %2159 = vmatpush1.bf16.msra.mxu0 0
  %2160 = vmatprep.subr.bf16.mxu0 0
  %2161 = vmatpush1.bf16.msra.mxu0 0
  %2162 = vmatprep.subr.bf16.mxu0 0
  %2163 = vmatpush1.bf16.msra.mxu0 0
  %2164 = vmatprep.subr.bf16.mxu0 0
  %2165 = vmatpush1.bf16.msra.mxu0 0
  %2166 = vmatprep.mubr.bf16.mxu0 0
  %2167 = vmatmul.mubr.bf16.gmra.mrb[0].mxu0 %v778
  %v2168 = vpop.f32.mrb[0].mxu0
  %v2169 = vadd.f32 %v2008, %v2168
  %v2170 = vpop.f32.mrb[0].mxu0
  %v2171 = vpop.f32.mrb[0].mxu0
  %v2172 = vadd.f32 %v2011, %v2171
  %v2173 = vpop.f32.mrb[0].mxu0
  %2174 = vmatprep.mubr.bf16.mxu0 0
  %2175 = vmatmul.mubr.bf16.gmra.mrb[0].mxu0 %v787
  %v2176 = vpop.f32.mrb[0].mxu0
  %v2177 = vadd.f32 %v2016, %v2176
  %v2178 = vpop.f32.mrb[0].mxu0
  %v2179 = vpop.f32.mrb[0].mxu0
  %v2180 = vadd.f32 %v2019, %v2179
  %v2181 = vpop.f32.mrb[0].mxu0
  %2182 = vmatprep.mubr.bf16.mxu0 0
  %2183 = vmatmul.mubr.bf16.gmra.mrb[0].mxu0 %v796
  %v2184 = vpop.f32.mrb[0].mxu0
  %v2185 = vadd.f32 %v2024, %v2184
  %v2186 = vpop.f32.mrb[0].mxu0
  %v2187 = vpop.f32.mrb[0].mxu0
  %v2188 = vadd.f32 %v2027, %v2187
  %v2189 = vpop.f32.mrb[0].mxu0
  %2190 = vmatprep.mubr.bf16.mxu0 0
  %2191 = vmatmul.mubr.bf16.gmra.mrb[0].mxu0 %v805
  %v2192 = vpop.f32.mrb[0].mxu0
  %v2193 = vadd.f32 %v2032, %v2192
  %v2194 = vpop.f32.mrb[0].mxu0
  %v2195 = vpop.f32.mrb[0].mxu0
  %v2196 = vadd.f32 %v2035, %v2195
  %v2197 = vpop.f32.mrb[0].mxu0
  %2198 = vmatprep.mubr.bf16.mxu0 0
  %2199 = vmatmul.mubr.bf16.gmra.mrb[0].mxu0 %v814
  %v2200 = vpop.f32.mrb[0].mxu0
  %v2201 = vadd.f32 %v2040, %v2200
  %v2202 = vpop.f32.mrb[0].mxu0
  %v2203 = vpop.f32.mrb[0].mxu0
  %v2204 = vadd.f32 %v2043, %v2203
  %v2205 = vpop.f32.mrb[0].mxu0
  %2206 = vmatprep.mubr.bf16.mxu0 0
  %2207 = vmatmul.mubr.bf16.gmra.mrb[0].mxu0 %v823
  %v2208 = vpop.f32.mrb[0].mxu0
  %v2209 = vadd.f32 %v2048, %v2208
  %v2210 = vpop.f32.mrb[0].mxu0
  %v2211 = vpop.f32.mrb[0].mxu0
  %v2212 = vadd.f32 %v2051, %v2211
  %v2213 = vpop.f32.mrb[0].mxu0
  %2214 = vmatprep.mubr.bf16.mxu0 0
  %2215 = vmatmul.mubr.bf16.gmra.mrb[0].mxu0 %v832
  %v2216 = vpop.f32.mrb[0].mxu0
  %v2217 = vadd.f32 %v2056, %v2216
  %v2218 = vpop.f32.mrb[0].mxu0
  %v2219 = vpop.f32.mrb[0].mxu0
  %v2220 = vadd.f32 %v2059, %v2219
  %v2221 = vpop.f32.mrb[0].mxu0
  %2222 = vmatprep.mubr.bf16.mxu0 0
  %2223 = vmatmul.mubr.bf16.gmra.mrb[0].mxu0 %v841
  %v2224 = vpop.f32.mrb[0].mxu0
  %v2225 = vadd.f32 %v2064, %v2224
  %v2226 = vpop.f32.mrb[0].mxu0
  %v2227 = vpop.f32.mrb[0].mxu0
  %v2228 = vadd.f32 %v2067, %v2227
  %v2229 = vpop.f32.mrb[0].mxu0
  %2230 = vmatprep.mubr.bf16.mxu0 0
  %2231 = vmatmul.mubr.bf16.gmra.mrb[0].mxu0 %v850
  %v2232 = vpop.f32.mrb[0].mxu0
  %v2233 = vadd.f32 %v2072, %v2232
  %v2234 = vpop.f32.mrb[0].mxu0
  %v2235 = vpop.f32.mrb[0].mxu0
  %v2236 = vadd.f32 %v2075, %v2235
  %v2237 = vpop.f32.mrb[0].mxu0
  %2238 = vmatprep.mubr.bf16.mxu0 0
  %2239 = vmatmul.mubr.bf16.gmra.mrb[0].mxu0 %v859
  %v2240 = vpop.f32.mrb[0].mxu0
  %v2241 = vadd.f32 %v2080, %v2240
  %v2242 = vpop.f32.mrb[0].mxu0
  %v2243 = vpop.f32.mrb[0].mxu0
  %v2244 = vadd.f32 %v2083, %v2243
  %v2245 = vpop.f32.mrb[0].mxu0
  %2246 = vmatprep.mubr.bf16.mxu0 0
  %2247 = vmatmul.mubr.bf16.gmra.mrb[0].mxu0 %v868
  %v2248 = vpop.f32.mrb[0].mxu0
  %v2249 = vadd.f32 %v2088, %v2248
  %v2250 = vpop.f32.mrb[0].mxu0
  %v2251 = vpop.f32.mrb[0].mxu0
  %v2252 = vadd.f32 %v2091, %v2251
  %v2253 = vpop.f32.mrb[0].mxu0
  %2254 = vmatprep.mubr.bf16.mxu0 0
  %2255 = vmatmul.mubr.bf16.gmra.mrb[0].mxu0 %v877
  %v2256 = vpop.f32.mrb[0].mxu0
  %v2257 = vadd.f32 %v2096, %v2256
  %v2258 = vpop.f32.mrb[0].mxu0
  %v2259 = vpop.f32.mrb[0].mxu0
  %v2260 = vadd.f32 %v2099, %v2259
  %v2261 = vpop.f32.mrb[0].mxu0
  %2262 = vmatprep.mubr.bf16.mxu0 0
  %2263 = vmatmul.mubr.bf16.gmra.mrb[0].mxu0 %v886
  %v2264 = vpop.f32.mrb[0].mxu0
  %v2265 = vadd.f32 %v2104, %v2264
  %v2266 = vpop.f32.mrb[0].mxu0
  %v2267 = vpop.f32.mrb[0].mxu0
  %v2268 = vadd.f32 %v2107, %v2267
  %v2269 = vpop.f32.mrb[0].mxu0
  %2270 = vmatprep.mubr.bf16.mxu0 0
  %2271 = vmatmul.mubr.bf16.gmra.mrb[0].mxu0 %v895
  %v2272 = vpop.f32.mrb[0].mxu0
  %v2273 = vadd.f32 %v2112, %v2272
  %v2274 = vpop.f32.mrb[0].mxu0
  %v2275 = vpop.f32.mrb[0].mxu0
  %v2276 = vadd.f32 %v2115, %v2275
  %v2277 = vpop.f32.mrb[0].mxu0
  %2278 = vmatprep.mubr.bf16.mxu0 0
  %2279 = vmatmul.mubr.bf16.gmra.mrb[0].mxu0 %v904
  %v2280 = vpop.f32.mrb[0].mxu0
  %v2281 = vadd.f32 %v2120, %v2280
  %v2282 = vpop.f32.mrb[0].mxu0
  %v2283 = vpop.f32.mrb[0].mxu0
  %v2284 = vadd.f32 %v2123, %v2283
  %v2285 = vpop.f32.mrb[0].mxu0
  %2286 = vmatprep.mubr.bf16.mxu0 0
  %2287 = vmatmul.mubr.bf16.gmra.mrb[0].mxu0 %v913
  %v2288 = vpop.f32.mrb[0].mxu0
  %v2289 = vadd.f32 %v2128, %v2288
  %v2290 = vpop.f32.mrb[0].mxu0
  %v2291 = vpop.f32.mrb[0].mxu0
  %v2292 = vadd.f32 %v2131, %v2291
  %v2293 = vpop.f32.mrb[0].mxu0
  %2294 = vdwg.mxu0
  %vm2295 = vcmask 261120
  %v2296 = vsel %vm2295, %v2169, 0.0
  %2297 = vadd.xlane.f32.xlu0 %v2296
  %v2298 = vpop.xlane.xlu0 %2297
  %v2299 = vsel %vm2295, %v2172, 0.0
  %2300 = vadd.xlane.f32.xlu0 %v2299
  %v2301 = vpop.xlane.xlu0 %2300
  %v2302 = vsel %vm2295, %v2177, 0.0
  %2303 = vadd.xlane.f32.xlu0 %v2302
  %v2304 = vpop.xlane.xlu0 %2303
  %v2305 = vsel %vm2295, %v2180, 0.0
  %2306 = vadd.xlane.f32.xlu0 %v2305
  %v2307 = vpop.xlane.xlu0 %2306
  %v2308 = vsel %vm2295, %v2185, 0.0
  %2309 = vadd.xlane.f32.xlu0 %v2308
  %v2310 = vpop.xlane.xlu0 %2309
  %v2311 = vsel %vm2295, %v2188, 0.0
  %2312 = vadd.xlane.f32.xlu0 %v2311
  %v2313 = vpop.xlane.xlu0 %2312
  %v2314 = vsel %vm2295, %v2193, 0.0
  %2315 = vadd.xlane.f32.xlu0 %v2314
  %v2316 = vpop.xlane.xlu0 %2315
  %v2317 = vsel %vm2295, %v2196, 0.0
  %2318 = vadd.xlane.f32.xlu0 %v2317
  %v2319 = vpop.xlane.xlu0 %2318
  %v2320 = vadd.f32 %v2298, 0.0
  %v2321 = vadd.f32 %v2301, 0.0
  %v2322 = vadd.f32 %v2304, 0.0
  %v2323 = vadd.f32 %v2307, 0.0
  %v2324 = vadd.f32 %v2310, 0.0
  %v2325 = vadd.f32 %v2313, 0.0
  %v2326 = vadd.f32 %v2316, 0.0
  %v2327 = vadd.f32 %v2319, 0.0
  %v2328 = vmul.f32 %v2169, %v2169
  %v2329 = vmul.f32 %v2172, %v2172
  %v2330 = vmul.f32 %v2177, %v2177
  %v2331 = vmul.f32 %v2180, %v2180
  %v2332 = vmul.f32 %v2185, %v2185
  %v2333 = vmul.f32 %v2188, %v2188
  %v2334 = vmul.f32 %v2193, %v2193
  %v2335 = vmul.f32 %v2196, %v2196
  %v2336 = vsel %vm2295, %v2328, 0.0
  %2337 = vadd.xlane.f32.xlu0 %v2336
  %v2338 = vpop.xlane.xlu0 %2337
  %v2339 = vsel %vm2295, %v2329, 0.0
  %2340 = vadd.xlane.f32.xlu0 %v2339
  %v2341 = vpop.xlane.xlu0 %2340
  %v2342 = vsel %vm2295, %v2330, 0.0
  %2343 = vadd.xlane.f32.xlu0 %v2342
  %v2344 = vpop.xlane.xlu0 %2343
  %v2345 = vsel %vm2295, %v2331, 0.0
  %2346 = vadd.xlane.f32.xlu0 %v2345
  %v2347 = vpop.xlane.xlu0 %2346
  %v2348 = vsel %vm2295, %v2332, 0.0
  %2349 = vadd.xlane.f32.xlu0 %v2348
  %v2350 = vpop.xlane.xlu0 %2349
  %v2351 = vsel %vm2295, %v2333, 0.0
  %2352 = vadd.xlane.f32.xlu0 %v2351
  %v2353 = vpop.xlane.xlu0 %2352
  %v2354 = vsel %vm2295, %v2334, 0.0
  %2355 = vadd.xlane.f32.xlu0 %v2354
  %v2356 = vpop.xlane.xlu0 %2355
  %v2357 = vsel %vm2295, %v2335, 0.0
  %2358 = vadd.xlane.f32.xlu0 %v2357
  %v2359 = vpop.xlane.xlu0 %2358
  %v2360 = vadd.f32 %v2338, 0.0
  %v2361 = vadd.f32 %v2341, 0.0
  %v2362 = vadd.f32 %v2344, 0.0
  %v2363 = vadd.f32 %v2347, 0.0
  %v2364 = vadd.f32 %v2350, 0.0
  %v2365 = vadd.f32 %v2353, 0.0
  %v2366 = vadd.f32 %v2356, 0.0
  %v2367 = vadd.f32 %v2359, 0.0
  %v2368 = vsel %vm2295, %v2201, 0.0
  %2369 = vadd.xlane.f32.xlu0 %v2368
  %v2370 = vpop.xlane.xlu0 %2369
  %v2371 = vsel %vm2295, %v2204, 0.0
  %2372 = vadd.xlane.f32.xlu0 %v2371
  %v2373 = vpop.xlane.xlu0 %2372
  %v2374 = vsel %vm2295, %v2209, 0.0
  %2375 = vadd.xlane.f32.xlu0 %v2374
  %v2376 = vpop.xlane.xlu0 %2375
  %v2377 = vsel %vm2295, %v2212, 0.0
  %2378 = vadd.xlane.f32.xlu0 %v2377
  %v2379 = vpop.xlane.xlu0 %2378
  %v2380 = vsel %vm2295, %v2217, 0.0
  %2381 = vadd.xlane.f32.xlu0 %v2380
  %v2382 = vpop.xlane.xlu0 %2381
  %v2383 = vsel %vm2295, %v2220, 0.0
  %2384 = vadd.xlane.f32.xlu0 %v2383
  %v2385 = vpop.xlane.xlu0 %2384
  %v2386 = vsel %vm2295, %v2225, 0.0
  %2387 = vadd.xlane.f32.xlu0 %v2386
  %v2388 = vpop.xlane.xlu0 %2387
  %v2389 = vsel %vm2295, %v2228, 0.0
  %2390 = vadd.xlane.f32.xlu0 %v2389
  %v2391 = vpop.xlane.xlu0 %2390
  %v2392 = vadd.f32 %v2320, %v2370
  %v2393 = vadd.f32 %v2321, %v2373
  %v2394 = vadd.f32 %v2322, %v2376
  %v2395 = vadd.f32 %v2323, %v2379
  %v2396 = vadd.f32 %v2324, %v2382
  %v2397 = vadd.f32 %v2325, %v2385
  %v2398 = vadd.f32 %v2326, %v2388
  %v2399 = vadd.f32 %v2327, %v2391
  %v2400 = vmul.f32 %v2201, %v2201
  %v2401 = vmul.f32 %v2204, %v2204
  %v2402 = vmul.f32 %v2209, %v2209
  %v2403 = vmul.f32 %v2212, %v2212
  %v2404 = vmul.f32 %v2217, %v2217
  %v2405 = vmul.f32 %v2220, %v2220
  %v2406 = vmul.f32 %v2225, %v2225
  %v2407 = vmul.f32 %v2228, %v2228
  %v2408 = vsel %vm2295, %v2400, 0.0
  %2409 = vadd.xlane.f32.xlu0 %v2408
  %v2410 = vpop.xlane.xlu0 %2409
  %v2411 = vsel %vm2295, %v2401, 0.0
  %2412 = vadd.xlane.f32.xlu0 %v2411
  %v2413 = vpop.xlane.xlu0 %2412
  %v2414 = vsel %vm2295, %v2402, 0.0
  %2415 = vadd.xlane.f32.xlu0 %v2414
  %v2416 = vpop.xlane.xlu0 %2415
  %v2417 = vsel %vm2295, %v2403, 0.0
  %2418 = vadd.xlane.f32.xlu0 %v2417
  %v2419 = vpop.xlane.xlu0 %2418
  %v2420 = vsel %vm2295, %v2404, 0.0
  %2421 = vadd.xlane.f32.xlu0 %v2420
  %v2422 = vpop.xlane.xlu0 %2421
  %v2423 = vsel %vm2295, %v2405, 0.0
  %2424 = vadd.xlane.f32.xlu0 %v2423
  %v2425 = vpop.xlane.xlu0 %2424
  %v2426 = vsel %vm2295, %v2406, 0.0
  %2427 = vadd.xlane.f32.xlu0 %v2426
  %v2428 = vpop.xlane.xlu0 %2427
  %v2429 = vsel %vm2295, %v2407, 0.0
  %2430 = vadd.xlane.f32.xlu0 %v2429
  %v2431 = vpop.xlane.xlu0 %2430
  %v2432 = vadd.f32 %v2360, %v2410
  %v2433 = vadd.f32 %v2361, %v2413
  %v2434 = vadd.f32 %v2362, %v2416
  %v2435 = vadd.f32 %v2363, %v2419
  %v2436 = vadd.f32 %v2364, %v2422
  %v2437 = vadd.f32 %v2365, %v2425
  %v2438 = vadd.f32 %v2366, %v2428
  %v2439 = vadd.f32 %v2367, %v2431
  %v2440 = vsel %vm2295, %v2233, 0.0
  %2441 = vadd.xlane.f32.xlu0 %v2440
  %v2442 = vpop.xlane.xlu0 %2441
  %v2443 = vsel %vm2295, %v2236, 0.0
  %2444 = vadd.xlane.f32.xlu0 %v2443
  %v2445 = vpop.xlane.xlu0 %2444
  %v2446 = vsel %vm2295, %v2241, 0.0
  %2447 = vadd.xlane.f32.xlu0 %v2446
  %v2448 = vpop.xlane.xlu0 %2447
  %v2449 = vsel %vm2295, %v2244, 0.0
  %2450 = vadd.xlane.f32.xlu0 %v2449
  %v2451 = vpop.xlane.xlu0 %2450
  %v2452 = vsel %vm2295, %v2249, 0.0
  %2453 = vadd.xlane.f32.xlu0 %v2452
  %v2454 = vpop.xlane.xlu0 %2453
  %v2455 = vsel %vm2295, %v2252, 0.0
  %2456 = vadd.xlane.f32.xlu0 %v2455
  %v2457 = vpop.xlane.xlu0 %2456
  %v2458 = vsel %vm2295, %v2257, 0.0
  %2459 = vadd.xlane.f32.xlu0 %v2458
  %v2460 = vpop.xlane.xlu0 %2459
  %v2461 = vsel %vm2295, %v2260, 0.0
  %2462 = vadd.xlane.f32.xlu0 %v2461
  %v2463 = vpop.xlane.xlu0 %2462
  %v2464 = vadd.f32 %v2392, %v2442
  %v2465 = vadd.f32 %v2393, %v2445
  %v2466 = vadd.f32 %v2394, %v2448
  %v2467 = vadd.f32 %v2395, %v2451
  %v2468 = vadd.f32 %v2396, %v2454
  %v2469 = vadd.f32 %v2397, %v2457
  %v2470 = vadd.f32 %v2398, %v2460
  %v2471 = vadd.f32 %v2399, %v2463
  %v2472 = vmul.f32 %v2233, %v2233
  %v2473 = vmul.f32 %v2236, %v2236
  %v2474 = vmul.f32 %v2241, %v2241
  %v2475 = vmul.f32 %v2244, %v2244
  %v2476 = vmul.f32 %v2249, %v2249
  %v2477 = vmul.f32 %v2252, %v2252
  %v2478 = vmul.f32 %v2257, %v2257
  %v2479 = vmul.f32 %v2260, %v2260
  %v2480 = vsel %vm2295, %v2472, 0.0
  %2481 = vadd.xlane.f32.xlu0 %v2480
  %v2482 = vpop.xlane.xlu0 %2481
  %v2483 = vsel %vm2295, %v2473, 0.0
  %2484 = vadd.xlane.f32.xlu0 %v2483
  %v2485 = vpop.xlane.xlu0 %2484
  %v2486 = vsel %vm2295, %v2474, 0.0
  %2487 = vadd.xlane.f32.xlu0 %v2486
  %v2488 = vpop.xlane.xlu0 %2487
  %v2489 = vsel %vm2295, %v2475, 0.0
  %2490 = vadd.xlane.f32.xlu0 %v2489
  %v2491 = vpop.xlane.xlu0 %2490
  %v2492 = vsel %vm2295, %v2476, 0.0
  %2493 = vadd.xlane.f32.xlu0 %v2492
  %v2494 = vpop.xlane.xlu0 %2493
  %v2495 = vsel %vm2295, %v2477, 0.0
  %2496 = vadd.xlane.f32.xlu0 %v2495
  %v2497 = vpop.xlane.xlu0 %2496
  %v2498 = vsel %vm2295, %v2478, 0.0
  %2499 = vadd.xlane.f32.xlu0 %v2498
  %v2500 = vpop.xlane.xlu0 %2499
  %v2501 = vsel %vm2295, %v2479, 0.0
  %2502 = vadd.xlane.f32.xlu0 %v2501
  %v2503 = vpop.xlane.xlu0 %2502
  %v2504 = vadd.f32 %v2432, %v2482
  %v2505 = vadd.f32 %v2433, %v2485
  %v2506 = vadd.f32 %v2434, %v2488
  %v2507 = vadd.f32 %v2435, %v2491
  %v2508 = vadd.f32 %v2436, %v2494
  %v2509 = vadd.f32 %v2437, %v2497
  %v2510 = vadd.f32 %v2438, %v2500
  %v2511 = vadd.f32 %v2439, %v2503
  %v2512 = vsel %vm2295, %v2265, 0.0
  %2513 = vadd.xlane.f32.xlu0 %v2512
  %v2514 = vpop.xlane.xlu0 %2513
  %v2515 = vsel %vm2295, %v2268, 0.0
  %2516 = vadd.xlane.f32.xlu0 %v2515
  %v2517 = vpop.xlane.xlu0 %2516
  %v2518 = vsel %vm2295, %v2273, 0.0
  %2519 = vadd.xlane.f32.xlu0 %v2518
  %v2520 = vpop.xlane.xlu0 %2519
  %v2521 = vsel %vm2295, %v2276, 0.0
  %2522 = vadd.xlane.f32.xlu0 %v2521
  %v2523 = vpop.xlane.xlu0 %2522
  %v2524 = vsel %vm2295, %v2281, 0.0
  %2525 = vadd.xlane.f32.xlu0 %v2524
  %v2526 = vpop.xlane.xlu0 %2525
  %v2527 = vsel %vm2295, %v2284, 0.0
  %2528 = vadd.xlane.f32.xlu0 %v2527
  %v2529 = vpop.xlane.xlu0 %2528
  %v2530 = vsel %vm2295, %v2289, 0.0
  %2531 = vadd.xlane.f32.xlu0 %v2530
  %v2532 = vpop.xlane.xlu0 %2531
  %v2533 = vsel %vm2295, %v2292, 0.0
  %2534 = vadd.xlane.f32.xlu0 %v2533
  %v2535 = vpop.xlane.xlu0 %2534
  %v2536 = vadd.f32 %v2464, %v2514
  %v2537 = vadd.f32 %v2465, %v2517
  %v2538 = vadd.f32 %v2466, %v2520
  %v2539 = vadd.f32 %v2467, %v2523
  %v2540 = vadd.f32 %v2468, %v2526
  %v2541 = vadd.f32 %v2469, %v2529
  %v2542 = vadd.f32 %v2470, %v2532
  %v2543 = vadd.f32 %v2471, %v2535
  %v2544 = vmul.f32 %v2265, %v2265
  %v2545 = vmul.f32 %v2268, %v2268
  %v2546 = vmul.f32 %v2273, %v2273
  %v2547 = vmul.f32 %v2276, %v2276
  %v2548 = vmul.f32 %v2281, %v2281
  %v2549 = vmul.f32 %v2284, %v2284
  %v2550 = vmul.f32 %v2289, %v2289
  %v2551 = vmul.f32 %v2292, %v2292
  %v2552 = vsel %vm2295, %v2544, 0.0
  %2553 = vadd.xlane.f32.xlu0 %v2552
  %v2554 = vpop.xlane.xlu0 %2553
  %v2555 = vsel %vm2295, %v2545, 0.0
  %2556 = vadd.xlane.f32.xlu0 %v2555
  %v2557 = vpop.xlane.xlu0 %2556
  %v2558 = vsel %vm2295, %v2546, 0.0
  %2559 = vadd.xlane.f32.xlu0 %v2558
  %v2560 = vpop.xlane.xlu0 %2559
  %v2561 = vsel %vm2295, %v2547, 0.0
  %2562 = vadd.xlane.f32.xlu0 %v2561
  %v2563 = vpop.xlane.xlu0 %2562
  %v2564 = vsel %vm2295, %v2548, 0.0
  %2565 = vadd.xlane.f32.xlu0 %v2564
  %v2566 = vpop.xlane.xlu0 %2565
  %v2567 = vsel %vm2295, %v2549, 0.0
  %2568 = vadd.xlane.f32.xlu0 %v2567
  %v2569 = vpop.xlane.xlu0 %2568
  %v2570 = vsel %vm2295, %v2550, 0.0
  %2571 = vadd.xlane.f32.xlu0 %v2570
  %v2572 = vpop.xlane.xlu0 %2571
  %v2573 = vsel %vm2295, %v2551, 0.0
  %2574 = vadd.xlane.f32.xlu0 %v2573
  %v2575 = vpop.xlane.xlu0 %2574
  %v2576 = vadd.f32 %v2504, %v2554
  %v2577 = vadd.f32 %v2505, %v2557
  %v2578 = vadd.f32 %v2506, %v2560
  %v2579 = vadd.f32 %v2507, %v2563
  %v2580 = vadd.f32 %v2508, %v2566
  %v2581 = vadd.f32 %v2509, %v2569
  %v2582 = vadd.f32 %v2510, %v2572
  %v2583 = vadd.f32 %v2511, %v2575
  %v2584 = vrcp.pop 128.0
  %v2585 = vmul.f32 %v2536, %v2584
  %v2586 = vmul.f32 %v2537, %v2584
  %v2587 = vmul.f32 %v2538, %v2584
  %v2588 = vmul.f32 %v2539, %v2584
  %v2589 = vmul.f32 %v2540, %v2584
  %v2590 = vmul.f32 %v2541, %v2584
  %v2591 = vmul.f32 %v2542, %v2584
  %v2592 = vmul.f32 %v2543, %v2584
  %v2593 = vmul.f32 %v2576, %v2584
  %v2594 = vmul.f32 %v2577, %v2584
  %v2595 = vmul.f32 %v2578, %v2584
  %v2596 = vmul.f32 %v2579, %v2584
  %v2597 = vmul.f32 %v2580, %v2584
  %v2598 = vmul.f32 %v2581, %v2584
  %v2599 = vmul.f32 %v2582, %v2584
  %v2600 = vmul.f32 %v2583, %v2584
  %v2601 = vmul.f32 %v2585, %v2585
  %v2602 = vmul.f32 %v2586, %v2586
  %v2603 = vmul.f32 %v2587, %v2587
  %v2604 = vmul.f32 %v2588, %v2588
  %v2605 = vmul.f32 %v2589, %v2589
  %v2606 = vmul.f32 %v2590, %v2590
  %v2607 = vmul.f32 %v2591, %v2591
  %v2608 = vmul.f32 %v2592, %v2592
  %v2609 = vsub.f32 %v2593, %v2601
  %v2610 = vsub.f32 %v2594, %v2602
  %v2611 = vsub.f32 %v2595, %v2603
  %v2612 = vsub.f32 %v2596, %v2604
  %v2613 = vsub.f32 %v2597, %v2605
  %v2614 = vsub.f32 %v2598, %v2606
  %v2615 = vsub.f32 %v2599, %v2607
  %v2616 = vsub.f32 %v2600, %v2608
  %v2617 = vadd.f32 %v2609, 1e-05
  %v2618 = vadd.f32 %v2610, 1e-05
  %v2619 = vadd.f32 %v2611, 1e-05
  %v2620 = vadd.f32 %v2612, 1e-05
  %v2621 = vadd.f32 %v2613, 1e-05
  %v2622 = vadd.f32 %v2614, 1e-05
  %v2623 = vadd.f32 %v2615, 1e-05
  %v2624 = vadd.f32 %v2616, 1e-05
  %v2625 = vrsqrt.pop %v2617
  %v2626 = vrsqrt.pop %v2618
  %v2627 = vrsqrt.pop %v2619
  %v2628 = vrsqrt.pop %v2620
  %v2629 = vrsqrt.pop %v2621
  %v2630 = vrsqrt.pop %v2622
  %v2631 = vrsqrt.pop %v2623
  %v2632 = vrsqrt.pop %v2624
  %v2633 = vld [vmem:[%s2] sm:$0xff]
  %v2634 = vld [vmem:[%s2 + $0x8] sm:$0xff]
  %v2635 = vld [vmem:[%s2 + $0x10] sm:$0xff]
  %v2636 = vld [vmem:[%s2 + $0x18] sm:$0xff]
  %v2637 = vld [vmem:[%s2 + $0x20] sm:$0xff]
  %v2638 = vld [vmem:[%s2 + $0x28] sm:$0xff]
  %v2639 = vld [vmem:[%s2 + $0x30] sm:$0xff]
  %v2640 = vld [vmem:[%s2 + $0x38] sm:$0xff]
  %v2641 = vmul.f32 %v2633, %v2625
  %v2642 = vmul.f32 %v2634, %v2626
  %v2643 = vmul.f32 %v2635, %v2627
  %v2644 = vmul.f32 %v2636, %v2628
  %v2645 = vmul.f32 %v2637, %v2629
  %v2646 = vmul.f32 %v2638, %v2630
  %v2647 = vmul.f32 %v2639, %v2631
  %v2648 = vmul.f32 %v2640, %v2632
  %v2649 = vld [vmem:[%s3] sm:$0xff]
  %v2650 = vld [vmem:[%s3 + $0x8] sm:$0xff]
  %v2651 = vld [vmem:[%s3 + $0x10] sm:$0xff]
  %v2652 = vld [vmem:[%s3 + $0x18] sm:$0xff]
  %v2653 = vld [vmem:[%s3 + $0x20] sm:$0xff]
  %v2654 = vld [vmem:[%s3 + $0x28] sm:$0xff]
  %v2655 = vld [vmem:[%s3 + $0x30] sm:$0xff]
  %v2656 = vld [vmem:[%s3 + $0x38] sm:$0xff]
  %v2657 = vmul.f32 %v2585, %v2641
  %v2658 = vmul.f32 %v2586, %v2642
  %v2659 = vmul.f32 %v2587, %v2643
  %v2660 = vmul.f32 %v2588, %v2644
  %v2661 = vmul.f32 %v2589, %v2645
  %v2662 = vmul.f32 %v2590, %v2646
  %v2663 = vmul.f32 %v2591, %v2647
  %v2664 = vmul.f32 %v2592, %v2648
  %v2665 = vsub.f32 %v2649, %v2657
  %v2666 = vsub.f32 %v2650, %v2658
  %v2667 = vsub.f32 %v2651, %v2659
  %v2668 = vsub.f32 %v2652, %v2660
  %v2669 = vsub.f32 %v2653, %v2661
  %v2670 = vsub.f32 %v2654, %v2662
  %v2671 = vsub.f32 %v2655, %v2663
  %v2672 = vsub.f32 %v2656, %v2664
  %2674 = vset.pattern.permute.xlu0 0
  %2675 = vperm.xlu0 %2674, %v2641
  %v2676 = vpop.permute.xlu0 %2675
  %2679 = vset.pattern.permute.xlu0 0
  %2680 = vperm.xlu0 %2679, %v2642
  %v2681 = vpop.permute.xlu0 %2680
  %2684 = vset.pattern.permute.xlu0 0
  %2685 = vperm.xlu0 %2684, %v2643
  %v2686 = vpop.permute.xlu0 %2685
  %2689 = vset.pattern.permute.xlu0 0
  %2690 = vperm.xlu0 %2689, %v2644
  %v2691 = vpop.permute.xlu0 %2690
  %2694 = vset.pattern.permute.xlu0 0
  %2695 = vperm.xlu0 %2694, %v2645
  %v2696 = vpop.permute.xlu0 %2695
  %2699 = vset.pattern.permute.xlu0 0
  %2700 = vperm.xlu0 %2699, %v2646
  %v2701 = vpop.permute.xlu0 %2700
  %2704 = vset.pattern.permute.xlu0 0
  %2705 = vperm.xlu0 %2704, %v2647
  %v2706 = vpop.permute.xlu0 %2705
  %2709 = vset.pattern.permute.xlu0 0
  %2710 = vperm.xlu0 %2709, %v2648
  %v2711 = vpop.permute.xlu0 %2710
  %v2713 = vmul.f32 %v2169, %v2676
  %v2714 = vmul.f32 %v2172, %v2681
  %v2715 = vmul.f32 %v2177, %v2686
  %v2716 = vmul.f32 %v2180, %v2691
  %v2717 = vmul.f32 %v2185, %v2696
  %v2718 = vmul.f32 %v2188, %v2701
  %v2719 = vmul.f32 %v2193, %v2706
  %v2720 = vmul.f32 %v2196, %v2711
  %2722 = vset.pattern.permute.xlu0 0
  %2723 = vperm.xlu0 %2722, %v2665
  %v2724 = vpop.permute.xlu0 %2723
  %2727 = vset.pattern.permute.xlu0 0
  %2728 = vperm.xlu0 %2727, %v2666
  %v2729 = vpop.permute.xlu0 %2728
  %2732 = vset.pattern.permute.xlu0 0
  %2733 = vperm.xlu0 %2732, %v2667
  %v2734 = vpop.permute.xlu0 %2733
  %2737 = vset.pattern.permute.xlu0 0
  %2738 = vperm.xlu0 %2737, %v2668
  %v2739 = vpop.permute.xlu0 %2738
  %2742 = vset.pattern.permute.xlu0 0
  %2743 = vperm.xlu0 %2742, %v2669
  %v2744 = vpop.permute.xlu0 %2743
  %2747 = vset.pattern.permute.xlu0 0
  %2748 = vperm.xlu0 %2747, %v2670
  %v2749 = vpop.permute.xlu0 %2748
  %2752 = vset.pattern.permute.xlu0 0
  %2753 = vperm.xlu0 %2752, %v2671
  %v2754 = vpop.permute.xlu0 %2753
  %2757 = vset.pattern.permute.xlu0 0
  %2758 = vperm.xlu0 %2757, %v2672
  %v2759 = vpop.permute.xlu0 %2758
  %v2761 = vadd.f32 %v2713, %v2724
  %v2762 = vadd.f32 %v2714, %v2729
  %v2763 = vadd.f32 %v2715, %v2734
  %v2764 = vadd.f32 %v2716, %v2739
  %v2765 = vadd.f32 %v2717, %v2744
  %v2766 = vadd.f32 %v2718, %v2749
  %v2767 = vadd.f32 %v2719, %v2754
  %v2768 = vadd.f32 %v2720, %v2759
  %v2769 = vmax.f32 %v2761, 0.0
  %v2770 = vmax.f32 %v2762, 0.0
  %v2771 = vmax.f32 %v2763, 0.0
  %v2772 = vmax.f32 %v2764, 0.0
  %v2773 = vmax.f32 %v2765, 0.0
  %v2774 = vmax.f32 %v2766, 0.0
  %v2775 = vmax.f32 %v2767, 0.0
  %v2776 = vmax.f32 %v2768, 0.0
  %v2777 = vpack.c.bf16 %v2770, %v2769
  %v2778 = vpack.c.bf16 %v2772, %v2771
  %v2779 = vpack.c.bf16 %v2774, %v2773
  %v2780 = vpack.c.bf16 %v2776, %v2775
  %v2785 = vunpack.c.l.b16 %v2777
  %v2786 = vunpack.c.h.b16 %v2777
  %v2787 = vunpack.c.l.b16 %v2778
  %v2788 = vunpack.c.h.b16 %v2778
  %v2789 = vunpack.c.l.b16 %v2779
  %v2790 = vunpack.c.h.b16 %v2779
  %v2791 = vunpack.c.l.b16 %v2780
  %v2792 = vunpack.c.h.b16 %v2780
  %v2793 = vpack.c.b16 %v2785, %v2785
  %v2794 = vpack.c.b16 %v2786, %v2786
  %v2795 = vpack.c.b16 %v2787, %v2787
  %v2796 = vpack.c.b16 %v2788, %v2788
  %v2797 = vpack.c.b16 %v2789, %v2789
  %v2798 = vpack.c.b16 %v2790, %v2790
  %v2799 = vpack.c.b16 %v2791, %v2791
  %v2800 = vpack.c.b16 %v2792, %v2792
  %vm2809 = vcmask 257024
  %2810 = vst.msk [vmem:[%s4] sm:$0xf] %vm2809, %v2793
  %2811 = vst.msk [vmem:[%s4 + $0x4] sm:$0xf] %vm2809, %v2794
  %2812 = vst.msk [vmem:[%s4 + $0x8] sm:$0xf] %vm2809, %v2795
  %2813 = vst.msk [vmem:[%s4 + $0xc] sm:$0xf] %vm2809, %v2796
  %2814 = vst.msk [vmem:[%s4 + $0x10] sm:$0xf] %vm2809, %v2797
  %2815 = vst.msk [vmem:[%s4 + $0x14] sm:$0xf] %vm2809, %v2798
  %2816 = vst.msk [vmem:[%s4 + $0x18] sm:$0xf] %vm2809, %v2799
  %2817 = vst.msk [vmem:[%s4 + $0x1c] sm:$0xf] %vm2809, %v2800
  %v2818 = vmul.f32 %v2201, %v2676
  %v2819 = vmul.f32 %v2204, %v2681
  %v2820 = vmul.f32 %v2209, %v2686
  %v2821 = vmul.f32 %v2212, %v2691
  %v2822 = vmul.f32 %v2217, %v2696
  %v2823 = vmul.f32 %v2220, %v2701
  %v2824 = vmul.f32 %v2225, %v2706
  %v2825 = vmul.f32 %v2228, %v2711
  %v2826 = vadd.f32 %v2818, %v2724
  %v2827 = vadd.f32 %v2819, %v2729
  %v2828 = vadd.f32 %v2820, %v2734
  %v2829 = vadd.f32 %v2821, %v2739
  %v2830 = vadd.f32 %v2822, %v2744
  %v2831 = vadd.f32 %v2823, %v2749
  %v2832 = vadd.f32 %v2824, %v2754
  %v2833 = vadd.f32 %v2825, %v2759
  %v2834 = vmax.f32 %v2826, 0.0
  %v2835 = vmax.f32 %v2827, 0.0
  %v2836 = vmax.f32 %v2828, 0.0
  %v2837 = vmax.f32 %v2829, 0.0
  %v2838 = vmax.f32 %v2830, 0.0
  %v2839 = vmax.f32 %v2831, 0.0
  %v2840 = vmax.f32 %v2832, 0.0
  %v2841 = vmax.f32 %v2833, 0.0
  %v2842 = vpack.c.bf16 %v2835, %v2834
  %v2843 = vpack.c.bf16 %v2837, %v2836
  %v2844 = vpack.c.bf16 %v2839, %v2838
  %v2845 = vpack.c.bf16 %v2841, %v2840
  %v2850 = vunpack.c.l.b16 %v2842
  %v2851 = vunpack.c.h.b16 %v2842
  %v2852 = vunpack.c.l.b16 %v2843
  %v2853 = vunpack.c.h.b16 %v2843
  %v2854 = vunpack.c.l.b16 %v2844
  %v2855 = vunpack.c.h.b16 %v2844
  %v2856 = vunpack.c.l.b16 %v2845
  %v2857 = vunpack.c.h.b16 %v2845
  %v2858 = vpack.c.b16 %v2850, %v2850
  %v2859 = vpack.c.b16 %v2851, %v2851
  %v2860 = vpack.c.b16 %v2852, %v2852
  %v2861 = vpack.c.b16 %v2853, %v2853
  %v2862 = vpack.c.b16 %v2854, %v2854
  %v2863 = vpack.c.b16 %v2855, %v2855
  %v2864 = vpack.c.b16 %v2856, %v2856
  %v2865 = vpack.c.b16 %v2857, %v2857
  %2874 = vst.msk [vmem:[%s4 + $0x20] sm:$0xf] %vm2809, %v2858
  %2875 = vst.msk [vmem:[%s4 + $0x24] sm:$0xf] %vm2809, %v2859
  %2876 = vst.msk [vmem:[%s4 + $0x28] sm:$0xf] %vm2809, %v2860
  %2877 = vst.msk [vmem:[%s4 + $0x2c] sm:$0xf] %vm2809, %v2861
  %2878 = vst.msk [vmem:[%s4 + $0x30] sm:$0xf] %vm2809, %v2862
  %2879 = vst.msk [vmem:[%s4 + $0x34] sm:$0xf] %vm2809, %v2863
  %2880 = vst.msk [vmem:[%s4 + $0x38] sm:$0xf] %vm2809, %v2864
  %2881 = vst.msk [vmem:[%s4 + $0x3c] sm:$0xf] %vm2809, %v2865
  %v2882 = vmul.f32 %v2233, %v2676
  %v2883 = vmul.f32 %v2236, %v2681
  %v2884 = vmul.f32 %v2241, %v2686
  %v2885 = vmul.f32 %v2244, %v2691
  %v2886 = vmul.f32 %v2249, %v2696
  %v2887 = vmul.f32 %v2252, %v2701
  %v2888 = vmul.f32 %v2257, %v2706
  %v2889 = vmul.f32 %v2260, %v2711
  %v2890 = vadd.f32 %v2882, %v2724
  %v2891 = vadd.f32 %v2883, %v2729
  %v2892 = vadd.f32 %v2884, %v2734
  %v2893 = vadd.f32 %v2885, %v2739
  %v2894 = vadd.f32 %v2886, %v2744
  %v2895 = vadd.f32 %v2887, %v2749
  %v2896 = vadd.f32 %v2888, %v2754
  %v2897 = vadd.f32 %v2889, %v2759
  %v2898 = vmax.f32 %v2890, 0.0
  %v2899 = vmax.f32 %v2891, 0.0
  %v2900 = vmax.f32 %v2892, 0.0
  %v2901 = vmax.f32 %v2893, 0.0
  %v2902 = vmax.f32 %v2894, 0.0
  %v2903 = vmax.f32 %v2895, 0.0
  %v2904 = vmax.f32 %v2896, 0.0
  %v2905 = vmax.f32 %v2897, 0.0
  %v2906 = vpack.c.bf16 %v2899, %v2898
  %v2907 = vpack.c.bf16 %v2901, %v2900
  %v2908 = vpack.c.bf16 %v2903, %v2902
  %v2909 = vpack.c.bf16 %v2905, %v2904
  %v2914 = vunpack.c.l.b16 %v2906
  %v2915 = vunpack.c.h.b16 %v2906
  %v2916 = vunpack.c.l.b16 %v2907
  %v2917 = vunpack.c.h.b16 %v2907
  %v2918 = vunpack.c.l.b16 %v2908
  %v2919 = vunpack.c.h.b16 %v2908
  %v2920 = vunpack.c.l.b16 %v2909
  %v2921 = vunpack.c.h.b16 %v2909
  %v2922 = vpack.c.b16 %v2914, %v2914
  %v2923 = vpack.c.b16 %v2915, %v2915
  %v2924 = vpack.c.b16 %v2916, %v2916
  %v2925 = vpack.c.b16 %v2917, %v2917
  %v2926 = vpack.c.b16 %v2918, %v2918
  %v2927 = vpack.c.b16 %v2919, %v2919
  %v2928 = vpack.c.b16 %v2920, %v2920
  %v2929 = vpack.c.b16 %v2921, %v2921
  %2938 = vst.msk [vmem:[%s4 + $0x40] sm:$0xf] %vm2809, %v2922
  %2939 = vst.msk [vmem:[%s4 + $0x44] sm:$0xf] %vm2809, %v2923
  %2940 = vst.msk [vmem:[%s4 + $0x48] sm:$0xf] %vm2809, %v2924
  %2941 = vst.msk [vmem:[%s4 + $0x4c] sm:$0xf] %vm2809, %v2925
  %2942 = vst.msk [vmem:[%s4 + $0x50] sm:$0xf] %vm2809, %v2926
  %2943 = vst.msk [vmem:[%s4 + $0x54] sm:$0xf] %vm2809, %v2927
  %2944 = vst.msk [vmem:[%s4 + $0x58] sm:$0xf] %vm2809, %v2928
  %2945 = vst.msk [vmem:[%s4 + $0x5c] sm:$0xf] %vm2809, %v2929
  %v2946 = vmul.f32 %v2265, %v2676
  %v2947 = vmul.f32 %v2268, %v2681
  %v2948 = vmul.f32 %v2273, %v2686
  %v2949 = vmul.f32 %v2276, %v2691
  %v2950 = vmul.f32 %v2281, %v2696
  %v2951 = vmul.f32 %v2284, %v2701
  %v2952 = vmul.f32 %v2289, %v2706
  %v2953 = vmul.f32 %v2292, %v2711
  %v2954 = vadd.f32 %v2946, %v2724
  %v2955 = vadd.f32 %v2947, %v2729
  %v2956 = vadd.f32 %v2948, %v2734
  %v2957 = vadd.f32 %v2949, %v2739
  %v2958 = vadd.f32 %v2950, %v2744
  %v2959 = vadd.f32 %v2951, %v2749
  %v2960 = vadd.f32 %v2952, %v2754
  %v2961 = vadd.f32 %v2953, %v2759
  %v2962 = vmax.f32 %v2954, 0.0
  %v2963 = vmax.f32 %v2955, 0.0
  %v2964 = vmax.f32 %v2956, 0.0
  %v2965 = vmax.f32 %v2957, 0.0
  %v2966 = vmax.f32 %v2958, 0.0
  %v2967 = vmax.f32 %v2959, 0.0
  %v2968 = vmax.f32 %v2960, 0.0
  %v2969 = vmax.f32 %v2961, 0.0
  %v2970 = vpack.c.bf16 %v2963, %v2962
  %v2971 = vpack.c.bf16 %v2965, %v2964
  %v2972 = vpack.c.bf16 %v2967, %v2966
  %v2973 = vpack.c.bf16 %v2969, %v2968
  %v2978 = vunpack.c.l.b16 %v2970
  %v2979 = vunpack.c.h.b16 %v2970
  %v2980 = vunpack.c.l.b16 %v2971
  %v2981 = vunpack.c.h.b16 %v2971
  %v2982 = vunpack.c.l.b16 %v2972
  %v2983 = vunpack.c.h.b16 %v2972
  %v2984 = vunpack.c.l.b16 %v2973
  %v2985 = vunpack.c.h.b16 %v2973
  %v2986 = vpack.c.b16 %v2978, %v2978
  %v2987 = vpack.c.b16 %v2979, %v2979
  %v2988 = vpack.c.b16 %v2980, %v2980
  %v2989 = vpack.c.b16 %v2981, %v2981
  %v2990 = vpack.c.b16 %v2982, %v2982
  %v2991 = vpack.c.b16 %v2983, %v2983
  %v2992 = vpack.c.b16 %v2984, %v2984
  %v2993 = vpack.c.b16 %v2985, %v2985
  %3002 = vst.msk [vmem:[%s4 + $0x60] sm:$0xf] %vm2809, %v2986
  %3003 = vst.msk [vmem:[%s4 + $0x64] sm:$0xf] %vm2809, %v2987
  %3004 = vst.msk [vmem:[%s4 + $0x68] sm:$0xf] %vm2809, %v2988
  %3005 = vst.msk [vmem:[%s4 + $0x6c] sm:$0xf] %vm2809, %v2989
  %3006 = vst.msk [vmem:[%s4 + $0x70] sm:$0xf] %vm2809, %v2990
  %3007 = vst.msk [vmem:[%s4 + $0x74] sm:$0xf] %vm2809, %v2991
  %3008 = vst.msk [vmem:[%s4 + $0x78] sm:$0xf] %vm2809, %v2992
  %3009 = vst.msk [vmem:[%s4 + $0x7c] sm:$0xf] %vm2809, %v2993
  // Predicated region
  $region18: #{generator_forward.6} parent=0 // pred_check
    _
  $region19: #{generator_forward.6} parent=0 // pred_check_branch
    %3011 = sbr.rel (0) target = $region21
  $region20: #{generator_forward.6} parent=0 // pred_region
    _
  $region21: #{generator_forward.6} parent=0 // pred_fallthru
    _
  // Predicated region
  $region22: #{generator_forward.6} parent=0 // pred_check
    _
  $region23: #{generator_forward.6} parent=0 // pred_check_branch
    %3013 = sbr.rel (0) target = $region25
  $region24: #{generator_forward.6} parent=0 // pred_region
    _
  $region25: #{generator_forward.6} parent=0 // pred_fallthru
    _

// kernel: generator_forward.8
$region0: #{generator_forward.8}
  #allocation0 [shape = 'u32[]', space=smem, size = 0x4, offset = 0x4, fixed_abs, tag = 'smem constant byte address 0x4 - core index']
  #allocation1 [shape = 'u32[144,128]{1,0:T(1,128)}', space=vmem, size = 0x12000, scoped, tag = 'internal scratch']
  %s0 = inlined_call_operand.vmem [shape: bf16[288,512], index: 0, kind: input, shape index: {}]
  %s1 = inlined_call_operand.vmem [shape: bf16[64,288], index: 1, kind: input, shape index: {}]
  %s2 = inlined_call_operand.vmem [shape: f32[16,1], index: 2, kind: input, shape index: {}]
  %s3 = inlined_call_operand.vmem [shape: f32[16,1], index: 3, kind: input, shape index: {}]
  %s4 = inlined_call_operand.vmem [shape: bf16[64,512], index: 4, kind: output, shape index: {}]
  %s5 = sld [smem:[#allocation0]]
  $region26: #{generator_forward.8} parent=0
    _
  %s7 = ssub.s32 1, %s5
  %s8 = scalar_select 0, %s7, %s5
  // Predicated region
  $region2: #{generator_forward.8} parent=0 // pred_check
    _
  $region3: #{generator_forward.8} parent=0 // pred_check_branch
    %10 = sbr.rel (0) target = $region5
  $region4: #{generator_forward.8} parent=0 // pred_region
    _
  $region5: #{generator_forward.8} parent=0 // pred_fallthru
    _
  // Predicated region
  $region6: #{generator_forward.8} parent=0 // pred_check
    _
  $region7: #{generator_forward.8} parent=0 // pred_check_branch
    %12 = sbr.rel (0) target = $region9
  $region8: #{generator_forward.8} parent=0 // pred_region
    _
  $region9: #{generator_forward.8} parent=0 // pred_fallthru
    _
  // Predicated region
  $region10: #{generator_forward.8} parent=0 // pred_check
    _
  $region11: #{generator_forward.8} parent=0 // pred_check_branch
    %14 = sbr.rel (0) target = $region13
  $region12: #{generator_forward.8} parent=0 // pred_region
    _
  $region13: #{generator_forward.8} parent=0 // pred_fallthru
    _
  // Predicated region
  $region14: #{generator_forward.8} parent=0 // pred_check
    _
  $region15: #{generator_forward.8} parent=0 // pred_check_branch
    %16 = sbr.rel (0) target = $region17
  $region16: #{generator_forward.8} parent=0 // pred_region
    _
  $region17: #{generator_forward.8} parent=0 // pred_fallthru
    _
  %v18 = vld [vmem:[%s1] sm:$0xff]
  %v19 = vld [vmem:[%s1 + $0x8] sm:$0xf]
  %v20 = vld [vmem:[%s1 + $0xc] sm:$0xff]
  %v21 = vld [vmem:[%s1 + $0x14] sm:$0xf]
  %v22 = vld [vmem:[%s1 + $0x18] sm:$0xff]
  %v23 = vld [vmem:[%s1 + $0x20] sm:$0xf]
  %v24 = vld [vmem:[%s1 + $0x24] sm:$0xff]
  %v25 = vld [vmem:[%s1 + $0x2c] sm:$0xf]
  %v26 = vld [vmem:[%s1 + $0x30] sm:$0xff]
  %v27 = vld [vmem:[%s1 + $0x38] sm:$0xf]
  %v28 = vld [vmem:[%s1 + $0x3c] sm:$0xff]
  %v29 = vld [vmem:[%s1 + $0x44] sm:$0xf]
  %v30 = vld [vmem:[%s1 + $0x48] sm:$0xff]
  %v31 = vld [vmem:[%s1 + $0x50] sm:$0xf]
  %v32 = vld [vmem:[%s1 + $0x54] sm:$0xff]
  %v33 = vld [vmem:[%s1 + $0x5c] sm:$0xf]
  %v34 = vld [vmem:[%s0] sm:$0xff]
  %v35 = vld [vmem:[%s0 + $0x8] sm:$0xff]
  %v36 = vld [vmem:[%s0 + $0x10] sm:$0xff]
  %v37 = vld [vmem:[%s0 + $0x18] sm:$0xff]
  %v38 = vld [vmem:[%s0 + $0x20] sm:$0xff]
  %v39 = vld [vmem:[%s0 + $0x28] sm:$0xff]
  %v40 = vld [vmem:[%s0 + $0x30] sm:$0xff]
  %v41 = vld [vmem:[%s0 + $0x38] sm:$0xff]
  %v42 = vld [vmem:[%s0 + $0x40] sm:$0xff]
  %v43 = vld [vmem:[%s0 + $0x48] sm:$0xff]
  %v44 = vld [vmem:[%s0 + $0x50] sm:$0xff]
  %v45 = vld [vmem:[%s0 + $0x58] sm:$0xff]
  %v46 = vld [vmem:[%s0 + $0x60] sm:$0xff]
  %v47 = vld [vmem:[%s0 + $0x68] sm:$0xff]
  %v48 = vld [vmem:[%s0 + $0x70] sm:$0xff]
  %v49 = vld [vmem:[%s0 + $0x78] sm:$0xff]
  %v50 = vld [vmem:[%s0 + $0x80] sm:$0xff]
  %v51 = vld [vmem:[%s0 + $0x88] sm:$0xff]
  %v52 = vld [vmem:[%s0 + $0x90] sm:$0xff]
  %v53 = vld [vmem:[%s0 + $0x98] sm:$0xff]
  %v54 = vld [vmem:[%s0 + $0xa0] sm:$0xff]
  %v55 = vld [vmem:[%s0 + $0xa8] sm:$0xff]
  %v56 = vld [vmem:[%s0 + $0xb0] sm:$0xff]
  %v57 = vld [vmem:[%s0 + $0xb8] sm:$0xff]
  %v58 = vld [vmem:[%s0 + $0xc0] sm:$0xff]
  %v59 = vld [vmem:[%s0 + $0xc8] sm:$0xff]
  %v60 = vld [vmem:[%s0 + $0xd0] sm:$0xff]
  %v61 = vld [vmem:[%s0 + $0xd8] sm:$0xff]
  %v62 = vld [vmem:[%s0 + $0xe0] sm:$0xff]
  %v63 = vld [vmem:[%s0 + $0xe8] sm:$0xff]
  %v64 = vld [vmem:[%s0 + $0xf0] sm:$0xff]
  %v65 = vld [vmem:[%s0 + $0xf8] sm:$0xff]
  %v66 = vld [vmem:[%s0 + $0x100] sm:$0xff]
  %v67 = vld [vmem:[%s0 + $0x108] sm:$0xff]
  %v68 = vld [vmem:[%s0 + $0x110] sm:$0xff]
  %v69 = vld [vmem:[%s0 + $0x118] sm:$0xff]
  %v70 = vld [vmem:[%s0 + $0x120] sm:$0xff]
  %v71 = vld [vmem:[%s0 + $0x128] sm:$0xff]
  %v72 = vld [vmem:[%s0 + $0x130] sm:$0xff]
  %v73 = vld [vmem:[%s0 + $0x138] sm:$0xff]
  %v74 = vld [vmem:[%s0 + $0x140] sm:$0xff]
  %v75 = vld [vmem:[%s0 + $0x148] sm:$0xff]
  %v76 = vld [vmem:[%s0 + $0x150] sm:$0xff]
  %v77 = vld [vmem:[%s0 + $0x158] sm:$0xff]
  %v78 = vld [vmem:[%s0 + $0x160] sm:$0xff]
  %v79 = vld [vmem:[%s0 + $0x168] sm:$0xff]
  %v80 = vld [vmem:[%s0 + $0x170] sm:$0xff]
  %v81 = vld [vmem:[%s0 + $0x178] sm:$0xff]
  %v82 = vld [vmem:[%s0 + $0x180] sm:$0xff]
  %v83 = vld [vmem:[%s0 + $0x188] sm:$0xff]
  %v84 = vld [vmem:[%s0 + $0x190] sm:$0xff]
  %v85 = vld [vmem:[%s0 + $0x198] sm:$0xff]
  %v86 = vld [vmem:[%s0 + $0x1a0] sm:$0xff]
  %v87 = vld [vmem:[%s0 + $0x1a8] sm:$0xff]
  %v88 = vld [vmem:[%s0 + $0x1b0] sm:$0xff]
  %v89 = vld [vmem:[%s0 + $0x1b8] sm:$0xff]
  %v90 = vld [vmem:[%s0 + $0x1c0] sm:$0xff]
  %v91 = vld [vmem:[%s0 + $0x1c8] sm:$0xff]
  %v92 = vld [vmem:[%s0 + $0x1d0] sm:$0xff]
  %v93 = vld [vmem:[%s0 + $0x1d8] sm:$0xff]
  %v94 = vld [vmem:[%s0 + $0x1e0] sm:$0xff]
  %v95 = vld [vmem:[%s0 + $0x1e8] sm:$0xff]
  %v96 = vld [vmem:[%s0 + $0x1f0] sm:$0xff]
  %v97 = vld [vmem:[%s0 + $0x1f8] sm:$0xff]
  %v98 = vld [vmem:[%s0 + $0x200] sm:$0xff]
  %v99 = vld [vmem:[%s0 + $0x208] sm:$0xff]
  %v100 = vld [vmem:[%s0 + $0x210] sm:$0xff]
  %v101 = vld [vmem:[%s0 + $0x218] sm:$0xff]
  %v102 = vld [vmem:[%s0 + $0x220] sm:$0xff]
  %v103 = vld [vmem:[%s0 + $0x228] sm:$0xff]
  %v104 = vld [vmem:[%s0 + $0x230] sm:$0xff]
  %v105 = vld [vmem:[%s0 + $0x238] sm:$0xff]
  %v122 = vunpack.c.l.b16 %v18
  %v123 = vunpack.c.h.b16 %v18
  %v124 = vunpack.c.l.b16 %v19
  %v125 = vunpack.c.l.b16 %v20
  %v126 = vunpack.c.h.b16 %v20
  %v127 = vunpack.c.l.b16 %v21
  %v128 = vunpack.c.l.b16 %v22
  %v129 = vunpack.c.h.b16 %v22
  %v130 = vunpack.c.l.b16 %v23
  %v131 = vunpack.c.l.b16 %v24
  %v132 = vunpack.c.h.b16 %v24
  %v133 = vunpack.c.l.b16 %v25
  %v134 = vunpack.c.l.b16 %v26
  %v135 = vunpack.c.h.b16 %v26
  %v136 = vunpack.c.l.b16 %v27
  %v137 = vunpack.c.l.b16 %v28
  %v138 = vunpack.c.h.b16 %v28
  %v139 = vunpack.c.l.b16 %v29
  %v140 = vunpack.c.l.b16 %v30
  %v141 = vunpack.c.h.b16 %v30
  %v142 = vunpack.c.l.b16 %v31
  %v143 = vunpack.c.l.b16 %v32
  %v144 = vunpack.c.h.b16 %v32
  %v145 = vunpack.c.l.b16 %v33
  %v146 = vpack.c.b16 %v125, %v122
  %v147 = vpack.c.b16 %v126, %v123
  %v148 = vpack.c.b16 %v127, %v124
  %v149 = vpack.c.b16 %v131, %v128
  %v150 = vpack.c.b16 %v132, %v129
  %v151 = vpack.c.b16 %v133, %v130
  %v152 = vpack.c.b16 %v137, %v134
  %v153 = vpack.c.b16 %v138, %v135
  %v154 = vpack.c.b16 %v139, %v136
  %v155 = vpack.c.b16 %v143, %v140
  %v156 = vpack.c.b16 %v144, %v141
  %v157 = vpack.c.b16 %v145, %v142
  %v238 = vunpack.c.l.b16 %v34
  %v239 = vunpack.c.h.b16 %v34
  %v240 = vunpack.c.l.b16 %v35
  %v241 = vunpack.c.h.b16 %v35
  %v242 = vunpack.c.l.b16 %v36
  %v243 = vunpack.c.h.b16 %v36
  %v244 = vunpack.c.l.b16 %v37
  %v245 = vunpack.c.h.b16 %v37
  %v246 = vunpack.c.l.b16 %v38
  %v247 = vunpack.c.h.b16 %v38
  %v248 = vunpack.c.l.b16 %v39
  %v249 = vunpack.c.h.b16 %v39
  %v250 = vunpack.c.l.b16 %v40
  %v251 = vunpack.c.h.b16 %v40
  %v252 = vunpack.c.l.b16 %v41
  %v253 = vunpack.c.h.b16 %v41
  %v254 = vunpack.c.l.b16 %v42
  %v255 = vunpack.c.h.b16 %v42
  %v256 = vunpack.c.l.b16 %v43
  %v257 = vunpack.c.h.b16 %v43
  %v258 = vunpack.c.l.b16 %v44
  %v259 = vunpack.c.h.b16 %v44
  %v260 = vunpack.c.l.b16 %v45
  %v261 = vunpack.c.h.b16 %v45
  %v262 = vunpack.c.l.b16 %v46
  %v263 = vunpack.c.h.b16 %v46
  %v264 = vunpack.c.l.b16 %v47
  %v265 = vunpack.c.h.b16 %v47
  %v266 = vunpack.c.l.b16 %v48
  %v267 = vunpack.c.h.b16 %v48
  %v268 = vunpack.c.l.b16 %v49
  %v269 = vunpack.c.h.b16 %v49
  %v270 = vunpack.c.l.b16 %v50
  %v271 = vunpack.c.h.b16 %v50
  %v272 = vunpack.c.l.b16 %v51
  %v273 = vunpack.c.h.b16 %v51
  %v274 = vunpack.c.l.b16 %v52
  %v275 = vunpack.c.h.b16 %v52
  %v276 = vunpack.c.l.b16 %v53
  %v277 = vunpack.c.h.b16 %v53
  %v278 = vunpack.c.l.b16 %v54
  %v279 = vunpack.c.h.b16 %v54
  %v280 = vunpack.c.l.b16 %v55
  %v281 = vunpack.c.h.b16 %v55
  %v282 = vunpack.c.l.b16 %v56
  %v283 = vunpack.c.h.b16 %v56
  %v284 = vunpack.c.l.b16 %v57
  %v285 = vunpack.c.h.b16 %v57
  %v286 = vunpack.c.l.b16 %v58
  %v287 = vunpack.c.h.b16 %v58
  %v288 = vunpack.c.l.b16 %v59
  %v289 = vunpack.c.h.b16 %v59
  %v290 = vunpack.c.l.b16 %v60
  %v291 = vunpack.c.h.b16 %v60
  %v292 = vunpack.c.l.b16 %v61
  %v293 = vunpack.c.h.b16 %v61
  %v294 = vunpack.c.l.b16 %v62
  %v295 = vunpack.c.h.b16 %v62
  %v296 = vunpack.c.l.b16 %v63
  %v297 = vunpack.c.h.b16 %v63
  %v298 = vunpack.c.l.b16 %v64
  %v299 = vunpack.c.h.b16 %v64
  %v300 = vunpack.c.l.b16 %v65
  %v301 = vunpack.c.h.b16 %v65
  %v302 = vunpack.c.l.b16 %v66
  %v303 = vunpack.c.h.b16 %v66
  %v304 = vunpack.c.l.b16 %v67
  %v305 = vunpack.c.h.b16 %v67
  %v306 = vunpack.c.l.b16 %v68
  %v307 = vunpack.c.h.b16 %v68
  %v308 = vunpack.c.l.b16 %v69
  %v309 = vunpack.c.h.b16 %v69
  %v310 = vunpack.c.l.b16 %v70
  %v311 = vunpack.c.h.b16 %v70
  %v312 = vunpack.c.l.b16 %v71
  %v313 = vunpack.c.h.b16 %v71
  %v314 = vunpack.c.l.b16 %v72
  %v315 = vunpack.c.h.b16 %v72
  %v316 = vunpack.c.l.b16 %v73
  %v317 = vunpack.c.h.b16 %v73
  %v318 = vunpack.c.l.b16 %v74
  %v319 = vunpack.c.h.b16 %v74
  %v320 = vunpack.c.l.b16 %v75
  %v321 = vunpack.c.h.b16 %v75
  %v322 = vunpack.c.l.b16 %v76
  %v323 = vunpack.c.h.b16 %v76
  %v324 = vunpack.c.l.b16 %v77
  %v325 = vunpack.c.h.b16 %v77
  %v326 = vunpack.c.l.b16 %v78
  %v327 = vunpack.c.h.b16 %v78
  %v328 = vunpack.c.l.b16 %v79
  %v329 = vunpack.c.h.b16 %v79
  %v330 = vunpack.c.l.b16 %v80
  %v331 = vunpack.c.h.b16 %v80
  %v332 = vunpack.c.l.b16 %v81
  %v333 = vunpack.c.h.b16 %v81
  %v334 = vunpack.c.l.b16 %v82
  %v335 = vunpack.c.h.b16 %v82
  %v336 = vunpack.c.l.b16 %v83
  %v337 = vunpack.c.h.b16 %v83
  %v338 = vunpack.c.l.b16 %v84
  %v339 = vunpack.c.h.b16 %v84
  %v340 = vunpack.c.l.b16 %v85
  %v341 = vunpack.c.h.b16 %v85
  %v342 = vunpack.c.l.b16 %v86
  %v343 = vunpack.c.h.b16 %v86
  %v344 = vunpack.c.l.b16 %v87
  %v345 = vunpack.c.h.b16 %v87
  %v346 = vunpack.c.l.b16 %v88
  %v347 = vunpack.c.h.b16 %v88
  %v348 = vunpack.c.l.b16 %v89
  %v349 = vunpack.c.h.b16 %v89
  %v350 = vunpack.c.l.b16 %v90
  %v351 = vunpack.c.h.b16 %v90
  %v352 = vunpack.c.l.b16 %v91
  %v353 = vunpack.c.h.b16 %v91
  %v354 = vunpack.c.l.b16 %v92
  %v355 = vunpack.c.h.b16 %v92
  %v356 = vunpack.c.l.b16 %v93
  %v357 = vunpack.c.h.b16 %v93
  %v358 = vunpack.c.l.b16 %v94
  %v359 = vunpack.c.h.b16 %v94
  %v360 = vunpack.c.l.b16 %v95
  %v361 = vunpack.c.h.b16 %v95
  %v362 = vunpack.c.l.b16 %v96
  %v363 = vunpack.c.h.b16 %v96
  %v364 = vunpack.c.l.b16 %v97
  %v365 = vunpack.c.h.b16 %v97
  %v366 = vunpack.c.l.b16 %v98
  %v367 = vunpack.c.h.b16 %v98
  %v368 = vunpack.c.l.b16 %v99
  %v369 = vunpack.c.h.b16 %v99
  %v370 = vunpack.c.l.b16 %v100
  %v371 = vunpack.c.h.b16 %v100
  %v372 = vunpack.c.l.b16 %v101
  %v373 = vunpack.c.h.b16 %v101
  %v374 = vunpack.c.l.b16 %v102
  %v375 = vunpack.c.h.b16 %v102
  %v376 = vunpack.c.l.b16 %v103
  %v377 = vunpack.c.h.b16 %v103
  %v378 = vunpack.c.l.b16 %v104
  %v379 = vunpack.c.h.b16 %v104
  %v380 = vunpack.c.l.b16 %v105
  %v381 = vunpack.c.h.b16 %v105
  %v382 = vpack.c.b16 %v242, %v238
  %v383 = vpack.c.b16 %v243, %v239
  %v384 = vpack.c.b16 %v244, %v240
  %v385 = vpack.c.b16 %v245, %v241
  %v386 = vpack.c.b16 %v250, %v246
  %v387 = vpack.c.b16 %v251, %v247
  %v388 = vpack.c.b16 %v252, %v248
  %v389 = vpack.c.b16 %v253, %v249
  %v390 = vpack.c.b16 %v258, %v254
  %v391 = vpack.c.b16 %v259, %v255
  %v392 = vpack.c.b16 %v260, %v256
  %v393 = vpack.c.b16 %v261, %v257
  %v394 = vpack.c.b16 %v266, %v262
  %v395 = vpack.c.b16 %v267, %v263
  %v396 = vpack.c.b16 %v268, %v264
  %v397 = vpack.c.b16 %v269, %v265
  %v398 = vpack.c.b16 %v274, %v270
  %v399 = vpack.c.b16 %v275, %v271
  %v400 = vpack.c.b16 %v276, %v272
  %v401 = vpack.c.b16 %v277, %v273
  %v402 = vpack.c.b16 %v282, %v278
  %v403 = vpack.c.b16 %v283, %v279
  %v404 = vpack.c.b16 %v284, %v280
  %v405 = vpack.c.b16 %v285, %v281
  %v406 = vpack.c.b16 %v290, %v286
  %v407 = vpack.c.b16 %v291, %v287
  %v408 = vpack.c.b16 %v292, %v288
  %v409 = vpack.c.b16 %v293, %v289
  %v410 = vpack.c.b16 %v298, %v294
  %v411 = vpack.c.b16 %v299, %v295
  %v412 = vpack.c.b16 %v300, %v296
  %v413 = vpack.c.b16 %v301, %v297
  %v414 = vpack.c.b16 %v306, %v302
  %v415 = vpack.c.b16 %v307, %v303
  %v416 = vpack.c.b16 %v308, %v304
  %v417 = vpack.c.b16 %v309, %v305
  %v418 = vpack.c.b16 %v314, %v310
  %v419 = vpack.c.b16 %v315, %v311
  %v420 = vpack.c.b16 %v316, %v312
  %v421 = vpack.c.b16 %v317, %v313
  %v422 = vpack.c.b16 %v322, %v318
  %v423 = vpack.c.b16 %v323, %v319
  %v424 = vpack.c.b16 %v324, %v320
  %v425 = vpack.c.b16 %v325, %v321
  %v426 = vpack.c.b16 %v330, %v326
  %v427 = vpack.c.b16 %v331, %v327
  %v428 = vpack.c.b16 %v332, %v328
  %v429 = vpack.c.b16 %v333, %v329
  %v430 = vpack.c.b16 %v338, %v334
  %v431 = vpack.c.b16 %v339, %v335
  %v432 = vpack.c.b16 %v340, %v336
  %v433 = vpack.c.b16 %v341, %v337
  %v434 = vpack.c.b16 %v346, %v342
  %v435 = vpack.c.b16 %v347, %v343
  %v436 = vpack.c.b16 %v348, %v344
  %v437 = vpack.c.b16 %v349, %v345
  %v438 = vpack.c.b16 %v354, %v350
  %v439 = vpack.c.b16 %v355, %v351
  %v440 = vpack.c.b16 %v356, %v352
  %v441 = vpack.c.b16 %v357, %v353
  %v442 = vpack.c.b16 %v362, %v358
  %v443 = vpack.c.b16 %v363, %v359
  %v444 = vpack.c.b16 %v364, %v360
  %v445 = vpack.c.b16 %v365, %v361
  %v446 = vpack.c.b16 %v370, %v366
  %v447 = vpack.c.b16 %v371, %v367
  %v448 = vpack.c.b16 %v372, %v368
  %v449 = vpack.c.b16 %v373, %v369
  %v450 = vpack.c.b16 %v378, %v374
  %v451 = vpack.c.b16 %v379, %v375
  %v452 = vpack.c.b16 %v380, %v376
  %v453 = vpack.c.b16 %v381, %v377
  %vm526 = vcmask 261120
  %v528 = vsel %vm526, %v148, 0
  %v531 = vsel %vm526, %v151, 0
  %v534 = vsel %vm526, %v154, 0
  %v537 = vsel %vm526, %v157, 0
  %539 = vmatprep.subr.bf16.mxu0 %v383
  %540 = vmatpush1.bf16.msra.mxu0 %v382
  %541 = vmatprep.subr.bf16.mxu0 %v387
  %542 = vmatpush1.bf16.msra.mxu0 %v386
  %543 = vmatprep.subr.bf16.mxu0 %v391
  %544 = vmatpush1.bf16.msra.mxu0 %v390
  %545 = vmatprep.subr.bf16.mxu0 %v395
  %546 = vmatpush1.bf16.msra.mxu0 %v394
  %547 = vmatprep.subr.bf16.mxu0 %v399
  %548 = vmatpush1.bf16.msra.mxu0 %v398
  %549 = vmatprep.subr.bf16.mxu0 %v403
  %550 = vmatpush1.bf16.msra.mxu0 %v402
  %551 = vmatprep.subr.bf16.mxu0 %v407
  %552 = vmatpush1.bf16.msra.mxu0 %v406
  %553 = vmatprep.subr.bf16.mxu0 %v411
  %554 = vmatpush1.bf16.msra.mxu0 %v410
  %555 = vmatprep.subr.bf16.mxu0 %v415
  %556 = vmatpush1.bf16.msra.mxu0 %v414
  %557 = vmatprep.subr.bf16.mxu0 %v419
  %558 = vmatpush1.bf16.msra.mxu0 %v418
  %559 = vmatprep.subr.bf16.mxu0 %v423
  %560 = vmatpush1.bf16.msra.mxu0 %v422
  %561 = vmatprep.subr.bf16.mxu0 %v427
  %562 = vmatpush1.bf16.msra.mxu0 %v426
  %563 = vmatprep.subr.bf16.mxu0 %v431
  %564 = vmatpush1.bf16.msra.mxu0 %v430
  %565 = vmatprep.subr.bf16.mxu0 %v435
  %566 = vmatpush1.bf16.msra.mxu0 %v434
  %567 = vmatprep.subr.bf16.mxu0 %v439
  %568 = vmatpush1.bf16.msra.mxu0 %v438
  %569 = vmatprep.subr.bf16.mxu0 %v443
  %570 = vmatpush1.bf16.msra.mxu0 %v442
  %571 = vmatprep.mubr.bf16.mxu0 %v147
  %572 = vmatmul.mubr.bf16.gmra.mrb[0].mxu0 %v146
  %v573 = vpop.f32.mrb[0].mxu0
  %v574 = vadd.f32 0.0, %v573
  %v575 = vpop.f32.mrb[0].mxu0
  %v576 = vadd.f32 0.0, %v575
  %v577 = vpop.f32.mrb[0].mxu0
  %v578 = vadd.f32 0.0, %v577
  %v579 = vpop.f32.mrb[0].mxu0
  %v580 = vadd.f32 0.0, %v579
  %581 = vmatprep.mubr.bf16.mxu0 %v150
  %582 = vmatmul.mubr.bf16.gmra.mrb[0].mxu0 %v149
  %v583 = vpop.f32.mrb[0].mxu0
  %v584 = vadd.f32 0.0, %v583
  %v585 = vpop.f32.mrb[0].mxu0
  %v586 = vadd.f32 0.0, %v585
  %v587 = vpop.f32.mrb[0].mxu0
  %v588 = vadd.f32 0.0, %v587
  %v589 = vpop.f32.mrb[0].mxu0
  %v590 = vadd.f32 0.0, %v589
  %591 = vmatprep.mubr.bf16.mxu0 %v153
  %592 = vmatmul.mubr.bf16.gmra.mrb[0].mxu0 %v152
  %v593 = vpop.f32.mrb[0].mxu0
  %v594 = vadd.f32 0.0, %v593
  %v595 = vpop.f32.mrb[0].mxu0
  %v596 = vadd.f32 0.0, %v595
  %v597 = vpop.f32.mrb[0].mxu0
  %v598 = vadd.f32 0.0, %v597
  %v599 = vpop.f32.mrb[0].mxu0
  %v600 = vadd.f32 0.0, %v599
  %601 = vmatprep.mubr.bf16.mxu0 %v156
  %602 = vmatmul.mubr.bf16.gmra.mrb[0].mxu0 %v155
  %v603 = vpop.f32.mrb[0].mxu0
  %v604 = vadd.f32 0.0, %v603
  %v605 = vpop.f32.mrb[0].mxu0
  %v606 = vadd.f32 0.0, %v605
  %v607 = vpop.f32.mrb[0].mxu0
  %v608 = vadd.f32 0.0, %v607
  %v609 = vpop.f32.mrb[0].mxu0
  %v610 = vadd.f32 0.0, %v609
  %611 = vdwg.mxu0
  %612 = vmatprep.subr.bf16.mxu0 %v447
  %613 = vmatpush1.bf16.msra.mxu0 %v446
  %614 = vmatprep.subr.bf16.mxu0 %v451
  %615 = vmatpush1.bf16.msra.mxu0 %v450
  %616 = vmatprep.subr.bf16.mxu0 0
  %617 = vmatpush1.bf16.msra.mxu0 0
  %618 = vmatprep.subr.bf16.mxu0 0
  %619 = vmatpush1.bf16.msra.mxu0 0
  %620 = vmatprep.subr.bf16.mxu0 0
  %621 = vmatpush1.bf16.msra.mxu0 0
  %622 = vmatprep.subr.bf16.mxu0 0
  %623 = vmatpush1.bf16.msra.mxu0 0
  %624 = vmatprep.subr.bf16.mxu0 0
  %625 = vmatpush1.bf16.msra.mxu0 0
  %626 = vmatprep.subr.bf16.mxu0 0
  %627 = vmatpush1.bf16.msra.mxu0 0
  %628 = vmatprep.subr.bf16.mxu0 0
  %629 = vmatpush1.bf16.msra.mxu0 0
  %630 = vmatprep.subr.bf16.mxu0 0
  %631 = vmatpush1.bf16.msra.mxu0 0
  %632 = vmatprep.subr.bf16.mxu0 0
  %633 = vmatpush1.bf16.msra.mxu0 0
  %634 = vmatprep.subr.bf16.mxu0 0
  %635 = vmatpush1.bf16.msra.mxu0 0
  %636 = vmatprep.subr.bf16.mxu0 0
  %637 = vmatpush1.bf16.msra.mxu0 0
  %638 = vmatprep.subr.bf16.mxu0 0
  %639 = vmatpush1.bf16.msra.mxu0 0
  %640 = vmatprep.subr.bf16.mxu0 0
  %641 = vmatpush1.bf16.msra.mxu0 0
  %642 = vmatprep.subr.bf16.mxu0 0
  %643 = vmatpush1.bf16.msra.mxu0 0
  %644 = vmatprep.mubr.bf16.mxu0 0
  %645 = vmatmul.mubr.bf16.gmra.mrb[0].mxu0 %v528
  %v646 = vpop.f32.mrb[0].mxu0
  %v647 = vadd.f32 %v574, %v646
  %v648 = vpop.f32.mrb[0].mxu0
  %v649 = vadd.f32 %v576, %v648
  %v650 = vpop.f32.mrb[0].mxu0
  %v651 = vadd.f32 %v578, %v650
  %v652 = vpop.f32.mrb[0].mxu0
  %v653 = vadd.f32 %v580, %v652
  %654 = vmatprep.mubr.bf16.mxu0 0
  %655 = vmatmul.mubr.bf16.gmra.mrb[0].mxu0 %v531
  %v656 = vpop.f32.mrb[0].mxu0
  %v657 = vadd.f32 %v584, %v656
  %v658 = vpop.f32.mrb[0].mxu0
  %v659 = vadd.f32 %v586, %v658
  %v660 = vpop.f32.mrb[0].mxu0
  %v661 = vadd.f32 %v588, %v660
  %v662 = vpop.f32.mrb[0].mxu0
  %v663 = vadd.f32 %v590, %v662
  %664 = vmatprep.mubr.bf16.mxu0 0
  %665 = vmatmul.mubr.bf16.gmra.mrb[0].mxu0 %v534
  %v666 = vpop.f32.mrb[0].mxu0
  %v667 = vadd.f32 %v594, %v666
  %v668 = vpop.f32.mrb[0].mxu0
  %v669 = vadd.f32 %v596, %v668
  %v670 = vpop.f32.mrb[0].mxu0
  %v671 = vadd.f32 %v598, %v670
  %v672 = vpop.f32.mrb[0].mxu0
  %v673 = vadd.f32 %v600, %v672
  %674 = vmatprep.mubr.bf16.mxu0 0
  %675 = vmatmul.mubr.bf16.gmra.mrb[0].mxu0 %v537
  %v676 = vpop.f32.mrb[0].mxu0
  %v677 = vadd.f32 %v604, %v676
  %v678 = vpop.f32.mrb[0].mxu0
  %v679 = vadd.f32 %v606, %v678
  %v680 = vpop.f32.mrb[0].mxu0
  %v681 = vadd.f32 %v608, %v680
  %v682 = vpop.f32.mrb[0].mxu0
  %v683 = vadd.f32 %v610, %v682
  %684 = vdwg.mxu0
  %685 = vmatprep.subr.bf16.mxu0 %v385
  %686 = vmatpush1.bf16.msra.mxu0 %v384
  %687 = vmatprep.subr.bf16.mxu0 %v389
  %688 = vmatpush1.bf16.msra.mxu0 %v388
  %689 = vmatprep.subr.bf16.mxu0 %v393
  %690 = vmatpush1.bf16.msra.mxu0 %v392
  %691 = vmatprep.subr.bf16.mxu0 %v397
  %692 = vmatpush1.bf16.msra.mxu0 %v396
  %693 = vmatprep.subr.bf16.mxu0 %v401
  %694 = vmatpush1.bf16.msra.mxu0 %v400
  %695 = vmatprep.subr.bf16.mxu0 %v405
  %696 = vmatpush1.bf16.msra.mxu0 %v404
  %697 = vmatprep.subr.bf16.mxu0 %v409
  %698 = vmatpush1.bf16.msra.mxu0 %v408
  %699 = vmatprep.subr.bf16.mxu0 %v413
  %700 = vmatpush1.bf16.msra.mxu0 %v412
  %701 = vmatprep.subr.bf16.mxu0 %v417
  %702 = vmatpush1.bf16.msra.mxu0 %v416
  %703 = vmatprep.subr.bf16.mxu0 %v421
  %704 = vmatpush1.bf16.msra.mxu0 %v420
  %705 = vmatprep.subr.bf16.mxu0 %v425
  %706 = vmatpush1.bf16.msra.mxu0 %v424
  %707 = vmatprep.subr.bf16.mxu0 %v429
  %708 = vmatpush1.bf16.msra.mxu0 %v428
  %709 = vmatprep.subr.bf16.mxu0 %v433
  %710 = vmatpush1.bf16.msra.mxu0 %v432
  %711 = vmatprep.subr.bf16.mxu0 %v437
  %712 = vmatpush1.bf16.msra.mxu0 %v436
  %713 = vmatprep.subr.bf16.mxu0 %v441
  %714 = vmatpush1.bf16.msra.mxu0 %v440
  %715 = vmatprep.subr.bf16.mxu0 %v445
  %716 = vmatpush1.bf16.msra.mxu0 %v444
  %717 = vmatprep.mubr.bf16.mxu0 %v147
  %718 = vmatmul.mubr.bf16.gmra.mrb[0].mxu0 %v146
  %v719 = vpop.f32.mrb[0].mxu0
  %v720 = vadd.f32 0.0, %v719
  %v721 = vpop.f32.mrb[0].mxu0
  %v722 = vadd.f32 0.0, %v721
  %v723 = vpop.f32.mrb[0].mxu0
  %v724 = vadd.f32 0.0, %v723
  %v725 = vpop.f32.mrb[0].mxu0
  %v726 = vadd.f32 0.0, %v725
  %727 = vmatprep.mubr.bf16.mxu0 %v150
  %728 = vmatmul.mubr.bf16.gmra.mrb[0].mxu0 %v149
  %v729 = vpop.f32.mrb[0].mxu0
  %v730 = vadd.f32 0.0, %v729
  %v731 = vpop.f32.mrb[0].mxu0
  %v732 = vadd.f32 0.0, %v731
  %v733 = vpop.f32.mrb[0].mxu0
  %v734 = vadd.f32 0.0, %v733
  %v735 = vpop.f32.mrb[0].mxu0
  %v736 = vadd.f32 0.0, %v735
  %737 = vmatprep.mubr.bf16.mxu0 %v153
  %738 = vmatmul.mubr.bf16.gmra.mrb[0].mxu0 %v152
  %v739 = vpop.f32.mrb[0].mxu0
  %v740 = vadd.f32 0.0, %v739
  %v741 = vpop.f32.mrb[0].mxu0
  %v742 = vadd.f32 0.0, %v741
  %v743 = vpop.f32.mrb[0].mxu0
  %v744 = vadd.f32 0.0, %v743
  %v745 = vpop.f32.mrb[0].mxu0
  %v746 = vadd.f32 0.0, %v745
  %747 = vmatprep.mubr.bf16.mxu0 %v156
  %748 = vmatmul.mubr.bf16.gmra.mrb[0].mxu0 %v155
  %v749 = vpop.f32.mrb[0].mxu0
  %v750 = vadd.f32 0.0, %v749
  %v751 = vpop.f32.mrb[0].mxu0
  %v752 = vadd.f32 0.0, %v751
  %v753 = vpop.f32.mrb[0].mxu0
  %v754 = vadd.f32 0.0, %v753
  %v755 = vpop.f32.mrb[0].mxu0
  %v756 = vadd.f32 0.0, %v755
  %757 = vdwg.mxu0
  %758 = vmatprep.subr.bf16.mxu0 %v449
  %759 = vmatpush1.bf16.msra.mxu0 %v448
  %760 = vmatprep.subr.bf16.mxu0 %v453
  %761 = vmatpush1.bf16.msra.mxu0 %v452
  %762 = vmatprep.subr.bf16.mxu0 0
  %763 = vmatpush1.bf16.msra.mxu0 0
  %764 = vmatprep.subr.bf16.mxu0 0
  %765 = vmatpush1.bf16.msra.mxu0 0
  %766 = vmatprep.subr.bf16.mxu0 0
  %767 = vmatpush1.bf16.msra.mxu0 0
  %768 = vmatprep.subr.bf16.mxu0 0
  %769 = vmatpush1.bf16.msra.mxu0 0
  %770 = vmatprep.subr.bf16.mxu0 0
  %771 = vmatpush1.bf16.msra.mxu0 0
  %772 = vmatprep.subr.bf16.mxu0 0
  %773 = vmatpush1.bf16.msra.mxu0 0
  %774 = vmatprep.subr.bf16.mxu0 0
  %775 = vmatpush1.bf16.msra.mxu0 0
  %776 = vmatprep.subr.bf16.mxu0 0
  %777 = vmatpush1.bf16.msra.mxu0 0
  %778 = vmatprep.subr.bf16.mxu0 0
  %779 = vmatpush1.bf16.msra.mxu0 0
  %780 = vmatprep.subr.bf16.mxu0 0
  %781 = vmatpush1.bf16.msra.mxu0 0
  %782 = vmatprep.subr.bf16.mxu0 0
  %783 = vmatpush1.bf16.msra.mxu0 0
  %784 = vmatprep.subr.bf16.mxu0 0
  %785 = vmatpush1.bf16.msra.mxu0 0
  %786 = vmatprep.subr.bf16.mxu0 0
  %787 = vmatpush1.bf16.msra.mxu0 0
  %788 = vmatprep.subr.bf16.mxu0 0
  %789 = vmatpush1.bf16.msra.mxu0 0
  %790 = vmatprep.mubr.bf16.mxu0 0
  %791 = vmatmul.mubr.bf16.gmra.mrb[0].mxu0 %v528
  %v792 = vpop.f32.mrb[0].mxu0
  %v793 = vadd.f32 %v720, %v792
  %v794 = vpop.f32.mrb[0].mxu0
  %v795 = vadd.f32 %v722, %v794
  %v796 = vpop.f32.mrb[0].mxu0
  %v797 = vadd.f32 %v724, %v796
  %v798 = vpop.f32.mrb[0].mxu0
  %v799 = vadd.f32 %v726, %v798
  %800 = vmatprep.mubr.bf16.mxu0 0
  %801 = vmatmul.mubr.bf16.gmra.mrb[0].mxu0 %v531
  %v802 = vpop.f32.mrb[0].mxu0
  %v803 = vadd.f32 %v730, %v802
  %v804 = vpop.f32.mrb[0].mxu0
  %v805 = vadd.f32 %v732, %v804
  %v806 = vpop.f32.mrb[0].mxu0
  %v807 = vadd.f32 %v734, %v806
  %v808 = vpop.f32.mrb[0].mxu0
  %v809 = vadd.f32 %v736, %v808
  %810 = vmatprep.mubr.bf16.mxu0 0
  %811 = vmatmul.mubr.bf16.gmra.mrb[0].mxu0 %v534
  %v812 = vpop.f32.mrb[0].mxu0
  %v813 = vadd.f32 %v740, %v812
  %v814 = vpop.f32.mrb[0].mxu0
  %v815 = vadd.f32 %v742, %v814
  %v816 = vpop.f32.mrb[0].mxu0
  %v817 = vadd.f32 %v744, %v816
  %v818 = vpop.f32.mrb[0].mxu0
  %v819 = vadd.f32 %v746, %v818
  %820 = vmatprep.mubr.bf16.mxu0 0
  %821 = vmatmul.mubr.bf16.gmra.mrb[0].mxu0 %v537
  %v822 = vpop.f32.mrb[0].mxu0
  %v823 = vadd.f32 %v750, %v822
  %v824 = vpop.f32.mrb[0].mxu0
  %v825 = vadd.f32 %v752, %v824
  %v826 = vpop.f32.mrb[0].mxu0
  %v827 = vadd.f32 %v754, %v826
  %v828 = vpop.f32.mrb[0].mxu0
  %v829 = vadd.f32 %v756, %v828
  %830 = vdwg.mxu0
  %v831 = vadd.f32 %v647, %v649
  %v832 = vadd.f32 %v831, %v793
  %v833 = vadd.f32 %v832, %v795
  %834 = vadd.xlane.f32.xlu0 %v833
  %v835 = vpop.xlane.xlu0 %834
  %v836 = vadd.f32 %v651, %v653
  %v837 = vadd.f32 %v836, %v797
  %v838 = vadd.f32 %v837, %v799
  %839 = vadd.xlane.f32.xlu0 %v838
  %v840 = vpop.xlane.xlu0 %839
  %v841 = vadd.f32 %v835, 0.0
  %v842 = vadd.f32 %v840, 0.0
  %v843 = vmul.f32 %v647, %v647
  %v844 = vmul.f32 %v649, %v649
  %v845 = vmul.f32 %v793, %v793
  %v846 = vmul.f32 %v795, %v795
  %v847 = vmul.f32 %v651, %v651
  %v848 = vmul.f32 %v653, %v653
  %v849 = vmul.f32 %v797, %v797
  %v850 = vmul.f32 %v799, %v799
  %v851 = vadd.f32 %v843, %v844
  %v852 = vadd.f32 %v851, %v845
  %v853 = vadd.f32 %v852, %v846
  %854 = vadd.xlane.f32.xlu0 %v853
  %v855 = vpop.xlane.xlu0 %854
  %v856 = vadd.f32 %v847, %v848
  %v857 = vadd.f32 %v856, %v849
  %v858 = vadd.f32 %v857, %v850
  %859 = vadd.xlane.f32.xlu0 %v858
  %v860 = vpop.xlane.xlu0 %859
  %v861 = vadd.f32 %v855, 0.0
  %v862 = vadd.f32 %v860, 0.0
  %v863 = vadd.f32 %v657, %v659
  %v864 = vadd.f32 %v863, %v803
  %v865 = vadd.f32 %v864, %v805
  %866 = vadd.xlane.f32.xlu0 %v865
  %v867 = vpop.xlane.xlu0 %866
  %v868 = vadd.f32 %v661, %v663
  %v869 = vadd.f32 %v868, %v807
  %v870 = vadd.f32 %v869, %v809
  %871 = vadd.xlane.f32.xlu0 %v870
  %v872 = vpop.xlane.xlu0 %871
  %v873 = vadd.f32 %v841, %v867
  %v874 = vadd.f32 %v842, %v872
  %v875 = vmul.f32 %v657, %v657
  %v876 = vmul.f32 %v659, %v659
  %v877 = vmul.f32 %v803, %v803
  %v878 = vmul.f32 %v805, %v805
  %v879 = vmul.f32 %v661, %v661
  %v880 = vmul.f32 %v663, %v663
  %v881 = vmul.f32 %v807, %v807
  %v882 = vmul.f32 %v809, %v809
  %v883 = vadd.f32 %v875, %v876
  %v884 = vadd.f32 %v883, %v877
  %v885 = vadd.f32 %v884, %v878
  %886 = vadd.xlane.f32.xlu0 %v885
  %v887 = vpop.xlane.xlu0 %886
  %v888 = vadd.f32 %v879, %v880
  %v889 = vadd.f32 %v888, %v881
  %v890 = vadd.f32 %v889, %v882
  %891 = vadd.xlane.f32.xlu0 %v890
  %v892 = vpop.xlane.xlu0 %891
  %v893 = vadd.f32 %v861, %v887
  %v894 = vadd.f32 %v862, %v892
  %v895 = vadd.f32 %v667, %v669
  %v896 = vadd.f32 %v895, %v813
  %v897 = vadd.f32 %v896, %v815
  %898 = vadd.xlane.f32.xlu0 %v897
  %v899 = vpop.xlane.xlu0 %898
  %v900 = vadd.f32 %v671, %v673
  %v901 = vadd.f32 %v900, %v817
  %v902 = vadd.f32 %v901, %v819
  %903 = vadd.xlane.f32.xlu0 %v902
  %v904 = vpop.xlane.xlu0 %903
  %v905 = vadd.f32 %v873, %v899
  %v906 = vadd.f32 %v874, %v904
  %v907 = vmul.f32 %v667, %v667
  %v908 = vmul.f32 %v669, %v669
  %v909 = vmul.f32 %v813, %v813
  %v910 = vmul.f32 %v815, %v815
  %v911 = vmul.f32 %v671, %v671
  %v912 = vmul.f32 %v673, %v673
  %v913 = vmul.f32 %v817, %v817
  %v914 = vmul.f32 %v819, %v819
  %v915 = vadd.f32 %v907, %v908
  %v916 = vadd.f32 %v915, %v909
  %v917 = vadd.f32 %v916, %v910
  %918 = vadd.xlane.f32.xlu0 %v917
  %v919 = vpop.xlane.xlu0 %918
  %v920 = vadd.f32 %v911, %v912
  %v921 = vadd.f32 %v920, %v913
  %v922 = vadd.f32 %v921, %v914
  %923 = vadd.xlane.f32.xlu0 %v922
  %v924 = vpop.xlane.xlu0 %923
  %v925 = vadd.f32 %v893, %v919
  %v926 = vadd.f32 %v894, %v924
  %v927 = vadd.f32 %v677, %v679
  %v928 = vadd.f32 %v927, %v823
  %v929 = vadd.f32 %v928, %v825
  %930 = vadd.xlane.f32.xlu0 %v929
  %v931 = vpop.xlane.xlu0 %930
  %v932 = vadd.f32 %v681, %v683
  %v933 = vadd.f32 %v932, %v827
  %v934 = vadd.f32 %v933, %v829
  %935 = vadd.xlane.f32.xlu0 %v934
  %v936 = vpop.xlane.xlu0 %935
  %v937 = vadd.f32 %v905, %v931
  %v938 = vadd.f32 %v906, %v936
  %v939 = vmul.f32 %v677, %v677
  %v940 = vmul.f32 %v679, %v679
  %v941 = vmul.f32 %v823, %v823
  %v942 = vmul.f32 %v825, %v825
  %v943 = vmul.f32 %v681, %v681
  %v944 = vmul.f32 %v683, %v683
  %v945 = vmul.f32 %v827, %v827
  %v946 = vmul.f32 %v829, %v829
  %v947 = vadd.f32 %v939, %v940
  %v948 = vadd.f32 %v947, %v941
  %v949 = vadd.f32 %v948, %v942
  %950 = vadd.xlane.f32.xlu0 %v949
  %v951 = vpop.xlane.xlu0 %950
  %v952 = vadd.f32 %v943, %v944
  %v953 = vadd.f32 %v952, %v945
  %v954 = vadd.f32 %v953, %v946
  %955 = vadd.xlane.f32.xlu0 %v954
  %v956 = vpop.xlane.xlu0 %955
  %v957 = vadd.f32 %v925, %v951
  %v958 = vadd.f32 %v926, %v956
  %v959 = vrcp.pop 2048.0
  %v960 = vmul.f32 %v937, %v959
  %v961 = vmul.f32 %v938, %v959
  %v962 = vmul.f32 %v957, %v959
  %v963 = vmul.f32 %v958, %v959
  %v964 = vmul.f32 %v960, %v960
  %v965 = vmul.f32 %v961, %v961
  %v966 = vsub.f32 %v962, %v964
  %v967 = vsub.f32 %v963, %v965
  %v968 = vadd.f32 %v966, 1e-05
  %v969 = vadd.f32 %v967, 1e-05
  %v970 = vrsqrt.pop %v968
  %v971 = vrsqrt.pop %v969
  %v972 = vld [vmem:[%s2] sm:$0xff]
  %v973 = vld [vmem:[%s2 + $0x8] sm:$0xff]
  %v974 = vmul.f32 %v972, %v970
  %v975 = vmul.f32 %v973, %v971
  %v976 = vld [vmem:[%s3] sm:$0xff]
  %v977 = vld [vmem:[%s3 + $0x8] sm:$0xff]
  %v978 = vmul.f32 %v960, %v974
  %v979 = vmul.f32 %v961, %v975
  %v980 = vsub.f32 %v976, %v978
  %v981 = vsub.f32 %v977, %v979
  %983 = vset.pattern.permute.xlu0 0
  %984 = vperm.xlu0 %983, %v974
  %v985 = vpop.permute.xlu0 %984
  %988 = vset.pattern.permute.xlu0 0
  %989 = vperm.xlu0 %988, %v975
  %v990 = vpop.permute.xlu0 %989
  %v992 = vmul.f32 %v647, %v985
  %v993 = vmul.f32 %v649, %v985
  %v994 = vmul.f32 %v793, %v985
  %v995 = vmul.f32 %v795, %v985
  %v996 = vmul.f32 %v651, %v990
  %v997 = vmul.f32 %v653, %v990
  %v998 = vmul.f32 %v797, %v990
  %v999 = vmul.f32 %v799, %v990
  %1001 = vset.pattern.permute.xlu0 0
  %1002 = vperm.xlu0 %1001, %v980
  %v1003 = vpop.permute.xlu0 %1002
  %1006 = vset.pattern.permute.xlu0 0
  %1007 = vperm.xlu0 %1006, %v981
  %v1008 = vpop.permute.xlu0 %1007
  %v1010 = vadd.f32 %v992, %v1003
  %v1011 = vadd.f32 %v993, %v1003
  %v1012 = vadd.f32 %v994, %v1003
  %v1013 = vadd.f32 %v995, %v1003
  %v1014 = vadd.f32 %v996, %v1008
  %v1015 = vadd.f32 %v997, %v1008
  %v1016 = vadd.f32 %v998, %v1008
  %v1017 = vadd.f32 %v999, %v1008
  %v1018 = vmax.f32 %v1010, 0.0
  %v1019 = vmax.f32 %v1011, 0.0
  %v1020 = vmax.f32 %v1012, 0.0
  %v1021 = vmax.f32 %v1013, 0.0
  %v1022 = vmax.f32 %v1014, 0.0
  %v1023 = vmax.f32 %v1015, 0.0
  %v1024 = vmax.f32 %v1016, 0.0
  %v1025 = vmax.f32 %v1017, 0.0
  %v1026 = vpack.c.bf16 %v1022, %v1018
  %v1027 = vpack.c.bf16 %v1023, %v1019
  %v1028 = vpack.c.bf16 %v1024, %v1020
  %v1029 = vpack.c.bf16 %v1025, %v1021
  %v1034 = vunpack.c.l.b16 %v1026
  %v1035 = vunpack.c.l.b16 %v1027
  %v1036 = vunpack.c.l.b16 %v1028
  %v1037 = vunpack.c.l.b16 %v1029
  %v1038 = vunpack.c.h.b16 %v1026
  %v1039 = vunpack.c.h.b16 %v1027
  %v1040 = vunpack.c.h.b16 %v1028
  %v1041 = vunpack.c.h.b16 %v1029
  %v1042 = vpack.c.b16 %v1035, %v1034
  %v1043 = vpack.c.b16 %v1037, %v1036
  %v1044 = vpack.c.b16 %v1039, %v1038
  %v1045 = vpack.c.b16 %v1041, %v1040
  %1050 = vst [vmem:[%s4] sm:$0xff] %v1042
  %1051 = vst [vmem:[%s4 + $0x8] sm:$0xff] %v1043
  %1052 = vst [vmem:[%s4 + $0x10] sm:$0xff] %v1044
  %1053 = vst [vmem:[%s4 + $0x18] sm:$0xff] %v1045
  %v1054 = vmul.f32 %v657, %v985
  %v1055 = vmul.f32 %v659, %v985
  %v1056 = vmul.f32 %v803, %v985
  %v1057 = vmul.f32 %v805, %v985
  %v1058 = vmul.f32 %v661, %v990
  %v1059 = vmul.f32 %v663, %v990
  %v1060 = vmul.f32 %v807, %v990
  %v1061 = vmul.f32 %v809, %v990
  %v1062 = vadd.f32 %v1054, %v1003
  %v1063 = vadd.f32 %v1055, %v1003
  %v1064 = vadd.f32 %v1056, %v1003
  %v1065 = vadd.f32 %v1057, %v1003
  %v1066 = vadd.f32 %v1058, %v1008
  %v1067 = vadd.f32 %v1059, %v1008
  %v1068 = vadd.f32 %v1060, %v1008
  %v1069 = vadd.f32 %v1061, %v1008
  %v1070 = vmax.f32 %v1062, 0.0
  %v1071 = vmax.f32 %v1063, 0.0
  %v1072 = vmax.f32 %v1064, 0.0
  %v1073 = vmax.f32 %v1065, 0.0
  %v1074 = vmax.f32 %v1066, 0.0
  %v1075 = vmax.f32 %v1067, 0.0
  %v1076 = vmax.f32 %v1068, 0.0
  %v1077 = vmax.f32 %v1069, 0.0
  %v1078 = vpack.c.bf16 %v1074, %v1070
  %v1079 = vpack.c.bf16 %v1075, %v1071
  %v1080 = vpack.c.bf16 %v1076, %v1072
  %v1081 = vpack.c.bf16 %v1077, %v1073
  %v1086 = vunpack.c.l.b16 %v1078
  %v1087 = vunpack.c.l.b16 %v1079
  %v1088 = vunpack.c.l.b16 %v1080
  %v1089 = vunpack.c.l.b16 %v1081
  %v1090 = vunpack.c.h.b16 %v1078
  %v1091 = vunpack.c.h.b16 %v1079
  %v1092 = vunpack.c.h.b16 %v1080
  %v1093 = vunpack.c.h.b16 %v1081
  %v1094 = vpack.c.b16 %v1087, %v1086
  %v1095 = vpack.c.b16 %v1089, %v1088
  %v1096 = vpack.c.b16 %v1091, %v1090
  %v1097 = vpack.c.b16 %v1093, %v1092
  %1102 = vst [vmem:[%s4 + $0x20] sm:$0xff] %v1094
  %1103 = vst [vmem:[%s4 + $0x28] sm:$0xff] %v1095
  %1104 = vst [vmem:[%s4 + $0x30] sm:$0xff] %v1096
  %1105 = vst [vmem:[%s4 + $0x38] sm:$0xff] %v1097
  %v1106 = vmul.f32 %v667, %v985
  %v1107 = vmul.f32 %v669, %v985
  %v1108 = vmul.f32 %v813, %v985
  %v1109 = vmul.f32 %v815, %v985
  %v1110 = vmul.f32 %v671, %v990
  %v1111 = vmul.f32 %v673, %v990
  %v1112 = vmul.f32 %v817, %v990
  %v1113 = vmul.f32 %v819, %v990
  %v1114 = vadd.f32 %v1106, %v1003
  %v1115 = vadd.f32 %v1107, %v1003
  %v1116 = vadd.f32 %v1108, %v1003
  %v1117 = vadd.f32 %v1109, %v1003
  %v1118 = vadd.f32 %v1110, %v1008
  %v1119 = vadd.f32 %v1111, %v1008
  %v1120 = vadd.f32 %v1112, %v1008
  %v1121 = vadd.f32 %v1113, %v1008
  %v1122 = vmax.f32 %v1114, 0.0
  %v1123 = vmax.f32 %v1115, 0.0
  %v1124 = vmax.f32 %v1116, 0.0
  %v1125 = vmax.f32 %v1117, 0.0
  %v1126 = vmax.f32 %v1118, 0.0
  %v1127 = vmax.f32 %v1119, 0.0
  %v1128 = vmax.f32 %v1120, 0.0
  %v1129 = vmax.f32 %v1121, 0.0
  %v1130 = vpack.c.bf16 %v1126, %v1122
  %v1131 = vpack.c.bf16 %v1127, %v1123
  %v1132 = vpack.c.bf16 %v1128, %v1124
  %v1133 = vpack.c.bf16 %v1129, %v1125
  %v1138 = vunpack.c.l.b16 %v1130
  %v1139 = vunpack.c.l.b16 %v1131
  %v1140 = vunpack.c.l.b16 %v1132
  %v1141 = vunpack.c.l.b16 %v1133
  %v1142 = vunpack.c.h.b16 %v1130
  %v1143 = vunpack.c.h.b16 %v1131
  %v1144 = vunpack.c.h.b16 %v1132
  %v1145 = vunpack.c.h.b16 %v1133
  %v1146 = vpack.c.b16 %v1139, %v1138
  %v1147 = vpack.c.b16 %v1141, %v1140
  %v1148 = vpack.c.b16 %v1143, %v1142
  %v1149 = vpack.c.b16 %v1145, %v1144
  %1154 = vst [vmem:[%s4 + $0x40] sm:$0xff] %v1146
  %1155 = vst [vmem:[%s4 + $0x48] sm:$0xff] %v1147
  %1156 = vst [vmem:[%s4 + $0x50] sm:$0xff] %v1148
  %1157 = vst [vmem:[%s4 + $0x58] sm:$0xff] %v1149
  %v1158 = vmul.f32 %v677, %v985
  %v1159 = vmul.f32 %v679, %v985
  %v1160 = vmul.f32 %v823, %v985
  %v1161 = vmul.f32 %v825, %v985
  %v1162 = vmul.f32 %v681, %v990
  %v1163 = vmul.f32 %v683, %v990
  %v1164 = vmul.f32 %v827, %v990
  %v1165 = vmul.f32 %v829, %v990
  %v1166 = vadd.f32 %v1158, %v1003
  %v1167 = vadd.f32 %v1159, %v1003
  %v1168 = vadd.f32 %v1160, %v1003
  %v1169 = vadd.f32 %v1161, %v1003
  %v1170 = vadd.f32 %v1162, %v1008
  %v1171 = vadd.f32 %v1163, %v1008
  %v1172 = vadd.f32 %v1164, %v1008
  %v1173 = vadd.f32 %v1165, %v1008
  %v1174 = vmax.f32 %v1166, 0.0
  %v1175 = vmax.f32 %v1167, 0.0
  %v1176 = vmax.f32 %v1168, 0.0
  %v1177 = vmax.f32 %v1169, 0.0
  %v1178 = vmax.f32 %v1170, 0.0
  %v1179 = vmax.f32 %v1171, 0.0
  %v1180 = vmax.f32 %v1172, 0.0
  %v1181 = vmax.f32 %v1173, 0.0
  %v1182 = vpack.c.bf16 %v1178, %v1174
  %v1183 = vpack.c.bf16 %v1179, %v1175
  %v1184 = vpack.c.bf16 %v1180, %v1176
  %v1185 = vpack.c.bf16 %v1181, %v1177
  %v1190 = vunpack.c.l.b16 %v1182
  %v1191 = vunpack.c.l.b16 %v1183
  %v1192 = vunpack.c.l.b16 %v1184
  %v1193 = vunpack.c.l.b16 %v1185
  %v1194 = vunpack.c.h.b16 %v1182
  %v1195 = vunpack.c.h.b16 %v1183
  %v1196 = vunpack.c.h.b16 %v1184
  %v1197 = vunpack.c.h.b16 %v1185
  %v1198 = vpack.c.b16 %v1191, %v1190
  %v1199 = vpack.c.b16 %v1193, %v1192
  %v1200 = vpack.c.b16 %v1195, %v1194
  %v1201 = vpack.c.b16 %v1197, %v1196
  %1206 = vst [vmem:[%s4 + $0x60] sm:$0xff] %v1198
  %1207 = vst [vmem:[%s4 + $0x68] sm:$0xff] %v1199
  %1208 = vst [vmem:[%s4 + $0x70] sm:$0xff] %v1200
  %1209 = vst [vmem:[%s4 + $0x78] sm:$0xff] %v1201
  // Predicated region
  $region18: #{generator_forward.8} parent=0 // pred_check
    _
  $region19: #{generator_forward.8} parent=0 // pred_check_branch
    %1211 = sbr.rel (0) target = $region21
  $region20: #{generator_forward.8} parent=0 // pred_region
    _
  $region21: #{generator_forward.8} parent=0 // pred_fallthru
    _
  // Predicated region
  $region22: #{generator_forward.8} parent=0 // pred_check
    _
  $region23: #{generator_forward.8} parent=0 // pred_check_branch
    %1213 = sbr.rel (0) target = $region25
  $region24: #{generator_forward.8} parent=0 // pred_region
    _
  $region25: #{generator_forward.8} parent=0 // pred_fallthru
    _

// kernel: generator_forward.9
$region0: #{generator_forward.9}
  #allocation0 [shape = 'u32[]', space=smem, size = 0x4, offset = 0x4, fixed_abs, tag = 'smem constant byte address 0x4 - core index']
  #allocation1 [shape = 'u32[144,128]{1,0:T(1,128)}', space=vmem, size = 0x12000, scoped, tag = 'internal scratch']
  %s0 = inlined_call_operand.vmem [shape: bf16[144,2048], index: 0, kind: input, shape index: {}]
  %s1 = inlined_call_operand.vmem [shape: bf16[32,144], index: 1, kind: input, shape index: {}]
  %s2 = inlined_call_operand.vmem [shape: f32[32,1], index: 2, kind: input, shape index: {}]
  %s3 = inlined_call_operand.vmem [shape: f32[32,2048], index: 3, kind: output, shape index: {}]
  %s4 = sld [smem:[#allocation0]]
  $region87: #{generator_forward.9} parent=0
    _
  %s6 = ssub.s32 1, %s4
  %s7 = scalar_select 0, %s6, %s4
  $region1: #{generator_forward.9} parent=0
    #allocation2 [shape = 'u8[589824]{0}', space=vmem, size = 0x90000, scoped, tag = 'input window, operand 0']
    #allocation3 [shape = 'u8[262144]{0}', space=vmem, size = 0x40000, scoped, tag = 'output window, operand 0']
    loop: start=0, step=1, limit=4
    $region2: #{generator_forward.9} parent=1 // loop_pre_header
      _
    $region3: #{generator_forward.9} parent=1 // loop_header
      %s9 = sphi 0, %s13
      %p10 = scmp.ge.s32.totalorder %s9, 4
      %s19 = sphi 0, %s21
      %s22 = sphi 0, %s19
      %s23 = sphi 0, %s22
      %s39 = sphi 0, %s23
      %s43 = sphi 0, %s43
      %s45 = sphi 0, %s43
      %s46 = sphi 0, %s45
      %s60 = sphi 0, %s46
      %s64 = sphi 0, %s64
      %s66 = sphi 0, %s64
      %s67 = sphi 0, %s66
      %s81 = sphi 0, %s67
      %s87 = sphi 0, %s89
      %s90 = sphi 0, %s87
      %s91 = sphi 0, %s90
      %s107 = sphi 0, %s91
    $region4: #{generator_forward.9} parent=1 // loop_header_branch
      %12 = sbr.rel (%p10) target = $region8
    $region5: #{generator_forward.9} parent=1 // loop_body
      %s14 = ssub.s32 %s9, 1
      %s15 = ssub.s32 %s9, 2
      %s16 = sadd.s32 %s9, 1
      %s17 = ssub.s32 %s9, %s16
      %p18 = scmp.eq.s32.totalorder %s17, 0
      %s20 = sadd.s32 %s19, 1
      %s21 = scalar_select %p18, %s19, %s20
      %p24 = pneg %p18
      %p25 = scmp.eq.s32.totalorder %s9, 1
      %p26 = por %p24, %p25
      %p27 = scmp.ne.s32.totalorder %s19, %s22
      %p28 = scmp.eq.s32.totalorder %s9, 0
      %p29 = por %p27, %p28
      %p30 = scmp.ne.s32.totalorder %s19, %s22
      %p31 = scmp.eq.s32.totalorder %s14, 1
      %p32 = por %p30, %p31
      %p33 = scmp.ne.s32.totalorder %s22, %s23
      %p34 = scmp.eq.s32.totalorder %s14, 0
      %p35 = por %p33, %p34
      %p36 = scmp.ne.s32.totalorder %s22, %s23
      %p37 = scmp.eq.s32.totalorder %s15, 1
      %p38 = por %p36, %p37
      %p40 = scmp.ne.s32.totalorder %s23, %s39
      %p41 = scmp.eq.s32.totalorder %s15, 0
      %p42 = por %p40, %p41
      %s44 = sadd.s32 %s43, 1
      %p47 = scmp.eq.s32.totalorder %s9, 1
      %p48 = scmp.ne.s32.totalorder %s43, %s45
      %p49 = scmp.eq.s32.totalorder %s9, 0
      %p50 = por %p48, %p49
      %p51 = scmp.ne.s32.totalorder %s43, %s45
      %p52 = scmp.eq.s32.totalorder %s14, 1
      %p53 = por %p51, %p52
      %p54 = scmp.ne.s32.totalorder %s45, %s46
      %p55 = scmp.eq.s32.totalorder %s14, 0
      %p56 = por %p54, %p55
      %p57 = scmp.ne.s32.totalorder %s45, %s46
      %p58 = scmp.eq.s32.totalorder %s15, 1
      %p59 = por %p57, %p58
      %p61 = scmp.ne.s32.totalorder %s46, %s60
      %p62 = scmp.eq.s32.totalorder %s15, 0
      %p63 = por %p61, %p62
      %s65 = sadd.s32 %s64, 1
      %p68 = scmp.eq.s32.totalorder %s9, 1
      %p69 = scmp.ne.s32.totalorder %s64, %s66
      %p70 = scmp.eq.s32.totalorder %s9, 0
      %p71 = por %p69, %p70
      %p72 = scmp.ne.s32.totalorder %s64, %s66
      %p73 = scmp.eq.s32.totalorder %s14, 1
      %p74 = por %p72, %p73
      %p75 = scmp.ne.s32.totalorder %s66, %s67
      %p76 = scmp.eq.s32.totalorder %s14, 0
      %p77 = por %p75, %p76
      %p78 = scmp.ne.s32.totalorder %s66, %s67
      %p79 = scmp.eq.s32.totalorder %s15, 1
      %p80 = por %p78, %p79
      %p82 = scmp.ne.s32.totalorder %s67, %s81
      %p83 = scmp.eq.s32.totalorder %s15, 0
      %p84 = por %p82, %p83
      %s85 = ssub.s32 %s9, %s16
      %p86 = scmp.eq.s32.totalorder %s85, 0
      %s88 = sadd.s32 %s87, 1
      %s89 = scalar_select %p86, %s87, %s88
      %p92 = pneg %p86
      %p93 = scmp.eq.s32.totalorder %s9, 1
      %p94 = por %p92, %p93
      %p95 = scmp.ne.s32.totalorder %s87, %s90
      %p96 = scmp.eq.s32.totalorder %s9, 0
      %p97 = por %p95, %p96
      %p98 = scmp.ne.s32.totalorder %s87, %s90
      %p99 = scmp.eq.s32.totalorder %s14, 1
      %p100 = por %p98, %p99
      %p101 = scmp.ne.s32.totalorder %s90, %s91
      %p102 = scmp.eq.s32.totalorder %s14, 0
      %p103 = por %p101, %p102
      %p104 = scmp.ne.s32.totalorder %s90, %s91
      %p105 = scmp.eq.s32.totalorder %s15, 1
      %p106 = por %p104, %p105
      %p108 = scmp.ne.s32.totalorder %s91, %s107
      %p109 = scmp.eq.s32.totalorder %s15, 0
      %p110 = por %p108, %p109
      %p111 = scmp.le.s32.totalorder 1, %s9
      %p112 = scmp.lt.s32.totalorder %s9, 3
      %p113 = pnand %p111, %p112
      %p114 = pneg %p113
      // Predicated region
      $region9: #{generator_forward.9} parent=5 // pred_check
        _
      $region10: #{generator_forward.9} parent=5 // pred_check_branch
        %116 = sbr.rel (%p113) target = $region12
      $region11: #{generator_forward.9} parent=5 // pred_region
        %s117 = ssub.s32 %s9, 1
        // Predicated region
        $region13: #{generator_forward.9} parent=11 // pred_check
          %p118 = pneg %p56
        $region14: #{generator_forward.9} parent=11 // pred_check_branch
          %120 = sbr.rel (%p118) target = $region16
        $region15: #{generator_forward.9} parent=11 // pred_region
          _
        $region16: #{generator_forward.9} parent=11 // pred_fallthru
          _
        // Predicated region
        $region17: #{generator_forward.9} parent=11 // pred_check
          %p121 = pneg %p77
        $region18: #{generator_forward.9} parent=11 // pred_check_branch
          %123 = sbr.rel (%p121) target = $region20
        $region19: #{generator_forward.9} parent=11 // pred_region
          _
        $region20: #{generator_forward.9} parent=11 // pred_fallthru
          _
      $region12: #{generator_forward.9} parent=5 // pred_fallthru
        _
      %p124 = scmp.lt.s32.totalorder %s9, 2
      // Predicated region
      $region21: #{generator_forward.9} parent=5 // pred_check
        %p125 = pneg %p124
      $region22: #{generator_forward.9} parent=5 // pred_check_branch
        %127 = sbr.rel (%p125) target = $region24
      $region23: #{generator_forward.9} parent=5 // pred_region
        // Predicated region
        $region25: #{generator_forward.9} parent=23 // pred_check
          %p128 = pneg %p29
        $region26: #{generator_forward.9} parent=23 // pred_check_branch
          %130 = sbr.rel (%p128) target = $region28
        $region27: #{generator_forward.9} parent=23 // pred_region
          %s131 = sand.u32 %s19, 1
          %s132 = sand.u32 %s19, 1
          %s133 = smul.addr %s132, 576
          %s134 = scalar_lea.vmem [#allocation2], %s133
          %s135 = smul.u32 8, %s9
          %s136 = smul.addr %s135, 4
          %s137 = scalar_lea.vmem %s0, %s136
          // Predicated region
          $region29: #{generator_forward.9} parent=27 // pred_check
            _
          $region30: #{generator_forward.9} parent=27 // pred_check_branch
            %139 = sbr.rel (0) target = $region32
          $region31: #{generator_forward.9} parent=27 // pred_region
            // Predicated region
            $region33: #{generator_forward.9} parent=31 // pred_check
              _
            $region34: #{generator_forward.9} parent=31 // pred_check_branch
              %141 = sbr.rel (0) target = $region36
            $region35: #{generator_forward.9} parent=31 // pred_region
              loop: start=0, step=1, limit=1
              $region37: #{generator_forward.9} parent=35 // loop_pre_header
                _
              $region38: #{generator_forward.9} parent=35 // loop_header
                %s143 = sphi 0, %s147
                %p144 = scmp.ge.s32.totalorder %s143, 1
                %s148 = sphi %s137, %s137
                %s149 = sphi %s134, %s134
              $region39: #{generator_forward.9} parent=35 // loop_header_branch
                %146 = sbr.rel (%p144) target = $region43
              $region40: #{generator_forward.9} parent=35 // loop_body
                %v150 = vld [vmem:[%s148] sm:$0xff]
                %151 = vst [vmem:[%s149] sm:$0xff] %v150
                %v152 = vld [vmem:[%s148 + $0x8] sm:$0xff]
                %153 = vst [vmem:[%s149 + $0x8] sm:$0xff] %v152
                %v154 = vld [vmem:[%s148 + $0x10] sm:$0xff]
                %155 = vst [vmem:[%s149 + $0x10] sm:$0xff] %v154
                %v156 = vld [vmem:[%s148 + $0x18] sm:$0xff]
                %157 = vst [vmem:[%s149 + $0x18] sm:$0xff] %v156
                %v158 = vld [vmem:[%s148 + $0x40] sm:$0xff]
                %159 = vst [vmem:[%s149 + $0x20] sm:$0xff] %v158
                %v160 = vld [vmem:[%s148 + $0x48] sm:$0xff]
                %161 = vst [vmem:[%s149 + $0x28] sm:$0xff] %v160
                %v162 = vld [vmem:[%s148 + $0x50] sm:$0xff]
                %163 = vst [vmem:[%s149 + $0x30] sm:$0xff] %v162
                %v164 = vld [vmem:[%s148 + $0x58] sm:$0xff]
                %165 = vst [vmem:[%s149 + $0x38] sm:$0xff] %v164
                %v166 = vld [vmem:[%s148 + $0x80] sm:$0xff]
                %167 = vst [vmem:[%s149 + $0x40] sm:$0xff] %v166
                %v168 = vld [vmem:[%s148 + $0x88] sm:$0xff]
                %169 = vst [vmem:[%s149 + $0x48] sm:$0xff] %v168
                %v170 = vld [vmem:[%s148 + $0x90] sm:$0xff]
                %171 = vst [vmem:[%s149 + $0x50] sm:$0xff] %v170
                %v172 = vld [vmem:[%s148 + $0x98] sm:$0xff]
                %173 = vst [vmem:[%s149 + $0x58] sm:$0xff] %v172
                %v174 = vld [vmem:[%s148 + $0xc0] sm:$0xff]
                %175 = vst [vmem:[%s149 + $0x60] sm:$0xff] %v174
                %v176 = vld [vmem:[%s148 + $0xc8] sm:$0xff]
                %177 = vst [vmem:[%s149 + $0x68] sm:$0xff] %v176
                %v178 = vld [vmem:[%s148 + $0xd0] sm:$0xff]
                %179 = vst [vmem:[%s149 + $0x70] sm:$0xff] %v178
                %v180 = vld [vmem:[%s148 + $0xd8] sm:$0xff]
                %181 = vst [vmem:[%s149 + $0x78] sm:$0xff] %v180
                %v182 = vld [vmem:[%s148 + $0x100] sm:$0xff]
                %183 = vst [vmem:[%s149 + $0x80] sm:$0xff] %v182
                %v184 = vld [vmem:[%s148 + $0x108] sm:$0xff]
                %185 = vst [vmem:[%s149 + $0x88] sm:$0xff] %v184
                %v186 = vld [vmem:[%s148 + $0x110] sm:$0xff]
                %187 = vst [vmem:[%s149 + $0x90] sm:$0xff] %v186
                %v188 = vld [vmem:[%s148 + $0x118] sm:$0xff]
                %189 = vst [vmem:[%s149 + $0x98] sm:$0xff] %v188
                %v190 = vld [vmem:[%s148 + $0x140] sm:$0xff]
                %191 = vst [vmem:[%s149 + $0xa0] sm:$0xff] %v190
                %v192 = vld [vmem:[%s148 + $0x148] sm:$0xff]
                %193 = vst [vmem:[%s149 + $0xa8] sm:$0xff] %v192
                %v194 = vld [vmem:[%s148 + $0x150] sm:$0xff]
                %195 = vst [vmem:[%s149 + $0xb0] sm:$0xff] %v194
                %v196 = vld [vmem:[%s148 + $0x158] sm:$0xff]
                %197 = vst [vmem:[%s149 + $0xb8] sm:$0xff] %v196
                %v198 = vld [vmem:[%s148 + $0x180] sm:$0xff]
                %199 = vst [vmem:[%s149 + $0xc0] sm:$0xff] %v198
                %v200 = vld [vmem:[%s148 + $0x188] sm:$0xff]
                %201 = vst [vmem:[%s149 + $0xc8] sm:$0xff] %v200
                %v202 = vld [vmem:[%s148 + $0x190] sm:$0xff]
                %203 = vst [vmem:[%s149 + $0xd0] sm:$0xff] %v202
                %v204 = vld [vmem:[%s148 + $0x198] sm:$0xff]
                %205 = vst [vmem:[%s149 + $0xd8] sm:$0xff] %v204
                %v206 = vld [vmem:[%s148 + $0x1c0] sm:$0xff]
                %207 = vst [vmem:[%s149 + $0xe0] sm:$0xff] %v206
                %v208 = vld [vmem:[%s148 + $0x1c8] sm:$0xff]
                %209 = vst [vmem:[%s149 + $0xe8] sm:$0xff] %v208
                %v210 = vld [vmem:[%s148 + $0x1d0] sm:$0xff]
                %211 = vst [vmem:[%s149 + $0xf0] sm:$0xff] %v210
                %v212 = vld [vmem:[%s148 + $0x1d8] sm:$0xff]
                %213 = vst [vmem:[%s149 + $0xf8] sm:$0xff] %v212
                %v214 = vld [vmem:[%s148 + $0x200] sm:$0xff]
                %215 = vst [vmem:[%s149 + $0x100] sm:$0xff] %v214
                %v216 = vld [vmem:[%s148 + $0x208] sm:$0xff]
                %217 = vst [vmem:[%s149 + $0x108] sm:$0xff] %v216
                %v218 = vld [vmem:[%s148 + $0x210] sm:$0xff]
                %219 = vst [vmem:[%s149 + $0x110] sm:$0xff] %v218
                %v220 = vld [vmem:[%s148 + $0x218] sm:$0xff]
                %221 = vst [vmem:[%s149 + $0x118] sm:$0xff] %v220
                %v222 = vld [vmem:[%s148 + $0x240] sm:$0xff]
                %223 = vst [vmem:[%s149 + $0x120] sm:$0xff] %v222
                %v224 = vld [vmem:[%s148 + $0x248] sm:$0xff]
                %225 = vst [vmem:[%s149 + $0x128] sm:$0xff] %v224
                %v226 = vld [vmem:[%s148 + $0x250] sm:$0xff]
                %227 = vst [vmem:[%s149 + $0x130] sm:$0xff] %v226
                %v228 = vld [vmem:[%s148 + $0x258] sm:$0xff]
                %229 = vst [vmem:[%s149 + $0x138] sm:$0xff] %v228
                %v230 = vld [vmem:[%s148 + $0x280] sm:$0xff]
                %231 = vst [vmem:[%s149 + $0x140] sm:$0xff] %v230
                %v232 = vld [vmem:[%s148 + $0x288] sm:$0xff]
                %233 = vst [vmem:[%s149 + $0x148] sm:$0xff] %v232
                %v234 = vld [vmem:[%s148 + $0x290] sm:$0xff]
                %235 = vst [vmem:[%s149 + $0x150] sm:$0xff] %v234
                %v236 = vld [vmem:[%s148 + $0x298] sm:$0xff]
                %237 = vst [vmem:[%s149 + $0x158] sm:$0xff] %v236
                %v238 = vld [vmem:[%s148 + $0x2c0] sm:$0xff]
                %239 = vst [vmem:[%s149 + $0x160] sm:$0xff] %v238
                %v240 = vld [vmem:[%s148 + $0x2c8] sm:$0xff]
                %241 = vst [vmem:[%s149 + $0x168] sm:$0xff] %v240
                %v242 = vld [vmem:[%s148 + $0x2d0] sm:$0xff]
                %243 = vst [vmem:[%s149 + $0x170] sm:$0xff] %v242
                %v244 = vld [vmem:[%s148 + $0x2d8] sm:$0xff]
                %245 = vst [vmem:[%s149 + $0x178] sm:$0xff] %v244
                %v246 = vld [vmem:[%s148 + $0x300] sm:$0xff]
                %247 = vst [vmem:[%s149 + $0x180] sm:$0xff] %v246
                %v248 = vld [vmem:[%s148 + $0x308] sm:$0xff]
                %249 = vst [vmem:[%s149 + $0x188] sm:$0xff] %v248
                %v250 = vld [vmem:[%s148 + $0x310] sm:$0xff]
                %251 = vst [vmem:[%s149 + $0x190] sm:$0xff] %v250
                %v252 = vld [vmem:[%s148 + $0x318] sm:$0xff]
                %253 = vst [vmem:[%s149 + $0x198] sm:$0xff] %v252
                %v254 = vld [vmem:[%s148 + $0x340] sm:$0xff]
                %255 = vst [vmem:[%s149 + $0x1a0] sm:$0xff] %v254
                %v256 = vld [vmem:[%s148 + $0x348] sm:$0xff]
                %257 = vst [vmem:[%s149 + $0x1a8] sm:$0xff] %v256
                %v258 = vld [vmem:[%s148 + $0x350] sm:$0xff]
                %259 = vst [vmem:[%s149 + $0x1b0] sm:$0xff] %v258
                %v260 = vld [vmem:[%s148 + $0x358] sm:$0xff]
                %261 = vst [vmem:[%s149 + $0x1b8] sm:$0xff] %v260
                %v262 = vld [vmem:[%s148 + $0x380] sm:$0xff]
                %263 = vst [vmem:[%s149 + $0x1c0] sm:$0xff] %v262
                %v264 = vld [vmem:[%s148 + $0x388] sm:$0xff]
                %265 = vst [vmem:[%s149 + $0x1c8] sm:$0xff] %v264
                %v266 = vld [vmem:[%s148 + $0x390] sm:$0xff]
                %267 = vst [vmem:[%s149 + $0x1d0] sm:$0xff] %v266
                %v268 = vld [vmem:[%s148 + $0x398] sm:$0xff]
                %269 = vst [vmem:[%s149 + $0x1d8] sm:$0xff] %v268
                %v270 = vld [vmem:[%s148 + $0x3c0] sm:$0xff]
                %271 = vst [vmem:[%s149 + $0x1e0] sm:$0xff] %v270
                %v272 = vld [vmem:[%s148 + $0x3c8] sm:$0xff]
                %273 = vst [vmem:[%s149 + $0x1e8] sm:$0xff] %v272
                %v274 = vld [vmem:[%s148 + $0x3d0] sm:$0xff]
                %275 = vst [vmem:[%s149 + $0x1f0] sm:$0xff] %v274
                %v276 = vld [vmem:[%s148 + $0x3d8] sm:$0xff]
                %277 = vst [vmem:[%s149 + $0x1f8] sm:$0xff] %v276
                %v278 = vld [vmem:[%s148 + $0x400] sm:$0xff]
                %279 = vst [vmem:[%s149 + $0x200] sm:$0xff] %v278
                %v280 = vld [vmem:[%s148 + $0x408] sm:$0xff]
                %281 = vst [vmem:[%s149 + $0x208] sm:$0xff] %v280
                %v282 = vld [vmem:[%s148 + $0x410] sm:$0xff]
                %283 = vst [vmem:[%s149 + $0x210] sm:$0xff] %v282
                %v284 = vld [vmem:[%s148 + $0x418] sm:$0xff]
                %285 = vst [vmem:[%s149 + $0x218] sm:$0xff] %v284
                %v286 = vld [vmem:[%s148 + $0x440] sm:$0xff]
                %287 = vst [vmem:[%s149 + $0x220] sm:$0xff] %v286
                %v288 = vld [vmem:[%s148 + $0x448] sm:$0xff]
                %289 = vst [vmem:[%s149 + $0x228] sm:$0xff] %v288
                %v290 = vld [vmem:[%s148 + $0x450] sm:$0xff]
                %291 = vst [vmem:[%s149 + $0x230] sm:$0xff] %v290
                %v292 = vld [vmem:[%s148 + $0x458] sm:$0xff]
                %293 = vst [vmem:[%s149 + $0x238] sm:$0xff] %v292
              $region41: #{generator_forward.9} parent=35 // loop_footer
                %s147 = sadd.s32 1, %s143
              $region42: #{generator_forward.9} parent=35 // loop_footer_branch
                %142 = sbr.rel target = $region38
              $region43: #{generator_forward.9} parent=35 // loop_exit
                _
            $region36: #{generator_forward.9} parent=31 // pred_fallthru
              _
            // Predicated region
            $region44: #{generator_forward.9} parent=31 // pred_check
              _
            $region45: #{generator_forward.9} parent=31 // pred_check_branch
              %295 = sbr.rel target = $region47
            $region46: #{generator_forward.9} parent=31 // pred_region
              _
            $region47: #{generator_forward.9} parent=31 // pred_fallthru
              _
          $region32: #{generator_forward.9} parent=27 // pred_fallthru
            _
          %296 = vnop
        $region28: #{generator_forward.9} parent=23 // pred_fallthru
          _
      $region24: #{generator_forward.9} parent=5 // pred_fallthru
        _
      %p297 = scmp.le.s32.totalorder 1, %s9
      %p298 = scmp.lt.s32.totalorder %s9, 3
      %p299 = pnand %p297, %p298
      %p300 = pneg %p299
      // Predicated region
      $region48: #{generator_forward.9} parent=5 // pred_check
        _
      $region49: #{generator_forward.9} parent=5 // pred_check_branch
        %302 = sbr.rel (%p299) target = $region51
      $region50: #{generator_forward.9} parent=5 // pred_region
        %s303 = ssub.s32 %s9, 1
        %s304 = sand.u32 %s22, 1
        %s305 = sand.u32 %s22, 1
        %s306 = smul.addr %s305, 576
        %s307 = scalar_lea.vmem [#allocation2], %s306
        // Predicated region
        $region52: #{generator_forward.9} parent=50 // pred_check
          %p308 = pneg %p35
        $region53: #{generator_forward.9} parent=50 // pred_check_branch
          %310 = sbr.rel (%p308) target = $region55
        $region54: #{generator_forward.9} parent=50 // pred_region
          _
        $region55: #{generator_forward.9} parent=50 // pred_fallthru
          _
        %s311 = sand.u32 %s22, 1
        %s312 = sand.u32 %s22, 1
        %s313 = smul.addr %s312, 576
        %s314 = scalar_lea.vmem [#allocation2], %s313
        %p315 = pneg %p35
        %p316 = pneg %p32
        %p317 = pneg %p56
        %p318 = pneg %p53
        %p319 = pneg %p77
        %p320 = pneg %p74
        %p321 = pneg %p103
        %p322 = pneg %p100
        %s323 = sand.u32 %s90, 1
        %s324 = sand.u32 %s90, 1
        %s325 = smul.addr %s324, 256
        %s326 = scalar_lea.vmem [#allocation3], %s325
        %s327 = smul.u32 8, %s14
        %s328 = smul.u32 8, %s14
        %v330 = vld [vmem:[%s1] sm:$0xff]
        %v331 = vld [vmem:[%s1 + $0x8] sm:$0xff]
        %v332 = vld [vmem:[%s1 + $0x10] sm:$0xff]
        %v333 = vld [vmem:[%s1 + $0x18] sm:$0xff]
        %v334 = vld [vmem:[%s307] sm:$0xff]
        %v335 = vld [vmem:[%s307 + $0x8] sm:$0xff]
        %v336 = vld [vmem:[%s307 + $0x10] sm:$0xff]
        %v337 = vld [vmem:[%s307 + $0x18] sm:$0xff]
        %v338 = vld [vmem:[%s307 + $0x20] sm:$0xff]
        %v339 = vld [vmem:[%s307 + $0x28] sm:$0xff]
        %v340 = vld [vmem:[%s307 + $0x30] sm:$0xff]
        %v341 = vld [vmem:[%s307 + $0x38] sm:$0xff]
        %v342 = vld [vmem:[%s307 + $0x40] sm:$0xff]
        %v343 = vld [vmem:[%s307 + $0x48] sm:$0xff]
        %v344 = vld [vmem:[%s307 + $0x50] sm:$0xff]
        %v345 = vld [vmem:[%s307 + $0x58] sm:$0xff]
        %v346 = vld [vmem:[%s307 + $0x60] sm:$0xff]
        %v347 = vld [vmem:[%s307 + $0x68] sm:$0xff]
        %v348 = vld [vmem:[%s307 + $0x70] sm:$0xff]
        %v349 = vld [vmem:[%s307 + $0x78] sm:$0xff]
        %v350 = vld [vmem:[%s307 + $0x80] sm:$0xff]
        %v351 = vld [vmem:[%s307 + $0x88] sm:$0xff]
        %v352 = vld [vmem:[%s307 + $0x90] sm:$0xff]
        %v353 = vld [vmem:[%s307 + $0x98] sm:$0xff]
        %v354 = vld [vmem:[%s307 + $0xa0] sm:$0xff]
        %v355 = vld [vmem:[%s307 + $0xa8] sm:$0xff]
        %v356 = vld [vmem:[%s307 + $0xb0] sm:$0xff]
        %v357 = vld [vmem:[%s307 + $0xb8] sm:$0xff]
        %v358 = vld [vmem:[%s307 + $0xc0] sm:$0xff]
        %v359 = vld [vmem:[%s307 + $0xc8] sm:$0xff]
        %v360 = vld [vmem:[%s307 + $0xd0] sm:$0xff]
        %v361 = vld [vmem:[%s307 + $0xd8] sm:$0xff]
        %v362 = vld [vmem:[%s307 + $0xe0] sm:$0xff]
        %v363 = vld [vmem:[%s307 + $0xe8] sm:$0xff]
        %v364 = vld [vmem:[%s307 + $0xf0] sm:$0xff]
        %v365 = vld [vmem:[%s307 + $0xf8] sm:$0xff]
        %v366 = vld [vmem:[%s307 + $0x100] sm:$0xff]
        %v367 = vld [vmem:[%s307 + $0x108] sm:$0xff]
        %v368 = vld [vmem:[%s307 + $0x110] sm:$0xff]
        %v369 = vld [vmem:[%s307 + $0x118] sm:$0xff]
        %v370 = vld [vmem:[%s307 + $0x120] sm:$0xff]
        %v371 = vld [vmem:[%s307 + $0x128] sm:$0xff]
        %v372 = vld [vmem:[%s307 + $0x130] sm:$0xff]
        %v373 = vld [vmem:[%s307 + $0x138] sm:$0xff]
        %v374 = vld [vmem:[%s307 + $0x140] sm:$0xff]
        %v375 = vld [vmem:[%s307 + $0x148] sm:$0xff]
        %v376 = vld [vmem:[%s307 + $0x150] sm:$0xff]
        %v377 = vld [vmem:[%s307 + $0x158] sm:$0xff]
        %v378 = vld [vmem:[%s307 + $0x160] sm:$0xff]
        %v379 = vld [vmem:[%s307 + $0x168] sm:$0xff]
        %v380 = vld [vmem:[%s307 + $0x170] sm:$0xff]
        %v381 = vld [vmem:[%s307 + $0x178] sm:$0xff]
        %v382 = vld [vmem:[%s307 + $0x180] sm:$0xff]
        %v383 = vld [vmem:[%s307 + $0x188] sm:$0xff]
        %v384 = vld [vmem:[%s307 + $0x190] sm:$0xff]
        %v385 = vld [vmem:[%s307 + $0x198] sm:$0xff]
        %v386 = vld [vmem:[%s307 + $0x1a0] sm:$0xff]
        %v387 = vld [vmem:[%s307 + $0x1a8] sm:$0xff]
        %v388 = vld [vmem:[%s307 + $0x1b0] sm:$0xff]
        %v389 = vld [vmem:[%s307 + $0x1b8] sm:$0xff]
        %v390 = vld [vmem:[%s307 + $0x1c0] sm:$0xff]
        %v391 = vld [vmem:[%s307 + $0x1c8] sm:$0xff]
        %v392 = vld [vmem:[%s307 + $0x1d0] sm:$0xff]
        %v393 = vld [vmem:[%s307 + $0x1d8] sm:$0xff]
        %v394 = vld [vmem:[%s307 + $0x1e0] sm:$0xff]
        %v395 = vld [vmem:[%s307 + $0x1e8] sm:$0xff]
        %v396 = vld [vmem:[%s307 + $0x1f0] sm:$0xff]
        %v397 = vld [vmem:[%s307 + $0x1f8] sm:$0xff]
        %v398 = vld [vmem:[%s307 + $0x200] sm:$0xff]
        %v399 = vld [vmem:[%s307 + $0x208] sm:$0xff]
        %v400 = vld [vmem:[%s307 + $0x210] sm:$0xff]
        %v401 = vld [vmem:[%s307 + $0x218] sm:$0xff]
        %v402 = vld [vmem:[%s307 + $0x220] sm:$0xff]
        %v403 = vld [vmem:[%s307 + $0x228] sm:$0xff]
        %v404 = vld [vmem:[%s307 + $0x230] sm:$0xff]
        %v405 = vld [vmem:[%s307 + $0x238] sm:$0xff]
        %v406 = vld [vmem:[%s2] sm:$0xff]
        %v407 = vld [vmem:[%s2 + $0x8] sm:$0xff]
        %v408 = vld [vmem:[%s2 + $0x10] sm:$0xff]
        %v409 = vld [vmem:[%s2 + $0x18] sm:$0xff]
        %411 = vset.pattern.permute.xlu0 0
        %412 = vperm.xlu0 %411, %v406
        %v413 = vpop.permute.xlu0 %412
        %416 = vset.pattern.permute.xlu0 0
        %417 = vperm.xlu0 %416, %v407
        %v418 = vpop.permute.xlu0 %417
        %421 = vset.pattern.permute.xlu0 0
        %422 = vperm.xlu0 %421, %v408
        %v423 = vpop.permute.xlu0 %422
        %426 = vset.pattern.permute.xlu0 0
        %427 = vperm.xlu0 %426, %v409
        %v428 = vpop.permute.xlu0 %427
        %v434 = vunpack.c.l.b16 %v330
        %v435 = vunpack.c.h.b16 %v330
        %v436 = vunpack.c.l.b16 %v331
        %v437 = vunpack.c.h.b16 %v331
        %v438 = vunpack.c.l.b16 %v332
        %v439 = vunpack.c.h.b16 %v332
        %v440 = vunpack.c.l.b16 %v333
        %v441 = vunpack.c.h.b16 %v333
        %v442 = vpack.c.b16 %v436, %v434
        %v443 = vpack.c.b16 %v437, %v435
        %v444 = vpack.c.b16 %v440, %v438
        %v445 = vpack.c.b16 %v441, %v439
        %v520 = vunpack.c.l.b16 %v334
        %v521 = vunpack.c.h.b16 %v334
        %v522 = vunpack.c.l.b16 %v335
        %v523 = vunpack.c.h.b16 %v335
        %v524 = vunpack.c.l.b16 %v336
        %v525 = vunpack.c.h.b16 %v336
        %v526 = vunpack.c.l.b16 %v337
        %v527 = vunpack.c.h.b16 %v337
        %v528 = vunpack.c.l.b16 %v338
        %v529 = vunpack.c.h.b16 %v338
        %v530 = vunpack.c.l.b16 %v339
        %v531 = vunpack.c.h.b16 %v339
        %v532 = vunpack.c.l.b16 %v340
        %v533 = vunpack.c.h.b16 %v340
        %v534 = vunpack.c.l.b16 %v341
        %v535 = vunpack.c.h.b16 %v341
        %v536 = vunpack.c.l.b16 %v342
        %v537 = vunpack.c.h.b16 %v342
        %v538 = vunpack.c.l.b16 %v343
        %v539 = vunpack.c.h.b16 %v343
        %v540 = vunpack.c.l.b16 %v344
        %v541 = vunpack.c.h.b16 %v344
        %v542 = vunpack.c.l.b16 %v345
        %v543 = vunpack.c.h.b16 %v345
        %v544 = vunpack.c.l.b16 %v346
        %v545 = vunpack.c.h.b16 %v346
        %v546 = vunpack.c.l.b16 %v347
        %v547 = vunpack.c.h.b16 %v347
        %v548 = vunpack.c.l.b16 %v348
        %v549 = vunpack.c.h.b16 %v348
        %v550 = vunpack.c.l.b16 %v349
        %v551 = vunpack.c.h.b16 %v349
        %v552 = vunpack.c.l.b16 %v350
        %v553 = vunpack.c.h.b16 %v350
        %v554 = vunpack.c.l.b16 %v351
        %v555 = vunpack.c.h.b16 %v351
        %v556 = vunpack.c.l.b16 %v352
        %v557 = vunpack.c.h.b16 %v352
        %v558 = vunpack.c.l.b16 %v353
        %v559 = vunpack.c.h.b16 %v353
        %v560 = vunpack.c.l.b16 %v354
        %v561 = vunpack.c.h.b16 %v354
        %v562 = vunpack.c.l.b16 %v355
        %v563 = vunpack.c.h.b16 %v355
        %v564 = vunpack.c.l.b16 %v356
        %v565 = vunpack.c.h.b16 %v356
        %v566 = vunpack.c.l.b16 %v357
        %v567 = vunpack.c.h.b16 %v357
        %v568 = vunpack.c.l.b16 %v358
        %v569 = vunpack.c.h.b16 %v358
        %v570 = vunpack.c.l.b16 %v359
        %v571 = vunpack.c.h.b16 %v359
        %v572 = vunpack.c.l.b16 %v360
        %v573 = vunpack.c.h.b16 %v360
        %v574 = vunpack.c.l.b16 %v361
        %v575 = vunpack.c.h.b16 %v361
        %v576 = vunpack.c.l.b16 %v362
        %v577 = vunpack.c.h.b16 %v362
        %v578 = vunpack.c.l.b16 %v363
        %v579 = vunpack.c.h.b16 %v363
        %v580 = vunpack.c.l.b16 %v364
        %v581 = vunpack.c.h.b16 %v364
        %v582 = vunpack.c.l.b16 %v365
        %v583 = vunpack.c.h.b16 %v365
        %v584 = vunpack.c.l.b16 %v366
        %v585 = vunpack.c.h.b16 %v366
        %v586 = vunpack.c.l.b16 %v367
        %v587 = vunpack.c.h.b16 %v367
        %v588 = vunpack.c.l.b16 %v368
        %v589 = vunpack.c.h.b16 %v368
        %v590 = vunpack.c.l.b16 %v369
        %v591 = vunpack.c.h.b16 %v369
        %v592 = vunpack.c.l.b16 %v370
        %v593 = vunpack.c.h.b16 %v370
        %v594 = vunpack.c.l.b16 %v371
        %v595 = vunpack.c.h.b16 %v371
        %v596 = vunpack.c.l.b16 %v372
        %v597 = vunpack.c.h.b16 %v372
        %v598 = vunpack.c.l.b16 %v373
        %v599 = vunpack.c.h.b16 %v373
        %v600 = vunpack.c.l.b16 %v374
        %v601 = vunpack.c.h.b16 %v374
        %v602 = vunpack.c.l.b16 %v375
        %v603 = vunpack.c.h.b16 %v375
        %v604 = vunpack.c.l.b16 %v376
        %v605 = vunpack.c.h.b16 %v376
        %v606 = vunpack.c.l.b16 %v377
        %v607 = vunpack.c.h.b16 %v377
        %v608 = vunpack.c.l.b16 %v378
        %v609 = vunpack.c.h.b16 %v378
        %v610 = vunpack.c.l.b16 %v379
        %v611 = vunpack.c.h.b16 %v379
        %v612 = vunpack.c.l.b16 %v380
        %v613 = vunpack.c.h.b16 %v380
        %v614 = vunpack.c.l.b16 %v381
        %v615 = vunpack.c.h.b16 %v381
        %v616 = vunpack.c.l.b16 %v382
        %v617 = vunpack.c.h.b16 %v382
        %v618 = vunpack.c.l.b16 %v383
        %v619 = vunpack.c.h.b16 %v383
        %v620 = vunpack.c.l.b16 %v384
        %v621 = vunpack.c.h.b16 %v384
        %v622 = vunpack.c.l.b16 %v385
        %v623 = vunpack.c.h.b16 %v385
        %v624 = vunpack.c.l.b16 %v386
        %v625 = vunpack.c.h.b16 %v386
        %v626 = vunpack.c.l.b16 %v387
        %v627 = vunpack.c.h.b16 %v387
        %v628 = vunpack.c.l.b16 %v388
        %v629 = vunpack.c.h.b16 %v388
        %v630 = vunpack.c.l.b16 %v389
        %v631 = vunpack.c.h.b16 %v389
        %v632 = vunpack.c.l.b16 %v390
        %v633 = vunpack.c.h.b16 %v390
        %v634 = vunpack.c.l.b16 %v391
        %v635 = vunpack.c.h.b16 %v391
        %v636 = vunpack.c.l.b16 %v392
        %v637 = vunpack.c.h.b16 %v392
        %v638 = vunpack.c.l.b16 %v393
        %v639 = vunpack.c.h.b16 %v393
        %v640 = vunpack.c.l.b16 %v394
        %v641 = vunpack.c.h.b16 %v394
        %v642 = vunpack.c.l.b16 %v395
        %v643 = vunpack.c.h.b16 %v395
        %v644 = vunpack.c.l.b16 %v396
        %v645 = vunpack.c.h.b16 %v396
        %v646 = vunpack.c.l.b16 %v397
        %v647 = vunpack.c.h.b16 %v397
        %v648 = vunpack.c.l.b16 %v398
        %v649 = vunpack.c.h.b16 %v398
        %v650 = vunpack.c.l.b16 %v399
        %v651 = vunpack.c.h.b16 %v399
        %v652 = vunpack.c.l.b16 %v400
        %v653 = vunpack.c.h.b16 %v400
        %v654 = vunpack.c.l.b16 %v401
        %v655 = vunpack.c.h.b16 %v401
        %v656 = vunpack.c.l.b16 %v402
        %v657 = vunpack.c.h.b16 %v402
        %v658 = vunpack.c.l.b16 %v403
        %v659 = vunpack.c.h.b16 %v403
        %v660 = vunpack.c.l.b16 %v404
        %v661 = vunpack.c.h.b16 %v404
        %v662 = vunpack.c.l.b16 %v405
        %v663 = vunpack.c.h.b16 %v405
        %v664 = vpack.c.b16 %v528, %v520
        %v665 = vpack.c.b16 %v529, %v521
        %v666 = vpack.c.b16 %v530, %v522
        %v667 = vpack.c.b16 %v531, %v523
        %v668 = vpack.c.b16 %v532, %v524
        %v669 = vpack.c.b16 %v533, %v525
        %v670 = vpack.c.b16 %v534, %v526
        %v671 = vpack.c.b16 %v535, %v527
        %v672 = vpack.c.b16 %v544, %v536
        %v673 = vpack.c.b16 %v545, %v537
        %v674 = vpack.c.b16 %v546, %v538
        %v675 = vpack.c.b16 %v547, %v539
        %v676 = vpack.c.b16 %v548, %v540
        %v677 = vpack.c.b16 %v549, %v541
        %v678 = vpack.c.b16 %v550, %v542
        %v679 = vpack.c.b16 %v551, %v543
        %v680 = vpack.c.b16 %v560, %v552
        %v681 = vpack.c.b16 %v561, %v553
        %v682 = vpack.c.b16 %v562, %v554
        %v683 = vpack.c.b16 %v563, %v555
        %v684 = vpack.c.b16 %v564, %v556
        %v685 = vpack.c.b16 %v565, %v557
        %v686 = vpack.c.b16 %v566, %v558
        %v687 = vpack.c.b16 %v567, %v559
        %v688 = vpack.c.b16 %v576, %v568
        %v689 = vpack.c.b16 %v577, %v569
        %v690 = vpack.c.b16 %v578, %v570
        %v691 = vpack.c.b16 %v579, %v571
        %v692 = vpack.c.b16 %v580, %v572
        %v693 = vpack.c.b16 %v581, %v573
        %v694 = vpack.c.b16 %v582, %v574
        %v695 = vpack.c.b16 %v583, %v575
        %v696 = vpack.c.b16 %v592, %v584
        %v697 = vpack.c.b16 %v593, %v585
        %v698 = vpack.c.b16 %v594, %v586
        %v699 = vpack.c.b16 %v595, %v587
        %v700 = vpack.c.b16 %v596, %v588
        %v701 = vpack.c.b16 %v597, %v589
        %v702 = vpack.c.b16 %v598, %v590
        %v703 = vpack.c.b16 %v599, %v591
        %v704 = vpack.c.b16 %v608, %v600
        %v705 = vpack.c.b16 %v609, %v601
        %v706 = vpack.c.b16 %v610, %v602
        %v707 = vpack.c.b16 %v611, %v603
        %v708 = vpack.c.b16 %v612, %v604
        %v709 = vpack.c.b16 %v613, %v605
        %v710 = vpack.c.b16 %v614, %v606
        %v711 = vpack.c.b16 %v615, %v607
        %v712 = vpack.c.b16 %v624, %v616
        %v713 = vpack.c.b16 %v625, %v617
        %v714 = vpack.c.b16 %v626, %v618
        %v715 = vpack.c.b16 %v627, %v619
        %v716 = vpack.c.b16 %v628, %v620
        %v717 = vpack.c.b16 %v629, %v621
        %v718 = vpack.c.b16 %v630, %v622
        %v719 = vpack.c.b16 %v631, %v623
        %v720 = vpack.c.b16 %v640, %v632
        %v721 = vpack.c.b16 %v641, %v633
        %v722 = vpack.c.b16 %v642, %v634
        %v723 = vpack.c.b16 %v643, %v635
        %v724 = vpack.c.b16 %v644, %v636
        %v725 = vpack.c.b16 %v645, %v637
        %v726 = vpack.c.b16 %v646, %v638
        %v727 = vpack.c.b16 %v647, %v639
        %v728 = vpack.c.b16 %v656, %v648
        %v729 = vpack.c.b16 %v657, %v649
        %v730 = vpack.c.b16 %v658, %v650
        %v731 = vpack.c.b16 %v659, %v651
        %v732 = vpack.c.b16 %v660, %v652
        %v733 = vpack.c.b16 %v661, %v653
        %v734 = vpack.c.b16 %v662, %v654
        %v735 = vpack.c.b16 %v663, %v655
        %vm808 = vcmask 130048
        %v810 = vsel %vm808, %v443, 0
        %v813 = vsel %vm808, %v445, 0
        %815 = vmatprep.subr.bf16.mxu0 %v665
        %816 = vmatpush1.bf16.msra.mxu0 %v664
        %817 = vmatprep.subr.bf16.mxu0 %v673
        %818 = vmatpush1.bf16.msra.mxu0 %v672
        %819 = vmatprep.subr.bf16.mxu0 %v681
        %820 = vmatpush1.bf16.msra.mxu0 %v680
        %821 = vmatprep.subr.bf16.mxu0 %v689
        %822 = vmatpush1.bf16.msra.mxu0 %v688
        %823 = vmatprep.subr.bf16.mxu0 %v697
        %824 = vmatpush1.bf16.msra.mxu0 %v696
        %825 = vmatprep.subr.bf16.mxu0 %v705
        %826 = vmatpush1.bf16.msra.mxu0 %v704
        %827 = vmatprep.subr.bf16.mxu0 %v713
        %828 = vmatpush1.bf16.msra.mxu0 %v712
        %829 = vmatprep.subr.bf16.mxu0 %v721
        %830 = vmatpush1.bf16.msra.mxu0 %v720
        %831 = vmatprep.subr.bf16.mxu0 %v729
        %832 = vmatpush1.bf16.msra.mxu0 %v728
        %833 = vmatprep.subr.bf16.mxu0 0
        %834 = vmatpush1.bf16.msra.mxu0 0
        %835 = vmatprep.subr.bf16.mxu0 0
        %836 = vmatpush1.bf16.msra.mxu0 0
        %837 = vmatprep.subr.bf16.mxu0 0
        %838 = vmatpush1.bf16.msra.mxu0 0
        %839 = vmatprep.subr.bf16.mxu0 0
        %840 = vmatpush1.bf16.msra.mxu0 0
        %841 = vmatprep.subr.bf16.mxu0 0
        %842 = vmatpush1.bf16.msra.mxu0 0
        %843 = vmatprep.subr.bf16.mxu0 0
        %844 = vmatpush1.bf16.msra.mxu0 0
        %845 = vmatprep.subr.bf16.mxu0 0
        %846 = vmatpush1.bf16.msra.mxu0 0
        %847 = vmatprep.mubr.bf16.mxu0 %v810
        %848 = vmatmul.mubr.bf16.gmra.mrb[0].mxu0 %v442
        %v849 = vpop.f32.mrb[0].mxu0
        %v850 = vadd.f32 %v413, %v849
        %v851 = vpop.f32.mrb[0].mxu0
        %v852 = vadd.f32 %v413, %v851
        %v853 = vpop.f32.mrb[0].mxu0
        %v854 = vadd.f32 %v418, %v853
        %v855 = vpop.f32.mrb[0].mxu0
        %v856 = vadd.f32 %v418, %v855
        %857 = vmatprep.mubr.bf16.mxu0 %v813
        %858 = vmatmul.mubr.bf16.gmra.mrb[0].mxu0 %v444
        %v859 = vpop.f32.mrb[0].mxu0
        %v860 = vadd.f32 %v423, %v859
        %v861 = vpop.f32.mrb[0].mxu0
        %v862 = vadd.f32 %v423, %v861
        %v863 = vpop.f32.mrb[0].mxu0
        %v864 = vadd.f32 %v428, %v863
        %v865 = vpop.f32.mrb[0].mxu0
        %v866 = vadd.f32 %v428, %v865
        %867 = vdwg.mxu0
        %868 = vmatprep.subr.bf16.mxu0 %v667
        %869 = vmatpush1.bf16.msra.mxu0 %v666
        %870 = vmatprep.subr.bf16.mxu0 %v675
        %871 = vmatpush1.bf16.msra.mxu0 %v674
        %872 = vmatprep.subr.bf16.mxu0 %v683
        %873 = vmatpush1.bf16.msra.mxu0 %v682
        %874 = vmatprep.subr.bf16.mxu0 %v691
        %875 = vmatpush1.bf16.msra.mxu0 %v690
        %876 = vmatprep.subr.bf16.mxu0 %v699
        %877 = vmatpush1.bf16.msra.mxu0 %v698
        %878 = vmatprep.subr.bf16.mxu0 %v707
        %879 = vmatpush1.bf16.msra.mxu0 %v706
        %880 = vmatprep.subr.bf16.mxu0 %v715
        %881 = vmatpush1.bf16.msra.mxu0 %v714
        %882 = vmatprep.subr.bf16.mxu0 %v723
        %883 = vmatpush1.bf16.msra.mxu0 %v722
        %884 = vmatprep.subr.bf16.mxu0 %v731
        %885 = vmatpush1.bf16.msra.mxu0 %v730
        %886 = vmatprep.subr.bf16.mxu0 0
        %887 = vmatpush1.bf16.msra.mxu0 0
        %888 = vmatprep.subr.bf16.mxu0 0
        %889 = vmatpush1.bf16.msra.mxu0 0
        %890 = vmatprep.subr.bf16.mxu0 0
        %891 = vmatpush1.bf16.msra.mxu0 0
        %892 = vmatprep.subr.bf16.mxu0 0
        %893 = vmatpush1.bf16.msra.mxu0 0
        %894 = vmatprep.subr.bf16.mxu0 0
        %895 = vmatpush1.bf16.msra.mxu0 0
        %896 = vmatprep.subr.bf16.mxu0 0
        %897 = vmatpush1.bf16.msra.mxu0 0
        %898 = vmatprep.subr.bf16.mxu0 0
        %899 = vmatpush1.bf16.msra.mxu0 0
        %900 = vmatprep.mubr.bf16.mxu0 %v810
        %901 = vmatmul.mubr.bf16.gmra.mrb[0].mxu0 %v442
        %v902 = vpop.f32.mrb[0].mxu0
        %v903 = vadd.f32 %v413, %v902
        %v904 = vpop.f32.mrb[0].mxu0
        %v905 = vadd.f32 %v413, %v904
        %v906 = vpop.f32.mrb[0].mxu0
        %v907 = vadd.f32 %v418, %v906
        %v908 = vpop.f32.mrb[0].mxu0
        %v909 = vadd.f32 %v418, %v908
        %910 = vmatprep.mubr.bf16.mxu0 %v813
        %911 = vmatmul.mubr.bf16.gmra.mrb[0].mxu0 %v444
        %v912 = vpop.f32.mrb[0].mxu0
        %v913 = vadd.f32 %v423, %v912
        %v914 = vpop.f32.mrb[0].mxu0
        %v915 = vadd.f32 %v423, %v914
        %v916 = vpop.f32.mrb[0].mxu0
        %v917 = vadd.f32 %v428, %v916
        %v918 = vpop.f32.mrb[0].mxu0
        %v919 = vadd.f32 %v428, %v918
        %920 = vdwg.mxu0
        %921 = vmatprep.subr.bf16.mxu0 %v669
        %922 = vmatpush1.bf16.msra.mxu0 %v668
        %923 = vmatprep.subr.bf16.mxu0 %v677
        %924 = vmatpush1.bf16.msra.mxu0 %v676
        %925 = vmatprep.subr.bf16.mxu0 %v685
        %926 = vmatpush1.bf16.msra.mxu0 %v684
        %927 = vmatprep.subr.bf16.mxu0 %v693
        %928 = vmatpush1.bf16.msra.mxu0 %v692
        %929 = vmatprep.subr.bf16.mxu0 %v701
        %930 = vmatpush1.bf16.msra.mxu0 %v700
        %931 = vmatprep.subr.bf16.mxu0 %v709
        %932 = vmatpush1.bf16.msra.mxu0 %v708
        %933 = vmatprep.subr.bf16.mxu0 %v717
        %934 = vmatpush1.bf16.msra.mxu0 %v716
        %935 = vmatprep.subr.bf16.mxu0 %v725
        %936 = vmatpush1.bf16.msra.mxu0 %v724
        %937 = vmatprep.subr.bf16.mxu0 %v733
        %938 = vmatpush1.bf16.msra.mxu0 %v732
        %939 = vmatprep.subr.bf16.mxu0 0
        %940 = vmatpush1.bf16.msra.mxu0 0
        %941 = vmatprep.subr.bf16.mxu0 0
        %942 = vmatpush1.bf16.msra.mxu0 0
        %943 = vmatprep.subr.bf16.mxu0 0
        %944 = vmatpush1.bf16.msra.mxu0 0
        %945 = vmatprep.subr.bf16.mxu0 0
        %946 = vmatpush1.bf16.msra.mxu0 0
        %947 = vmatprep.subr.bf16.mxu0 0
        %948 = vmatpush1.bf16.msra.mxu0 0
        %949 = vmatprep.subr.bf16.mxu0 0
        %950 = vmatpush1.bf16.msra.mxu0 0
        %951 = vmatprep.subr.bf16.mxu0 0
        %952 = vmatpush1.bf16.msra.mxu0 0
        %953 = vmatprep.mubr.bf16.mxu0 %v810
        %954 = vmatmul.mubr.bf16.gmra.mrb[0].mxu0 %v442
        %v955 = vpop.f32.mrb[0].mxu0
        %v956 = vadd.f32 %v413, %v955
        %v957 = vpop.f32.mrb[0].mxu0
        %v958 = vadd.f32 %v413, %v957
        %v959 = vpop.f32.mrb[0].mxu0
        %v960 = vadd.f32 %v418, %v959
        %v961 = vpop.f32.mrb[0].mxu0
        %v962 = vadd.f32 %v418, %v961
        %963 = vmatprep.mubr.bf16.mxu0 %v813
        %964 = vmatmul.mubr.bf16.gmra.mrb[0].mxu0 %v444
        %v965 = vpop.f32.mrb[0].mxu0
        %v966 = vadd.f32 %v423, %v965
        %v967 = vpop.f32.mrb[0].mxu0
        %v968 = vadd.f32 %v423, %v967
        %v969 = vpop.f32.mrb[0].mxu0
        %v970 = vadd.f32 %v428, %v969
        %v971 = vpop.f32.mrb[0].mxu0
        %v972 = vadd.f32 %v428, %v971
        %973 = vdwg.mxu0
        %974 = vmatprep.subr.bf16.mxu0 %v671
        %975 = vmatpush1.bf16.msra.mxu0 %v670
        %976 = vmatprep.subr.bf16.mxu0 %v679
        %977 = vmatpush1.bf16.msra.mxu0 %v678
        %978 = vmatprep.subr.bf16.mxu0 %v687
        %979 = vmatpush1.bf16.msra.mxu0 %v686
        %980 = vmatprep.subr.bf16.mxu0 %v695
        %981 = vmatpush1.bf16.msra.mxu0 %v694
        %982 = vmatprep.subr.bf16.mxu0 %v703
        %983 = vmatpush1.bf16.msra.mxu0 %v702
        %984 = vmatprep.subr.bf16.mxu0 %v711
        %985 = vmatpush1.bf16.msra.mxu0 %v710
        %986 = vmatprep.subr.bf16.mxu0 %v719
        %987 = vmatpush1.bf16.msra.mxu0 %v718
        %988 = vmatprep.subr.bf16.mxu0 %v727
        %989 = vmatpush1.bf16.msra.mxu0 %v726
        %990 = vmatprep.subr.bf16.mxu0 %v735
        %991 = vmatpush1.bf16.msra.mxu0 %v734
        %992 = vmatprep.subr.bf16.mxu0 0
        %993 = vmatpush1.bf16.msra.mxu0 0
        %994 = vmatprep.subr.bf16.mxu0 0
        %995 = vmatpush1.bf16.msra.mxu0 0
        %996 = vmatprep.subr.bf16.mxu0 0
        %997 = vmatpush1.bf16.msra.mxu0 0
        %998 = vmatprep.subr.bf16.mxu0 0
        %999 = vmatpush1.bf16.msra.mxu0 0
        %1000 = vmatprep.subr.bf16.mxu0 0
        %1001 = vmatpush1.bf16.msra.mxu0 0
        %1002 = vmatprep.subr.bf16.mxu0 0
        %1003 = vmatpush1.bf16.msra.mxu0 0
        %1004 = vmatprep.subr.bf16.mxu0 0
        %1005 = vmatpush1.bf16.msra.mxu0 0
        %1006 = vmatprep.mubr.bf16.mxu0 %v810
        %1007 = vmatmul.mubr.bf16.gmra.mrb[0].mxu0 %v442
        %v1008 = vpop.f32.mrb[0].mxu0
        %v1009 = vadd.f32 %v413, %v1008
        %v1010 = vpop.f32.mrb[0].mxu0
        %v1011 = vadd.f32 %v413, %v1010
        %v1012 = vpop.f32.mrb[0].mxu0
        %v1013 = vadd.f32 %v418, %v1012
        %v1014 = vpop.f32.mrb[0].mxu0
        %v1015 = vadd.f32 %v418, %v1014
        %1016 = vmatprep.mubr.bf16.mxu0 %v813
        %1017 = vmatmul.mubr.bf16.gmra.mrb[0].mxu0 %v444
        %v1018 = vpop.f32.mrb[0].mxu0
        %v1019 = vadd.f32 %v423, %v1018
        %v1020 = vpop.f32.mrb[0].mxu0
        %v1021 = vadd.f32 %v423, %v1020
        %v1022 = vpop.f32.mrb[0].mxu0
        %v1023 = vadd.f32 %v428, %v1022
        %v1024 = vpop.f32.mrb[0].mxu0
        %v1025 = vadd.f32 %v428, %v1024
        %1026 = vdwg.mxu0
        %v1027 = vtanh.pop %v850
        %v1028 = vtanh.pop %v852
        %v1029 = vtanh.pop %v903
        %v1030 = vtanh.pop %v905
        %v1031 = vtanh.pop %v956
        %v1032 = vtanh.pop %v958
        %v1033 = vtanh.pop %v1009
        %v1034 = vtanh.pop %v1011
        %v1035 = vtanh.pop %v854
        %v1036 = vtanh.pop %v856
        %v1037 = vtanh.pop %v907
        %v1038 = vtanh.pop %v909
        %v1039 = vtanh.pop %v960
        %v1040 = vtanh.pop %v962
        %v1041 = vtanh.pop %v1013
        %v1042 = vtanh.pop %v1015
        %v1043 = vtanh.pop %v860
        %v1044 = vtanh.pop %v862
        %v1045 = vtanh.pop %v913
        %v1046 = vtanh.pop %v915
        %v1047 = vtanh.pop %v966
        %v1048 = vtanh.pop %v968
        %v1049 = vtanh.pop %v1019
        %v1050 = vtanh.pop %v1021
        %v1051 = vtanh.pop %v864
        %v1052 = vtanh.pop %v866
        %v1053 = vtanh.pop %v917
        %v1054 = vtanh.pop %v919
        %v1055 = vtanh.pop %v970
        %v1056 = vtanh.pop %v972
        %v1057 = vtanh.pop %v1023
        %v1058 = vtanh.pop %v1025
        %1059 = vst [vmem:[%s326] sm:$0xff] %v1027
        %1060 = vst [vmem:[%s326 + $0x8] sm:$0xff] %v1028
        %1061 = vst [vmem:[%s326 + $0x10] sm:$0xff] %v1029
        %1062 = vst [vmem:[%s326 + $0x18] sm:$0xff] %v1030
        %1063 = vst [vmem:[%s326 + $0x20] sm:$0xff] %v1031
        %1064 = vst [vmem:[%s326 + $0x28] sm:$0xff] %v1032
        %1065 = vst [vmem:[%s326 + $0x30] sm:$0xff] %v1033
        %1066 = vst [vmem:[%s326 + $0x38] sm:$0xff] %v1034
        %1067 = vst [vmem:[%s326 + $0x40] sm:$0xff] %v1035
        %1068 = vst [vmem:[%s326 + $0x48] sm:$0xff] %v1036
        %1069 = vst [vmem:[%s326 + $0x50] sm:$0xff] %v1037
        %1070 = vst [vmem:[%s326 + $0x58] sm:$0xff] %v1038
        %1071 = vst [vmem:[%s326 + $0x60] sm:$0xff] %v1039
        %1072 = vst [vmem:[%s326 + $0x68] sm:$0xff] %v1040
        %1073 = vst [vmem:[%s326 + $0x70] sm:$0xff] %v1041
        %1074 = vst [vmem:[%s326 + $0x78] sm:$0xff] %v1042
        %1075 = vst [vmem:[%s326 + $0x80] sm:$0xff] %v1043
        %1076 = vst [vmem:[%s326 + $0x88] sm:$0xff] %v1044
        %1077 = vst [vmem:[%s326 + $0x90] sm:$0xff] %v1045
        %1078 = vst [vmem:[%s326 + $0x98] sm:$0xff] %v1046
        %1079 = vst [vmem:[%s326 + $0xa0] sm:$0xff] %v1047
        %1080 = vst [vmem:[%s326 + $0xa8] sm:$0xff] %v1048
        %1081 = vst [vmem:[%s326 + $0xb0] sm:$0xff] %v1049
        %1082 = vst [vmem:[%s326 + $0xb8] sm:$0xff] %v1050
        %1083 = vst [vmem:[%s326 + $0xc0] sm:$0xff] %v1051
        %1084 = vst [vmem:[%s326 + $0xc8] sm:$0xff] %v1052
        %1085 = vst [vmem:[%s326 + $0xd0] sm:$0xff] %v1053
        %1086 = vst [vmem:[%s326 + $0xd8] sm:$0xff] %v1054
        %1087 = vst [vmem:[%s326 + $0xe0] sm:$0xff] %v1055
        %1088 = vst [vmem:[%s326 + $0xe8] sm:$0xff] %v1056
        %1089 = vst [vmem:[%s326 + $0xf0] sm:$0xff] %v1057
        %1090 = vst [vmem:[%s326 + $0xf8] sm:$0xff] %v1058
        %s1091 = sand.u32 %s90, 1
        %s1092 = sand.u32 %s90, 1
        %s1093 = smul.addr %s1092, 256
        %s1094 = scalar_lea.vmem [#allocation3], %s1093
        // Predicated region
        $region56: #{generator_forward.9} parent=50 // pred_check
          %p1095 = pneg %p100
        $region57: #{generator_forward.9} parent=50 // pred_check_branch
          %1097 = sbr.rel (%p1095) target = $region59
        $region58: #{generator_forward.9} parent=50 // pred_region
          %s1098 = smul.u32 8, %s14
          %s1099 = smul.addr %s1098, 8
          %s1100 = scalar_lea.vmem %s3, %s1099
          // Predicated region
          $region60: #{generator_forward.9} parent=58 // pred_check
            _
          $region61: #{generator_forward.9} parent=58 // pred_check_branch
            %1102 = sbr.rel (0) target = $region63
          $region62: #{generator_forward.9} parent=58 // pred_region
            // Predicated region
            $region64: #{generator_forward.9} parent=62 // pred_check
              _
            $region65: #{generator_forward.9} parent=62 // pred_check_branch
              %1104 = sbr.rel (0) target = $region67
            $region66: #{generator_forward.9} parent=62 // pred_region
              loop: start=0, step=1, limit=1
              $region68: #{generator_forward.9} parent=66 // loop_pre_header
                _
              $region69: #{generator_forward.9} parent=66 // loop_header
                %s1106 = sphi 0, %s1110
                %p1107 = scmp.ge.s32.totalorder %s1106, 1
                %s1111 = sphi %s1094, %s1094
                %s1112 = sphi %s1100, %s1100
              $region70: #{generator_forward.9} parent=66 // loop_header_branch
                %1109 = sbr.rel (%p1107) target = $region74
              $region71: #{generator_forward.9} parent=66 // loop_body
                %v1113 = vld [vmem:[%s1111] sm:$0xff]
                %1114 = vst [vmem:[%s1112] sm:$0xff] %v1113
                %v1115 = vld [vmem:[%s1111 + $0x8] sm:$0xff]
                %1116 = vst [vmem:[%s1112 + $0x8] sm:$0xff] %v1115
                %v1117 = vld [vmem:[%s1111 + $0x10] sm:$0xff]
                %1118 = vst [vmem:[%s1112 + $0x10] sm:$0xff] %v1117
                %v1119 = vld [vmem:[%s1111 + $0x18] sm:$0xff]
                %1120 = vst [vmem:[%s1112 + $0x18] sm:$0xff] %v1119
                %v1121 = vld [vmem:[%s1111 + $0x20] sm:$0xff]
                %1122 = vst [vmem:[%s1112 + $0x20] sm:$0xff] %v1121
                %v1123 = vld [vmem:[%s1111 + $0x28] sm:$0xff]
                %1124 = vst [vmem:[%s1112 + $0x28] sm:$0xff] %v1123
                %v1125 = vld [vmem:[%s1111 + $0x30] sm:$0xff]
                %1126 = vst [vmem:[%s1112 + $0x30] sm:$0xff] %v1125
                %v1127 = vld [vmem:[%s1111 + $0x38] sm:$0xff]
                %1128 = vst [vmem:[%s1112 + $0x38] sm:$0xff] %v1127
                %v1129 = vld [vmem:[%s1111 + $0x40] sm:$0xff]
                %1130 = vst [vmem:[%s1112 + $0x80] sm:$0xff] %v1129
                %v1131 = vld [vmem:[%s1111 + $0x48] sm:$0xff]
                %1132 = vst [vmem:[%s1112 + $0x88] sm:$0xff] %v1131
                %v1133 = vld [vmem:[%s1111 + $0x50] sm:$0xff]
                %1134 = vst [vmem:[%s1112 + $0x90] sm:$0xff] %v1133
                %v1135 = vld [vmem:[%s1111 + $0x58] sm:$0xff]
                %1136 = vst [vmem:[%s1112 + $0x98] sm:$0xff] %v1135
                %v1137 = vld [vmem:[%s1111 + $0x60] sm:$0xff]
                %1138 = vst [vmem:[%s1112 + $0xa0] sm:$0xff] %v1137
                %v1139 = vld [vmem:[%s1111 + $0x68] sm:$0xff]
                %1140 = vst [vmem:[%s1112 + $0xa8] sm:$0xff] %v1139
                %v1141 = vld [vmem:[%s1111 + $0x70] sm:$0xff]
                %1142 = vst [vmem:[%s1112 + $0xb0] sm:$0xff] %v1141
                %v1143 = vld [vmem:[%s1111 + $0x78] sm:$0xff]
                %1144 = vst [vmem:[%s1112 + $0xb8] sm:$0xff] %v1143
                %v1145 = vld [vmem:[%s1111 + $0x80] sm:$0xff]
                %1146 = vst [vmem:[%s1112 + $0x100] sm:$0xff] %v1145
                %v1147 = vld [vmem:[%s1111 + $0x88] sm:$0xff]
                %1148 = vst [vmem:[%s1112 + $0x108] sm:$0xff] %v1147
                %v1149 = vld [vmem:[%s1111 + $0x90] sm:$0xff]
                %1150 = vst [vmem:[%s1112 + $0x110] sm:$0xff] %v1149
                %v1151 = vld [vmem:[%s1111 + $0x98] sm:$0xff]
                %1152 = vst [vmem:[%s1112 + $0x118] sm:$0xff] %v1151
                %v1153 = vld [vmem:[%s1111 + $0xa0] sm:$0xff]
                %1154 = vst [vmem:[%s1112 + $0x120] sm:$0xff] %v1153
                %v1155 = vld [vmem:[%s1111 + $0xa8] sm:$0xff]
                %1156 = vst [vmem:[%s1112 + $0x128] sm:$0xff] %v1155
                %v1157 = vld [vmem:[%s1111 + $0xb0] sm:$0xff]
                %1158 = vst [vmem:[%s1112 + $0x130] sm:$0xff] %v1157
                %v1159 = vld [vmem:[%s1111 + $0xb8] sm:$0xff]
                %1160 = vst [vmem:[%s1112 + $0x138] sm:$0xff] %v1159
                %v1161 = vld [vmem:[%s1111 + $0xc0] sm:$0xff]
                %1162 = vst [vmem:[%s1112 + $0x180] sm:$0xff] %v1161
                %v1163 = vld [vmem:[%s1111 + $0xc8] sm:$0xff]
                %1164 = vst [vmem:[%s1112 + $0x188] sm:$0xff] %v1163
                %v1165 = vld [vmem:[%s1111 + $0xd0] sm:$0xff]
                %1166 = vst [vmem:[%s1112 + $0x190] sm:$0xff] %v1165
                %v1167 = vld [vmem:[%s1111 + $0xd8] sm:$0xff]
                %1168 = vst [vmem:[%s1112 + $0x198] sm:$0xff] %v1167
                %v1169 = vld [vmem:[%s1111 + $0xe0] sm:$0xff]
                %1170 = vst [vmem:[%s1112 + $0x1a0] sm:$0xff] %v1169
                %v1171 = vld [vmem:[%s1111 + $0xe8] sm:$0xff]
                %1172 = vst [vmem:[%s1112 + $0x1a8] sm:$0xff] %v1171
                %v1173 = vld [vmem:[%s1111 + $0xf0] sm:$0xff]
                %1174 = vst [vmem:[%s1112 + $0x1b0] sm:$0xff] %v1173
                %v1175 = vld [vmem:[%s1111 + $0xf8] sm:$0xff]
                %1176 = vst [vmem:[%s1112 + $0x1b8] sm:$0xff] %v1175
              $region72: #{generator_forward.9} parent=66 // loop_footer
                %s1110 = sadd.s32 1, %s1106
              $region73: #{generator_forward.9} parent=66 // loop_footer_branch
                %1105 = sbr.rel target = $region69
              $region74: #{generator_forward.9} parent=66 // loop_exit
                _
            $region67: #{generator_forward.9} parent=62 // pred_fallthru
              _
            // Predicated region
            $region75: #{generator_forward.9} parent=62 // pred_check
              _
            $region76: #{generator_forward.9} parent=62 // pred_check_branch
              %1178 = sbr.rel target = $region78
            $region77: #{generator_forward.9} parent=62 // pred_region
              _
            $region78: #{generator_forward.9} parent=62 // pred_fallthru
              _
          $region63: #{generator_forward.9} parent=58 // pred_fallthru
            _
          %1179 = vnop
        $region59: #{generator_forward.9} parent=50 // pred_fallthru
          _
      $region51: #{generator_forward.9} parent=5 // pred_fallthru
        _
      %p1180 = scmp.le.s32.totalorder 2, %s9
      // Predicated region
      $region79: #{generator_forward.9} parent=5 // pred_check
        %p1181 = pneg %p1180
      $region80: #{generator_forward.9} parent=5 // pred_check_branch
        %1183 = sbr.rel (%p1181) target = $region82
      $region81: #{generator_forward.9} parent=5 // pred_region
        %s1184 = ssub.s32 %s9, 2
        // Predicated region
        $region83: #{generator_forward.9} parent=81 // pred_check
          %p1185 = pneg %p106
        $region84: #{generator_forward.9} parent=81 // pred_check_branch
          %1187 = sbr.rel (%p1185) target = $region86
        $region85: #{generator_forward.9} parent=81 // pred_region
          %s1188 = sand.u32 %s91, 1
          %s1189 = sand.u32 %s91, 1
          %s1190 = smul.addr %s1189, 256
          %s1191 = scalar_lea.vmem [#allocation3], %s1190
        $region86: #{generator_forward.9} parent=81 // pred_fallthru
          _
      $region82: #{generator_forward.9} parent=5 // pred_fallthru
        _
    $region6: #{generator_forward.9} parent=1 // loop_footer
      %s13 = sadd.s32 1, %s9
    $region7: #{generator_forward.9} parent=1 // loop_footer_branch
      %8 = sbr.rel target = $region3
    $region8: #{generator_forward.9} parent=1 // loop_exit
      _

</llo_original>
